<compile_context>
chip_gen: v7x
topology: tpu7x:2x2x1
jax: 0.10.0
libtpu: 0.0.40
codegen_flags: <defaults>
</compile_context>

<pallas_src>
import functools
import math

import jax
import jax.numpy as jnp
from jax.experimental import pallas as pl
from jax.experimental.pallas import tpu as pltpu

# ----------------------------- model config (small, synthetic) ---------------
VOCAB = 50
MAX_POS = 16
HIDDEN = 32
NUM_HEADS = 4
HEAD_DIM = HIDDEN // NUM_HEADS
INTERMEDIATE = 64
NUM_LAYERS = 2
LN_EPS = 1e-12

LAYER_PARAM_ORDER = [
    "wq", "bq", "wk", "bk", "wv", "bv", "wo", "bo",
    "ln1g", "ln1b", "w1", "b1", "w2", "b2", "ln2g", "ln2b",
]
MATMUL_WEIGHTS = {"wq", "wk", "wv", "wo", "w1", "w2"}   # stored as bf16


def _layernorm(x, gamma, beta):
    # fp32 statistics (LN_EPS = 1e-12 would be meaningless in bf16).
    mu = jnp.mean(x, axis=-1, keepdims=True)
    var = jnp.mean(jnp.square(x - mu), axis=-1, keepdims=True)
    return (x - mu) * jax.lax.rsqrt(var + LN_EPS) * gamma + beta


# ----------------------------- fused kernel -----------------------------------
def fused_cross_encoder_kernel(num_heads, head_dim, num_layers, bb, seq,
                               x_ref, mask_ref, emb_g_ref, emb_b_ref,
                               wq_ref, bq_ref, wk_ref, bk_ref, wv_ref, bv_ref,
                               wo_ref, bo_ref, ln1g_ref, ln1b_ref,
                               w1_ref, b1_ref, w2_ref, b2_ref,
                               ln2g_ref, ln2b_ref,
                               cls_w_ref, cls_b_ref, o_ref, ctx_ref):
    hidden = x_ref.shape[-1]
    n_tok = bb * seq
    scale = 1.0 / math.sqrt(head_dim)

    mask = mask_ref[...].astype(jnp.float32)                # (bb, 1, S) additive
    # Flatten (bb, S, H) -> (bb*S, H) once; projections / FFN / LN stay flat.
    h = x_ref[...].reshape(n_tok, hidden).astype(jnp.float32)
    h = _layernorm(h, emb_g_ref[...], emb_b_ref[...])       # embedding LayerNorm

    for l in range(num_layers):                             # static unrolled loop
        # One flat bf16 projection per Q/K/V for the whole batch (f32 accum).
        h_b = h.astype(jnp.bfloat16)
        q = jnp.dot(h_b, wq_ref[l], preferred_element_type=jnp.float32) + bq_ref[l]
        k = jnp.dot(h_b, wk_ref[l], preferred_element_type=jnp.float32) + bk_ref[l]
        v = jnp.dot(h_b, wv_ref[l], preferred_element_type=jnp.float32) + bv_ref[l]

        q3 = q.reshape(bb, seq, hidden).astype(jnp.bfloat16)
        k3 = k.reshape(bb, seq, hidden).astype(jnp.bfloat16)
        v3 = v.reshape(bb, seq, hidden).astype(jnp.bfloat16)

        # Multi-head attention: static per-head loop of 3-D (single-batch-dim)
        # einsums (4-D head-batched einsums need multi-batch-dim dot_general /
        # non-minor 4-D transposes that Mosaic does not lower reliably).
        for hh in range(num_heads):
            lo = hh * head_dim
            q_h = q3[:, :, lo:lo + head_dim]                # (bb, S, hd) bf16
            k_h = k3[:, :, lo:lo + head_dim]
            v_h = v3[:, :, lo:lo + head_dim]
            s = jnp.einsum("bqd,bkd->bqk", q_h, k_h,
                           preferred_element_type=jnp.float32) * scale + mask
            m = jnp.max(s, axis=-1, keepdims=True)          # fp32 softmax stats
            p = jnp.exp(s - m)
            denom = jnp.sum(p, axis=-1, keepdims=True)      # (bb, S, 1)
            ctx = jnp.einsum("bqk,bkd->bqd", p.astype(jnp.bfloat16), v_h,
                             preferred_element_type=jnp.float32)
            # Normalize AFTER the PV matmul; reciprocal goes to the EUP slot.
            ctx = ctx * pl.reciprocal(denom, approx=True)
            # Assemble head contexts into (n_tok, H) bf16 scratch for ONE Wo dot.
            ctx_ref[:, lo:lo + head_dim] = (
                ctx.reshape(n_tok, head_dim).astype(jnp.bfloat16))

        # Single fused output projection: one (n_tok,H)@(H,H) MXU push.
        attn = jnp.dot(ctx_ref[...], wo_ref[l],
                       preferred_element_type=jnp.float32) + bo_ref[l]

        h1 = _layernorm(h + attn, ln1g_ref[l], ln1b_ref[l])

        ff = jnp.dot(h1.astype(jnp.bfloat16), w1_ref[l],
                     preferred_element_type=jnp.float32) + b1_ref[l]
        # HF BERT/MiniLM uses exact (erf) GELU; tanh approximation kept for
        # robust Mosaic lowering (small numerical drift only).
        ff = jax.nn.gelu(ff, approximate=True)
        ff = jnp.dot(ff.astype(jnp.bfloat16), w2_ref[l],
                     preferred_element_type=jnp.float32) + b2_ref[l]

        h = _layernorm(h1 + ff, ln2g_ref[l], ln2b_ref[l])

    # Classifier on the CLS token: row 0 of every sequence (one strided slice).
    cls = h.reshape(bb, seq, hidden)[:, 0, :]               # (bb, H) fp32
    scores = jnp.dot(cls.astype(jnp.bfloat16), cls_w_ref[...],
                     preferred_element_type=jnp.float32) + cls_b_ref[...]
    o_ref[0] = scores                                        # block = (1, bb, 1)


# ----------------------------- wrapper -----------------------------------------
def _const_spec(arr, single_buffer):
    # Full-array block, same block index for every grid step (weights resident).
    idx = lambda i, nd=arr.ndim: (0,) * nd
    if single_buffer:
        return pl.BlockSpec(arr.shape, idx, pipeline_mode=pl.Buffered(1))
    return pl.BlockSpec(arr.shape, idx)


def cross_encoder_forward(params, input_ids, attention_mask, *, batch_block=None):
    B, S = input_ids.shape
    H = HIDDEN
    if batch_block is None:
        # >= 2 grid steps so the pipeline overlaps DMA/compute and both v7x TCs
        # get work; harmless (sequential loop) on single-TC v5e/v6e.
        batch_block = B // 2 if B >= 2 else B
    assert B % batch_block == 0
    num_blocks = B // batch_block

    # Embedding gather + position/type embeddings stay in plain JAX (glue);
    # the streamed activations and mask go to HBM as bf16 (half the DMA bytes).
    x = (params["word_emb"][input_ids]
         + params["pos_emb"][:S][None, :, :]
         + params["type_emb"][0][None, None, :]).astype(jnp.bfloat16)

    # BERT-style extended additive attention mask: [B, 1, S].
    mask_add = ((1.0 - attention_mask.astype(jnp.float32))[:, None, :]
                * (-1e9)).astype(jnp.bfloat16)

    # Stack per-layer weights on a leading axis (static layer loop in-kernel);
    # matmul weights in bf16, LayerNorm params and biases in fp32.
    stacked = []
    for name in LAYER_PARAM_ORDER:
        w = jnp.stack([lp[name] for lp in params["layers"]], axis=0)
        stacked.append(w.astype(jnp.bfloat16) if name in MATMUL_WEIGHTS else w)
    weight_args = [params["emb_ln_g"], params["emb_ln_b"],
                   *stacked,
                   params["cls_w"].astype(jnp.bfloat16), params["cls_b"]]

    # VMEM budget: single-buffered weights + double-buffered (x, mask, out)
    # blocks + fp32 activations / attention intermediates, with 4x headroom.
    n_tok = batch_block * S
    weight_bytes = sum(int(w.size) * w.dtype.itemsize for w in weight_args)
    io_bytes = 2 * (batch_block * S * H * 2 + batch_block * S * 2 + batch_block * 4)
    act_bytes = (4 * n_tok * (8 * H + 2 * INTERMEDIATE)
                 + 4 * 3 * batch_block * S * S + 2 * n_tok * H)
    vmem_limit = int(min(64 * 2 ** 20,
                         max(16 * 2 ** 20, 4 * (weight_bytes + io_bytes + act_bytes))))

    kernel = functools.partial(fused_cross_encoder_kernel,
                               NUM_HEADS, HEAD_DIM, NUM_LAYERS, batch_block, S)

    def run(single_buffer_weights):
        in_specs = [pl.BlockSpec((batch_block, S, H), lambda i: (i, 0, 0)),
                    pl.BlockSpec((batch_block, 1, S), lambda i: (i, 0, 0))]
        in_specs += [_const_spec(w, single_buffer_weights) for w in weight_args]
        out = pl.pallas_call(
            kernel,
            out_shape=jax.ShapeDtypeStruct((num_blocks, batch_block, 1), jnp.float32),
            grid=(num_blocks,),
            in_specs=in_specs,
            out_specs=pl.BlockSpec((1, batch_block, 1), lambda i: (i, 0, 0)),
            scratch_shapes=[pltpu.VMEM((n_tok, H), jnp.bfloat16)],
            compiler_params=pltpu.CompilerParams(
                dimension_semantics=("parallel",),
                vmem_limit_bytes=vmem_limit),
        )(x, mask_add, *weight_args)
        return jax.block_until_ready(out)

    try:
        out = run(True)
    except Exception:
        # pipeline_mode / pl.Buffered(1) not supported on this jax version:
        # rebuild with default (double-buffered) weight specs.
        out = run(False)
    return out.reshape(B, 1)


# ----------------------------- parameters -------------------------------------
def init_params(key):
    def normal(key, shape):
        return 0.02 * jax.random.normal(key, shape, dtype=jnp.float32)

    keys = jax.random.split(key, 8 + NUM_LAYERS)
    params = {
        "word_emb": normal(keys[0], (VOCAB, HIDDEN)),
        "pos_emb": normal(keys[1], (MAX_POS, HIDDEN)),
        "type_emb": normal(keys[2], (2, HIDDEN)),
        "emb_ln_g": jnp.ones((1, HIDDEN), jnp.float32),
        "emb_ln_b": jnp.zeros((1, HIDDEN), jnp.float32),
        "cls_w": normal(keys[3], (HIDDEN, 1)),
        "cls_b": jnp.zeros((1, 1), jnp.float32),
        "layers": [],
    }
    for l in range(NUM_LAYERS):
        lk = jax.random.split(keys[8 + l], 6)
        params["layers"].append({
            "wq": normal(lk[0], (HIDDEN, HIDDEN)),
            "bq": jnp.zeros((1, HIDDEN), jnp.float32),
            "wk": normal(lk[1], (HIDDEN, HIDDEN)),
            "bk": jnp.zeros((1, HIDDEN), jnp.float32),
            "wv": normal(lk[2], (HIDDEN, HIDDEN)),
            "bv": jnp.zeros((1, HIDDEN), jnp.float32),
            "wo": normal(lk[3], (HIDDEN, HIDDEN)),
            "bo": jnp.zeros((1, HIDDEN), jnp.float32),
            "ln1g": jnp.ones((1, HIDDEN), jnp.float32),
            "ln1b": jnp.zeros((1, HIDDEN), jnp.float32),
            "w1": normal(lk[4], (HIDDEN, INTERMEDIATE)),
            "b1": jnp.zeros((1, INTERMEDIATE), jnp.float32),
            "w2": normal(lk[5], (INTERMEDIATE, HIDDEN)),
            "b2": jnp.zeros((1, HIDDEN), jnp.float32),
            "ln2g": jnp.ones((1, HIDDEN), jnp.float32),
            "ln2b": jnp.zeros((1, HIDDEN), jnp.float32),
        })
    return params


# TODO(synk): pretrained-checkpoint loading (AutoModel.from_pretrained) has no
# Pallas equivalent; weights are synthesized deterministically above.

if __name__ == "__main__":
    key = jax.random.PRNGKey(0)
    k_params, k_ids = jax.random.split(key)
    params = init_params(k_params)

    B, S = 2, 8
    input_ids = jax.random.randint(k_ids, (B, S), 0, VOCAB, dtype=jnp.int32)
    attention_mask = jnp.array([[1, 1, 1, 1, 1, 1, 1, 1],
                                [1, 1, 1, 1, 1, 1, 0, 0]], dtype=jnp.int32)

    scores = cross_encoder_forward(params, input_ids, attention_mask)
    scores = jax.block_until_ready(scores)
    assert scores.shape == (B, 1) and scores.dtype == jnp.float32
    assert bool(jnp.all(jnp.isfinite(scores)))
    print("KERNEL_OK")
</pallas_src>

<mosaic_0001>
module attributes {stable_mosaic.version = 11 : i64} {
  func.func @fused_cross_encoder_kernel(%arg0: i32, %arg1: memref<1x8x32xbf16, #tpu.memory_space<vmem>>, %arg2: memref<1x1x8xbf16, #tpu.memory_space<vmem>>, %arg3: memref<1x32xf32, #tpu.memory_space<vmem>>, %arg4: memref<1x32xf32, #tpu.memory_space<vmem>>, %arg5: memref<2x32x32xbf16, #tpu.memory_space<vmem>>, %arg6: memref<2x1x32xf32, #tpu.memory_space<vmem>>, %arg7: memref<2x32x32xbf16, #tpu.memory_space<vmem>>, %arg8: memref<2x1x32xf32, #tpu.memory_space<vmem>>, %arg9: memref<2x32x32xbf16, #tpu.memory_space<vmem>>, %arg10: memref<2x1x32xf32, #tpu.memory_space<vmem>>, %arg11: memref<2x32x32xbf16, #tpu.memory_space<vmem>>, %arg12: memref<2x1x32xf32, #tpu.memory_space<vmem>>, %arg13: memref<2x1x32xf32, #tpu.memory_space<vmem>>, %arg14: memref<2x1x32xf32, #tpu.memory_space<vmem>>, %arg15: memref<2x32x64xbf16, #tpu.memory_space<vmem>>, %arg16: memref<2x1x64xf32, #tpu.memory_space<vmem>>, %arg17: memref<2x64x32xbf16, #tpu.memory_space<vmem>>, %arg18: memref<2x1x32xf32, #tpu.memory_space<vmem>>, %arg19: memref<2x1x32xf32, #tpu.memory_space<vmem>>, %arg20: memref<2x1x32xf32, #tpu.memory_space<vmem>>, %arg21: memref<32x1xbf16, #tpu.memory_space<vmem>>, %arg22: memref<1x1xf32, #tpu.memory_space<vmem>>, %arg23: memref<1x1x1xf32, #tpu.memory_space<vmem>>, %arg24: memref<8x32xbf16, #tpu.memory_space<vmem>>) attributes {dimension_semantics = [#tpu.dimension_semantics<parallel>], iteration_bounds = array<i64: 2>, scalar_prefetch = 0 : i64, scratch_operands = 1 : i64, tpu.core_type = #tpu.core_type<tc>, window_params = [{transform_indices = @transform_0, window_bounds = array<i64: 1, 8, 32>}, {transform_indices = @transform_1, window_bounds = array<i64: 1, 1, 8>}, {pipeline_mode = #tpu.pipeline_mode<synchronous>, transform_indices = @transform_2, window_bounds = array<i64: 1, 32>}, {pipeline_mode = #tpu.pipeline_mode<synchronous>, transform_indices = @transform_3, window_bounds = array<i64: 1, 32>}, {pipeline_mode = #tpu.pipeline_mode<synchronous>, transform_indices = @transform_4, window_bounds = array<i64: 2, 32, 32>}, {pipeline_mode = #tpu.pipeline_mode<synchronous>, transform_indices = @transform_5, window_bounds = array<i64: 2, 1, 32>}, {pipeline_mode = #tpu.pipeline_mode<synchronous>, transform_indices = @transform_6, window_bounds = array<i64: 2, 32, 32>}, {pipeline_mode = #tpu.pipeline_mode<synchronous>, transform_indices = @transform_7, window_bounds = array<i64: 2, 1, 32>}, {pipeline_mode = #tpu.pipeline_mode<synchronous>, transform_indices = @transform_8, window_bounds = array<i64: 2, 32, 32>}, {pipeline_mode = #tpu.pipeline_mode<synchronous>, transform_indices = @transform_9, window_bounds = array<i64: 2, 1, 32>}, {pipeline_mode = #tpu.pipeline_mode<synchronous>, transform_indices = @transform_10, window_bounds = array<i64: 2, 32, 32>}, {pipeline_mode = #tpu.pipeline_mode<synchronous>, transform_indices = @transform_11, window_bounds = array<i64: 2, 1, 32>}, {pipeline_mode = #tpu.pipeline_mode<synchronous>, transform_indices = @transform_12, window_bounds = array<i64: 2, 1, 32>}, {pipeline_mode = #tpu.pipeline_mode<synchronous>, transform_indices = @transform_13, window_bounds = array<i64: 2, 1, 32>}, {pipeline_mode = #tpu.pipeline_mode<synchronous>, transform_indices = @transform_14, window_bounds = array<i64: 2, 32, 64>}, {pipeline_mode = #tpu.pipeline_mode<synchronous>, transform_indices = @transform_15, window_bounds = array<i64: 2, 1, 64>}, {pipeline_mode = #tpu.pipeline_mode<synchronous>, transform_indices = @transform_16, window_bounds = array<i64: 2, 64, 32>}, {pipeline_mode = #tpu.pipeline_mode<synchronous>, transform_indices = @transform_17, window_bounds = array<i64: 2, 1, 32>}, {pipeline_mode = #tpu.pipeline_mode<synchronous>, transform_indices = @transform_18, window_bounds = array<i64: 2, 1, 32>}, {pipeline_mode = #tpu.pipeline_mode<synchronous>, transform_indices = @transform_19, window_bounds = array<i64: 2, 1, 32>}, {pipeline_mode = #tpu.pipeline_mode<synchronous>, transform_indices = @transform_20, window_bounds = array<i64: 32, 1>}, {pipeline_mode = #tpu.pipeline_mode<synchronous>, transform_indices = @transform_21, window_bounds = array<i64: 1, 1>}, {transform_indices = @transform_22, window_bounds = array<i64: 1, 1, 1>}]} {
    %c0 = arith.constant 0 : index
    %c0_0 = arith.constant 0 : index
    %c0_1 = arith.constant 0 : index
    %0 = vector.load %arg2[%c0, %c0_0, %c0_1] : memref<1x1x8xbf16, #tpu.memory_space<vmem>>, vector<1x1x8xbf16>
    %1 = arith.extf %0 : vector<1x1x8xbf16> to vector<1x1x8xf32>
    %c0_2 = arith.constant 0 : index
    %c0_3 = arith.constant 0 : index
    %c0_4 = arith.constant 0 : index
    %2 = vector.load %arg1[%c0_2, %c0_3, %c0_4] : memref<1x8x32xbf16, #tpu.memory_space<vmem>>, vector<1x8x32xbf16>
    %3 = vector.shape_cast %2 : vector<1x8x32xbf16> to vector<8x32xbf16>
    %4 = arith.extf %3 : vector<8x32xbf16> to vector<8x32xf32>
    %c0_5 = arith.constant 0 : index
    %c0_6 = arith.constant 0 : index
    %5 = vector.load %arg3[%c0_5, %c0_6] : memref<1x32xf32, #tpu.memory_space<vmem>>, vector<1x32xf32>
    %c0_7 = arith.constant 0 : index
    %c0_8 = arith.constant 0 : index
    %6 = vector.load %arg4[%c0_7, %c0_8] : memref<1x32xf32, #tpu.memory_space<vmem>>, vector<1x32xf32>
    %cst = arith.constant dense<0.000000e+00> : vector<8xf32>
    %7 = vector.multi_reduction <add>, %4, %cst [1] : vector<8x32xf32> to vector<8xf32>
    %8 = vector.shape_cast %7 : vector<8xf32> to vector<8x1xf32>
    %cst_9 = arith.constant 3.200000e+01 : f32
    %9 = vector.broadcast %cst_9 : f32 to vector<8x1xf32>
    %10 = arith.divf %8, %9 : vector<8x1xf32>
    %11 = vector.broadcast %10 : vector<8x1xf32> to vector<8x32xf32>
    %12 = arith.subf %4, %11 : vector<8x32xf32>
    %13 = arith.mulf %12, %12 : vector<8x32xf32>
    %cst_10 = arith.constant dense<0.000000e+00> : vector<8xf32>
    %14 = vector.multi_reduction <add>, %13, %cst_10 [1] : vector<8x32xf32> to vector<8xf32>
    %15 = vector.shape_cast %14 : vector<8xf32> to vector<8x1xf32>
    %cst_11 = arith.constant 3.200000e+01 : f32
    %16 = vector.broadcast %cst_11 : f32 to vector<8x1xf32>
    %17 = arith.divf %15, %16 : vector<8x1xf32>
    %18 = vector.broadcast %10 : vector<8x1xf32> to vector<8x32xf32>
    %19 = arith.subf %4, %18 : vector<8x32xf32>
    %cst_12 = arith.constant 9.99999996E-13 : f32
    %20 = vector.broadcast %cst_12 : f32 to vector<8x1xf32>
    %21 = arith.addf %17, %20 : vector<8x1xf32>
    %22 = math.rsqrt %21 : vector<8x1xf32>
    %23 = vector.broadcast %22 : vector<8x1xf32> to vector<8x32xf32>
    %24 = arith.mulf %19, %23 : vector<8x32xf32>
    %25 = vector.broadcast %5 : vector<1x32xf32> to vector<8x32xf32>
    %26 = arith.mulf %24, %25 : vector<8x32xf32>
    %27 = vector.broadcast %6 : vector<1x32xf32> to vector<8x32xf32>
    %28 = arith.addf %26, %27 : vector<8x32xf32>
    %29 = arith.truncf %28 : vector<8x32xf32> to vector<8x32xbf16>
    %c0_13 = arith.constant 0 : index
    %c0_14 = arith.constant 0 : index
    %c0_15 = arith.constant 0 : index
    %30 = vector.load %arg5[%c0_13, %c0_14, %c0_15] : memref<2x32x32xbf16, #tpu.memory_space<vmem>>, vector<1x32x32xbf16>
    %31 = vector.shape_cast %30 : vector<1x32x32xbf16> to vector<32x32xbf16>
    %cst_16 = arith.constant dense<0.000000e+00> : vector<8x32xf32>
    %32 = tpu.matmul %29, %31, %cst_16 {dimension_numbers = #tpu.dot_dimension_numbers<[1], [0], [0], [1], [0, 0, 1, 1], [], []>} : vector<8x32xbf16>, vector<32x32xbf16>, vector<8x32xf32> -> vector<8x32xf32>
    %c0_17 = arith.constant 0 : index
    %c0_18 = arith.constant 0 : index
    %c0_19 = arith.constant 0 : index
    %33 = vector.load %arg6[%c0_17, %c0_18, %c0_19] : memref<2x1x32xf32, #tpu.memory_space<vmem>>, vector<1x1x32xf32>
    %34 = vector.shape_cast %33 : vector<1x1x32xf32> to vector<1x32xf32>
    %35 = vector.broadcast %34 : vector<1x32xf32> to vector<8x32xf32>
    %36 = arith.addf %32, %35 : vector<8x32xf32>
    %c0_20 = arith.constant 0 : index
    %c0_21 = arith.constant 0 : index
    %c0_22 = arith.constant 0 : index
    %37 = vector.load %arg7[%c0_20, %c0_21, %c0_22] : memref<2x32x32xbf16, #tpu.memory_space<vmem>>, vector<1x32x32xbf16>
    %38 = vector.shape_cast %37 : vector<1x32x32xbf16> to vector<32x32xbf16>
    %cst_23 = arith.constant dense<0.000000e+00> : vector<8x32xf32>
    %39 = tpu.matmul %29, %38, %cst_23 {dimension_numbers = #tpu.dot_dimension_numbers<[1], [0], [0], [1], [0, 0, 1, 1], [], []>} : vector<8x32xbf16>, vector<32x32xbf16>, vector<8x32xf32> -> vector<8x32xf32>
    %c0_24 = arith.constant 0 : index
    %c0_25 = arith.constant 0 : index
    %c0_26 = arith.constant 0 : index
    %40 = vector.load %arg8[%c0_24, %c0_25, %c0_26] : memref<2x1x32xf32, #tpu.memory_space<vmem>>, vector<1x1x32xf32>
    %41 = vector.shape_cast %40 : vector<1x1x32xf32> to vector<1x32xf32>
    %42 = vector.broadcast %41 : vector<1x32xf32> to vector<8x32xf32>
    %43 = arith.addf %39, %42 : vector<8x32xf32>
    %c0_27 = arith.constant 0 : index
    %c0_28 = arith.constant 0 : index
    %c0_29 = arith.constant 0 : index
    %44 = vector.load %arg9[%c0_27, %c0_28, %c0_29] : memref<2x32x32xbf16, #tpu.memory_space<vmem>>, vector<1x32x32xbf16>
    %45 = vector.shape_cast %44 : vector<1x32x32xbf16> to vector<32x32xbf16>
    %cst_30 = arith.constant dense<0.000000e+00> : vector<8x32xf32>
    %46 = tpu.matmul %29, %45, %cst_30 {dimension_numbers = #tpu.dot_dimension_numbers<[1], [0], [0], [1], [0, 0, 1, 1], [], []>} : vector<8x32xbf16>, vector<32x32xbf16>, vector<8x32xf32> -> vector<8x32xf32>
    %c0_31 = arith.constant 0 : index
    %c0_32 = arith.constant 0 : index
    %c0_33 = arith.constant 0 : index
    %47 = vector.load %arg10[%c0_31, %c0_32, %c0_33] : memref<2x1x32xf32, #tpu.memory_space<vmem>>, vector<1x1x32xf32>
    %48 = vector.shape_cast %47 : vector<1x1x32xf32> to vector<1x32xf32>
    %49 = vector.broadcast %48 : vector<1x32xf32> to vector<8x32xf32>
    %50 = arith.addf %46, %49 : vector<8x32xf32>
    %51 = vector.shape_cast %36 : vector<8x32xf32> to vector<1x8x32xf32>
    %52 = arith.truncf %51 : vector<1x8x32xf32> to vector<1x8x32xbf16>
    %53 = vector.shape_cast %43 : vector<8x32xf32> to vector<1x8x32xf32>
    %54 = arith.truncf %53 : vector<1x8x32xf32> to vector<1x8x32xbf16>
    %55 = vector.shape_cast %50 : vector<8x32xf32> to vector<1x8x32xf32>
    %56 = arith.truncf %55 : vector<1x8x32xf32> to vector<1x8x32xbf16>
    %57 = vector.extract_strided_slice %52 {offsets = [0, 0, 0], sizes = [1, 8, 8], strides = [1, 1, 1]} : vector<1x8x32xbf16> to vector<1x8x8xbf16>
    %58 = vector.extract_strided_slice %54 {offsets = [0, 0, 0], sizes = [1, 8, 8], strides = [1, 1, 1]} : vector<1x8x32xbf16> to vector<1x8x8xbf16>
    %59 = vector.extract_strided_slice %56 {offsets = [0, 0, 0], sizes = [1, 8, 8], strides = [1, 1, 1]} : vector<1x8x32xbf16> to vector<1x8x8xbf16>
    "tpu.trace_start"() <{level = 10 : i32, message = "bqd,bkd->bqk"}> : () -> ()
    %cst_34 = arith.constant dense<0.000000e+00> : vector<1x8x8xf32>
    %60 = tpu.matmul %57, %58, %cst_34 {dimension_numbers = #tpu.dot_dimension_numbers<[2], [2], [1], [1], [0, 0, 0, 1, 1, 1], [0], [0]>} : vector<1x8x8xbf16>, vector<1x8x8xbf16>, vector<1x8x8xf32> -> vector<1x8x8xf32>
    "tpu.trace_stop"() : () -> ()
    %cst_35 = arith.constant 0.353553385 : f32
    %61 = vector.broadcast %cst_35 : f32 to vector<1x8x8xf32>
    %62 = arith.mulf %60, %61 : vector<1x8x8xf32>
    %63 = vector.broadcast %1 : vector<1x1x8xf32> to vector<1x8x8xf32>
    %64 = arith.addf %62, %63 : vector<1x8x8xf32>
    %cst_36 = arith.constant dense<0xFF800000> : vector<1x8xf32>
    %65 = vector.multi_reduction <maximumf>, %64, %cst_36 [2] : vector<1x8x8xf32> to vector<1x8xf32>
    %66 = vector.shape_cast %65 : vector<1x8xf32> to vector<1x8x1xf32>
    %67 = vector.broadcast %66 : vector<1x8x1xf32> to vector<1x8x8xf32>
    %68 = arith.subf %64, %67 : vector<1x8x8xf32>
    %69 = math.exp %68 : vector<1x8x8xf32>
    %cst_37 = arith.constant dense<0.000000e+00> : vector<1x8xf32>
    %70 = vector.multi_reduction <add>, %69, %cst_37 [2] : vector<1x8x8xf32> to vector<1x8xf32>
    %71 = vector.shape_cast %70 : vector<1x8xf32> to vector<1x8x1xf32>
    %72 = arith.truncf %69 : vector<1x8x8xf32> to vector<1x8x8xbf16>
    "tpu.trace_start"() <{level = 10 : i32, message = "bqk,bkd->bqd"}> : () -> ()
    %cst_38 = arith.constant dense<0.000000e+00> : vector<1x8x8xf32>
    %73 = tpu.matmul %72, %59, %cst_38 {dimension_numbers = #tpu.dot_dimension_numbers<[2], [1], [1], [2], [0, 0, 0, 1, 1, 2], [0], [0]>} : vector<1x8x8xbf16>, vector<1x8x8xbf16>, vector<1x8x8xf32> -> vector<1x8x8xf32>
    "tpu.trace_stop"() : () -> ()
    %74 = tpu.reciprocal %71 {approx = true} : vector<1x8x1xf32> -> vector<1x8x1xf32>
    %75 = vector.broadcast %74 : vector<1x8x1xf32> to vector<1x8x8xf32>
    %76 = arith.mulf %73, %75 : vector<1x8x8xf32>
    %77 = vector.shape_cast %76 : vector<1x8x8xf32> to vector<8x8xf32>
    %78 = arith.truncf %77 : vector<8x8xf32> to vector<8x8xbf16>
    %c0_39 = arith.constant 0 : index
    %c0_40 = arith.constant 0 : index
    %79 = vector.load %arg24[%c0_39, %c0_40] : memref<8x32xbf16, #tpu.memory_space<vmem>>, vector<8x8xbf16>
    tpu.vector_store %arg24[%c0_39, %c0_40], %78 {strides = array<i32>} : memref<8x32xbf16, #tpu.memory_space<vmem>>, vector<8x8xbf16>,
    %80 = vector.extract_strided_slice %52 {offsets = [0, 0, 8], sizes = [1, 8, 8], strides = [1, 1, 1]} : vector<1x8x32xbf16> to vector<1x8x8xbf16>
    %81 = vector.extract_strided_slice %54 {offsets = [0, 0, 8], sizes = [1, 8, 8], strides = [1, 1, 1]} : vector<1x8x32xbf16> to vector<1x8x8xbf16>
    %82 = vector.extract_strided_slice %56 {offsets = [0, 0, 8], sizes = [1, 8, 8], strides = [1, 1, 1]} : vector<1x8x32xbf16> to vector<1x8x8xbf16>
    "tpu.trace_start"() <{level = 10 : i32, message = "bqd,bkd->bqk"}> : () -> ()
    %cst_41 = arith.constant dense<0.000000e+00> : vector<1x8x8xf32>
    %83 = tpu.matmul %80, %81, %cst_41 {dimension_numbers = #tpu.dot_dimension_numbers<[2], [2], [1], [1], [0, 0, 0, 1, 1, 1], [0], [0]>} : vector<1x8x8xbf16>, vector<1x8x8xbf16>, vector<1x8x8xf32> -> vector<1x8x8xf32>
    "tpu.trace_stop"() : () -> ()
    %cst_42 = arith.constant 0.353553385 : f32
    %84 = vector.broadcast %cst_42 : f32 to vector<1x8x8xf32>
    %85 = arith.mulf %83, %84 : vector<1x8x8xf32>
    %86 = vector.broadcast %1 : vector<1x1x8xf32> to vector<1x8x8xf32>
    %87 = arith.addf %85, %86 : vector<1x8x8xf32>
    %cst_43 = arith.constant dense<0xFF800000> : vector<1x8xf32>
    %88 = vector.multi_reduction <maximumf>, %87, %cst_43 [2] : vector<1x8x8xf32> to vector<1x8xf32>
    %89 = vector.shape_cast %88 : vector<1x8xf32> to vector<1x8x1xf32>
    %90 = vector.broadcast %89 : vector<1x8x1xf32> to vector<1x8x8xf32>
    %91 = arith.subf %87, %90 : vector<1x8x8xf32>
    %92 = math.exp %91 : vector<1x8x8xf32>
    %cst_44 = arith.constant dense<0.000000e+00> : vector<1x8xf32>
    %93 = vector.multi_reduction <add>, %92, %cst_44 [2] : vector<1x8x8xf32> to vector<1x8xf32>
    %94 = vector.shape_cast %93 : vector<1x8xf32> to vector<1x8x1xf32>
    %95 = arith.truncf %92 : vector<1x8x8xf32> to vector<1x8x8xbf16>
    "tpu.trace_start"() <{level = 10 : i32, message = "bqk,bkd->bqd"}> : () -> ()
    %cst_45 = arith.constant dense<0.000000e+00> : vector<1x8x8xf32>
    %96 = tpu.matmul %95, %82, %cst_45 {dimension_numbers = #tpu.dot_dimension_numbers<[2], [1], [1], [2], [0, 0, 0, 1, 1, 2], [0], [0]>} : vector<1x8x8xbf16>, vector<1x8x8xbf16>, vector<1x8x8xf32> -> vector<1x8x8xf32>
    "tpu.trace_stop"() : () -> ()
    %97 = tpu.reciprocal %94 {approx = true} : vector<1x8x1xf32> -> vector<1x8x1xf32>
    %98 = vector.broadcast %97 : vector<1x8x1xf32> to vector<1x8x8xf32>
    %99 = arith.mulf %96, %98 : vector<1x8x8xf32>
    %100 = vector.shape_cast %99 : vector<1x8x8xf32> to vector<8x8xf32>
    %101 = arith.truncf %100 : vector<8x8xf32> to vector<8x8xbf16>
    %c0_46 = arith.constant 0 : index
    %c8 = arith.constant 8 : index
    %102 = vector.load %arg24[%c0_46, %c8] : memref<8x32xbf16, #tpu.memory_space<vmem>>, vector<8x8xbf16>
    tpu.vector_store %arg24[%c0_46, %c8], %101 {strides = array<i32>} : memref<8x32xbf16, #tpu.memory_space<vmem>>, vector<8x8xbf16>,
    %103 = vector.extract_strided_slice %52 {offsets = [0, 0, 16], sizes = [1, 8, 8], strides = [1, 1, 1]} : vector<1x8x32xbf16> to vector<1x8x8xbf16>
    %104 = vector.extract_strided_slice %54 {offsets = [0, 0, 16], sizes = [1, 8, 8], strides = [1, 1, 1]} : vector<1x8x32xbf16> to vector<1x8x8xbf16>
    %105 = vector.extract_strided_slice %56 {offsets = [0, 0, 16], sizes = [1, 8, 8], strides = [1, 1, 1]} : vector<1x8x32xbf16> to vector<1x8x8xbf16>
    "tpu.trace_start"() <{level = 10 : i32, message = "bqd,bkd->bqk"}> : () -> ()
    %cst_47 = arith.constant dense<0.000000e+00> : vector<1x8x8xf32>
    %106 = tpu.matmul %103, %104, %cst_47 {dimension_numbers = #tpu.dot_dimension_numbers<[2], [2], [1], [1], [0, 0, 0, 1, 1, 1], [0], [0]>} : vector<1x8x8xbf16>, vector<1x8x8xbf16>, vector<1x8x8xf32> -> vector<1x8x8xf32>
    "tpu.trace_stop"() : () -> ()
    %cst_48 = arith.constant 0.353553385 : f32
    %107 = vector.broadcast %cst_48 : f32 to vector<1x8x8xf32>
    %108 = arith.mulf %106, %107 : vector<1x8x8xf32>
    %109 = vector.broadcast %1 : vector<1x1x8xf32> to vector<1x8x8xf32>
    %110 = arith.addf %108, %109 : vector<1x8x8xf32>
    %cst_49 = arith.constant dense<0xFF800000> : vector<1x8xf32>
    %111 = vector.multi_reduction <maximumf>, %110, %cst_49 [2] : vector<1x8x8xf32> to vector<1x8xf32>
    %112 = vector.shape_cast %111 : vector<1x8xf32> to vector<1x8x1xf32>
    %113 = vector.broadcast %112 : vector<1x8x1xf32> to vector<1x8x8xf32>
    %114 = arith.subf %110, %113 : vector<1x8x8xf32>
    %115 = math.exp %114 : vector<1x8x8xf32>
    %cst_50 = arith.constant dense<0.000000e+00> : vector<1x8xf32>
    %116 = vector.multi_reduction <add>, %115, %cst_50 [2] : vector<1x8x8xf32> to vector<1x8xf32>
    %117 = vector.shape_cast %116 : vector<1x8xf32> to vector<1x8x1xf32>
    %118 = arith.truncf %115 : vector<1x8x8xf32> to vector<1x8x8xbf16>
    "tpu.trace_start"() <{level = 10 : i32, message = "bqk,bkd->bqd"}> : () -> ()
    %cst_51 = arith.constant dense<0.000000e+00> : vector<1x8x8xf32>
    %119 = tpu.matmul %118, %105, %cst_51 {dimension_numbers = #tpu.dot_dimension_numbers<[2], [1], [1], [2], [0, 0, 0, 1, 1, 2], [0], [0]>} : vector<1x8x8xbf16>, vector<1x8x8xbf16>, vector<1x8x8xf32> -> vector<1x8x8xf32>
    "tpu.trace_stop"() : () -> ()
    %120 = tpu.reciprocal %117 {approx = true} : vector<1x8x1xf32> -> vector<1x8x1xf32>
    %121 = vector.broadcast %120 : vector<1x8x1xf32> to vector<1x8x8xf32>
    %122 = arith.mulf %119, %121 : vector<1x8x8xf32>
    %123 = vector.shape_cast %122 : vector<1x8x8xf32> to vector<8x8xf32>
    %124 = arith.truncf %123 : vector<8x8xf32> to vector<8x8xbf16>
    %c0_52 = arith.constant 0 : index
    %c16 = arith.constant 16 : index
    %125 = vector.load %arg24[%c0_52, %c16] : memref<8x32xbf16, #tpu.memory_space<vmem>>, vector<8x8xbf16>
    tpu.vector_store %arg24[%c0_52, %c16], %124 {strides = array<i32>} : memref<8x32xbf16, #tpu.memory_space<vmem>>, vector<8x8xbf16>,
    %126 = vector.extract_strided_slice %52 {offsets = [0, 0, 24], sizes = [1, 8, 8], strides = [1, 1, 1]} : vector<1x8x32xbf16> to vector<1x8x8xbf16>
    %127 = vector.extract_strided_slice %54 {offsets = [0, 0, 24], sizes = [1, 8, 8], strides = [1, 1, 1]} : vector<1x8x32xbf16> to vector<1x8x8xbf16>
    %128 = vector.extract_strided_slice %56 {offsets = [0, 0, 24], sizes = [1, 8, 8], strides = [1, 1, 1]} : vector<1x8x32xbf16> to vector<1x8x8xbf16>
    "tpu.trace_start"() <{level = 10 : i32, message = "bqd,bkd->bqk"}> : () -> ()
    %cst_53 = arith.constant dense<0.000000e+00> : vector<1x8x8xf32>
    %129 = tpu.matmul %126, %127, %cst_53 {dimension_numbers = #tpu.dot_dimension_numbers<[2], [2], [1], [1], [0, 0, 0, 1, 1, 1], [0], [0]>} : vector<1x8x8xbf16>, vector<1x8x8xbf16>, vector<1x8x8xf32> -> vector<1x8x8xf32>
    "tpu.trace_stop"() : () -> ()
    %cst_54 = arith.constant 0.353553385 : f32
    %130 = vector.broadcast %cst_54 : f32 to vector<1x8x8xf32>
    %131 = arith.mulf %129, %130 : vector<1x8x8xf32>
    %132 = vector.broadcast %1 : vector<1x1x8xf32> to vector<1x8x8xf32>
    %133 = arith.addf %131, %132 : vector<1x8x8xf32>
    %cst_55 = arith.constant dense<0xFF800000> : vector<1x8xf32>
    %134 = vector.multi_reduction <maximumf>, %133, %cst_55 [2] : vector<1x8x8xf32> to vector<1x8xf32>
    %135 = vector.shape_cast %134 : vector<1x8xf32> to vector<1x8x1xf32>
    %136 = vector.broadcast %135 : vector<1x8x1xf32> to vector<1x8x8xf32>
    %137 = arith.subf %133, %136 : vector<1x8x8xf32>
    %138 = math.exp %137 : vector<1x8x8xf32>
    %cst_56 = arith.constant dense<0.000000e+00> : vector<1x8xf32>
    %139 = vector.multi_reduction <add>, %138, %cst_56 [2] : vector<1x8x8xf32> to vector<1x8xf32>
    %140 = vector.shape_cast %139 : vector<1x8xf32> to vector<1x8x1xf32>
    %141 = arith.truncf %138 : vector<1x8x8xf32> to vector<1x8x8xbf16>
    "tpu.trace_start"() <{level = 10 : i32, message = "bqk,bkd->bqd"}> : () -> ()
    %cst_57 = arith.constant dense<0.000000e+00> : vector<1x8x8xf32>
    %142 = tpu.matmul %141, %128, %cst_57 {dimension_numbers = #tpu.dot_dimension_numbers<[2], [1], [1], [2], [0, 0, 0, 1, 1, 2], [0], [0]>} : vector<1x8x8xbf16>, vector<1x8x8xbf16>, vector<1x8x8xf32> -> vector<1x8x8xf32>
    "tpu.trace_stop"() : () -> ()
    %143 = tpu.reciprocal %140 {approx = true} : vector<1x8x1xf32> -> vector<1x8x1xf32>
    %144 = vector.broadcast %143 : vector<1x8x1xf32> to vector<1x8x8xf32>
    %145 = arith.mulf %142, %144 : vector<1x8x8xf32>
    %146 = vector.shape_cast %145 : vector<1x8x8xf32> to vector<8x8xf32>
    %147 = arith.truncf %146 : vector<8x8xf32> to vector<8x8xbf16>
    %c0_58 = arith.constant 0 : index
    %c24 = arith.constant 24 : index
    %148 = vector.load %arg24[%c0_58, %c24] : memref<8x32xbf16, #tpu.memory_space<vmem>>, vector<8x8xbf16>
    tpu.vector_store %arg24[%c0_58, %c24], %147 {strides = array<i32>} : memref<8x32xbf16, #tpu.memory_space<vmem>>, vector<8x8xbf16>,
    %c0_59 = arith.constant 0 : index
    %c0_60 = arith.constant 0 : index
    %149 = vector.load %arg24[%c0_59, %c0_60] : memref<8x32xbf16, #tpu.memory_space<vmem>>, vector<8x32xbf16>
    %c0_61 = arith.constant 0 : index
    %c0_62 = arith.constant 0 : index
    %c0_63 = arith.constant 0 : index
    %150 = vector.load %arg11[%c0_61, %c0_62, %c0_63] : memref<2x32x32xbf16, #tpu.memory_space<vmem>>, vector<1x32x32xbf16>
    %151 = vector.shape_cast %150 : vector<1x32x32xbf16> to vector<32x32xbf16>
    %cst_64 = arith.constant dense<0.000000e+00> : vector<8x32xf32>
    %152 = tpu.matmul %149, %151, %cst_64 {dimension_numbers = #tpu.dot_dimension_numbers<[1], [0], [0], [1], [0, 0, 1, 1], [], []>} : vector<8x32xbf16>, vector<32x32xbf16>, vector<8x32xf32> -> vector<8x32xf32>
    %c0_65 = arith.constant 0 : index
    %c0_66 = arith.constant 0 : index
    %c0_67 = arith.constant 0 : index
    %153 = vector.load %arg12[%c0_65, %c0_66, %c0_67] : memref<2x1x32xf32, #tpu.memory_space<vmem>>, vector<1x1x32xf32>
    %154 = vector.shape_cast %153 : vector<1x1x32xf32> to vector<1x32xf32>
    %155 = vector.broadcast %154 : vector<1x32xf32> to vector<8x32xf32>
    %156 = arith.addf %152, %155 : vector<8x32xf32>
    %157 = arith.addf %28, %156 : vector<8x32xf32>
    %c0_68 = arith.constant 0 : index
    %c0_69 = arith.constant 0 : index
    %c0_70 = arith.constant 0 : index
    %158 = vector.load %arg13[%c0_68, %c0_69, %c0_70] : memref<2x1x32xf32, #tpu.memory_space<vmem>>, vector<1x1x32xf32>
    %159 = vector.shape_cast %158 : vector<1x1x32xf32> to vector<1x32xf32>
    %c0_71 = arith.constant 0 : index
    %c0_72 = arith.constant 0 : index
    %c0_73 = arith.constant 0 : index
    %160 = vector.load %arg14[%c0_71, %c0_72, %c0_73] : memref<2x1x32xf32, #tpu.memory_space<vmem>>, vector<1x1x32xf32>
    %161 = vector.shape_cast %160 : vector<1x1x32xf32> to vector<1x32xf32>
    %cst_74 = arith.constant dense<0.000000e+00> : vector<8xf32>
    %162 = vector.multi_reduction <add>, %157, %cst_74 [1] : vector<8x32xf32> to vector<8xf32>
    %163 = vector.shape_cast %162 : vector<8xf32> to vector<8x1xf32>
    %cst_75 = arith.constant 3.200000e+01 : f32
    %164 = vector.broadcast %cst_75 : f32 to vector<8x1xf32>
    %165 = arith.divf %163, %164 : vector<8x1xf32>
    %166 = vector.broadcast %165 : vector<8x1xf32> to vector<8x32xf32>
    %167 = arith.subf %157, %166 : vector<8x32xf32>
    %168 = arith.mulf %167, %167 : vector<8x32xf32>
    %cst_76 = arith.constant dense<0.000000e+00> : vector<8xf32>
    %169 = vector.multi_reduction <add>, %168, %cst_76 [1] : vector<8x32xf32> to vector<8xf32>
    %170 = vector.shape_cast %169 : vector<8xf32> to vector<8x1xf32>
    %cst_77 = arith.constant 3.200000e+01 : f32
    %171 = vector.broadcast %cst_77 : f32 to vector<8x1xf32>
    %172 = arith.divf %170, %171 : vector<8x1xf32>
    %173 = vector.broadcast %165 : vector<8x1xf32> to vector<8x32xf32>
    %174 = arith.subf %157, %173 : vector<8x32xf32>
    %cst_78 = arith.constant 9.99999996E-13 : f32
    %175 = vector.broadcast %cst_78 : f32 to vector<8x1xf32>
    %176 = arith.addf %172, %175 : vector<8x1xf32>
    %177 = math.rsqrt %176 : vector<8x1xf32>
    %178 = vector.broadcast %177 : vector<8x1xf32> to vector<8x32xf32>
    %179 = arith.mulf %174, %178 : vector<8x32xf32>
    %180 = vector.broadcast %159 : vector<1x32xf32> to vector<8x32xf32>
    %181 = arith.mulf %179, %180 : vector<8x32xf32>
    %182 = vector.broadcast %161 : vector<1x32xf32> to vector<8x32xf32>
    %183 = arith.addf %181, %182 : vector<8x32xf32>
    %184 = arith.truncf %183 : vector<8x32xf32> to vector<8x32xbf16>
    %c0_79 = arith.constant 0 : index
    %c0_80 = arith.constant 0 : index
    %c0_81 = arith.constant 0 : index
    %185 = vector.load %arg15[%c0_79, %c0_80, %c0_81] : memref<2x32x64xbf16, #tpu.memory_space<vmem>>, vector<1x32x64xbf16>
    %186 = vector.shape_cast %185 : vector<1x32x64xbf16> to vector<32x64xbf16>
    %cst_82 = arith.constant dense<0.000000e+00> : vector<8x64xf32>
    %187 = tpu.matmul %184, %186, %cst_82 {dimension_numbers = #tpu.dot_dimension_numbers<[1], [0], [0], [1], [0, 0, 1, 1], [], []>} : vector<8x32xbf16>, vector<32x64xbf16>, vector<8x64xf32> -> vector<8x64xf32>
    %c0_83 = arith.constant 0 : index
    %c0_84 = arith.constant 0 : index
    %c0_85 = arith.constant 0 : index
    %188 = vector.load %arg16[%c0_83, %c0_84, %c0_85] : memref<2x1x64xf32, #tpu.memory_space<vmem>>, vector<1x1x64xf32>
    %189 = vector.shape_cast %188 : vector<1x1x64xf32> to vector<1x64xf32>
    %190 = vector.broadcast %189 : vector<1x64xf32> to vector<8x64xf32>
    %191 = arith.addf %187, %190 : vector<8x64xf32>
    %192 = arith.mulf %191, %191 : vector<8x64xf32>
    %193 = arith.mulf %191, %192 : vector<8x64xf32>
    %cst_86 = arith.constant 4.471500e-02 : f32
    %194 = vector.broadcast %cst_86 : f32 to vector<8x64xf32>
    %195 = arith.mulf %194, %193 : vector<8x64xf32>
    %196 = arith.addf %191, %195 : vector<8x64xf32>
    %cst_87 = arith.constant 0.797884583 : f32
    %197 = vector.broadcast %cst_87 : f32 to vector<8x64xf32>
    %198 = arith.mulf %197, %196 : vector<8x64xf32>
    %199 = math.tanh %198 : vector<8x64xf32>
    %cst_88 = arith.constant 1.000000e+00 : f32
    %200 = vector.broadcast %cst_88 : f32 to vector<8x64xf32>
    %201 = arith.addf %200, %199 : vector<8x64xf32>
    %cst_89 = arith.constant 5.000000e-01 : f32
    %202 = vector.broadcast %cst_89 : f32 to vector<8x64xf32>
    %203 = arith.mulf %202, %201 : vector<8x64xf32>
    %204 = arith.mulf %191, %203 : vector<8x64xf32>
    %205 = arith.truncf %204 : vector<8x64xf32> to vector<8x64xbf16>
    %c0_90 = arith.constant 0 : index
    %c0_91 = arith.constant 0 : index
    %c0_92 = arith.constant 0 : index
    %206 = vector.load %arg17[%c0_90, %c0_91, %c0_92] : memref<2x64x32xbf16, #tpu.memory_space<vmem>>, vector<1x64x32xbf16>
    %207 = vector.shape_cast %206 : vector<1x64x32xbf16> to vector<64x32xbf16>
    %cst_93 = arith.constant dense<0.000000e+00> : vector<8x32xf32>
    %208 = tpu.matmul %205, %207, %cst_93 {dimension_numbers = #tpu.dot_dimension_numbers<[1], [0], [0], [1], [0, 0, 1, 1], [], []>} : vector<8x64xbf16>, vector<64x32xbf16>, vector<8x32xf32> -> vector<8x32xf32>
    %c0_94 = arith.constant 0 : index
    %c0_95 = arith.constant 0 : index
    %c0_96 = arith.constant 0 : index
    %209 = vector.load %arg18[%c0_94, %c0_95, %c0_96] : memref<2x1x32xf32, #tpu.memory_space<vmem>>, vector<1x1x32xf32>
    %210 = vector.shape_cast %209 : vector<1x1x32xf32> to vector<1x32xf32>
    %211 = vector.broadcast %210 : vector<1x32xf32> to vector<8x32xf32>
    %212 = arith.addf %208, %211 : vector<8x32xf32>
    %213 = arith.addf %183, %212 : vector<8x32xf32>
    %c0_97 = arith.constant 0 : index
    %c0_98 = arith.constant 0 : index
    %c0_99 = arith.constant 0 : index
    %214 = vector.load %arg19[%c0_97, %c0_98, %c0_99] : memref<2x1x32xf32, #tpu.memory_space<vmem>>, vector<1x1x32xf32>
    %215 = vector.shape_cast %214 : vector<1x1x32xf32> to vector<1x32xf32>
    %c0_100 = arith.constant 0 : index
    %c0_101 = arith.constant 0 : index
    %c0_102 = arith.constant 0 : index
    %216 = vector.load %arg20[%c0_100, %c0_101, %c0_102] : memref<2x1x32xf32, #tpu.memory_space<vmem>>, vector<1x1x32xf32>
    %217 = vector.shape_cast %216 : vector<1x1x32xf32> to vector<1x32xf32>
    %cst_103 = arith.constant dense<0.000000e+00> : vector<8xf32>
    %218 = vector.multi_reduction <add>, %213, %cst_103 [1] : vector<8x32xf32> to vector<8xf32>
    %219 = vector.shape_cast %218 : vector<8xf32> to vector<8x1xf32>
    %cst_104 = arith.constant 3.200000e+01 : f32
    %220 = vector.broadcast %cst_104 : f32 to vector<8x1xf32>
    %221 = arith.divf %219, %220 : vector<8x1xf32>
    %222 = vector.broadcast %221 : vector<8x1xf32> to vector<8x32xf32>
    %223 = arith.subf %213, %222 : vector<8x32xf32>
    %224 = arith.mulf %223, %223 : vector<8x32xf32>
    %cst_105 = arith.constant dense<0.000000e+00> : vector<8xf32>
    %225 = vector.multi_reduction <add>, %224, %cst_105 [1] : vector<8x32xf32> to vector<8xf32>
    %226 = vector.shape_cast %225 : vector<8xf32> to vector<8x1xf32>
    %cst_106 = arith.constant 3.200000e+01 : f32
    %227 = vector.broadcast %cst_106 : f32 to vector<8x1xf32>
    %228 = arith.divf %226, %227 : vector<8x1xf32>
    %229 = vector.broadcast %221 : vector<8x1xf32> to vector<8x32xf32>
    %230 = arith.subf %213, %229 : vector<8x32xf32>
    %cst_107 = arith.constant 9.99999996E-13 : f32
    %231 = vector.broadcast %cst_107 : f32 to vector<8x1xf32>
    %232 = arith.addf %228, %231 : vector<8x1xf32>
    %233 = math.rsqrt %232 : vector<8x1xf32>
    %234 = vector.broadcast %233 : vector<8x1xf32> to vector<8x32xf32>
    %235 = arith.mulf %230, %234 : vector<8x32xf32>
    %236 = vector.broadcast %215 : vector<1x32xf32> to vector<8x32xf32>
    %237 = arith.mulf %235, %236 : vector<8x32xf32>
    %238 = vector.broadcast %217 : vector<1x32xf32> to vector<8x32xf32>
    %239 = arith.addf %237, %238 : vector<8x32xf32>
    %240 = arith.truncf %239 : vector<8x32xf32> to vector<8x32xbf16>
    %c1 = arith.constant 1 : index
    %c0_108 = arith.constant 0 : index
    %c0_109 = arith.constant 0 : index
    %241 = vector.load %arg5[%c1, %c0_108, %c0_109] : memref<2x32x32xbf16, #tpu.memory_space<vmem>>, vector<1x32x32xbf16>
    %242 = vector.shape_cast %241 : vector<1x32x32xbf16> to vector<32x32xbf16>
    %cst_110 = arith.constant dense<0.000000e+00> : vector<8x32xf32>
    %243 = tpu.matmul %240, %242, %cst_110 {dimension_numbers = #tpu.dot_dimension_numbers<[1], [0], [0], [1], [0, 0, 1, 1], [], []>} : vector<8x32xbf16>, vector<32x32xbf16>, vector<8x32xf32> -> vector<8x32xf32>
    %c1_111 = arith.constant 1 : index
    %c0_112 = arith.constant 0 : index
    %c0_113 = arith.constant 0 : index
    %244 = vector.load %arg6[%c1_111, %c0_112, %c0_113] : memref<2x1x32xf32, #tpu.memory_space<vmem>>, vector<1x1x32xf32>
    %245 = vector.shape_cast %244 : vector<1x1x32xf32> to vector<1x32xf32>
    %246 = vector.broadcast %245 : vector<1x32xf32> to vector<8x32xf32>
    %247 = arith.addf %243, %246 : vector<8x32xf32>
    %c1_114 = arith.constant 1 : index
    %c0_115 = arith.constant 0 : index
    %c0_116 = arith.constant 0 : index
    %248 = vector.load %arg7[%c1_114, %c0_115, %c0_116] : memref<2x32x32xbf16, #tpu.memory_space<vmem>>, vector<1x32x32xbf16>
    %249 = vector.shape_cast %248 : vector<1x32x32xbf16> to vector<32x32xbf16>
    %cst_117 = arith.constant dense<0.000000e+00> : vector<8x32xf32>
    %250 = tpu.matmul %240, %249, %cst_117 {dimension_numbers = #tpu.dot_dimension_numbers<[1], [0], [0], [1], [0, 0, 1, 1], [], []>} : vector<8x32xbf16>, vector<32x32xbf16>, vector<8x32xf32> -> vector<8x32xf32>
    %c1_118 = arith.constant 1 : index
    %c0_119 = arith.constant 0 : index
    %c0_120 = arith.constant 0 : index
    %251 = vector.load %arg8[%c1_118, %c0_119, %c0_120] : memref<2x1x32xf32, #tpu.memory_space<vmem>>, vector<1x1x32xf32>
    %252 = vector.shape_cast %251 : vector<1x1x32xf32> to vector<1x32xf32>
    %253 = vector.broadcast %252 : vector<1x32xf32> to vector<8x32xf32>
    %254 = arith.addf %250, %253 : vector<8x32xf32>
    %c1_121 = arith.constant 1 : index
    %c0_122 = arith.constant 0 : index
    %c0_123 = arith.constant 0 : index
    %255 = vector.load %arg9[%c1_121, %c0_122, %c0_123] : memref<2x32x32xbf16, #tpu.memory_space<vmem>>, vector<1x32x32xbf16>
    %256 = vector.shape_cast %255 : vector<1x32x32xbf16> to vector<32x32xbf16>
    %cst_124 = arith.constant dense<0.000000e+00> : vector<8x32xf32>
    %257 = tpu.matmul %240, %256, %cst_124 {dimension_numbers = #tpu.dot_dimension_numbers<[1], [0], [0], [1], [0, 0, 1, 1], [], []>} : vector<8x32xbf16>, vector<32x32xbf16>, vector<8x32xf32> -> vector<8x32xf32>
    %c1_125 = arith.constant 1 : index
    %c0_126 = arith.constant 0 : index
    %c0_127 = arith.constant 0 : index
    %258 = vector.load %arg10[%c1_125, %c0_126, %c0_127] : memref<2x1x32xf32, #tpu.memory_space<vmem>>, vector<1x1x32xf32>
    %259 = vector.shape_cast %258 : vector<1x1x32xf32> to vector<1x32xf32>
    %260 = vector.broadcast %259 : vector<1x32xf32> to vector<8x32xf32>
    %261 = arith.addf %257, %260 : vector<8x32xf32>
    %262 = vector.shape_cast %247 : vector<8x32xf32> to vector<1x8x32xf32>
    %263 = arith.truncf %262 : vector<1x8x32xf32> to vector<1x8x32xbf16>
    %264 = vector.shape_cast %254 : vector<8x32xf32> to vector<1x8x32xf32>
    %265 = arith.truncf %264 : vector<1x8x32xf32> to vector<1x8x32xbf16>
    %266 = vector.shape_cast %261 : vector<8x32xf32> to vector<1x8x32xf32>
    %267 = arith.truncf %266 : vector<1x8x32xf32> to vector<1x8x32xbf16>
    %268 = vector.extract_strided_slice %263 {offsets = [0, 0, 0], sizes = [1, 8, 8], strides = [1, 1, 1]} : vector<1x8x32xbf16> to vector<1x8x8xbf16>
    %269 = vector.extract_strided_slice %265 {offsets = [0, 0, 0], sizes = [1, 8, 8], strides = [1, 1, 1]} : vector<1x8x32xbf16> to vector<1x8x8xbf16>
    %270 = vector.extract_strided_slice %267 {offsets = [0, 0, 0], sizes = [1, 8, 8], strides = [1, 1, 1]} : vector<1x8x32xbf16> to vector<1x8x8xbf16>
    "tpu.trace_start"() <{level = 10 : i32, message = "bqd,bkd->bqk"}> : () -> ()
    %cst_128 = arith.constant dense<0.000000e+00> : vector<1x8x8xf32>
    %271 = tpu.matmul %268, %269, %cst_128 {dimension_numbers = #tpu.dot_dimension_numbers<[2], [2], [1], [1], [0, 0, 0, 1, 1, 1], [0], [0]>} : vector<1x8x8xbf16>, vector<1x8x8xbf16>, vector<1x8x8xf32> -> vector<1x8x8xf32>
    "tpu.trace_stop"() : () -> ()
    %cst_129 = arith.constant 0.353553385 : f32
    %272 = vector.broadcast %cst_129 : f32 to vector<1x8x8xf32>
    %273 = arith.mulf %271, %272 : vector<1x8x8xf32>
    %274 = vector.broadcast %1 : vector<1x1x8xf32> to vector<1x8x8xf32>
    %275 = arith.addf %273, %274 : vector<1x8x8xf32>
    %cst_130 = arith.constant dense<0xFF800000> : vector<1x8xf32>
    %276 = vector.multi_reduction <maximumf>, %275, %cst_130 [2] : vector<1x8x8xf32> to vector<1x8xf32>
    %277 = vector.shape_cast %276 : vector<1x8xf32> to vector<1x8x1xf32>
    %278 = vector.broadcast %277 : vector<1x8x1xf32> to vector<1x8x8xf32>
    %279 = arith.subf %275, %278 : vector<1x8x8xf32>
    %280 = math.exp %279 : vector<1x8x8xf32>
    %cst_131 = arith.constant dense<0.000000e+00> : vector<1x8xf32>
    %281 = vector.multi_reduction <add>, %280, %cst_131 [2] : vector<1x8x8xf32> to vector<1x8xf32>
    %282 = vector.shape_cast %281 : vector<1x8xf32> to vector<1x8x1xf32>
    %283 = arith.truncf %280 : vector<1x8x8xf32> to vector<1x8x8xbf16>
    "tpu.trace_start"() <{level = 10 : i32, message = "bqk,bkd->bqd"}> : () -> ()
    %cst_132 = arith.constant dense<0.000000e+00> : vector<1x8x8xf32>
    %284 = tpu.matmul %283, %270, %cst_132 {dimension_numbers = #tpu.dot_dimension_numbers<[2], [1], [1], [2], [0, 0, 0, 1, 1, 2], [0], [0]>} : vector<1x8x8xbf16>, vector<1x8x8xbf16>, vector<1x8x8xf32> -> vector<1x8x8xf32>
    "tpu.trace_stop"() : () -> ()
    %285 = tpu.reciprocal %282 {approx = true} : vector<1x8x1xf32> -> vector<1x8x1xf32>
    %286 = vector.broadcast %285 : vector<1x8x1xf32> to vector<1x8x8xf32>
    %287 = arith.mulf %284, %286 : vector<1x8x8xf32>
    %288 = vector.shape_cast %287 : vector<1x8x8xf32> to vector<8x8xf32>
    %289 = arith.truncf %288 : vector<8x8xf32> to vector<8x8xbf16>
    %c0_133 = arith.constant 0 : index
    %c0_134 = arith.constant 0 : index
    %290 = vector.load %arg24[%c0_133, %c0_134] : memref<8x32xbf16, #tpu.memory_space<vmem>>, vector<8x8xbf16>
    tpu.vector_store %arg24[%c0_133, %c0_134], %289 {strides = array<i32>} : memref<8x32xbf16, #tpu.memory_space<vmem>>, vector<8x8xbf16>,
    %291 = vector.extract_strided_slice %263 {offsets = [0, 0, 8], sizes = [1, 8, 8], strides = [1, 1, 1]} : vector<1x8x32xbf16> to vector<1x8x8xbf16>
    %292 = vector.extract_strided_slice %265 {offsets = [0, 0, 8], sizes = [1, 8, 8], strides = [1, 1, 1]} : vector<1x8x32xbf16> to vector<1x8x8xbf16>
    %293 = vector.extract_strided_slice %267 {offsets = [0, 0, 8], sizes = [1, 8, 8], strides = [1, 1, 1]} : vector<1x8x32xbf16> to vector<1x8x8xbf16>
    "tpu.trace_start"() <{level = 10 : i32, message = "bqd,bkd->bqk"}> : () -> ()
    %cst_135 = arith.constant dense<0.000000e+00> : vector<1x8x8xf32>
    %294 = tpu.matmul %291, %292, %cst_135 {dimension_numbers = #tpu.dot_dimension_numbers<[2], [2], [1], [1], [0, 0, 0, 1, 1, 1], [0], [0]>} : vector<1x8x8xbf16>, vector<1x8x8xbf16>, vector<1x8x8xf32> -> vector<1x8x8xf32>
    "tpu.trace_stop"() : () -> ()
    %cst_136 = arith.constant 0.353553385 : f32
    %295 = vector.broadcast %cst_136 : f32 to vector<1x8x8xf32>
    %296 = arith.mulf %294, %295 : vector<1x8x8xf32>
    %297 = vector.broadcast %1 : vector<1x1x8xf32> to vector<1x8x8xf32>
    %298 = arith.addf %296, %297 : vector<1x8x8xf32>
    %cst_137 = arith.constant dense<0xFF800000> : vector<1x8xf32>
    %299 = vector.multi_reduction <maximumf>, %298, %cst_137 [2] : vector<1x8x8xf32> to vector<1x8xf32>
    %300 = vector.shape_cast %299 : vector<1x8xf32> to vector<1x8x1xf32>
    %301 = vector.broadcast %300 : vector<1x8x1xf32> to vector<1x8x8xf32>
    %302 = arith.subf %298, %301 : vector<1x8x8xf32>
    %303 = math.exp %302 : vector<1x8x8xf32>
    %cst_138 = arith.constant dense<0.000000e+00> : vector<1x8xf32>
    %304 = vector.multi_reduction <add>, %303, %cst_138 [2] : vector<1x8x8xf32> to vector<1x8xf32>
    %305 = vector.shape_cast %304 : vector<1x8xf32> to vector<1x8x1xf32>
    %306 = arith.truncf %303 : vector<1x8x8xf32> to vector<1x8x8xbf16>
    "tpu.trace_start"() <{level = 10 : i32, message = "bqk,bkd->bqd"}> : () -> ()
    %cst_139 = arith.constant dense<0.000000e+00> : vector<1x8x8xf32>
    %307 = tpu.matmul %306, %293, %cst_139 {dimension_numbers = #tpu.dot_dimension_numbers<[2], [1], [1], [2], [0, 0, 0, 1, 1, 2], [0], [0]>} : vector<1x8x8xbf16>, vector<1x8x8xbf16>, vector<1x8x8xf32> -> vector<1x8x8xf32>
    "tpu.trace_stop"() : () -> ()
    %308 = tpu.reciprocal %305 {approx = true} : vector<1x8x1xf32> -> vector<1x8x1xf32>
    %309 = vector.broadcast %308 : vector<1x8x1xf32> to vector<1x8x8xf32>
    %310 = arith.mulf %307, %309 : vector<1x8x8xf32>
    %311 = vector.shape_cast %310 : vector<1x8x8xf32> to vector<8x8xf32>
    %312 = arith.truncf %311 : vector<8x8xf32> to vector<8x8xbf16>
    %c0_140 = arith.constant 0 : index
    %c8_141 = arith.constant 8 : index
    %313 = vector.load %arg24[%c0_140, %c8_141] : memref<8x32xbf16, #tpu.memory_space<vmem>>, vector<8x8xbf16>
    tpu.vector_store %arg24[%c0_140, %c8_141], %312 {strides = array<i32>} : memref<8x32xbf16, #tpu.memory_space<vmem>>, vector<8x8xbf16>,
    %314 = vector.extract_strided_slice %263 {offsets = [0, 0, 16], sizes = [1, 8, 8], strides = [1, 1, 1]} : vector<1x8x32xbf16> to vector<1x8x8xbf16>
    %315 = vector.extract_strided_slice %265 {offsets = [0, 0, 16], sizes = [1, 8, 8], strides = [1, 1, 1]} : vector<1x8x32xbf16> to vector<1x8x8xbf16>
    %316 = vector.extract_strided_slice %267 {offsets = [0, 0, 16], sizes = [1, 8, 8], strides = [1, 1, 1]} : vector<1x8x32xbf16> to vector<1x8x8xbf16>
    "tpu.trace_start"() <{level = 10 : i32, message = "bqd,bkd->bqk"}> : () -> ()
    %cst_142 = arith.constant dense<0.000000e+00> : vector<1x8x8xf32>
    %317 = tpu.matmul %314, %315, %cst_142 {dimension_numbers = #tpu.dot_dimension_numbers<[2], [2], [1], [1], [0, 0, 0, 1, 1, 1], [0], [0]>} : vector<1x8x8xbf16>, vector<1x8x8xbf16>, vector<1x8x8xf32> -> vector<1x8x8xf32>
    "tpu.trace_stop"() : () -> ()
    %cst_143 = arith.constant 0.353553385 : f32
    %318 = vector.broadcast %cst_143 : f32 to vector<1x8x8xf32>
    %319 = arith.mulf %317, %318 : vector<1x8x8xf32>
    %320 = vector.broadcast %1 : vector<1x1x8xf32> to vector<1x8x8xf32>
    %321 = arith.addf %319, %320 : vector<1x8x8xf32>
    %cst_144 = arith.constant dense<0xFF800000> : vector<1x8xf32>
    %322 = vector.multi_reduction <maximumf>, %321, %cst_144 [2] : vector<1x8x8xf32> to vector<1x8xf32>
    %323 = vector.shape_cast %322 : vector<1x8xf32> to vector<1x8x1xf32>
    %324 = vector.broadcast %323 : vector<1x8x1xf32> to vector<1x8x8xf32>
    %325 = arith.subf %321, %324 : vector<1x8x8xf32>
    %326 = math.exp %325 : vector<1x8x8xf32>
    %cst_145 = arith.constant dense<0.000000e+00> : vector<1x8xf32>
    %327 = vector.multi_reduction <add>, %326, %cst_145 [2] : vector<1x8x8xf32> to vector<1x8xf32>
    %328 = vector.shape_cast %327 : vector<1x8xf32> to vector<1x8x1xf32>
    %329 = arith.truncf %326 : vector<1x8x8xf32> to vector<1x8x8xbf16>
    "tpu.trace_start"() <{level = 10 : i32, message = "bqk,bkd->bqd"}> : () -> ()
    %cst_146 = arith.constant dense<0.000000e+00> : vector<1x8x8xf32>
    %330 = tpu.matmul %329, %316, %cst_146 {dimension_numbers = #tpu.dot_dimension_numbers<[2], [1], [1], [2], [0, 0, 0, 1, 1, 2], [0], [0]>} : vector<1x8x8xbf16>, vector<1x8x8xbf16>, vector<1x8x8xf32> -> vector<1x8x8xf32>
    "tpu.trace_stop"() : () -> ()
    %331 = tpu.reciprocal %328 {approx = true} : vector<1x8x1xf32> -> vector<1x8x1xf32>
    %332 = vector.broadcast %331 : vector<1x8x1xf32> to vector<1x8x8xf32>
    %333 = arith.mulf %330, %332 : vector<1x8x8xf32>
    %334 = vector.shape_cast %333 : vector<1x8x8xf32> to vector<8x8xf32>
    %335 = arith.truncf %334 : vector<8x8xf32> to vector<8x8xbf16>
    %c0_147 = arith.constant 0 : index
    %c16_148 = arith.constant 16 : index
    %336 = vector.load %arg24[%c0_147, %c16_148] : memref<8x32xbf16, #tpu.memory_space<vmem>>, vector<8x8xbf16>
    tpu.vector_store %arg24[%c0_147, %c16_148], %335 {strides = array<i32>} : memref<8x32xbf16, #tpu.memory_space<vmem>>, vector<8x8xbf16>,
    %337 = vector.extract_strided_slice %263 {offsets = [0, 0, 24], sizes = [1, 8, 8], strides = [1, 1, 1]} : vector<1x8x32xbf16> to vector<1x8x8xbf16>
    %338 = vector.extract_strided_slice %265 {offsets = [0, 0, 24], sizes = [1, 8, 8], strides = [1, 1, 1]} : vector<1x8x32xbf16> to vector<1x8x8xbf16>
    %339 = vector.extract_strided_slice %267 {offsets = [0, 0, 24], sizes = [1, 8, 8], strides = [1, 1, 1]} : vector<1x8x32xbf16> to vector<1x8x8xbf16>
    "tpu.trace_start"() <{level = 10 : i32, message = "bqd,bkd->bqk"}> : () -> ()
    %cst_149 = arith.constant dense<0.000000e+00> : vector<1x8x8xf32>
    %340 = tpu.matmul %337, %338, %cst_149 {dimension_numbers = #tpu.dot_dimension_numbers<[2], [2], [1], [1], [0, 0, 0, 1, 1, 1], [0], [0]>} : vector<1x8x8xbf16>, vector<1x8x8xbf16>, vector<1x8x8xf32> -> vector<1x8x8xf32>
    "tpu.trace_stop"() : () -> ()
    %cst_150 = arith.constant 0.353553385 : f32
    %341 = vector.broadcast %cst_150 : f32 to vector<1x8x8xf32>
    %342 = arith.mulf %340, %341 : vector<1x8x8xf32>
    %343 = vector.broadcast %1 : vector<1x1x8xf32> to vector<1x8x8xf32>
    %344 = arith.addf %342, %343 : vector<1x8x8xf32>
    %cst_151 = arith.constant dense<0xFF800000> : vector<1x8xf32>
    %345 = vector.multi_reduction <maximumf>, %344, %cst_151 [2] : vector<1x8x8xf32> to vector<1x8xf32>
    %346 = vector.shape_cast %345 : vector<1x8xf32> to vector<1x8x1xf32>
    %347 = vector.broadcast %346 : vector<1x8x1xf32> to vector<1x8x8xf32>
    %348 = arith.subf %344, %347 : vector<1x8x8xf32>
    %349 = math.exp %348 : vector<1x8x8xf32>
    %cst_152 = arith.constant dense<0.000000e+00> : vector<1x8xf32>
    %350 = vector.multi_reduction <add>, %349, %cst_152 [2] : vector<1x8x8xf32> to vector<1x8xf32>
    %351 = vector.shape_cast %350 : vector<1x8xf32> to vector<1x8x1xf32>
    %352 = arith.truncf %349 : vector<1x8x8xf32> to vector<1x8x8xbf16>
    "tpu.trace_start"() <{level = 10 : i32, message = "bqk,bkd->bqd"}> : () -> ()
    %cst_153 = arith.constant dense<0.000000e+00> : vector<1x8x8xf32>
    %353 = tpu.matmul %352, %339, %cst_153 {dimension_numbers = #tpu.dot_dimension_numbers<[2], [1], [1], [2], [0, 0, 0, 1, 1, 2], [0], [0]>} : vector<1x8x8xbf16>, vector<1x8x8xbf16>, vector<1x8x8xf32> -> vector<1x8x8xf32>
    "tpu.trace_stop"() : () -> ()
    %354 = tpu.reciprocal %351 {approx = true} : vector<1x8x1xf32> -> vector<1x8x1xf32>
    %355 = vector.broadcast %354 : vector<1x8x1xf32> to vector<1x8x8xf32>
    %356 = arith.mulf %353, %355 : vector<1x8x8xf32>
    %357 = vector.shape_cast %356 : vector<1x8x8xf32> to vector<8x8xf32>
    %358 = arith.truncf %357 : vector<8x8xf32> to vector<8x8xbf16>
    %c0_154 = arith.constant 0 : index
    %c24_155 = arith.constant 24 : index
    %359 = vector.load %arg24[%c0_154, %c24_155] : memref<8x32xbf16, #tpu.memory_space<vmem>>, vector<8x8xbf16>
    tpu.vector_store %arg24[%c0_154, %c24_155], %358 {strides = array<i32>} : memref<8x32xbf16, #tpu.memory_space<vmem>>, vector<8x8xbf16>,
    %c0_156 = arith.constant 0 : index
    %c0_157 = arith.constant 0 : index
    %360 = vector.load %arg24[%c0_156, %c0_157] : memref<8x32xbf16, #tpu.memory_space<vmem>>, vector<8x32xbf16>
    %c1_158 = arith.constant 1 : index
    %c0_159 = arith.constant 0 : index
    %c0_160 = arith.constant 0 : index
    %361 = vector.load %arg11[%c1_158, %c0_159, %c0_160] : memref<2x32x32xbf16, #tpu.memory_space<vmem>>, vector<1x32x32xbf16>
    %362 = vector.shape_cast %361 : vector<1x32x32xbf16> to vector<32x32xbf16>
    %cst_161 = arith.constant dense<0.000000e+00> : vector<8x32xf32>
    %363 = tpu.matmul %360, %362, %cst_161 {dimension_numbers = #tpu.dot_dimension_numbers<[1], [0], [0], [1], [0, 0, 1, 1], [], []>} : vector<8x32xbf16>, vector<32x32xbf16>, vector<8x32xf32> -> vector<8x32xf32>
    %c1_162 = arith.constant 1 : index
    %c0_163 = arith.constant 0 : index
    %c0_164 = arith.constant 0 : index
    %364 = vector.load %arg12[%c1_162, %c0_163, %c0_164] : memref<2x1x32xf32, #tpu.memory_space<vmem>>, vector<1x1x32xf32>
    %365 = vector.shape_cast %364 : vector<1x1x32xf32> to vector<1x32xf32>
    %366 = vector.broadcast %365 : vector<1x32xf32> to vector<8x32xf32>
    %367 = arith.addf %363, %366 : vector<8x32xf32>
    %368 = arith.addf %239, %367 : vector<8x32xf32>
    %c1_165 = arith.constant 1 : index
    %c0_166 = arith.constant 0 : index
    %c0_167 = arith.constant 0 : index
    %369 = vector.load %arg13[%c1_165, %c0_166, %c0_167] : memref<2x1x32xf32, #tpu.memory_space<vmem>>, vector<1x1x32xf32>
    %370 = vector.shape_cast %369 : vector<1x1x32xf32> to vector<1x32xf32>
    %c1_168 = arith.constant 1 : index
    %c0_169 = arith.constant 0 : index
    %c0_170 = arith.constant 0 : index
    %371 = vector.load %arg14[%c1_168, %c0_169, %c0_170] : memref<2x1x32xf32, #tpu.memory_space<vmem>>, vector<1x1x32xf32>
    %372 = vector.shape_cast %371 : vector<1x1x32xf32> to vector<1x32xf32>
    %cst_171 = arith.constant dense<0.000000e+00> : vector<8xf32>
    %373 = vector.multi_reduction <add>, %368, %cst_171 [1] : vector<8x32xf32> to vector<8xf32>
    %374 = vector.shape_cast %373 : vector<8xf32> to vector<8x1xf32>
    %cst_172 = arith.constant 3.200000e+01 : f32
    %375 = vector.broadcast %cst_172 : f32 to vector<8x1xf32>
    %376 = arith.divf %374, %375 : vector<8x1xf32>
    %377 = vector.broadcast %376 : vector<8x1xf32> to vector<8x32xf32>
    %378 = arith.subf %368, %377 : vector<8x32xf32>
    %379 = arith.mulf %378, %378 : vector<8x32xf32>
    %cst_173 = arith.constant dense<0.000000e+00> : vector<8xf32>
    %380 = vector.multi_reduction <add>, %379, %cst_173 [1] : vector<8x32xf32> to vector<8xf32>
    %381 = vector.shape_cast %380 : vector<8xf32> to vector<8x1xf32>
    %cst_174 = arith.constant 3.200000e+01 : f32
    %382 = vector.broadcast %cst_174 : f32 to vector<8x1xf32>
    %383 = arith.divf %381, %382 : vector<8x1xf32>
    %384 = vector.broadcast %376 : vector<8x1xf32> to vector<8x32xf32>
    %385 = arith.subf %368, %384 : vector<8x32xf32>
    %cst_175 = arith.constant 9.99999996E-13 : f32
    %386 = vector.broadcast %cst_175 : f32 to vector<8x1xf32>
    %387 = arith.addf %383, %386 : vector<8x1xf32>
    %388 = math.rsqrt %387 : vector<8x1xf32>
    %389 = vector.broadcast %388 : vector<8x1xf32> to vector<8x32xf32>
    %390 = arith.mulf %385, %389 : vector<8x32xf32>
    %391 = vector.broadcast %370 : vector<1x32xf32> to vector<8x32xf32>
    %392 = arith.mulf %390, %391 : vector<8x32xf32>
    %393 = vector.broadcast %372 : vector<1x32xf32> to vector<8x32xf32>
    %394 = arith.addf %392, %393 : vector<8x32xf32>
    %395 = arith.truncf %394 : vector<8x32xf32> to vector<8x32xbf16>
    %c1_176 = arith.constant 1 : index
    %c0_177 = arith.constant 0 : index
    %c0_178 = arith.constant 0 : index
    %396 = vector.load %arg15[%c1_176, %c0_177, %c0_178] : memref<2x32x64xbf16, #tpu.memory_space<vmem>>, vector<1x32x64xbf16>
    %397 = vector.shape_cast %396 : vector<1x32x64xbf16> to vector<32x64xbf16>
    %cst_179 = arith.constant dense<0.000000e+00> : vector<8x64xf32>
    %398 = tpu.matmul %395, %397, %cst_179 {dimension_numbers = #tpu.dot_dimension_numbers<[1], [0], [0], [1], [0, 0, 1, 1], [], []>} : vector<8x32xbf16>, vector<32x64xbf16>, vector<8x64xf32> -> vector<8x64xf32>
    %c1_180 = arith.constant 1 : index
    %c0_181 = arith.constant 0 : index
    %c0_182 = arith.constant 0 : index
    %399 = vector.load %arg16[%c1_180, %c0_181, %c0_182] : memref<2x1x64xf32, #tpu.memory_space<vmem>>, vector<1x1x64xf32>
    %400 = vector.shape_cast %399 : vector<1x1x64xf32> to vector<1x64xf32>
    %401 = vector.broadcast %400 : vector<1x64xf32> to vector<8x64xf32>
    %402 = arith.addf %398, %401 : vector<8x64xf32>
    %403 = arith.mulf %402, %402 : vector<8x64xf32>
    %404 = arith.mulf %402, %403 : vector<8x64xf32>
    %cst_183 = arith.constant 4.471500e-02 : f32
    %405 = vector.broadcast %cst_183 : f32 to vector<8x64xf32>
    %406 = arith.mulf %405, %404 : vector<8x64xf32>
    %407 = arith.addf %402, %406 : vector<8x64xf32>
    %cst_184 = arith.constant 0.797884583 : f32
    %408 = vector.broadcast %cst_184 : f32 to vector<8x64xf32>
    %409 = arith.mulf %408, %407 : vector<8x64xf32>
    %410 = math.tanh %409 : vector<8x64xf32>
    %cst_185 = arith.constant 1.000000e+00 : f32
    %411 = vector.broadcast %cst_185 : f32 to vector<8x64xf32>
    %412 = arith.addf %411, %410 : vector<8x64xf32>
    %cst_186 = arith.constant 5.000000e-01 : f32
    %413 = vector.broadcast %cst_186 : f32 to vector<8x64xf32>
    %414 = arith.mulf %413, %412 : vector<8x64xf32>
    %415 = arith.mulf %402, %414 : vector<8x64xf32>
    %416 = arith.truncf %415 : vector<8x64xf32> to vector<8x64xbf16>
    %c1_187 = arith.constant 1 : index
    %c0_188 = arith.constant 0 : index
    %c0_189 = arith.constant 0 : index
    %417 = vector.load %arg17[%c1_187, %c0_188, %c0_189] : memref<2x64x32xbf16, #tpu.memory_space<vmem>>, vector<1x64x32xbf16>
    %418 = vector.shape_cast %417 : vector<1x64x32xbf16> to vector<64x32xbf16>
    %cst_190 = arith.constant dense<0.000000e+00> : vector<8x32xf32>
    %419 = tpu.matmul %416, %418, %cst_190 {dimension_numbers = #tpu.dot_dimension_numbers<[1], [0], [0], [1], [0, 0, 1, 1], [], []>} : vector<8x64xbf16>, vector<64x32xbf16>, vector<8x32xf32> -> vector<8x32xf32>
    %c1_191 = arith.constant 1 : index
    %c0_192 = arith.constant 0 : index
    %c0_193 = arith.constant 0 : index
    %420 = vector.load %arg18[%c1_191, %c0_192, %c0_193] : memref<2x1x32xf32, #tpu.memory_space<vmem>>, vector<1x1x32xf32>
    %421 = vector.shape_cast %420 : vector<1x1x32xf32> to vector<1x32xf32>
    %422 = vector.broadcast %421 : vector<1x32xf32> to vector<8x32xf32>
    %423 = arith.addf %419, %422 : vector<8x32xf32>
    %424 = arith.addf %394, %423 : vector<8x32xf32>
    %c1_194 = arith.constant 1 : index
    %c0_195 = arith.constant 0 : index
    %c0_196 = arith.constant 0 : index
    %425 = vector.load %arg19[%c1_194, %c0_195, %c0_196] : memref<2x1x32xf32, #tpu.memory_space<vmem>>, vector<1x1x32xf32>
    %426 = vector.shape_cast %425 : vector<1x1x32xf32> to vector<1x32xf32>
    %c1_197 = arith.constant 1 : index
    %c0_198 = arith.constant 0 : index
    %c0_199 = arith.constant 0 : index
    %427 = vector.load %arg20[%c1_197, %c0_198, %c0_199] : memref<2x1x32xf32, #tpu.memory_space<vmem>>, vector<1x1x32xf32>
    %428 = vector.shape_cast %427 : vector<1x1x32xf32> to vector<1x32xf32>
    %cst_200 = arith.constant dense<0.000000e+00> : vector<8xf32>
    %429 = vector.multi_reduction <add>, %424, %cst_200 [1] : vector<8x32xf32> to vector<8xf32>
    %430 = vector.shape_cast %429 : vector<8xf32> to vector<8x1xf32>
    %cst_201 = arith.constant 3.200000e+01 : f32
    %431 = vector.broadcast %cst_201 : f32 to vector<8x1xf32>
    %432 = arith.divf %430, %431 : vector<8x1xf32>
    %433 = vector.broadcast %432 : vector<8x1xf32> to vector<8x32xf32>
    %434 = arith.subf %424, %433 : vector<8x32xf32>
    %435 = arith.mulf %434, %434 : vector<8x32xf32>
    %cst_202 = arith.constant dense<0.000000e+00> : vector<8xf32>
    %436 = vector.multi_reduction <add>, %435, %cst_202 [1] : vector<8x32xf32> to vector<8xf32>
    %437 = vector.shape_cast %436 : vector<8xf32> to vector<8x1xf32>
    %cst_203 = arith.constant 3.200000e+01 : f32
    %438 = vector.broadcast %cst_203 : f32 to vector<8x1xf32>
    %439 = arith.divf %437, %438 : vector<8x1xf32>
    %440 = vector.broadcast %432 : vector<8x1xf32> to vector<8x32xf32>
    %441 = arith.subf %424, %440 : vector<8x32xf32>
    %cst_204 = arith.constant 9.99999996E-13 : f32
    %442 = vector.broadcast %cst_204 : f32 to vector<8x1xf32>
    %443 = arith.addf %439, %442 : vector<8x1xf32>
    %444 = math.rsqrt %443 : vector<8x1xf32>
    %445 = vector.broadcast %444 : vector<8x1xf32> to vector<8x32xf32>
    %446 = arith.mulf %441, %445 : vector<8x32xf32>
    %447 = vector.broadcast %426 : vector<1x32xf32> to vector<8x32xf32>
    %448 = arith.mulf %446, %447 : vector<8x32xf32>
    %449 = vector.broadcast %428 : vector<1x32xf32> to vector<8x32xf32>
    %450 = arith.addf %448, %449 : vector<8x32xf32>
    %451 = vector.shape_cast %450 : vector<8x32xf32> to vector<1x8x32xf32>
    %452 = vector.extract_strided_slice %451 {offsets = [0, 0, 0], sizes = [1, 1, 32], strides = [1, 1, 1]} : vector<1x8x32xf32> to vector<1x1x32xf32>
    %453 = vector.shape_cast %452 : vector<1x1x32xf32> to vector<1x32xf32>
    %454 = arith.truncf %453 : vector<1x32xf32> to vector<1x32xbf16>
    %c0_205 = arith.constant 0 : index
    %c0_206 = arith.constant 0 : index
    %455 = vector.load %arg21[%c0_205, %c0_206] : memref<32x1xbf16, #tpu.memory_space<vmem>>, vector<32x1xbf16>
    %cst_207 = arith.constant dense<0.000000e+00> : vector<1x1xf32>
    %456 = tpu.matmul %454, %455, %cst_207 {dimension_numbers = #tpu.dot_dimension_numbers<[1], [0], [0], [1], [0, 0, 1, 1], [], []>} : vector<1x32xbf16>, vector<32x1xbf16>, vector<1x1xf32> -> vector<1x1xf32>
    %c0_208 = arith.constant 0 : index
    %c0_209 = arith.constant 0 : index
    %457 = vector.load %arg22[%c0_208, %c0_209] : memref<1x1xf32, #tpu.memory_space<vmem>>, vector<1x1xf32>
    %458 = arith.addf %456, %457 : vector<1x1xf32>
    %c0_210 = arith.constant 0 : index
    %c0_211 = arith.constant 0 : index
    %c0_212 = arith.constant 0 : index
    %459 = vector.load %arg23[%c0_210, %c0_211, %c0_212] : memref<1x1x1xf32, #tpu.memory_space<vmem>>, vector<1x1x1xf32>
    %460 = vector.shape_cast %459 : vector<1x1x1xf32> to vector<1x1xf32>
    %461 = vector.shape_cast %458 : vector<1x1xf32> to vector<1x1x1xf32>
    tpu.vector_store %arg23[%c0_210, %c0_211, %c0_212], %461 {strides = array<i32>} : memref<1x1x1xf32, #tpu.memory_space<vmem>>, vector<1x1x1xf32>,
    return
  }
  func.func @transform_0(%arg0: i32) -> (i32, i32, i32) {
    %c0_i32 = arith.constant 0 : i32
    %c0_i32_0 = arith.constant 0 : i32
    %c0_i32_1 = arith.constant 0 : i32
    return %arg0, %c0_i32, %c0_i32_0 : i32, i32, i32
  }
  func.func @transform_1(%arg0: i32) -> (i32, i32, i32) {
    %c0_i32 = arith.constant 0 : i32
    %c0_i32_0 = arith.constant 0 : i32
    %c0_i32_1 = arith.constant 0 : i32
    return %arg0, %c0_i32, %c0_i32_0 : i32, i32, i32
  }
  func.func @transform_2(%arg0: i32) -> (i32, i32) {
    %c0_i32 = arith.constant 0 : i32
    %c0_i32_0 = arith.constant 0 : i32
    %c0_i32_1 = arith.constant 0 : i32
    return %c0_i32, %c0_i32_0 : i32, i32
  }
  func.func @transform_3(%arg0: i32) -> (i32, i32) {
    %c0_i32 = arith.constant 0 : i32
    %c0_i32_0 = arith.constant 0 : i32
    %c0_i32_1 = arith.constant 0 : i32
    return %c0_i32, %c0_i32_0 : i32, i32
  }
  func.func @transform_4(%arg0: i32) -> (i32, i32, i32) {
    %c0_i32 = arith.constant 0 : i32
    %c0_i32_0 = arith.constant 0 : i32
    %c0_i32_1 = arith.constant 0 : i32
    %c0_i32_2 = arith.constant 0 : i32
    return %c0_i32, %c0_i32_0, %c0_i32_1 : i32, i32, i32
  }
  func.func @transform_5(%arg0: i32) -> (i32, i32, i32) {
    %c0_i32 = arith.constant 0 : i32
    %c0_i32_0 = arith.constant 0 : i32
    %c0_i32_1 = arith.constant 0 : i32
    %c0_i32_2 = arith.constant 0 : i32
    return %c0_i32, %c0_i32_0, %c0_i32_1 : i32, i32, i32
  }
  func.func @transform_6(%arg0: i32) -> (i32, i32, i32) {
    %c0_i32 = arith.constant 0 : i32
    %c0_i32_0 = arith.constant 0 : i32
    %c0_i32_1 = arith.constant 0 : i32
    %c0_i32_2 = arith.constant 0 : i32
    return %c0_i32, %c0_i32_0, %c0_i32_1 : i32, i32, i32
  }
  func.func @transform_7(%arg0: i32) -> (i32, i32, i32) {
    %c0_i32 = arith.constant 0 : i32
    %c0_i32_0 = arith.constant 0 : i32
    %c0_i32_1 = arith.constant 0 : i32
    %c0_i32_2 = arith.constant 0 : i32
    return %c0_i32, %c0_i32_0, %c0_i32_1 : i32, i32, i32
  }
  func.func @transform_8(%arg0: i32) -> (i32, i32, i32) {
    %c0_i32 = arith.constant 0 : i32
    %c0_i32_0 = arith.constant 0 : i32
    %c0_i32_1 = arith.constant 0 : i32
    %c0_i32_2 = arith.constant 0 : i32
    return %c0_i32, %c0_i32_0, %c0_i32_1 : i32, i32, i32
  }
  func.func @transform_9(%arg0: i32) -> (i32, i32, i32) {
    %c0_i32 = arith.constant 0 : i32
    %c0_i32_0 = arith.constant 0 : i32
    %c0_i32_1 = arith.constant 0 : i32
    %c0_i32_2 = arith.constant 0 : i32
    return %c0_i32, %c0_i32_0, %c0_i32_1 : i32, i32, i32
  }
  func.func @transform_10(%arg0: i32) -> (i32, i32, i32) {
    %c0_i32 = arith.constant 0 : i32
    %c0_i32_0 = arith.constant 0 : i32
    %c0_i32_1 = arith.constant 0 : i32
    %c0_i32_2 = arith.constant 0 : i32
    return %c0_i32, %c0_i32_0, %c0_i32_1 : i32, i32, i32
  }
  func.func @transform_11(%arg0: i32) -> (i32, i32, i32) {
    %c0_i32 = arith.constant 0 : i32
    %c0_i32_0 = arith.constant 0 : i32
    %c0_i32_1 = arith.constant 0 : i32
    %c0_i32_2 = arith.constant 0 : i32
    return %c0_i32, %c0_i32_0, %c0_i32_1 : i32, i32, i32
  }
  func.func @transform_12(%arg0: i32) -> (i32, i32, i32) {
    %c0_i32 = arith.constant 0 : i32
    %c0_i32_0 = arith.constant 0 : i32
    %c0_i32_1 = arith.constant 0 : i32
    %c0_i32_2 = arith.constant 0 : i32
    return %c0_i32, %c0_i32_0, %c0_i32_1 : i32, i32, i32
  }
  func.func @transform_13(%arg0: i32) -> (i32, i32, i32) {
    %c0_i32 = arith.constant 0 : i32
    %c0_i32_0 = arith.constant 0 : i32
    %c0_i32_1 = arith.constant 0 : i32
    %c0_i32_2 = arith.constant 0 : i32
    return %c0_i32, %c0_i32_0, %c0_i32_1 : i32, i32, i32
  }
  func.func @transform_14(%arg0: i32) -> (i32, i32, i32) {
    %c0_i32 = arith.constant 0 : i32
    %c0_i32_0 = arith.constant 0 : i32
    %c0_i32_1 = arith.constant 0 : i32
    %c0_i32_2 = arith.constant 0 : i32
    return %c0_i32, %c0_i32_0, %c0_i32_1 : i32, i32, i32
  }
  func.func @transform_15(%arg0: i32) -> (i32, i32, i32) {
    %c0_i32 = arith.constant 0 : i32
    %c0_i32_0 = arith.constant 0 : i32
    %c0_i32_1 = arith.constant 0 : i32
    %c0_i32_2 = arith.constant 0 : i32
    return %c0_i32, %c0_i32_0, %c0_i32_1 : i32, i32, i32
  }
  func.func @transform_16(%arg0: i32) -> (i32, i32, i32) {
    %c0_i32 = arith.constant 0 : i32
    %c0_i32_0 = arith.constant 0 : i32
    %c0_i32_1 = arith.constant 0 : i32
    %c0_i32_2 = arith.constant 0 : i32
    return %c0_i32, %c0_i32_0, %c0_i32_1 : i32, i32, i32
  }
  func.func @transform_17(%arg0: i32) -> (i32, i32, i32) {
    %c0_i32 = arith.constant 0 : i32
    %c0_i32_0 = arith.constant 0 : i32
    %c0_i32_1 = arith.constant 0 : i32
    %c0_i32_2 = arith.constant 0 : i32
    return %c0_i32, %c0_i32_0, %c0_i32_1 : i32, i32, i32
  }
  func.func @transform_18(%arg0: i32) -> (i32, i32, i32) {
    %c0_i32 = arith.constant 0 : i32
    %c0_i32_0 = arith.constant 0 : i32
    %c0_i32_1 = arith.constant 0 : i32
    %c0_i32_2 = arith.constant 0 : i32
    return %c0_i32, %c0_i32_0, %c0_i32_1 : i32, i32, i32
  }
  func.func @transform_19(%arg0: i32) -> (i32, i32, i32) {
    %c0_i32 = arith.constant 0 : i32
    %c0_i32_0 = arith.constant 0 : i32
    %c0_i32_1 = arith.constant 0 : i32
    %c0_i32_2 = arith.constant 0 : i32
    return %c0_i32, %c0_i32_0, %c0_i32_1 : i32, i32, i32
  }
  func.func @transform_20(%arg0: i32) -> (i32, i32) {
    %c0_i32 = arith.constant 0 : i32
    %c0_i32_0 = arith.constant 0 : i32
    %c0_i32_1 = arith.constant 0 : i32
    return %c0_i32, %c0_i32_0 : i32, i32
  }
  func.func @transform_21(%arg0: i32) -> (i32, i32) {
    %c0_i32 = arith.constant 0 : i32
    %c0_i32_0 = arith.constant 0 : i32
    %c0_i32_1 = arith.constant 0 : i32
    return %c0_i32, %c0_i32_0 : i32, i32
  }
  func.func @transform_22(%arg0: i32) -> (i32, i32, i32) {
    %c0_i32 = arith.constant 0 : i32
    %c0_i32_0 = arith.constant 0 : i32
    %c0_i32_1 = arith.constant 0 : i32
    return %arg0, %c0_i32, %c0_i32_0 : i32, i32, i32
  }
}

module attributes {stable_mosaic.version = 11 : i64} {
  func.func @fused_cross_encoder_kernel(%arg0: i32, %arg1: memref<1x8x32xbf16, #tpu.memory_space<vmem>>, %arg2: memref<1x1x8xbf16, #tpu.memory_space<vmem>>, %arg3: memref<1x32xf32, #tpu.memory_space<vmem>>, %arg4: memref<1x32xf32, #tpu.memory_space<vmem>>, %arg5: memref<2x32x32xbf16, #tpu.memory_space<vmem>>, %arg6: memref<2x1x32xf32, #tpu.memory_space<vmem>>, %arg7: memref<2x32x32xbf16, #tpu.memory_space<vmem>>, %arg8: memref<2x1x32xf32, #tpu.memory_space<vmem>>, %arg9: memref<2x32x32xbf16, #tpu.memory_space<vmem>>, %arg10: memref<2x1x32xf32, #tpu.memory_space<vmem>>, %arg11: memref<2x32x32xbf16, #tpu.memory_space<vmem>>, %arg12: memref<2x1x32xf32, #tpu.memory_space<vmem>>, %arg13: memref<2x1x32xf32, #tpu.memory_space<vmem>>, %arg14: memref<2x1x32xf32, #tpu.memory_space<vmem>>, %arg15: memref<2x32x64xbf16, #tpu.memory_space<vmem>>, %arg16: memref<2x1x64xf32, #tpu.memory_space<vmem>>, %arg17: memref<2x64x32xbf16, #tpu.memory_space<vmem>>, %arg18: memref<2x1x32xf32, #tpu.memory_space<vmem>>, %arg19: memref<2x1x32xf32, #tpu.memory_space<vmem>>, %arg20: memref<2x1x32xf32, #tpu.memory_space<vmem>>, %arg21: memref<32x1xbf16, #tpu.memory_space<vmem>>, %arg22: memref<1x1xf32, #tpu.memory_space<vmem>>, %arg23: memref<1x1x1xf32, #tpu.memory_space<vmem>>, %arg24: memref<8x32xbf16, #tpu.memory_space<vmem>>) attributes {dimension_semantics = [#tpu.dimension_semantics<parallel>], iteration_bounds = array<i64: 2>, scalar_prefetch = 0 : i64, scratch_operands = 1 : i64, tpu.core_type = #tpu.core_type<tc>, window_params = [{transform_indices = @transform_0, window_bounds = array<i64: 1, 8, 32>}, {transform_indices = @transform_1, window_bounds = array<i64: 1, 1, 8>}, {pipeline_mode = #tpu.pipeline_mode<synchronous>, transform_indices = @transform_2, window_bounds = array<i64: 1, 32>}, {pipeline_mode = #tpu.pipeline_mode<synchronous>, transform_indices = @transform_3, window_bounds = array<i64: 1, 32>}, {pipeline_mode = #tpu.pipeline_mode<synchronous>, transform_indices = @transform_4, window_bounds = array<i64: 2, 32, 32>}, {pipeline_mode = #tpu.pipeline_mode<synchronous>, transform_indices = @transform_5, window_bounds = array<i64: 2, 1, 32>}, {pipeline_mode = #tpu.pipeline_mode<synchronous>, transform_indices = @transform_6, window_bounds = array<i64: 2, 32, 32>}, {pipeline_mode = #tpu.pipeline_mode<synchronous>, transform_indices = @transform_7, window_bounds = array<i64: 2, 1, 32>}, {pipeline_mode = #tpu.pipeline_mode<synchronous>, transform_indices = @transform_8, window_bounds = array<i64: 2, 32, 32>}, {pipeline_mode = #tpu.pipeline_mode<synchronous>, transform_indices = @transform_9, window_bounds = array<i64: 2, 1, 32>}, {pipeline_mode = #tpu.pipeline_mode<synchronous>, transform_indices = @transform_10, window_bounds = array<i64: 2, 32, 32>}, {pipeline_mode = #tpu.pipeline_mode<synchronous>, transform_indices = @transform_11, window_bounds = array<i64: 2, 1, 32>}, {pipeline_mode = #tpu.pipeline_mode<synchronous>, transform_indices = @transform_12, window_bounds = array<i64: 2, 1, 32>}, {pipeline_mode = #tpu.pipeline_mode<synchronous>, transform_indices = @transform_13, window_bounds = array<i64: 2, 1, 32>}, {pipeline_mode = #tpu.pipeline_mode<synchronous>, transform_indices = @transform_14, window_bounds = array<i64: 2, 32, 64>}, {pipeline_mode = #tpu.pipeline_mode<synchronous>, transform_indices = @transform_15, window_bounds = array<i64: 2, 1, 64>}, {pipeline_mode = #tpu.pipeline_mode<synchronous>, transform_indices = @transform_16, window_bounds = array<i64: 2, 64, 32>}, {pipeline_mode = #tpu.pipeline_mode<synchronous>, transform_indices = @transform_17, window_bounds = array<i64: 2, 1, 32>}, {pipeline_mode = #tpu.pipeline_mode<synchronous>, transform_indices = @transform_18, window_bounds = array<i64: 2, 1, 32>}, {pipeline_mode = #tpu.pipeline_mode<synchronous>, transform_indices = @transform_19, window_bounds = array<i64: 2, 1, 32>}, {pipeline_mode = #tpu.pipeline_mode<synchronous>, transform_indices = @transform_20, window_bounds = array<i64: 32, 1>}, {pipeline_mode = #tpu.pipeline_mode<synchronous>, transform_indices = @transform_21, window_bounds = array<i64: 1, 1>}, {transform_indices = @transform_22, window_bounds = array<i64: 1, 1, 1>}]} {
    %c0 = arith.constant 0 : index
    %c0_0 = arith.constant 0 : index
    %c0_1 = arith.constant 0 : index
    %0 = vector.load %arg2[%c0, %c0_0, %c0_1] : memref<1x1x8xbf16, #tpu.memory_space<vmem>>, vector<1x1x8xbf16>
    %1 = arith.extf %0 : vector<1x1x8xbf16> to vector<1x1x8xf32>
    %c0_2 = arith.constant 0 : index
    %c0_3 = arith.constant 0 : index
    %c0_4 = arith.constant 0 : index
    %2 = vector.load %arg1[%c0_2, %c0_3, %c0_4] : memref<1x8x32xbf16, #tpu.memory_space<vmem>>, vector<1x8x32xbf16>
    %3 = vector.shape_cast %2 : vector<1x8x32xbf16> to vector<8x32xbf16>
    %4 = arith.extf %3 : vector<8x32xbf16> to vector<8x32xf32>
    %c0_5 = arith.constant 0 : index
    %c0_6 = arith.constant 0 : index
    %5 = vector.load %arg3[%c0_5, %c0_6] : memref<1x32xf32, #tpu.memory_space<vmem>>, vector<1x32xf32>
    %c0_7 = arith.constant 0 : index
    %c0_8 = arith.constant 0 : index
    %6 = vector.load %arg4[%c0_7, %c0_8] : memref<1x32xf32, #tpu.memory_space<vmem>>, vector<1x32xf32>
    %cst = arith.constant dense<0.000000e+00> : vector<8xf32>
    %7 = vector.multi_reduction <add>, %4, %cst [1] : vector<8x32xf32> to vector<8xf32>
    %8 = vector.shape_cast %7 : vector<8xf32> to vector<8x1xf32>
    %cst_9 = arith.constant 3.200000e+01 : f32
    %9 = vector.broadcast %cst_9 : f32 to vector<8x1xf32>
    %10 = arith.divf %8, %9 : vector<8x1xf32>
    %11 = vector.broadcast %10 : vector<8x1xf32> to vector<8x32xf32>
    %12 = arith.subf %4, %11 : vector<8x32xf32>
    %13 = arith.mulf %12, %12 : vector<8x32xf32>
    %cst_10 = arith.constant dense<0.000000e+00> : vector<8xf32>
    %14 = vector.multi_reduction <add>, %13, %cst_10 [1] : vector<8x32xf32> to vector<8xf32>
    %15 = vector.shape_cast %14 : vector<8xf32> to vector<8x1xf32>
    %cst_11 = arith.constant 3.200000e+01 : f32
    %16 = vector.broadcast %cst_11 : f32 to vector<8x1xf32>
    %17 = arith.divf %15, %16 : vector<8x1xf32>
    %18 = vector.broadcast %10 : vector<8x1xf32> to vector<8x32xf32>
    %19 = arith.subf %4, %18 : vector<8x32xf32>
    %cst_12 = arith.constant 9.99999996E-13 : f32
    %20 = vector.broadcast %cst_12 : f32 to vector<8x1xf32>
    %21 = arith.addf %17, %20 : vector<8x1xf32>
    %22 = math.rsqrt %21 : vector<8x1xf32>
    %23 = vector.broadcast %22 : vector<8x1xf32> to vector<8x32xf32>
    %24 = arith.mulf %19, %23 : vector<8x32xf32>
    %25 = vector.broadcast %5 : vector<1x32xf32> to vector<8x32xf32>
    %26 = arith.mulf %24, %25 : vector<8x32xf32>
    %27 = vector.broadcast %6 : vector<1x32xf32> to vector<8x32xf32>
    %28 = arith.addf %26, %27 : vector<8x32xf32>
    %29 = arith.truncf %28 : vector<8x32xf32> to vector<8x32xbf16>
    %c0_13 = arith.constant 0 : index
    %c0_14 = arith.constant 0 : index
    %c0_15 = arith.constant 0 : index
    %30 = vector.load %arg5[%c0_13, %c0_14, %c0_15] : memref<2x32x32xbf16, #tpu.memory_space<vmem>>, vector<1x32x32xbf16>
    %31 = vector.shape_cast %30 : vector<1x32x32xbf16> to vector<32x32xbf16>
    %cst_16 = arith.constant dense<0.000000e+00> : vector<8x32xf32>
    %32 = tpu.matmul %29, %31, %cst_16 {dimension_numbers = #tpu.dot_dimension_numbers<[1], [0], [0], [1], [0, 0, 1, 1], [], []>} : vector<8x32xbf16>, vector<32x32xbf16>, vector<8x32xf32> -> vector<8x32xf32>
    %c0_17 = arith.constant 0 : index
    %c0_18 = arith.constant 0 : index
    %c0_19 = arith.constant 0 : index
    %33 = vector.load %arg6[%c0_17, %c0_18, %c0_19] : memref<2x1x32xf32, #tpu.memory_space<vmem>>, vector<1x1x32xf32>
    %34 = vector.shape_cast %33 : vector<1x1x32xf32> to vector<1x32xf32>
    %35 = vector.broadcast %34 : vector<1x32xf32> to vector<8x32xf32>
    %36 = arith.addf %32, %35 : vector<8x32xf32>
    %c0_20 = arith.constant 0 : index
    %c0_21 = arith.constant 0 : index
    %c0_22 = arith.constant 0 : index
    %37 = vector.load %arg7[%c0_20, %c0_21, %c0_22] : memref<2x32x32xbf16, #tpu.memory_space<vmem>>, vector<1x32x32xbf16>
    %38 = vector.shape_cast %37 : vector<1x32x32xbf16> to vector<32x32xbf16>
    %cst_23 = arith.constant dense<0.000000e+00> : vector<8x32xf32>
    %39 = tpu.matmul %29, %38, %cst_23 {dimension_numbers = #tpu.dot_dimension_numbers<[1], [0], [0], [1], [0, 0, 1, 1], [], []>} : vector<8x32xbf16>, vector<32x32xbf16>, vector<8x32xf32> -> vector<8x32xf32>
    %c0_24 = arith.constant 0 : index
    %c0_25 = arith.constant 0 : index
    %c0_26 = arith.constant 0 : index
    %40 = vector.load %arg8[%c0_24, %c0_25, %c0_26] : memref<2x1x32xf32, #tpu.memory_space<vmem>>, vector<1x1x32xf32>
    %41 = vector.shape_cast %40 : vector<1x1x32xf32> to vector<1x32xf32>
    %42 = vector.broadcast %41 : vector<1x32xf32> to vector<8x32xf32>
    %43 = arith.addf %39, %42 : vector<8x32xf32>
    %c0_27 = arith.constant 0 : index
    %c0_28 = arith.constant 0 : index
    %c0_29 = arith.constant 0 : index
    %44 = vector.load %arg9[%c0_27, %c0_28, %c0_29] : memref<2x32x32xbf16, #tpu.memory_space<vmem>>, vector<1x32x32xbf16>
    %45 = vector.shape_cast %44 : vector<1x32x32xbf16> to vector<32x32xbf16>
    %cst_30 = arith.constant dense<0.000000e+00> : vector<8x32xf32>
    %46 = tpu.matmul %29, %45, %cst_30 {dimension_numbers = #tpu.dot_dimension_numbers<[1], [0], [0], [1], [0, 0, 1, 1], [], []>} : vector<8x32xbf16>, vector<32x32xbf16>, vector<8x32xf32> -> vector<8x32xf32>
    %c0_31 = arith.constant 0 : index
    %c0_32 = arith.constant 0 : index
    %c0_33 = arith.constant 0 : index
    %47 = vector.load %arg10[%c0_31, %c0_32, %c0_33] : memref<2x1x32xf32, #tpu.memory_space<vmem>>, vector<1x1x32xf32>
    %48 = vector.shape_cast %47 : vector<1x1x32xf32> to vector<1x32xf32>
    %49 = vector.broadcast %48 : vector<1x32xf32> to vector<8x32xf32>
    %50 = arith.addf %46, %49 : vector<8x32xf32>
    %51 = vector.shape_cast %36 : vector<8x32xf32> to vector<1x8x32xf32>
    %52 = arith.truncf %51 : vector<1x8x32xf32> to vector<1x8x32xbf16>
    %53 = vector.shape_cast %43 : vector<8x32xf32> to vector<1x8x32xf32>
    %54 = arith.truncf %53 : vector<1x8x32xf32> to vector<1x8x32xbf16>
    %55 = vector.shape_cast %50 : vector<8x32xf32> to vector<1x8x32xf32>
    %56 = arith.truncf %55 : vector<1x8x32xf32> to vector<1x8x32xbf16>
    %57 = vector.extract_strided_slice %52 {offsets = [0, 0, 0], sizes = [1, 8, 8], strides = [1, 1, 1]} : vector<1x8x32xbf16> to vector<1x8x8xbf16>
    %58 = vector.extract_strided_slice %54 {offsets = [0, 0, 0], sizes = [1, 8, 8], strides = [1, 1, 1]} : vector<1x8x32xbf16> to vector<1x8x8xbf16>
    %59 = vector.extract_strided_slice %56 {offsets = [0, 0, 0], sizes = [1, 8, 8], strides = [1, 1, 1]} : vector<1x8x32xbf16> to vector<1x8x8xbf16>
    "tpu.trace_start"() <{level = 10 : i32, message = "bqd,bkd->bqk"}> : () -> ()
    %cst_34 = arith.constant dense<0.000000e+00> : vector<1x8x8xf32>
    %60 = tpu.matmul %57, %58, %cst_34 {dimension_numbers = #tpu.dot_dimension_numbers<[2], [2], [1], [1], [0, 0, 0, 1, 1, 1], [0], [0]>} : vector<1x8x8xbf16>, vector<1x8x8xbf16>, vector<1x8x8xf32> -> vector<1x8x8xf32>
    "tpu.trace_stop"() : () -> ()
    %cst_35 = arith.constant 0.353553385 : f32
    %61 = vector.broadcast %cst_35 : f32 to vector<1x8x8xf32>
    %62 = arith.mulf %60, %61 : vector<1x8x8xf32>
    %63 = vector.broadcast %1 : vector<1x1x8xf32> to vector<1x8x8xf32>
    %64 = arith.addf %62, %63 : vector<1x8x8xf32>
    %cst_36 = arith.constant dense<0xFF800000> : vector<1x8xf32>
    %65 = vector.multi_reduction <maximumf>, %64, %cst_36 [2] : vector<1x8x8xf32> to vector<1x8xf32>
    %66 = vector.shape_cast %65 : vector<1x8xf32> to vector<1x8x1xf32>
    %67 = vector.broadcast %66 : vector<1x8x1xf32> to vector<1x8x8xf32>
    %68 = arith.subf %64, %67 : vector<1x8x8xf32>
    %69 = math.exp %68 : vector<1x8x8xf32>
    %cst_37 = arith.constant dense<0.000000e+00> : vector<1x8xf32>
    %70 = vector.multi_reduction <add>, %69, %cst_37 [2] : vector<1x8x8xf32> to vector<1x8xf32>
    %71 = vector.shape_cast %70 : vector<1x8xf32> to vector<1x8x1xf32>
    %72 = arith.truncf %69 : vector<1x8x8xf32> to vector<1x8x8xbf16>
    "tpu.trace_start"() <{level = 10 : i32, message = "bqk,bkd->bqd"}> : () -> ()
    %cst_38 = arith.constant dense<0.000000e+00> : vector<1x8x8xf32>
    %73 = tpu.matmul %72, %59, %cst_38 {dimension_numbers = #tpu.dot_dimension_numbers<[2], [1], [1], [2], [0, 0, 0, 1, 1, 2], [0], [0]>} : vector<1x8x8xbf16>, vector<1x8x8xbf16>, vector<1x8x8xf32> -> vector<1x8x8xf32>
    "tpu.trace_stop"() : () -> ()
    %74 = tpu.reciprocal %71 {approx = true} : vector<1x8x1xf32> -> vector<1x8x1xf32>
    %75 = vector.broadcast %74 : vector<1x8x1xf32> to vector<1x8x8xf32>
    %76 = arith.mulf %73, %75 : vector<1x8x8xf32>
    %77 = vector.shape_cast %76 : vector<1x8x8xf32> to vector<8x8xf32>
    %78 = arith.truncf %77 : vector<8x8xf32> to vector<8x8xbf16>
    %c0_39 = arith.constant 0 : index
    %c0_40 = arith.constant 0 : index
    %79 = vector.load %arg24[%c0_39, %c0_40] : memref<8x32xbf16, #tpu.memory_space<vmem>>, vector<8x8xbf16>
    tpu.vector_store %arg24[%c0_39, %c0_40], %78 {strides = array<i32>} : memref<8x32xbf16, #tpu.memory_space<vmem>>, vector<8x8xbf16>,
    %80 = vector.extract_strided_slice %52 {offsets = [0, 0, 8], sizes = [1, 8, 8], strides = [1, 1, 1]} : vector<1x8x32xbf16> to vector<1x8x8xbf16>
    %81 = vector.extract_strided_slice %54 {offsets = [0, 0, 8], sizes = [1, 8, 8], strides = [1, 1, 1]} : vector<1x8x32xbf16> to vector<1x8x8xbf16>
    %82 = vector.extract_strided_slice %56 {offsets = [0, 0, 8], sizes = [1, 8, 8], strides = [1, 1, 1]} : vector<1x8x32xbf16> to vector<1x8x8xbf16>
    "tpu.trace_start"() <{level = 10 : i32, message = "bqd,bkd->bqk"}> : () -> ()
    %cst_41 = arith.constant dense<0.000000e+00> : vector<1x8x8xf32>
    %83 = tpu.matmul %80, %81, %cst_41 {dimension_numbers = #tpu.dot_dimension_numbers<[2], [2], [1], [1], [0, 0, 0, 1, 1, 1], [0], [0]>} : vector<1x8x8xbf16>, vector<1x8x8xbf16>, vector<1x8x8xf32> -> vector<1x8x8xf32>
    "tpu.trace_stop"() : () -> ()
    %cst_42 = arith.constant 0.353553385 : f32
    %84 = vector.broadcast %cst_42 : f32 to vector<1x8x8xf32>
    %85 = arith.mulf %83, %84 : vector<1x8x8xf32>
    %86 = vector.broadcast %1 : vector<1x1x8xf32> to vector<1x8x8xf32>
    %87 = arith.addf %85, %86 : vector<1x8x8xf32>
    %cst_43 = arith.constant dense<0xFF800000> : vector<1x8xf32>
    %88 = vector.multi_reduction <maximumf>, %87, %cst_43 [2] : vector<1x8x8xf32> to vector<1x8xf32>
    %89 = vector.shape_cast %88 : vector<1x8xf32> to vector<1x8x1xf32>
    %90 = vector.broadcast %89 : vector<1x8x1xf32> to vector<1x8x8xf32>
    %91 = arith.subf %87, %90 : vector<1x8x8xf32>
    %92 = math.exp %91 : vector<1x8x8xf32>
    %cst_44 = arith.constant dense<0.000000e+00> : vector<1x8xf32>
    %93 = vector.multi_reduction <add>, %92, %cst_44 [2] : vector<1x8x8xf32> to vector<1x8xf32>
    %94 = vector.shape_cast %93 : vector<1x8xf32> to vector<1x8x1xf32>
    %95 = arith.truncf %92 : vector<1x8x8xf32> to vector<1x8x8xbf16>
    "tpu.trace_start"() <{level = 10 : i32, message = "bqk,bkd->bqd"}> : () -> ()
    %cst_45 = arith.constant dense<0.000000e+00> : vector<1x8x8xf32>
    %96 = tpu.matmul %95, %82, %cst_45 {dimension_numbers = #tpu.dot_dimension_numbers<[2], [1], [1], [2], [0, 0, 0, 1, 1, 2], [0], [0]>} : vector<1x8x8xbf16>, vector<1x8x8xbf16>, vector<1x8x8xf32> -> vector<1x8x8xf32>
    "tpu.trace_stop"() : () -> ()
    %97 = tpu.reciprocal %94 {approx = true} : vector<1x8x1xf32> -> vector<1x8x1xf32>
    %98 = vector.broadcast %97 : vector<1x8x1xf32> to vector<1x8x8xf32>
    %99 = arith.mulf %96, %98 : vector<1x8x8xf32>
    %100 = vector.shape_cast %99 : vector<1x8x8xf32> to vector<8x8xf32>
    %101 = arith.truncf %100 : vector<8x8xf32> to vector<8x8xbf16>
    %c0_46 = arith.constant 0 : index
    %c8 = arith.constant 8 : index
    %102 = vector.load %arg24[%c0_46, %c8] : memref<8x32xbf16, #tpu.memory_space<vmem>>, vector<8x8xbf16>
    tpu.vector_store %arg24[%c0_46, %c8], %101 {strides = array<i32>} : memref<8x32xbf16, #tpu.memory_space<vmem>>, vector<8x8xbf16>,
    %103 = vector.extract_strided_slice %52 {offsets = [0, 0, 16], sizes = [1, 8, 8], strides = [1, 1, 1]} : vector<1x8x32xbf16> to vector<1x8x8xbf16>
    %104 = vector.extract_strided_slice %54 {offsets = [0, 0, 16], sizes = [1, 8, 8], strides = [1, 1, 1]} : vector<1x8x32xbf16> to vector<1x8x8xbf16>
    %105 = vector.extract_strided_slice %56 {offsets = [0, 0, 16], sizes = [1, 8, 8], strides = [1, 1, 1]} : vector<1x8x32xbf16> to vector<1x8x8xbf16>
    "tpu.trace_start"() <{level = 10 : i32, message = "bqd,bkd->bqk"}> : () -> ()
    %cst_47 = arith.constant dense<0.000000e+00> : vector<1x8x8xf32>
    %106 = tpu.matmul %103, %104, %cst_47 {dimension_numbers = #tpu.dot_dimension_numbers<[2], [2], [1], [1], [0, 0, 0, 1, 1, 1], [0], [0]>} : vector<1x8x8xbf16>, vector<1x8x8xbf16>, vector<1x8x8xf32> -> vector<1x8x8xf32>
    "tpu.trace_stop"() : () -> ()
    %cst_48 = arith.constant 0.353553385 : f32
    %107 = vector.broadcast %cst_48 : f32 to vector<1x8x8xf32>
    %108 = arith.mulf %106, %107 : vector<1x8x8xf32>
    %109 = vector.broadcast %1 : vector<1x1x8xf32> to vector<1x8x8xf32>
    %110 = arith.addf %108, %109 : vector<1x8x8xf32>
    %cst_49 = arith.constant dense<0xFF800000> : vector<1x8xf32>
    %111 = vector.multi_reduction <maximumf>, %110, %cst_49 [2] : vector<1x8x8xf32> to vector<1x8xf32>
    %112 = vector.shape_cast %111 : vector<1x8xf32> to vector<1x8x1xf32>
    %113 = vector.broadcast %112 : vector<1x8x1xf32> to vector<1x8x8xf32>
    %114 = arith.subf %110, %113 : vector<1x8x8xf32>
    %115 = math.exp %114 : vector<1x8x8xf32>
    %cst_50 = arith.constant dense<0.000000e+00> : vector<1x8xf32>
    %116 = vector.multi_reduction <add>, %115, %cst_50 [2] : vector<1x8x8xf32> to vector<1x8xf32>
    %117 = vector.shape_cast %116 : vector<1x8xf32> to vector<1x8x1xf32>
    %118 = arith.truncf %115 : vector<1x8x8xf32> to vector<1x8x8xbf16>
    "tpu.trace_start"() <{level = 10 : i32, message = "bqk,bkd->bqd"}> : () -> ()
    %cst_51 = arith.constant dense<0.000000e+00> : vector<1x8x8xf32>
    %119 = tpu.matmul %118, %105, %cst_51 {dimension_numbers = #tpu.dot_dimension_numbers<[2], [1], [1], [2], [0, 0, 0, 1, 1, 2], [0], [0]>} : vector<1x8x8xbf16>, vector<1x8x8xbf16>, vector<1x8x8xf32> -> vector<1x8x8xf32>
    "tpu.trace_stop"() : () -> ()
    %120 = tpu.reciprocal %117 {approx = true} : vector<1x8x1xf32> -> vector<1x8x1xf32>
    %121 = vector.broadcast %120 : vector<1x8x1xf32> to vector<1x8x8xf32>
    %122 = arith.mulf %119, %121 : vector<1x8x8xf32>
    %123 = vector.shape_cast %122 : vector<1x8x8xf32> to vector<8x8xf32>
    %124 = arith.truncf %123 : vector<8x8xf32> to vector<8x8xbf16>
    %c0_52 = arith.constant 0 : index
    %c16 = arith.constant 16 : index
    %125 = vector.load %arg24[%c0_52, %c16] : memref<8x32xbf16, #tpu.memory_space<vmem>>, vector<8x8xbf16>
    tpu.vector_store %arg24[%c0_52, %c16], %124 {strides = array<i32>} : memref<8x32xbf16, #tpu.memory_space<vmem>>, vector<8x8xbf16>,
    %126 = vector.extract_strided_slice %52 {offsets = [0, 0, 24], sizes = [1, 8, 8], strides = [1, 1, 1]} : vector<1x8x32xbf16> to vector<1x8x8xbf16>
    %127 = vector.extract_strided_slice %54 {offsets = [0, 0, 24], sizes = [1, 8, 8], strides = [1, 1, 1]} : vector<1x8x32xbf16> to vector<1x8x8xbf16>
    %128 = vector.extract_strided_slice %56 {offsets = [0, 0, 24], sizes = [1, 8, 8], strides = [1, 1, 1]} : vector<1x8x32xbf16> to vector<1x8x8xbf16>
    "tpu.trace_start"() <{level = 10 : i32, message = "bqd,bkd->bqk"}> : () -> ()
    %cst_53 = arith.constant dense<0.000000e+00> : vector<1x8x8xf32>
    %129 = tpu.matmul %126, %127, %cst_53 {dimension_numbers = #tpu.dot_dimension_numbers<[2], [2], [1], [1], [0, 0, 0, 1, 1, 1], [0], [0]>} : vector<1x8x8xbf16>, vector<1x8x8xbf16>, vector<1x8x8xf32> -> vector<1x8x8xf32>
    "tpu.trace_stop"() : () -> ()
    %cst_54 = arith.constant 0.353553385 : f32
    %130 = vector.broadcast %cst_54 : f32 to vector<1x8x8xf32>
    %131 = arith.mulf %129, %130 : vector<1x8x8xf32>
    %132 = vector.broadcast %1 : vector<1x1x8xf32> to vector<1x8x8xf32>
    %133 = arith.addf %131, %132 : vector<1x8x8xf32>
    %cst_55 = arith.constant dense<0xFF800000> : vector<1x8xf32>
    %134 = vector.multi_reduction <maximumf>, %133, %cst_55 [2] : vector<1x8x8xf32> to vector<1x8xf32>
    %135 = vector.shape_cast %134 : vector<1x8xf32> to vector<1x8x1xf32>
    %136 = vector.broadcast %135 : vector<1x8x1xf32> to vector<1x8x8xf32>
    %137 = arith.subf %133, %136 : vector<1x8x8xf32>
    %138 = math.exp %137 : vector<1x8x8xf32>
    %cst_56 = arith.constant dense<0.000000e+00> : vector<1x8xf32>
    %139 = vector.multi_reduction <add>, %138, %cst_56 [2] : vector<1x8x8xf32> to vector<1x8xf32>
    %140 = vector.shape_cast %139 : vector<1x8xf32> to vector<1x8x1xf32>
    %141 = arith.truncf %138 : vector<1x8x8xf32> to vector<1x8x8xbf16>
    "tpu.trace_start"() <{level = 10 : i32, message = "bqk,bkd->bqd"}> : () -> ()
    %cst_57 = arith.constant dense<0.000000e+00> : vector<1x8x8xf32>
    %142 = tpu.matmul %141, %128, %cst_57 {dimension_numbers = #tpu.dot_dimension_numbers<[2], [1], [1], [2], [0, 0, 0, 1, 1, 2], [0], [0]>} : vector<1x8x8xbf16>, vector<1x8x8xbf16>, vector<1x8x8xf32> -> vector<1x8x8xf32>
    "tpu.trace_stop"() : () -> ()
    %143 = tpu.reciprocal %140 {approx = true} : vector<1x8x1xf32> -> vector<1x8x1xf32>
    %144 = vector.broadcast %143 : vector<1x8x1xf32> to vector<1x8x8xf32>
    %145 = arith.mulf %142, %144 : vector<1x8x8xf32>
    %146 = vector.shape_cast %145 : vector<1x8x8xf32> to vector<8x8xf32>
    %147 = arith.truncf %146 : vector<8x8xf32> to vector<8x8xbf16>
    %c0_58 = arith.constant 0 : index
    %c24 = arith.constant 24 : index
    %148 = vector.load %arg24[%c0_58, %c24] : memref<8x32xbf16, #tpu.memory_space<vmem>>, vector<8x8xbf16>
    tpu.vector_store %arg24[%c0_58, %c24], %147 {strides = array<i32>} : memref<8x32xbf16, #tpu.memory_space<vmem>>, vector<8x8xbf16>,
    %c0_59 = arith.constant 0 : index
    %c0_60 = arith.constant 0 : index
    %149 = vector.load %arg24[%c0_59, %c0_60] : memref<8x32xbf16, #tpu.memory_space<vmem>>, vector<8x32xbf16>
    %c0_61 = arith.constant 0 : index
    %c0_62 = arith.constant 0 : index
    %c0_63 = arith.constant 0 : index
    %150 = vector.load %arg11[%c0_61, %c0_62, %c0_63] : memref<2x32x32xbf16, #tpu.memory_space<vmem>>, vector<1x32x32xbf16>
    %151 = vector.shape_cast %150 : vector<1x32x32xbf16> to vector<32x32xbf16>
    %cst_64 = arith.constant dense<0.000000e+00> : vector<8x32xf32>
    %152 = tpu.matmul %149, %151, %cst_64 {dimension_numbers = #tpu.dot_dimension_numbers<[1], [0], [0], [1], [0, 0, 1, 1], [], []>} : vector<8x32xbf16>, vector<32x32xbf16>, vector<8x32xf32> -> vector<8x32xf32>
    %c0_65 = arith.constant 0 : index
    %c0_66 = arith.constant 0 : index
    %c0_67 = arith.constant 0 : index
    %153 = vector.load %arg12[%c0_65, %c0_66, %c0_67] : memref<2x1x32xf32, #tpu.memory_space<vmem>>, vector<1x1x32xf32>
    %154 = vector.shape_cast %153 : vector<1x1x32xf32> to vector<1x32xf32>
    %155 = vector.broadcast %154 : vector<1x32xf32> to vector<8x32xf32>
    %156 = arith.addf %152, %155 : vector<8x32xf32>
    %157 = arith.addf %28, %156 : vector<8x32xf32>
    %c0_68 = arith.constant 0 : index
    %c0_69 = arith.constant 0 : index
    %c0_70 = arith.constant 0 : index
    %158 = vector.load %arg13[%c0_68, %c0_69, %c0_70] : memref<2x1x32xf32, #tpu.memory_space<vmem>>, vector<1x1x32xf32>
    %159 = vector.shape_cast %158 : vector<1x1x32xf32> to vector<1x32xf32>
    %c0_71 = arith.constant 0 : index
    %c0_72 = arith.constant 0 : index
    %c0_73 = arith.constant 0 : index
    %160 = vector.load %arg14[%c0_71, %c0_72, %c0_73] : memref<2x1x32xf32, #tpu.memory_space<vmem>>, vector<1x1x32xf32>
    %161 = vector.shape_cast %160 : vector<1x1x32xf32> to vector<1x32xf32>
    %cst_74 = arith.constant dense<0.000000e+00> : vector<8xf32>
    %162 = vector.multi_reduction <add>, %157, %cst_74 [1] : vector<8x32xf32> to vector<8xf32>
    %163 = vector.shape_cast %162 : vector<8xf32> to vector<8x1xf32>
    %cst_75 = arith.constant 3.200000e+01 : f32
    %164 = vector.broadcast %cst_75 : f32 to vector<8x1xf32>
    %165 = arith.divf %163, %164 : vector<8x1xf32>
    %166 = vector.broadcast %165 : vector<8x1xf32> to vector<8x32xf32>
    %167 = arith.subf %157, %166 : vector<8x32xf32>
    %168 = arith.mulf %167, %167 : vector<8x32xf32>
    %cst_76 = arith.constant dense<0.000000e+00> : vector<8xf32>
    %169 = vector.multi_reduction <add>, %168, %cst_76 [1] : vector<8x32xf32> to vector<8xf32>
    %170 = vector.shape_cast %169 : vector<8xf32> to vector<8x1xf32>
    %cst_77 = arith.constant 3.200000e+01 : f32
    %171 = vector.broadcast %cst_77 : f32 to vector<8x1xf32>
    %172 = arith.divf %170, %171 : vector<8x1xf32>
    %173 = vector.broadcast %165 : vector<8x1xf32> to vector<8x32xf32>
    %174 = arith.subf %157, %173 : vector<8x32xf32>
    %cst_78 = arith.constant 9.99999996E-13 : f32
    %175 = vector.broadcast %cst_78 : f32 to vector<8x1xf32>
    %176 = arith.addf %172, %175 : vector<8x1xf32>
    %177 = math.rsqrt %176 : vector<8x1xf32>
    %178 = vector.broadcast %177 : vector<8x1xf32> to vector<8x32xf32>
    %179 = arith.mulf %174, %178 : vector<8x32xf32>
    %180 = vector.broadcast %159 : vector<1x32xf32> to vector<8x32xf32>
    %181 = arith.mulf %179, %180 : vector<8x32xf32>
    %182 = vector.broadcast %161 : vector<1x32xf32> to vector<8x32xf32>
    %183 = arith.addf %181, %182 : vector<8x32xf32>
    %184 = arith.truncf %183 : vector<8x32xf32> to vector<8x32xbf16>
    %c0_79 = arith.constant 0 : index
    %c0_80 = arith.constant 0 : index
    %c0_81 = arith.constant 0 : index
    %185 = vector.load %arg15[%c0_79, %c0_80, %c0_81] : memref<2x32x64xbf16, #tpu.memory_space<vmem>>, vector<1x32x64xbf16>
    %186 = vector.shape_cast %185 : vector<1x32x64xbf16> to vector<32x64xbf16>
    %cst_82 = arith.constant dense<0.000000e+00> : vector<8x64xf32>
    %187 = tpu.matmul %184, %186, %cst_82 {dimension_numbers = #tpu.dot_dimension_numbers<[1], [0], [0], [1], [0, 0, 1, 1], [], []>} : vector<8x32xbf16>, vector<32x64xbf16>, vector<8x64xf32> -> vector<8x64xf32>
    %c0_83 = arith.constant 0 : index
    %c0_84 = arith.constant 0 : index
    %c0_85 = arith.constant 0 : index
    %188 = vector.load %arg16[%c0_83, %c0_84, %c0_85] : memref<2x1x64xf32, #tpu.memory_space<vmem>>, vector<1x1x64xf32>
    %189 = vector.shape_cast %188 : vector<1x1x64xf32> to vector<1x64xf32>
    %190 = vector.broadcast %189 : vector<1x64xf32> to vector<8x64xf32>
    %191 = arith.addf %187, %190 : vector<8x64xf32>
    %192 = arith.mulf %191, %191 : vector<8x64xf32>
    %193 = arith.mulf %191, %192 : vector<8x64xf32>
    %cst_86 = arith.constant 4.471500e-02 : f32
    %194 = vector.broadcast %cst_86 : f32 to vector<8x64xf32>
    %195 = arith.mulf %194, %193 : vector<8x64xf32>
    %196 = arith.addf %191, %195 : vector<8x64xf32>
    %cst_87 = arith.constant 0.797884583 : f32
    %197 = vector.broadcast %cst_87 : f32 to vector<8x64xf32>
    %198 = arith.mulf %197, %196 : vector<8x64xf32>
    %199 = math.tanh %198 : vector<8x64xf32>
    %cst_88 = arith.constant 1.000000e+00 : f32
    %200 = vector.broadcast %cst_88 : f32 to vector<8x64xf32>
    %201 = arith.addf %200, %199 : vector<8x64xf32>
    %cst_89 = arith.constant 5.000000e-01 : f32
    %202 = vector.broadcast %cst_89 : f32 to vector<8x64xf32>
    %203 = arith.mulf %202, %201 : vector<8x64xf32>
    %204 = arith.mulf %191, %203 : vector<8x64xf32>
    %205 = arith.truncf %204 : vector<8x64xf32> to vector<8x64xbf16>
    %c0_90 = arith.constant 0 : index
    %c0_91 = arith.constant 0 : index
    %c0_92 = arith.constant 0 : index
    %206 = vector.load %arg17[%c0_90, %c0_91, %c0_92] : memref<2x64x32xbf16, #tpu.memory_space<vmem>>, vector<1x64x32xbf16>
    %207 = vector.shape_cast %206 : vector<1x64x32xbf16> to vector<64x32xbf16>
    %cst_93 = arith.constant dense<0.000000e+00> : vector<8x32xf32>
    %208 = tpu.matmul %205, %207, %cst_93 {dimension_numbers = #tpu.dot_dimension_numbers<[1], [0], [0], [1], [0, 0, 1, 1], [], []>} : vector<8x64xbf16>, vector<64x32xbf16>, vector<8x32xf32> -> vector<8x32xf32>
    %c0_94 = arith.constant 0 : index
    %c0_95 = arith.constant 0 : index
    %c0_96 = arith.constant 0 : index
    %209 = vector.load %arg18[%c0_94, %c0_95, %c0_96] : memref<2x1x32xf32, #tpu.memory_space<vmem>>, vector<1x1x32xf32>
    %210 = vector.shape_cast %209 : vector<1x1x32xf32> to vector<1x32xf32>
    %211 = vector.broadcast %210 : vector<1x32xf32> to vector<8x32xf32>
    %212 = arith.addf %208, %211 : vector<8x32xf32>
    %213 = arith.addf %183, %212 : vector<8x32xf32>
    %c0_97 = arith.constant 0 : index
    %c0_98 = arith.constant 0 : index
    %c0_99 = arith.constant 0 : index
    %214 = vector.load %arg19[%c0_97, %c0_98, %c0_99] : memref<2x1x32xf32, #tpu.memory_space<vmem>>, vector<1x1x32xf32>
    %215 = vector.shape_cast %214 : vector<1x1x32xf32> to vector<1x32xf32>
    %c0_100 = arith.constant 0 : index
    %c0_101 = arith.constant 0 : index
    %c0_102 = arith.constant 0 : index
    %216 = vector.load %arg20[%c0_100, %c0_101, %c0_102] : memref<2x1x32xf32, #tpu.memory_space<vmem>>, vector<1x1x32xf32>
    %217 = vector.shape_cast %216 : vector<1x1x32xf32> to vector<1x32xf32>
    %cst_103 = arith.constant dense<0.000000e+00> : vector<8xf32>
    %218 = vector.multi_reduction <add>, %213, %cst_103 [1] : vector<8x32xf32> to vector<8xf32>
    %219 = vector.shape_cast %218 : vector<8xf32> to vector<8x1xf32>
    %cst_104 = arith.constant 3.200000e+01 : f32
    %220 = vector.broadcast %cst_104 : f32 to vector<8x1xf32>
    %221 = arith.divf %219, %220 : vector<8x1xf32>
    %222 = vector.broadcast %221 : vector<8x1xf32> to vector<8x32xf32>
    %223 = arith.subf %213, %222 : vector<8x32xf32>
    %224 = arith.mulf %223, %223 : vector<8x32xf32>
    %cst_105 = arith.constant dense<0.000000e+00> : vector<8xf32>
    %225 = vector.multi_reduction <add>, %224, %cst_105 [1] : vector<8x32xf32> to vector<8xf32>
    %226 = vector.shape_cast %225 : vector<8xf32> to vector<8x1xf32>
    %cst_106 = arith.constant 3.200000e+01 : f32
    %227 = vector.broadcast %cst_106 : f32 to vector<8x1xf32>
    %228 = arith.divf %226, %227 : vector<8x1xf32>
    %229 = vector.broadcast %221 : vector<8x1xf32> to vector<8x32xf32>
    %230 = arith.subf %213, %229 : vector<8x32xf32>
    %cst_107 = arith.constant 9.99999996E-13 : f32
    %231 = vector.broadcast %cst_107 : f32 to vector<8x1xf32>
    %232 = arith.addf %228, %231 : vector<8x1xf32>
    %233 = math.rsqrt %232 : vector<8x1xf32>
    %234 = vector.broadcast %233 : vector<8x1xf32> to vector<8x32xf32>
    %235 = arith.mulf %230, %234 : vector<8x32xf32>
    %236 = vector.broadcast %215 : vector<1x32xf32> to vector<8x32xf32>
    %237 = arith.mulf %235, %236 : vector<8x32xf32>
    %238 = vector.broadcast %217 : vector<1x32xf32> to vector<8x32xf32>
    %239 = arith.addf %237, %238 : vector<8x32xf32>
    %240 = arith.truncf %239 : vector<8x32xf32> to vector<8x32xbf16>
    %c1 = arith.constant 1 : index
    %c0_108 = arith.constant 0 : index
    %c0_109 = arith.constant 0 : index
    %241 = vector.load %arg5[%c1, %c0_108, %c0_109] : memref<2x32x32xbf16, #tpu.memory_space<vmem>>, vector<1x32x32xbf16>
    %242 = vector.shape_cast %241 : vector<1x32x32xbf16> to vector<32x32xbf16>
    %cst_110 = arith.constant dense<0.000000e+00> : vector<8x32xf32>
    %243 = tpu.matmul %240, %242, %cst_110 {dimension_numbers = #tpu.dot_dimension_numbers<[1], [0], [0], [1], [0, 0, 1, 1], [], []>} : vector<8x32xbf16>, vector<32x32xbf16>, vector<8x32xf32> -> vector<8x32xf32>
    %c1_111 = arith.constant 1 : index
    %c0_112 = arith.constant 0 : index
    %c0_113 = arith.constant 0 : index
    %244 = vector.load %arg6[%c1_111, %c0_112, %c0_113] : memref<2x1x32xf32, #tpu.memory_space<vmem>>, vector<1x1x32xf32>
    %245 = vector.shape_cast %244 : vector<1x1x32xf32> to vector<1x32xf32>
    %246 = vector.broadcast %245 : vector<1x32xf32> to vector<8x32xf32>
    %247 = arith.addf %243, %246 : vector<8x32xf32>
    %c1_114 = arith.constant 1 : index
    %c0_115 = arith.constant 0 : index
    %c0_116 = arith.constant 0 : index
    %248 = vector.load %arg7[%c1_114, %c0_115, %c0_116] : memref<2x32x32xbf16, #tpu.memory_space<vmem>>, vector<1x32x32xbf16>
    %249 = vector.shape_cast %248 : vector<1x32x32xbf16> to vector<32x32xbf16>
    %cst_117 = arith.constant dense<0.000000e+00> : vector<8x32xf32>
    %250 = tpu.matmul %240, %249, %cst_117 {dimension_numbers = #tpu.dot_dimension_numbers<[1], [0], [0], [1], [0, 0, 1, 1], [], []>} : vector<8x32xbf16>, vector<32x32xbf16>, vector<8x32xf32> -> vector<8x32xf32>
    %c1_118 = arith.constant 1 : index
    %c0_119 = arith.constant 0 : index
    %c0_120 = arith.constant 0 : index
    %251 = vector.load %arg8[%c1_118, %c0_119, %c0_120] : memref<2x1x32xf32, #tpu.memory_space<vmem>>, vector<1x1x32xf32>
    %252 = vector.shape_cast %251 : vector<1x1x32xf32> to vector<1x32xf32>
    %253 = vector.broadcast %252 : vector<1x32xf32> to vector<8x32xf32>
    %254 = arith.addf %250, %253 : vector<8x32xf32>
    %c1_121 = arith.constant 1 : index
    %c0_122 = arith.constant 0 : index
    %c0_123 = arith.constant 0 : index
    %255 = vector.load %arg9[%c1_121, %c0_122, %c0_123] : memref<2x32x32xbf16, #tpu.memory_space<vmem>>, vector<1x32x32xbf16>
    %256 = vector.shape_cast %255 : vector<1x32x32xbf16> to vector<32x32xbf16>
    %cst_124 = arith.constant dense<0.000000e+00> : vector<8x32xf32>
    %257 = tpu.matmul %240, %256, %cst_124 {dimension_numbers = #tpu.dot_dimension_numbers<[1], [0], [0], [1], [0, 0, 1, 1], [], []>} : vector<8x32xbf16>, vector<32x32xbf16>, vector<8x32xf32> -> vector<8x32xf32>
    %c1_125 = arith.constant 1 : index
    %c0_126 = arith.constant 0 : index
    %c0_127 = arith.constant 0 : index
    %258 = vector.load %arg10[%c1_125, %c0_126, %c0_127] : memref<2x1x32xf32, #tpu.memory_space<vmem>>, vector<1x1x32xf32>
    %259 = vector.shape_cast %258 : vector<1x1x32xf32> to vector<1x32xf32>
    %260 = vector.broadcast %259 : vector<1x32xf32> to vector<8x32xf32>
    %261 = arith.addf %257, %260 : vector<8x32xf32>
    %262 = vector.shape_cast %247 : vector<8x32xf32> to vector<1x8x32xf32>
    %263 = arith.truncf %262 : vector<1x8x32xf32> to vector<1x8x32xbf16>
    %264 = vector.shape_cast %254 : vector<8x32xf32> to vector<1x8x32xf32>
    %265 = arith.truncf %264 : vector<1x8x32xf32> to vector<1x8x32xbf16>
    %266 = vector.shape_cast %261 : vector<8x32xf32> to vector<1x8x32xf32>
    %267 = arith.truncf %266 : vector<1x8x32xf32> to vector<1x8x32xbf16>
    %268 = vector.extract_strided_slice %263 {offsets = [0, 0, 0], sizes = [1, 8, 8], strides = [1, 1, 1]} : vector<1x8x32xbf16> to vector<1x8x8xbf16>
    %269 = vector.extract_strided_slice %265 {offsets = [0, 0, 0], sizes = [1, 8, 8], strides = [1, 1, 1]} : vector<1x8x32xbf16> to vector<1x8x8xbf16>
    %270 = vector.extract_strided_slice %267 {offsets = [0, 0, 0], sizes = [1, 8, 8], strides = [1, 1, 1]} : vector<1x8x32xbf16> to vector<1x8x8xbf16>
    "tpu.trace_start"() <{level = 10 : i32, message = "bqd,bkd->bqk"}> : () -> ()
    %cst_128 = arith.constant dense<0.000000e+00> : vector<1x8x8xf32>
    %271 = tpu.matmul %268, %269, %cst_128 {dimension_numbers = #tpu.dot_dimension_numbers<[2], [2], [1], [1], [0, 0, 0, 1, 1, 1], [0], [0]>} : vector<1x8x8xbf16>, vector<1x8x8xbf16>, vector<1x8x8xf32> -> vector<1x8x8xf32>
    "tpu.trace_stop"() : () -> ()
    %cst_129 = arith.constant 0.353553385 : f32
    %272 = vector.broadcast %cst_129 : f32 to vector<1x8x8xf32>
    %273 = arith.mulf %271, %272 : vector<1x8x8xf32>
    %274 = vector.broadcast %1 : vector<1x1x8xf32> to vector<1x8x8xf32>
    %275 = arith.addf %273, %274 : vector<1x8x8xf32>
    %cst_130 = arith.constant dense<0xFF800000> : vector<1x8xf32>
    %276 = vector.multi_reduction <maximumf>, %275, %cst_130 [2] : vector<1x8x8xf32> to vector<1x8xf32>
    %277 = vector.shape_cast %276 : vector<1x8xf32> to vector<1x8x1xf32>
    %278 = vector.broadcast %277 : vector<1x8x1xf32> to vector<1x8x8xf32>
    %279 = arith.subf %275, %278 : vector<1x8x8xf32>
    %280 = math.exp %279 : vector<1x8x8xf32>
    %cst_131 = arith.constant dense<0.000000e+00> : vector<1x8xf32>
    %281 = vector.multi_reduction <add>, %280, %cst_131 [2] : vector<1x8x8xf32> to vector<1x8xf32>
    %282 = vector.shape_cast %281 : vector<1x8xf32> to vector<1x8x1xf32>
    %283 = arith.truncf %280 : vector<1x8x8xf32> to vector<1x8x8xbf16>
    "tpu.trace_start"() <{level = 10 : i32, message = "bqk,bkd->bqd"}> : () -> ()
    %cst_132 = arith.constant dense<0.000000e+00> : vector<1x8x8xf32>
    %284 = tpu.matmul %283, %270, %cst_132 {dimension_numbers = #tpu.dot_dimension_numbers<[2], [1], [1], [2], [0, 0, 0, 1, 1, 2], [0], [0]>} : vector<1x8x8xbf16>, vector<1x8x8xbf16>, vector<1x8x8xf32> -> vector<1x8x8xf32>
    "tpu.trace_stop"() : () -> ()
    %285 = tpu.reciprocal %282 {approx = true} : vector<1x8x1xf32> -> vector<1x8x1xf32>
    %286 = vector.broadcast %285 : vector<1x8x1xf32> to vector<1x8x8xf32>
    %287 = arith.mulf %284, %286 : vector<1x8x8xf32>
    %288 = vector.shape_cast %287 : vector<1x8x8xf32> to vector<8x8xf32>
    %289 = arith.truncf %288 : vector<8x8xf32> to vector<8x8xbf16>
    %c0_133 = arith.constant 0 : index
    %c0_134 = arith.constant 0 : index
    %290 = vector.load %arg24[%c0_133, %c0_134] : memref<8x32xbf16, #tpu.memory_space<vmem>>, vector<8x8xbf16>
    tpu.vector_store %arg24[%c0_133, %c0_134], %289 {strides = array<i32>} : memref<8x32xbf16, #tpu.memory_space<vmem>>, vector<8x8xbf16>,
    %291 = vector.extract_strided_slice %263 {offsets = [0, 0, 8], sizes = [1, 8, 8], strides = [1, 1, 1]} : vector<1x8x32xbf16> to vector<1x8x8xbf16>
    %292 = vector.extract_strided_slice %265 {offsets = [0, 0, 8], sizes = [1, 8, 8], strides = [1, 1, 1]} : vector<1x8x32xbf16> to vector<1x8x8xbf16>
    %293 = vector.extract_strided_slice %267 {offsets = [0, 0, 8], sizes = [1, 8, 8], strides = [1, 1, 1]} : vector<1x8x32xbf16> to vector<1x8x8xbf16>
    "tpu.trace_start"() <{level = 10 : i32, message = "bqd,bkd->bqk"}> : () -> ()
    %cst_135 = arith.constant dense<0.000000e+00> : vector<1x8x8xf32>
    %294 = tpu.matmul %291, %292, %cst_135 {dimension_numbers = #tpu.dot_dimension_numbers<[2], [2], [1], [1], [0, 0, 0, 1, 1, 1], [0], [0]>} : vector<1x8x8xbf16>, vector<1x8x8xbf16>, vector<1x8x8xf32> -> vector<1x8x8xf32>
    "tpu.trace_stop"() : () -> ()
    %cst_136 = arith.constant 0.353553385 : f32
    %295 = vector.broadcast %cst_136 : f32 to vector<1x8x8xf32>
    %296 = arith.mulf %294, %295 : vector<1x8x8xf32>
    %297 = vector.broadcast %1 : vector<1x1x8xf32> to vector<1x8x8xf32>
    %298 = arith.addf %296, %297 : vector<1x8x8xf32>
    %cst_137 = arith.constant dense<0xFF800000> : vector<1x8xf32>
    %299 = vector.multi_reduction <maximumf>, %298, %cst_137 [2] : vector<1x8x8xf32> to vector<1x8xf32>
    %300 = vector.shape_cast %299 : vector<1x8xf32> to vector<1x8x1xf32>
    %301 = vector.broadcast %300 : vector<1x8x1xf32> to vector<1x8x8xf32>
    %302 = arith.subf %298, %301 : vector<1x8x8xf32>
    %303 = math.exp %302 : vector<1x8x8xf32>
    %cst_138 = arith.constant dense<0.000000e+00> : vector<1x8xf32>
    %304 = vector.multi_reduction <add>, %303, %cst_138 [2] : vector<1x8x8xf32> to vector<1x8xf32>
    %305 = vector.shape_cast %304 : vector<1x8xf32> to vector<1x8x1xf32>
    %306 = arith.truncf %303 : vector<1x8x8xf32> to vector<1x8x8xbf16>
    "tpu.trace_start"() <{level = 10 : i32, message = "bqk,bkd->bqd"}> : () -> ()
    %cst_139 = arith.constant dense<0.000000e+00> : vector<1x8x8xf32>
    %307 = tpu.matmul %306, %293, %cst_139 {dimension_numbers = #tpu.dot_dimension_numbers<[2], [1], [1], [2], [0, 0, 0, 1, 1, 2], [0], [0]>} : vector<1x8x8xbf16>, vector<1x8x8xbf16>, vector<1x8x8xf32> -> vector<1x8x8xf32>
    "tpu.trace_stop"() : () -> ()
    %308 = tpu.reciprocal %305 {approx = true} : vector<1x8x1xf32> -> vector<1x8x1xf32>
    %309 = vector.broadcast %308 : vector<1x8x1xf32> to vector<1x8x8xf32>
    %310 = arith.mulf %307, %309 : vector<1x8x8xf32>
    %311 = vector.shape_cast %310 : vector<1x8x8xf32> to vector<8x8xf32>
    %312 = arith.truncf %311 : vector<8x8xf32> to vector<8x8xbf16>
    %c0_140 = arith.constant 0 : index
    %c8_141 = arith.constant 8 : index
    %313 = vector.load %arg24[%c0_140, %c8_141] : memref<8x32xbf16, #tpu.memory_space<vmem>>, vector<8x8xbf16>
    tpu.vector_store %arg24[%c0_140, %c8_141], %312 {strides = array<i32>} : memref<8x32xbf16, #tpu.memory_space<vmem>>, vector<8x8xbf16>,
    %314 = vector.extract_strided_slice %263 {offsets = [0, 0, 16], sizes = [1, 8, 8], strides = [1, 1, 1]} : vector<1x8x32xbf16> to vector<1x8x8xbf16>
    %315 = vector.extract_strided_slice %265 {offsets = [0, 0, 16], sizes = [1, 8, 8], strides = [1, 1, 1]} : vector<1x8x32xbf16> to vector<1x8x8xbf16>
    %316 = vector.extract_strided_slice %267 {offsets = [0, 0, 16], sizes = [1, 8, 8], strides = [1, 1, 1]} : vector<1x8x32xbf16> to vector<1x8x8xbf16>
    "tpu.trace_start"() <{level = 10 : i32, message = "bqd,bkd->bqk"}> : () -> ()
    %cst_142 = arith.constant dense<0.000000e+00> : vector<1x8x8xf32>
    %317 = tpu.matmul %314, %315, %cst_142 {dimension_numbers = #tpu.dot_dimension_numbers<[2], [2], [1], [1], [0, 0, 0, 1, 1, 1], [0], [0]>} : vector<1x8x8xbf16>, vector<1x8x8xbf16>, vector<1x8x8xf32> -> vector<1x8x8xf32>
    "tpu.trace_stop"() : () -> ()
    %cst_143 = arith.constant 0.353553385 : f32
    %318 = vector.broadcast %cst_143 : f32 to vector<1x8x8xf32>
    %319 = arith.mulf %317, %318 : vector<1x8x8xf32>
    %320 = vector.broadcast %1 : vector<1x1x8xf32> to vector<1x8x8xf32>
    %321 = arith.addf %319, %320 : vector<1x8x8xf32>
    %cst_144 = arith.constant dense<0xFF800000> : vector<1x8xf32>
    %322 = vector.multi_reduction <maximumf>, %321, %cst_144 [2] : vector<1x8x8xf32> to vector<1x8xf32>
    %323 = vector.shape_cast %322 : vector<1x8xf32> to vector<1x8x1xf32>
    %324 = vector.broadcast %323 : vector<1x8x1xf32> to vector<1x8x8xf32>
    %325 = arith.subf %321, %324 : vector<1x8x8xf32>
    %326 = math.exp %325 : vector<1x8x8xf32>
    %cst_145 = arith.constant dense<0.000000e+00> : vector<1x8xf32>
    %327 = vector.multi_reduction <add>, %326, %cst_145 [2] : vector<1x8x8xf32> to vector<1x8xf32>
    %328 = vector.shape_cast %327 : vector<1x8xf32> to vector<1x8x1xf32>
    %329 = arith.truncf %326 : vector<1x8x8xf32> to vector<1x8x8xbf16>
    "tpu.trace_start"() <{level = 10 : i32, message = "bqk,bkd->bqd"}> : () -> ()
    %cst_146 = arith.constant dense<0.000000e+00> : vector<1x8x8xf32>
    %330 = tpu.matmul %329, %316, %cst_146 {dimension_numbers = #tpu.dot_dimension_numbers<[2], [1], [1], [2], [0, 0, 0, 1, 1, 2], [0], [0]>} : vector<1x8x8xbf16>, vector<1x8x8xbf16>, vector<1x8x8xf32> -> vector<1x8x8xf32>
    "tpu.trace_stop"() : () -> ()
    %331 = tpu.reciprocal %328 {approx = true} : vector<1x8x1xf32> -> vector<1x8x1xf32>
    %332 = vector.broadcast %331 : vector<1x8x1xf32> to vector<1x8x8xf32>
    %333 = arith.mulf %330, %332 : vector<1x8x8xf32>
    %334 = vector.shape_cast %333 : vector<1x8x8xf32> to vector<8x8xf32>
    %335 = arith.truncf %334 : vector<8x8xf32> to vector<8x8xbf16>
    %c0_147 = arith.constant 0 : index
    %c16_148 = arith.constant 16 : index
    %336 = vector.load %arg24[%c0_147, %c16_148] : memref<8x32xbf16, #tpu.memory_space<vmem>>, vector<8x8xbf16>
    tpu.vector_store %arg24[%c0_147, %c16_148], %335 {strides = array<i32>} : memref<8x32xbf16, #tpu.memory_space<vmem>>, vector<8x8xbf16>,
    %337 = vector.extract_strided_slice %263 {offsets = [0, 0, 24], sizes = [1, 8, 8], strides = [1, 1, 1]} : vector<1x8x32xbf16> to vector<1x8x8xbf16>
    %338 = vector.extract_strided_slice %265 {offsets = [0, 0, 24], sizes = [1, 8, 8], strides = [1, 1, 1]} : vector<1x8x32xbf16> to vector<1x8x8xbf16>
    %339 = vector.extract_strided_slice %267 {offsets = [0, 0, 24], sizes = [1, 8, 8], strides = [1, 1, 1]} : vector<1x8x32xbf16> to vector<1x8x8xbf16>
    "tpu.trace_start"() <{level = 10 : i32, message = "bqd,bkd->bqk"}> : () -> ()
    %cst_149 = arith.constant dense<0.000000e+00> : vector<1x8x8xf32>
    %340 = tpu.matmul %337, %338, %cst_149 {dimension_numbers = #tpu.dot_dimension_numbers<[2], [2], [1], [1], [0, 0, 0, 1, 1, 1], [0], [0]>} : vector<1x8x8xbf16>, vector<1x8x8xbf16>, vector<1x8x8xf32> -> vector<1x8x8xf32>
    "tpu.trace_stop"() : () -> ()
    %cst_150 = arith.constant 0.353553385 : f32
    %341 = vector.broadcast %cst_150 : f32 to vector<1x8x8xf32>
    %342 = arith.mulf %340, %341 : vector<1x8x8xf32>
    %343 = vector.broadcast %1 : vector<1x1x8xf32> to vector<1x8x8xf32>
    %344 = arith.addf %342, %343 : vector<1x8x8xf32>
    %cst_151 = arith.constant dense<0xFF800000> : vector<1x8xf32>
    %345 = vector.multi_reduction <maximumf>, %344, %cst_151 [2] : vector<1x8x8xf32> to vector<1x8xf32>
    %346 = vector.shape_cast %345 : vector<1x8xf32> to vector<1x8x1xf32>
    %347 = vector.broadcast %346 : vector<1x8x1xf32> to vector<1x8x8xf32>
    %348 = arith.subf %344, %347 : vector<1x8x8xf32>
    %349 = math.exp %348 : vector<1x8x8xf32>
    %cst_152 = arith.constant dense<0.000000e+00> : vector<1x8xf32>
    %350 = vector.multi_reduction <add>, %349, %cst_152 [2] : vector<1x8x8xf32> to vector<1x8xf32>
    %351 = vector.shape_cast %350 : vector<1x8xf32> to vector<1x8x1xf32>
    %352 = arith.truncf %349 : vector<1x8x8xf32> to vector<1x8x8xbf16>
    "tpu.trace_start"() <{level = 10 : i32, message = "bqk,bkd->bqd"}> : () -> ()
    %cst_153 = arith.constant dense<0.000000e+00> : vector<1x8x8xf32>
    %353 = tpu.matmul %352, %339, %cst_153 {dimension_numbers = #tpu.dot_dimension_numbers<[2], [1], [1], [2], [0, 0, 0, 1, 1, 2], [0], [0]>} : vector<1x8x8xbf16>, vector<1x8x8xbf16>, vector<1x8x8xf32> -> vector<1x8x8xf32>
    "tpu.trace_stop"() : () -> ()
    %354 = tpu.reciprocal %351 {approx = true} : vector<1x8x1xf32> -> vector<1x8x1xf32>
    %355 = vector.broadcast %354 : vector<1x8x1xf32> to vector<1x8x8xf32>
    %356 = arith.mulf %353, %355 : vector<1x8x8xf32>
    %357 = vector.shape_cast %356 : vector<1x8x8xf32> to vector<8x8xf32>
    %358 = arith.truncf %357 : vector<8x8xf32> to vector<8x8xbf16>
    %c0_154 = arith.constant 0 : index
    %c24_155 = arith.constant 24 : index
    %359 = vector.load %arg24[%c0_154, %c24_155] : memref<8x32xbf16, #tpu.memory_space<vmem>>, vector<8x8xbf16>
    tpu.vector_store %arg24[%c0_154, %c24_155], %358 {strides = array<i32>} : memref<8x32xbf16, #tpu.memory_space<vmem>>, vector<8x8xbf16>,
    %c0_156 = arith.constant 0 : index
    %c0_157 = arith.constant 0 : index
    %360 = vector.load %arg24[%c0_156, %c0_157] : memref<8x32xbf16, #tpu.memory_space<vmem>>, vector<8x32xbf16>
    %c1_158 = arith.constant 1 : index
    %c0_159 = arith.constant 0 : index
    %c0_160 = arith.constant 0 : index
    %361 = vector.load %arg11[%c1_158, %c0_159, %c0_160] : memref<2x32x32xbf16, #tpu.memory_space<vmem>>, vector<1x32x32xbf16>
    %362 = vector.shape_cast %361 : vector<1x32x32xbf16> to vector<32x32xbf16>
    %cst_161 = arith.constant dense<0.000000e+00> : vector<8x32xf32>
    %363 = tpu.matmul %360, %362, %cst_161 {dimension_numbers = #tpu.dot_dimension_numbers<[1], [0], [0], [1], [0, 0, 1, 1], [], []>} : vector<8x32xbf16>, vector<32x32xbf16>, vector<8x32xf32> -> vector<8x32xf32>
    %c1_162 = arith.constant 1 : index
    %c0_163 = arith.constant 0 : index
    %c0_164 = arith.constant 0 : index
    %364 = vector.load %arg12[%c1_162, %c0_163, %c0_164] : memref<2x1x32xf32, #tpu.memory_space<vmem>>, vector<1x1x32xf32>
    %365 = vector.shape_cast %364 : vector<1x1x32xf32> to vector<1x32xf32>
    %366 = vector.broadcast %365 : vector<1x32xf32> to vector<8x32xf32>
    %367 = arith.addf %363, %366 : vector<8x32xf32>
    %368 = arith.addf %239, %367 : vector<8x32xf32>
    %c1_165 = arith.constant 1 : index
    %c0_166 = arith.constant 0 : index
    %c0_167 = arith.constant 0 : index
    %369 = vector.load %arg13[%c1_165, %c0_166, %c0_167] : memref<2x1x32xf32, #tpu.memory_space<vmem>>, vector<1x1x32xf32>
    %370 = vector.shape_cast %369 : vector<1x1x32xf32> to vector<1x32xf32>
    %c1_168 = arith.constant 1 : index
    %c0_169 = arith.constant 0 : index
    %c0_170 = arith.constant 0 : index
    %371 = vector.load %arg14[%c1_168, %c0_169, %c0_170] : memref<2x1x32xf32, #tpu.memory_space<vmem>>, vector<1x1x32xf32>
    %372 = vector.shape_cast %371 : vector<1x1x32xf32> to vector<1x32xf32>
    %cst_171 = arith.constant dense<0.000000e+00> : vector<8xf32>
    %373 = vector.multi_reduction <add>, %368, %cst_171 [1] : vector<8x32xf32> to vector<8xf32>
    %374 = vector.shape_cast %373 : vector<8xf32> to vector<8x1xf32>
    %cst_172 = arith.constant 3.200000e+01 : f32
    %375 = vector.broadcast %cst_172 : f32 to vector<8x1xf32>
    %376 = arith.divf %374, %375 : vector<8x1xf32>
    %377 = vector.broadcast %376 : vector<8x1xf32> to vector<8x32xf32>
    %378 = arith.subf %368, %377 : vector<8x32xf32>
    %379 = arith.mulf %378, %378 : vector<8x32xf32>
    %cst_173 = arith.constant dense<0.000000e+00> : vector<8xf32>
    %380 = vector.multi_reduction <add>, %379, %cst_173 [1] : vector<8x32xf32> to vector<8xf32>
    %381 = vector.shape_cast %380 : vector<8xf32> to vector<8x1xf32>
    %cst_174 = arith.constant 3.200000e+01 : f32
    %382 = vector.broadcast %cst_174 : f32 to vector<8x1xf32>
    %383 = arith.divf %381, %382 : vector<8x1xf32>
    %384 = vector.broadcast %376 : vector<8x1xf32> to vector<8x32xf32>
    %385 = arith.subf %368, %384 : vector<8x32xf32>
    %cst_175 = arith.constant 9.99999996E-13 : f32
    %386 = vector.broadcast %cst_175 : f32 to vector<8x1xf32>
    %387 = arith.addf %383, %386 : vector<8x1xf32>
    %388 = math.rsqrt %387 : vector<8x1xf32>
    %389 = vector.broadcast %388 : vector<8x1xf32> to vector<8x32xf32>
    %390 = arith.mulf %385, %389 : vector<8x32xf32>
    %391 = vector.broadcast %370 : vector<1x32xf32> to vector<8x32xf32>
    %392 = arith.mulf %390, %391 : vector<8x32xf32>
    %393 = vector.broadcast %372 : vector<1x32xf32> to vector<8x32xf32>
    %394 = arith.addf %392, %393 : vector<8x32xf32>
    %395 = arith.truncf %394 : vector<8x32xf32> to vector<8x32xbf16>
    %c1_176 = arith.constant 1 : index
    %c0_177 = arith.constant 0 : index
    %c0_178 = arith.constant 0 : index
    %396 = vector.load %arg15[%c1_176, %c0_177, %c0_178] : memref<2x32x64xbf16, #tpu.memory_space<vmem>>, vector<1x32x64xbf16>
    %397 = vector.shape_cast %396 : vector<1x32x64xbf16> to vector<32x64xbf16>
    %cst_179 = arith.constant dense<0.000000e+00> : vector<8x64xf32>
    %398 = tpu.matmul %395, %397, %cst_179 {dimension_numbers = #tpu.dot_dimension_numbers<[1], [0], [0], [1], [0, 0, 1, 1], [], []>} : vector<8x32xbf16>, vector<32x64xbf16>, vector<8x64xf32> -> vector<8x64xf32>
    %c1_180 = arith.constant 1 : index
    %c0_181 = arith.constant 0 : index
    %c0_182 = arith.constant 0 : index
    %399 = vector.load %arg16[%c1_180, %c0_181, %c0_182] : memref<2x1x64xf32, #tpu.memory_space<vmem>>, vector<1x1x64xf32>
    %400 = vector.shape_cast %399 : vector<1x1x64xf32> to vector<1x64xf32>
    %401 = vector.broadcast %400 : vector<1x64xf32> to vector<8x64xf32>
    %402 = arith.addf %398, %401 : vector<8x64xf32>
    %403 = arith.mulf %402, %402 : vector<8x64xf32>
    %404 = arith.mulf %402, %403 : vector<8x64xf32>
    %cst_183 = arith.constant 4.471500e-02 : f32
    %405 = vector.broadcast %cst_183 : f32 to vector<8x64xf32>
    %406 = arith.mulf %405, %404 : vector<8x64xf32>
    %407 = arith.addf %402, %406 : vector<8x64xf32>
    %cst_184 = arith.constant 0.797884583 : f32
    %408 = vector.broadcast %cst_184 : f32 to vector<8x64xf32>
    %409 = arith.mulf %408, %407 : vector<8x64xf32>
    %410 = math.tanh %409 : vector<8x64xf32>
    %cst_185 = arith.constant 1.000000e+00 : f32
    %411 = vector.broadcast %cst_185 : f32 to vector<8x64xf32>
    %412 = arith.addf %411, %410 : vector<8x64xf32>
    %cst_186 = arith.constant 5.000000e-01 : f32
    %413 = vector.broadcast %cst_186 : f32 to vector<8x64xf32>
    %414 = arith.mulf %413, %412 : vector<8x64xf32>
    %415 = arith.mulf %402, %414 : vector<8x64xf32>
    %416 = arith.truncf %415 : vector<8x64xf32> to vector<8x64xbf16>
    %c1_187 = arith.constant 1 : index
    %c0_188 = arith.constant 0 : index
    %c0_189 = arith.constant 0 : index
    %417 = vector.load %arg17[%c1_187, %c0_188, %c0_189] : memref<2x64x32xbf16, #tpu.memory_space<vmem>>, vector<1x64x32xbf16>
    %418 = vector.shape_cast %417 : vector<1x64x32xbf16> to vector<64x32xbf16>
    %cst_190 = arith.constant dense<0.000000e+00> : vector<8x32xf32>
    %419 = tpu.matmul %416, %418, %cst_190 {dimension_numbers = #tpu.dot_dimension_numbers<[1], [0], [0], [1], [0, 0, 1, 1], [], []>} : vector<8x64xbf16>, vector<64x32xbf16>, vector<8x32xf32> -> vector<8x32xf32>
    %c1_191 = arith.constant 1 : index
    %c0_192 = arith.constant 0 : index
    %c0_193 = arith.constant 0 : index
    %420 = vector.load %arg18[%c1_191, %c0_192, %c0_193] : memref<2x1x32xf32, #tpu.memory_space<vmem>>, vector<1x1x32xf32>
    %421 = vector.shape_cast %420 : vector<1x1x32xf32> to vector<1x32xf32>
    %422 = vector.broadcast %421 : vector<1x32xf32> to vector<8x32xf32>
    %423 = arith.addf %419, %422 : vector<8x32xf32>
    %424 = arith.addf %394, %423 : vector<8x32xf32>
    %c1_194 = arith.constant 1 : index
    %c0_195 = arith.constant 0 : index
    %c0_196 = arith.constant 0 : index
    %425 = vector.load %arg19[%c1_194, %c0_195, %c0_196] : memref<2x1x32xf32, #tpu.memory_space<vmem>>, vector<1x1x32xf32>
    %426 = vector.shape_cast %425 : vector<1x1x32xf32> to vector<1x32xf32>
    %c1_197 = arith.constant 1 : index
    %c0_198 = arith.constant 0 : index
    %c0_199 = arith.constant 0 : index
    %427 = vector.load %arg20[%c1_197, %c0_198, %c0_199] : memref<2x1x32xf32, #tpu.memory_space<vmem>>, vector<1x1x32xf32>
    %428 = vector.shape_cast %427 : vector<1x1x32xf32> to vector<1x32xf32>
    %cst_200 = arith.constant dense<0.000000e+00> : vector<8xf32>
    %429 = vector.multi_reduction <add>, %424, %cst_200 [1] : vector<8x32xf32> to vector<8xf32>
    %430 = vector.shape_cast %429 : vector<8xf32> to vector<8x1xf32>
    %cst_201 = arith.constant 3.200000e+01 : f32
    %431 = vector.broadcast %cst_201 : f32 to vector<8x1xf32>
    %432 = arith.divf %430, %431 : vector<8x1xf32>
    %433 = vector.broadcast %432 : vector<8x1xf32> to vector<8x32xf32>
    %434 = arith.subf %424, %433 : vector<8x32xf32>
    %435 = arith.mulf %434, %434 : vector<8x32xf32>
    %cst_202 = arith.constant dense<0.000000e+00> : vector<8xf32>
    %436 = vector.multi_reduction <add>, %435, %cst_202 [1] : vector<8x32xf32> to vector<8xf32>
    %437 = vector.shape_cast %436 : vector<8xf32> to vector<8x1xf32>
    %cst_203 = arith.constant 3.200000e+01 : f32
    %438 = vector.broadcast %cst_203 : f32 to vector<8x1xf32>
    %439 = arith.divf %437, %438 : vector<8x1xf32>
    %440 = vector.broadcast %432 : vector<8x1xf32> to vector<8x32xf32>
    %441 = arith.subf %424, %440 : vector<8x32xf32>
    %cst_204 = arith.constant 9.99999996E-13 : f32
    %442 = vector.broadcast %cst_204 : f32 to vector<8x1xf32>
    %443 = arith.addf %439, %442 : vector<8x1xf32>
    %444 = math.rsqrt %443 : vector<8x1xf32>
    %445 = vector.broadcast %444 : vector<8x1xf32> to vector<8x32xf32>
    %446 = arith.mulf %441, %445 : vector<8x32xf32>
    %447 = vector.broadcast %426 : vector<1x32xf32> to vector<8x32xf32>
    %448 = arith.mulf %446, %447 : vector<8x32xf32>
    %449 = vector.broadcast %428 : vector<1x32xf32> to vector<8x32xf32>
    %450 = arith.addf %448, %449 : vector<8x32xf32>
    %451 = vector.shape_cast %450 : vector<8x32xf32> to vector<1x8x32xf32>
    %452 = vector.extract_strided_slice %451 {offsets = [0, 0, 0], sizes = [1, 1, 32], strides = [1, 1, 1]} : vector<1x8x32xf32> to vector<1x1x32xf32>
    %453 = vector.shape_cast %452 : vector<1x1x32xf32> to vector<1x32xf32>
    %454 = arith.truncf %453 : vector<1x32xf32> to vector<1x32xbf16>
    %c0_205 = arith.constant 0 : index
    %c0_206 = arith.constant 0 : index
    %455 = vector.load %arg21[%c0_205, %c0_206] : memref<32x1xbf16, #tpu.memory_space<vmem>>, vector<32x1xbf16>
    %cst_207 = arith.constant dense<0.000000e+00> : vector<1x1xf32>
    %456 = tpu.matmul %454, %455, %cst_207 {dimension_numbers = #tpu.dot_dimension_numbers<[1], [0], [0], [1], [0, 0, 1, 1], [], []>} : vector<1x32xbf16>, vector<32x1xbf16>, vector<1x1xf32> -> vector<1x1xf32>
    %c0_208 = arith.constant 0 : index
    %c0_209 = arith.constant 0 : index
    %457 = vector.load %arg22[%c0_208, %c0_209] : memref<1x1xf32, #tpu.memory_space<vmem>>, vector<1x1xf32>
    %458 = arith.addf %456, %457 : vector<1x1xf32>
    %c0_210 = arith.constant 0 : index
    %c0_211 = arith.constant 0 : index
    %c0_212 = arith.constant 0 : index
    %459 = vector.load %arg23[%c0_210, %c0_211, %c0_212] : memref<1x1x1xf32, #tpu.memory_space<vmem>>, vector<1x1x1xf32>
    %460 = vector.shape_cast %459 : vector<1x1x1xf32> to vector<1x1xf32>
    %461 = vector.shape_cast %458 : vector<1x1xf32> to vector<1x1x1xf32>
    tpu.vector_store %arg23[%c0_210, %c0_211, %c0_212], %461 {strides = array<i32>} : memref<1x1x1xf32, #tpu.memory_space<vmem>>, vector<1x1x1xf32>,
    return
  }
  func.func @transform_0(%arg0: i32) -> (i32, i32, i32) {
    %c0_i32 = arith.constant 0 : i32
    %c0_i32_0 = arith.constant 0 : i32
    %c0_i32_1 = arith.constant 0 : i32
    return %arg0, %c0_i32, %c0_i32_0 : i32, i32, i32
  }
  func.func @transform_1(%arg0: i32) -> (i32, i32, i32) {
    %c0_i32 = arith.constant 0 : i32
    %c0_i32_0 = arith.constant 0 : i32
    %c0_i32_1 = arith.constant 0 : i32
    return %arg0, %c0_i32, %c0_i32_0 : i32, i32, i32
  }
  func.func @transform_2(%arg0: i32) -> (i32, i32) {
    %c0_i32 = arith.constant 0 : i32
    %c0_i32_0 = arith.constant 0 : i32
    %c0_i32_1 = arith.constant 0 : i32
    return %c0_i32, %c0_i32_0 : i32, i32
  }
  func.func @transform_3(%arg0: i32) -> (i32, i32) {
    %c0_i32 = arith.constant 0 : i32
    %c0_i32_0 = arith.constant 0 : i32
    %c0_i32_1 = arith.constant 0 : i32
    return %c0_i32, %c0_i32_0 : i32, i32
  }
  func.func @transform_4(%arg0: i32) -> (i32, i32, i32) {
    %c0_i32 = arith.constant 0 : i32
    %c0_i32_0 = arith.constant 0 : i32
    %c0_i32_1 = arith.constant 0 : i32
    %c0_i32_2 = arith.constant 0 : i32
    return %c0_i32, %c0_i32_0, %c0_i32_1 : i32, i32, i32
  }
  func.func @transform_5(%arg0: i32) -> (i32, i32, i32) {
    %c0_i32 = arith.constant 0 : i32
    %c0_i32_0 = arith.constant 0 : i32
    %c0_i32_1 = arith.constant 0 : i32
    %c0_i32_2 = arith.constant 0 : i32
    return %c0_i32, %c0_i32_0, %c0_i32_1 : i32, i32, i32
  }
  func.func @transform_6(%arg0: i32) -> (i32, i32, i32) {
    %c0_i32 = arith.constant 0 : i32
    %c0_i32_0 = arith.constant 0 : i32
    %c0_i32_1 = arith.constant 0 : i32
    %c0_i32_2 = arith.constant 0 : i32
    return %c0_i32, %c0_i32_0, %c0_i32_1 : i32, i32, i32
  }
  func.func @transform_7(%arg0: i32) -> (i32, i32, i32) {
    %c0_i32 = arith.constant 0 : i32
    %c0_i32_0 = arith.constant 0 : i32
    %c0_i32_1 = arith.constant 0 : i32
    %c0_i32_2 = arith.constant 0 : i32
    return %c0_i32, %c0_i32_0, %c0_i32_1 : i32, i32, i32
  }
  func.func @transform_8(%arg0: i32) -> (i32, i32, i32) {
    %c0_i32 = arith.constant 0 : i32
    %c0_i32_0 = arith.constant 0 : i32
    %c0_i32_1 = arith.constant 0 : i32
    %c0_i32_2 = arith.constant 0 : i32
    return %c0_i32, %c0_i32_0, %c0_i32_1 : i32, i32, i32
  }
  func.func @transform_9(%arg0: i32) -> (i32, i32, i32) {
    %c0_i32 = arith.constant 0 : i32
    %c0_i32_0 = arith.constant 0 : i32
    %c0_i32_1 = arith.constant 0 : i32
    %c0_i32_2 = arith.constant 0 : i32
    return %c0_i32, %c0_i32_0, %c0_i32_1 : i32, i32, i32
  }
  func.func @transform_10(%arg0: i32) -> (i32, i32, i32) {
    %c0_i32 = arith.constant 0 : i32
    %c0_i32_0 = arith.constant 0 : i32
    %c0_i32_1 = arith.constant 0 : i32
    %c0_i32_2 = arith.constant 0 : i32
    return %c0_i32, %c0_i32_0, %c0_i32_1 : i32, i32, i32
  }
  func.func @transform_11(%arg0: i32) -> (i32, i32, i32) {
    %c0_i32 = arith.constant 0 : i32
    %c0_i32_0 = arith.constant 0 : i32
    %c0_i32_1 = arith.constant 0 : i32
    %c0_i32_2 = arith.constant 0 : i32
    return %c0_i32, %c0_i32_0, %c0_i32_1 : i32, i32, i32
  }
  func.func @transform_12(%arg0: i32) -> (i32, i32, i32) {
    %c0_i32 = arith.constant 0 : i32
    %c0_i32_0 = arith.constant 0 : i32
    %c0_i32_1 = arith.constant 0 : i32
    %c0_i32_2 = arith.constant 0 : i32
    return %c0_i32, %c0_i32_0, %c0_i32_1 : i32, i32, i32
  }
  func.func @transform_13(%arg0: i32) -> (i32, i32, i32) {
    %c0_i32 = arith.constant 0 : i32
    %c0_i32_0 = arith.constant 0 : i32
    %c0_i32_1 = arith.constant 0 : i32
    %c0_i32_2 = arith.constant 0 : i32
    return %c0_i32, %c0_i32_0, %c0_i32_1 : i32, i32, i32
  }
  func.func @transform_14(%arg0: i32) -> (i32, i32, i32) {
    %c0_i32 = arith.constant 0 : i32
    %c0_i32_0 = arith.constant 0 : i32
    %c0_i32_1 = arith.constant 0 : i32
    %c0_i32_2 = arith.constant 0 : i32
    return %c0_i32, %c0_i32_0, %c0_i32_1 : i32, i32, i32
  }
  func.func @transform_15(%arg0: i32) -> (i32, i32, i32) {
    %c0_i32 = arith.constant 0 : i32
    %c0_i32_0 = arith.constant 0 : i32
    %c0_i32_1 = arith.constant 0 : i32
    %c0_i32_2 = arith.constant 0 : i32
    return %c0_i32, %c0_i32_0, %c0_i32_1 : i32, i32, i32
  }
  func.func @transform_16(%arg0: i32) -> (i32, i32, i32) {
    %c0_i32 = arith.constant 0 : i32
    %c0_i32_0 = arith.constant 0 : i32
    %c0_i32_1 = arith.constant 0 : i32
    %c0_i32_2 = arith.constant 0 : i32
    return %c0_i32, %c0_i32_0, %c0_i32_1 : i32, i32, i32
  }
  func.func @transform_17(%arg0: i32) -> (i32, i32, i32) {
    %c0_i32 = arith.constant 0 : i32
    %c0_i32_0 = arith.constant 0 : i32
    %c0_i32_1 = arith.constant 0 : i32
    %c0_i32_2 = arith.constant 0 : i32
    return %c0_i32, %c0_i32_0, %c0_i32_1 : i32, i32, i32
  }
  func.func @transform_18(%arg0: i32) -> (i32, i32, i32) {
    %c0_i32 = arith.constant 0 : i32
    %c0_i32_0 = arith.constant 0 : i32
    %c0_i32_1 = arith.constant 0 : i32
    %c0_i32_2 = arith.constant 0 : i32
    return %c0_i32, %c0_i32_0, %c0_i32_1 : i32, i32, i32
  }
  func.func @transform_19(%arg0: i32) -> (i32, i32, i32) {
    %c0_i32 = arith.constant 0 : i32
    %c0_i32_0 = arith.constant 0 : i32
    %c0_i32_1 = arith.constant 0 : i32
    %c0_i32_2 = arith.constant 0 : i32
    return %c0_i32, %c0_i32_0, %c0_i32_1 : i32, i32, i32
  }
  func.func @transform_20(%arg0: i32) -> (i32, i32) {
    %c0_i32 = arith.constant 0 : i32
    %c0_i32_0 = arith.constant 0 : i32
    %c0_i32_1 = arith.constant 0 : i32
    return %c0_i32, %c0_i32_0 : i32, i32
  }
  func.func @transform_21(%arg0: i32) -> (i32, i32) {
    %c0_i32 = arith.constant 0 : i32
    %c0_i32_0 = arith.constant 0 : i32
    %c0_i32_1 = arith.constant 0 : i32
    return %c0_i32, %c0_i32_0 : i32, i32
  }
  func.func @transform_22(%arg0: i32) -> (i32, i32, i32) {
    %c0_i32 = arith.constant 0 : i32
    %c0_i32_0 = arith.constant 0 : i32
    %c0_i32_1 = arith.constant 0 : i32
    return %arg0, %c0_i32, %c0_i32_0 : i32, i32, i32
  }
}

</mosaic_0001>

<llo_original>
// kernel: tpu_custom_call.1
$region0: #{tpu_custom_call.1}
  #allocation0 [shape = 'u32[]', space=smem, size = 0x4, offset = 0x4, fixed_abs, tag = 'smem constant byte address 0x4 - core index']
  #allocation1 [shape = 'u32[144,128]{1,0:T(1,128)}', space=vmem, size = 0x12000, scoped, tag = 'internal scratch']
  #allocation2 [shape = 'bf16[8,32]{1,0:T(8,128)(2,1)}', space=vmem, size = 0x800, scoped, tag = 'scratch operand']
  #allocation3 [shape = 'f32[1,1]{1,0:T(1,128)S(1)}', space=vmem, size = 0x200, scoped, tag = 'scoped memory for tpu_custom_call.1']
  %s0 = inlined_call_operand.hbm [shape: bf16[2,8,32], index: 0, kind: input, shape index: {}]
  %s1 = inlined_call_operand.vmem [shape: bf16[2,1,8], index: 1, kind: input, shape index: {}]
  %s2 = inlined_call_operand.hbm [shape: f32[1,32], index: 2, kind: input, shape index: {}]
  %s3 = inlined_call_operand.hbm [shape: f32[1,32], index: 3, kind: input, shape index: {}]
  %s4 = inlined_call_operand.vmem [shape: bf16[2,32,32], index: 4, kind: input, shape index: {}]
  %s5 = inlined_call_operand.vmem [shape: f32[2,1,32], index: 5, kind: input, shape index: {}]
  %s6 = inlined_call_operand.vmem [shape: bf16[2,32,32], index: 6, kind: input, shape index: {}]
  %s7 = inlined_call_operand.hbm [shape: f32[2,1,32], index: 7, kind: input, shape index: {}]
  %s8 = inlined_call_operand.vmem [shape: bf16[2,32,32], index: 8, kind: input, shape index: {}]
  %s9 = inlined_call_operand.hbm [shape: f32[2,1,32], index: 9, kind: input, shape index: {}]
  %s10 = inlined_call_operand.hbm [shape: bf16[2,32,32], index: 10, kind: input, shape index: {}]
  %s11 = inlined_call_operand.hbm [shape: f32[2,1,32], index: 11, kind: input, shape index: {}]
  %s12 = inlined_call_operand.vmem [shape: f32[2,1,32], index: 12, kind: input, shape index: {}]
  %s13 = inlined_call_operand.vmem [shape: f32[2,1,32], index: 13, kind: input, shape index: {}]
  %s14 = inlined_call_operand.vmem [shape: bf16[2,32,64], index: 14, kind: input, shape index: {}]
  %s15 = inlined_call_operand.vmem [shape: f32[2,1,64], index: 15, kind: input, shape index: {}]
  %s16 = inlined_call_operand.vmem [shape: bf16[2,64,32], index: 16, kind: input, shape index: {}]
  %s17 = inlined_call_operand.vmem [shape: f32[2,1,32], index: 17, kind: input, shape index: {}]
  %s18 = inlined_call_operand.vmem [shape: f32[2,1,32], index: 18, kind: input, shape index: {}]
  %s19 = inlined_call_operand.vmem [shape: f32[2,1,32], index: 19, kind: input, shape index: {}]
  %s20 = inlined_call_operand.vmem [shape: bf16[32,1], index: 20, kind: input, shape index: {}]
  %s21 = inlined_call_operand.<no memory space> [shape: f32[1,1], index: 21, kind: input, shape index: {}]
  %s22 = inlined_call_operand.vmem [shape: f32[2,1,1], index: 22, kind: output, shape index: {}]
  %s23 = sld [smem:[#allocation0]]
  $region149: #{tpu_custom_call.1} parent=0
    _
  %s25 = ssub.s32 1, %s23
  %s26 = scalar_select 0, %s25, %s23
  %v27 = vstv %s21
  %28 = vst [vmem:[#allocation3] sm:$0x1] %v27
  $region1: #{tpu_custom_call.1} parent=0
    #allocation4 [shape = 'u8[4096]{0}', space=vmem, size = 0x1000, scoped, tag = 'input window, operand 0']
    #allocation5 [shape = 's32[2]{0}', space=sflag, size = 0x8, scoped, tag = 'scoped memory for tpu_custom_call.1']
    #allocation6 [shape = 'u8[512]{0}', space=vmem, size = 0x400, scoped, tag = 'input window, operand 2, single buffered']
    #allocation7 [shape = 's32[1]{0}', space=sflag, size = 0x4, scoped, tag = 'scoped memory for tpu_custom_call.1']
    #allocation8 [shape = 'u8[512]{0}', space=vmem, size = 0x400, scoped, tag = 'input window, operand 3, single buffered']
    #allocation9 [shape = 'u8[1024]{0}', space=vmem, size = 0x400, scoped, tag = 'input window, operand 7, single buffered']
    #allocation10 [shape = 's32[1]{0}', space=sflag, size = 0x4, scoped, tag = 'scoped memory for tpu_custom_call.1']
    #allocation11 [shape = 'u8[1024]{0}', space=vmem, size = 0x400, scoped, tag = 'input window, operand 9, single buffered']
    #allocation12 [shape = 'u8[16384]{0}', space=vmem, size = 0x4000, scoped, tag = 'input window, operand 10, single buffered']
    #allocation13 [shape = 's32[1]{0}', space=sflag, size = 0x4, scoped, tag = 'scoped memory for tpu_custom_call.1']
    #allocation14 [shape = 'u8[1024]{0}', space=vmem, size = 0x400, scoped, tag = 'input window, operand 11, single buffered']
    %29 = vsyncpa [#allocation5], 0
    %s30 = scalar_lea.sflag [#allocation5], 1
    %31 = vsyncpa %s30, 0
    %32 = vsyncpa [#allocation7], 0
    %33 = vsyncpa [#allocation10], 0
    %34 = vsyncpa [#allocation13], 0
    loop: start=0, step=1, limit=4
    $region2: #{tpu_custom_call.1} parent=1 // loop_pre_header
      _
    $region3: #{tpu_custom_call.1} parent=1 // loop_header
      %s36 = sphi 0, %s40
      %p37 = scmp.ge.s32.totalorder %s36, 4
      %s46 = sphi 0, %s48
      %s49 = sphi 0, %s46
      %s50 = sphi 0, %s49
      %s66 = sphi 0, %s50
      %s72 = sphi 0, %s74
      %s75 = sphi 0, %s72
      %s76 = sphi 0, %s75
      %s92 = sphi 0, %s76
      %s96 = sphi 0, %s96
      %s98 = sphi 0, %s96
      %s99 = sphi 0, %s98
      %s113 = sphi 0, %s99
      %s117 = sphi 0, %s117
      %s119 = sphi 0, %s117
      %s120 = sphi 0, %s119
      %s134 = sphi 0, %s120
      %s138 = sphi 0, %s138
      %s140 = sphi 0, %s138
      %s141 = sphi 0, %s140
      %s155 = sphi 0, %s141
      %s159 = sphi 0, %s159
      %s161 = sphi 0, %s159
      %s162 = sphi 0, %s161
      %s176 = sphi 0, %s162
      %s180 = sphi 0, %s180
      %s182 = sphi 0, %s180
      %s183 = sphi 0, %s182
      %s197 = sphi 0, %s183
      %s201 = sphi 0, %s201
      %s203 = sphi 0, %s201
      %s204 = sphi 0, %s203
      %s218 = sphi 0, %s204
      %s222 = sphi 0, %s222
      %s224 = sphi 0, %s222
      %s225 = sphi 0, %s224
      %s239 = sphi 0, %s225
      %s243 = sphi 0, %s243
      %s245 = sphi 0, %s243
      %s246 = sphi 0, %s245
      %s260 = sphi 0, %s246
      %s264 = sphi 0, %s264
      %s266 = sphi 0, %s264
      %s267 = sphi 0, %s266
      %s281 = sphi 0, %s267
      %s285 = sphi 0, %s285
      %s287 = sphi 0, %s285
      %s288 = sphi 0, %s287
      %s302 = sphi 0, %s288
      %s306 = sphi 0, %s306
      %s308 = sphi 0, %s306
      %s309 = sphi 0, %s308
      %s323 = sphi 0, %s309
      %s327 = sphi 0, %s327
      %s329 = sphi 0, %s327
      %s330 = sphi 0, %s329
      %s344 = sphi 0, %s330
      %s348 = sphi 0, %s348
      %s350 = sphi 0, %s348
      %s351 = sphi 0, %s350
      %s365 = sphi 0, %s351
      %s369 = sphi 0, %s369
      %s371 = sphi 0, %s369
      %s372 = sphi 0, %s371
      %s386 = sphi 0, %s372
      %s390 = sphi 0, %s390
      %s392 = sphi 0, %s390
      %s393 = sphi 0, %s392
      %s407 = sphi 0, %s393
      %s411 = sphi 0, %s411
      %s413 = sphi 0, %s411
      %s414 = sphi 0, %s413
      %s428 = sphi 0, %s414
      %s432 = sphi 0, %s432
      %s434 = sphi 0, %s432
      %s435 = sphi 0, %s434
      %s449 = sphi 0, %s435
      %s453 = sphi 0, %s453
      %s455 = sphi 0, %s453
      %s456 = sphi 0, %s455
      %s470 = sphi 0, %s456
      %s474 = sphi 0, %s474
      %s476 = sphi 0, %s474
      %s477 = sphi 0, %s476
      %s491 = sphi 0, %s477
      %s495 = sphi 0, %s495
      %s497 = sphi 0, %s495
      %s498 = sphi 0, %s497
      %s512 = sphi 0, %s498
      %s518 = sphi 0, %s520
      %s521 = sphi 0, %s518
      %s522 = sphi 0, %s521
      %s538 = sphi 0, %s522
    $region4: #{tpu_custom_call.1} parent=1 // loop_header_branch
      %39 = sbr.rel (%p37) target = $region8
    $region5: #{tpu_custom_call.1} parent=1 // loop_body
      %s41 = ssub.s32 %s36, 1
      %s42 = ssub.s32 %s36, 2
      %s43 = sadd.s32 %s36, 1
      %s44 = ssub.s32 %s36, %s43
      %p45 = scmp.eq.s32.totalorder %s44, 0
      %s47 = sadd.s32 %s46, 1
      %s48 = scalar_select %p45, %s46, %s47
      %p51 = pneg %p45
      %p52 = scmp.eq.s32.totalorder %s36, 1
      %p53 = por %p51, %p52
      %p54 = scmp.ne.s32.totalorder %s46, %s49
      %p55 = scmp.eq.s32.totalorder %s36, 0
      %p56 = por %p54, %p55
      %p57 = scmp.ne.s32.totalorder %s46, %s49
      %p58 = scmp.eq.s32.totalorder %s41, 1
      %p59 = por %p57, %p58
      %p60 = scmp.ne.s32.totalorder %s49, %s50
      %p61 = scmp.eq.s32.totalorder %s41, 0
      %p62 = por %p60, %p61
      %p63 = scmp.ne.s32.totalorder %s49, %s50
      %p64 = scmp.eq.s32.totalorder %s42, 1
      %p65 = por %p63, %p64
      %p67 = scmp.ne.s32.totalorder %s50, %s66
      %p68 = scmp.eq.s32.totalorder %s42, 0
      %p69 = por %p67, %p68
      %s70 = ssub.s32 %s36, %s43
      %p71 = scmp.eq.s32.totalorder %s70, 0
      %s73 = sadd.s32 %s72, 1
      %s74 = scalar_select %p71, %s72, %s73
      %p77 = pneg %p71
      %p78 = scmp.eq.s32.totalorder %s36, 1
      %p79 = por %p77, %p78
      %p80 = scmp.ne.s32.totalorder %s72, %s75
      %p81 = scmp.eq.s32.totalorder %s36, 0
      %p82 = por %p80, %p81
      %p83 = scmp.ne.s32.totalorder %s72, %s75
      %p84 = scmp.eq.s32.totalorder %s41, 1
      %p85 = por %p83, %p84
      %p86 = scmp.ne.s32.totalorder %s75, %s76
      %p87 = scmp.eq.s32.totalorder %s41, 0
      %p88 = por %p86, %p87
      %p89 = scmp.ne.s32.totalorder %s75, %s76
      %p90 = scmp.eq.s32.totalorder %s42, 1
      %p91 = por %p89, %p90
      %p93 = scmp.ne.s32.totalorder %s76, %s92
      %p94 = scmp.eq.s32.totalorder %s42, 0
      %p95 = por %p93, %p94
      %s97 = sadd.s32 %s96, 1
      %p100 = scmp.eq.s32.totalorder %s36, 1
      %p101 = scmp.ne.s32.totalorder %s96, %s98
      %p102 = scmp.eq.s32.totalorder %s36, 0
      %p103 = por %p101, %p102
      %p104 = scmp.ne.s32.totalorder %s96, %s98
      %p105 = scmp.eq.s32.totalorder %s41, 1
      %p106 = por %p104, %p105
      %p107 = scmp.ne.s32.totalorder %s98, %s99
      %p108 = scmp.eq.s32.totalorder %s41, 0
      %p109 = por %p107, %p108
      %p110 = scmp.ne.s32.totalorder %s98, %s99
      %p111 = scmp.eq.s32.totalorder %s42, 1
      %p112 = por %p110, %p111
      %p114 = scmp.ne.s32.totalorder %s99, %s113
      %p115 = scmp.eq.s32.totalorder %s42, 0
      %p116 = por %p114, %p115
      %s118 = sadd.s32 %s117, 1
      %p121 = scmp.eq.s32.totalorder %s36, 1
      %p122 = scmp.ne.s32.totalorder %s117, %s119
      %p123 = scmp.eq.s32.totalorder %s36, 0
      %p124 = por %p122, %p123
      %p125 = scmp.ne.s32.totalorder %s117, %s119
      %p126 = scmp.eq.s32.totalorder %s41, 1
      %p127 = por %p125, %p126
      %p128 = scmp.ne.s32.totalorder %s119, %s120
      %p129 = scmp.eq.s32.totalorder %s41, 0
      %p130 = por %p128, %p129
      %p131 = scmp.ne.s32.totalorder %s119, %s120
      %p132 = scmp.eq.s32.totalorder %s42, 1
      %p133 = por %p131, %p132
      %p135 = scmp.ne.s32.totalorder %s120, %s134
      %p136 = scmp.eq.s32.totalorder %s42, 0
      %p137 = por %p135, %p136
      %s139 = sadd.s32 %s138, 1
      %p142 = scmp.eq.s32.totalorder %s36, 1
      %p143 = scmp.ne.s32.totalorder %s138, %s140
      %p144 = scmp.eq.s32.totalorder %s36, 0
      %p145 = por %p143, %p144
      %p146 = scmp.ne.s32.totalorder %s138, %s140
      %p147 = scmp.eq.s32.totalorder %s41, 1
      %p148 = por %p146, %p147
      %p149 = scmp.ne.s32.totalorder %s140, %s141
      %p150 = scmp.eq.s32.totalorder %s41, 0
      %p151 = por %p149, %p150
      %p152 = scmp.ne.s32.totalorder %s140, %s141
      %p153 = scmp.eq.s32.totalorder %s42, 1
      %p154 = por %p152, %p153
      %p156 = scmp.ne.s32.totalorder %s141, %s155
      %p157 = scmp.eq.s32.totalorder %s42, 0
      %p158 = por %p156, %p157
      %s160 = sadd.s32 %s159, 1
      %p163 = scmp.eq.s32.totalorder %s36, 1
      %p164 = scmp.ne.s32.totalorder %s159, %s161
      %p165 = scmp.eq.s32.totalorder %s36, 0
      %p166 = por %p164, %p165
      %p167 = scmp.ne.s32.totalorder %s159, %s161
      %p168 = scmp.eq.s32.totalorder %s41, 1
      %p169 = por %p167, %p168
      %p170 = scmp.ne.s32.totalorder %s161, %s162
      %p171 = scmp.eq.s32.totalorder %s41, 0
      %p172 = por %p170, %p171
      %p173 = scmp.ne.s32.totalorder %s161, %s162
      %p174 = scmp.eq.s32.totalorder %s42, 1
      %p175 = por %p173, %p174
      %p177 = scmp.ne.s32.totalorder %s162, %s176
      %p178 = scmp.eq.s32.totalorder %s42, 0
      %p179 = por %p177, %p178
      %s181 = sadd.s32 %s180, 1
      %p184 = scmp.eq.s32.totalorder %s36, 1
      %p185 = scmp.ne.s32.totalorder %s180, %s182
      %p186 = scmp.eq.s32.totalorder %s36, 0
      %p187 = por %p185, %p186
      %p188 = scmp.ne.s32.totalorder %s180, %s182
      %p189 = scmp.eq.s32.totalorder %s41, 1
      %p190 = por %p188, %p189
      %p191 = scmp.ne.s32.totalorder %s182, %s183
      %p192 = scmp.eq.s32.totalorder %s41, 0
      %p193 = por %p191, %p192
      %p194 = scmp.ne.s32.totalorder %s182, %s183
      %p195 = scmp.eq.s32.totalorder %s42, 1
      %p196 = por %p194, %p195
      %p198 = scmp.ne.s32.totalorder %s183, %s197
      %p199 = scmp.eq.s32.totalorder %s42, 0
      %p200 = por %p198, %p199
      %s202 = sadd.s32 %s201, 1
      %p205 = scmp.eq.s32.totalorder %s36, 1
      %p206 = scmp.ne.s32.totalorder %s201, %s203
      %p207 = scmp.eq.s32.totalorder %s36, 0
      %p208 = por %p206, %p207
      %p209 = scmp.ne.s32.totalorder %s201, %s203
      %p210 = scmp.eq.s32.totalorder %s41, 1
      %p211 = por %p209, %p210
      %p212 = scmp.ne.s32.totalorder %s203, %s204
      %p213 = scmp.eq.s32.totalorder %s41, 0
      %p214 = por %p212, %p213
      %p215 = scmp.ne.s32.totalorder %s203, %s204
      %p216 = scmp.eq.s32.totalorder %s42, 1
      %p217 = por %p215, %p216
      %p219 = scmp.ne.s32.totalorder %s204, %s218
      %p220 = scmp.eq.s32.totalorder %s42, 0
      %p221 = por %p219, %p220
      %s223 = sadd.s32 %s222, 1
      %p226 = scmp.eq.s32.totalorder %s36, 1
      %p227 = scmp.ne.s32.totalorder %s222, %s224
      %p228 = scmp.eq.s32.totalorder %s36, 0
      %p229 = por %p227, %p228
      %p230 = scmp.ne.s32.totalorder %s222, %s224
      %p231 = scmp.eq.s32.totalorder %s41, 1
      %p232 = por %p230, %p231
      %p233 = scmp.ne.s32.totalorder %s224, %s225
      %p234 = scmp.eq.s32.totalorder %s41, 0
      %p235 = por %p233, %p234
      %p236 = scmp.ne.s32.totalorder %s224, %s225
      %p237 = scmp.eq.s32.totalorder %s42, 1
      %p238 = por %p236, %p237
      %p240 = scmp.ne.s32.totalorder %s225, %s239
      %p241 = scmp.eq.s32.totalorder %s42, 0
      %p242 = por %p240, %p241
      %s244 = sadd.s32 %s243, 1
      %p247 = scmp.eq.s32.totalorder %s36, 1
      %p248 = scmp.ne.s32.totalorder %s243, %s245
      %p249 = scmp.eq.s32.totalorder %s36, 0
      %p250 = por %p248, %p249
      %p251 = scmp.ne.s32.totalorder %s243, %s245
      %p252 = scmp.eq.s32.totalorder %s41, 1
      %p253 = por %p251, %p252
      %p254 = scmp.ne.s32.totalorder %s245, %s246
      %p255 = scmp.eq.s32.totalorder %s41, 0
      %p256 = por %p254, %p255
      %p257 = scmp.ne.s32.totalorder %s245, %s246
      %p258 = scmp.eq.s32.totalorder %s42, 1
      %p259 = por %p257, %p258
      %p261 = scmp.ne.s32.totalorder %s246, %s260
      %p262 = scmp.eq.s32.totalorder %s42, 0
      %p263 = por %p261, %p262
      %s265 = sadd.s32 %s264, 1
      %p268 = scmp.eq.s32.totalorder %s36, 1
      %p269 = scmp.ne.s32.totalorder %s264, %s266
      %p270 = scmp.eq.s32.totalorder %s36, 0
      %p271 = por %p269, %p270
      %p272 = scmp.ne.s32.totalorder %s264, %s266
      %p273 = scmp.eq.s32.totalorder %s41, 1
      %p274 = por %p272, %p273
      %p275 = scmp.ne.s32.totalorder %s266, %s267
      %p276 = scmp.eq.s32.totalorder %s41, 0
      %p277 = por %p275, %p276
      %p278 = scmp.ne.s32.totalorder %s266, %s267
      %p279 = scmp.eq.s32.totalorder %s42, 1
      %p280 = por %p278, %p279
      %p282 = scmp.ne.s32.totalorder %s267, %s281
      %p283 = scmp.eq.s32.totalorder %s42, 0
      %p284 = por %p282, %p283
      %s286 = sadd.s32 %s285, 1
      %p289 = scmp.eq.s32.totalorder %s36, 1
      %p290 = scmp.ne.s32.totalorder %s285, %s287
      %p291 = scmp.eq.s32.totalorder %s36, 0
      %p292 = por %p290, %p291
      %p293 = scmp.ne.s32.totalorder %s285, %s287
      %p294 = scmp.eq.s32.totalorder %s41, 1
      %p295 = por %p293, %p294
      %p296 = scmp.ne.s32.totalorder %s287, %s288
      %p297 = scmp.eq.s32.totalorder %s41, 0
      %p298 = por %p296, %p297
      %p299 = scmp.ne.s32.totalorder %s287, %s288
      %p300 = scmp.eq.s32.totalorder %s42, 1
      %p301 = por %p299, %p300
      %p303 = scmp.ne.s32.totalorder %s288, %s302
      %p304 = scmp.eq.s32.totalorder %s42, 0
      %p305 = por %p303, %p304
      %s307 = sadd.s32 %s306, 1
      %p310 = scmp.eq.s32.totalorder %s36, 1
      %p311 = scmp.ne.s32.totalorder %s306, %s308
      %p312 = scmp.eq.s32.totalorder %s36, 0
      %p313 = por %p311, %p312
      %p314 = scmp.ne.s32.totalorder %s306, %s308
      %p315 = scmp.eq.s32.totalorder %s41, 1
      %p316 = por %p314, %p315
      %p317 = scmp.ne.s32.totalorder %s308, %s309
      %p318 = scmp.eq.s32.totalorder %s41, 0
      %p319 = por %p317, %p318
      %p320 = scmp.ne.s32.totalorder %s308, %s309
      %p321 = scmp.eq.s32.totalorder %s42, 1
      %p322 = por %p320, %p321
      %p324 = scmp.ne.s32.totalorder %s309, %s323
      %p325 = scmp.eq.s32.totalorder %s42, 0
      %p326 = por %p324, %p325
      %s328 = sadd.s32 %s327, 1
      %p331 = scmp.eq.s32.totalorder %s36, 1
      %p332 = scmp.ne.s32.totalorder %s327, %s329
      %p333 = scmp.eq.s32.totalorder %s36, 0
      %p334 = por %p332, %p333
      %p335 = scmp.ne.s32.totalorder %s327, %s329
      %p336 = scmp.eq.s32.totalorder %s41, 1
      %p337 = por %p335, %p336
      %p338 = scmp.ne.s32.totalorder %s329, %s330
      %p339 = scmp.eq.s32.totalorder %s41, 0
      %p340 = por %p338, %p339
      %p341 = scmp.ne.s32.totalorder %s329, %s330
      %p342 = scmp.eq.s32.totalorder %s42, 1
      %p343 = por %p341, %p342
      %p345 = scmp.ne.s32.totalorder %s330, %s344
      %p346 = scmp.eq.s32.totalorder %s42, 0
      %p347 = por %p345, %p346
      %s349 = sadd.s32 %s348, 1
      %p352 = scmp.eq.s32.totalorder %s36, 1
      %p353 = scmp.ne.s32.totalorder %s348, %s350
      %p354 = scmp.eq.s32.totalorder %s36, 0
      %p355 = por %p353, %p354
      %p356 = scmp.ne.s32.totalorder %s348, %s350
      %p357 = scmp.eq.s32.totalorder %s41, 1
      %p358 = por %p356, %p357
      %p359 = scmp.ne.s32.totalorder %s350, %s351
      %p360 = scmp.eq.s32.totalorder %s41, 0
      %p361 = por %p359, %p360
      %p362 = scmp.ne.s32.totalorder %s350, %s351
      %p363 = scmp.eq.s32.totalorder %s42, 1
      %p364 = por %p362, %p363
      %p366 = scmp.ne.s32.totalorder %s351, %s365
      %p367 = scmp.eq.s32.totalorder %s42, 0
      %p368 = por %p366, %p367
      %s370 = sadd.s32 %s369, 1
      %p373 = scmp.eq.s32.totalorder %s36, 1
      %p374 = scmp.ne.s32.totalorder %s369, %s371
      %p375 = scmp.eq.s32.totalorder %s36, 0
      %p376 = por %p374, %p375
      %p377 = scmp.ne.s32.totalorder %s369, %s371
      %p378 = scmp.eq.s32.totalorder %s41, 1
      %p379 = por %p377, %p378
      %p380 = scmp.ne.s32.totalorder %s371, %s372
      %p381 = scmp.eq.s32.totalorder %s41, 0
      %p382 = por %p380, %p381
      %p383 = scmp.ne.s32.totalorder %s371, %s372
      %p384 = scmp.eq.s32.totalorder %s42, 1
      %p385 = por %p383, %p384
      %p387 = scmp.ne.s32.totalorder %s372, %s386
      %p388 = scmp.eq.s32.totalorder %s42, 0
      %p389 = por %p387, %p388
      %s391 = sadd.s32 %s390, 1
      %p394 = scmp.eq.s32.totalorder %s36, 1
      %p395 = scmp.ne.s32.totalorder %s390, %s392
      %p396 = scmp.eq.s32.totalorder %s36, 0
      %p397 = por %p395, %p396
      %p398 = scmp.ne.s32.totalorder %s390, %s392
      %p399 = scmp.eq.s32.totalorder %s41, 1
      %p400 = por %p398, %p399
      %p401 = scmp.ne.s32.totalorder %s392, %s393
      %p402 = scmp.eq.s32.totalorder %s41, 0
      %p403 = por %p401, %p402
      %p404 = scmp.ne.s32.totalorder %s392, %s393
      %p405 = scmp.eq.s32.totalorder %s42, 1
      %p406 = por %p404, %p405
      %p408 = scmp.ne.s32.totalorder %s393, %s407
      %p409 = scmp.eq.s32.totalorder %s42, 0
      %p410 = por %p408, %p409
      %s412 = sadd.s32 %s411, 1
      %p415 = scmp.eq.s32.totalorder %s36, 1
      %p416 = scmp.ne.s32.totalorder %s411, %s413
      %p417 = scmp.eq.s32.totalorder %s36, 0
      %p418 = por %p416, %p417
      %p419 = scmp.ne.s32.totalorder %s411, %s413
      %p420 = scmp.eq.s32.totalorder %s41, 1
      %p421 = por %p419, %p420
      %p422 = scmp.ne.s32.totalorder %s413, %s414
      %p423 = scmp.eq.s32.totalorder %s41, 0
      %p424 = por %p422, %p423
      %p425 = scmp.ne.s32.totalorder %s413, %s414
      %p426 = scmp.eq.s32.totalorder %s42, 1
      %p427 = por %p425, %p426
      %p429 = scmp.ne.s32.totalorder %s414, %s428
      %p430 = scmp.eq.s32.totalorder %s42, 0
      %p431 = por %p429, %p430
      %s433 = sadd.s32 %s432, 1
      %p436 = scmp.eq.s32.totalorder %s36, 1
      %p437 = scmp.ne.s32.totalorder %s432, %s434
      %p438 = scmp.eq.s32.totalorder %s36, 0
      %p439 = por %p437, %p438
      %p440 = scmp.ne.s32.totalorder %s432, %s434
      %p441 = scmp.eq.s32.totalorder %s41, 1
      %p442 = por %p440, %p441
      %p443 = scmp.ne.s32.totalorder %s434, %s435
      %p444 = scmp.eq.s32.totalorder %s41, 0
      %p445 = por %p443, %p444
      %p446 = scmp.ne.s32.totalorder %s434, %s435
      %p447 = scmp.eq.s32.totalorder %s42, 1
      %p448 = por %p446, %p447
      %p450 = scmp.ne.s32.totalorder %s435, %s449
      %p451 = scmp.eq.s32.totalorder %s42, 0
      %p452 = por %p450, %p451
      %s454 = sadd.s32 %s453, 1
      %p457 = scmp.eq.s32.totalorder %s36, 1
      %p458 = scmp.ne.s32.totalorder %s453, %s455
      %p459 = scmp.eq.s32.totalorder %s36, 0
      %p460 = por %p458, %p459
      %p461 = scmp.ne.s32.totalorder %s453, %s455
      %p462 = scmp.eq.s32.totalorder %s41, 1
      %p463 = por %p461, %p462
      %p464 = scmp.ne.s32.totalorder %s455, %s456
      %p465 = scmp.eq.s32.totalorder %s41, 0
      %p466 = por %p464, %p465
      %p467 = scmp.ne.s32.totalorder %s455, %s456
      %p468 = scmp.eq.s32.totalorder %s42, 1
      %p469 = por %p467, %p468
      %p471 = scmp.ne.s32.totalorder %s456, %s470
      %p472 = scmp.eq.s32.totalorder %s42, 0
      %p473 = por %p471, %p472
      %s475 = sadd.s32 %s474, 1
      %p478 = scmp.eq.s32.totalorder %s36, 1
      %p479 = scmp.ne.s32.totalorder %s474, %s476
      %p480 = scmp.eq.s32.totalorder %s36, 0
      %p481 = por %p479, %p480
      %p482 = scmp.ne.s32.totalorder %s474, %s476
      %p483 = scmp.eq.s32.totalorder %s41, 1
      %p484 = por %p482, %p483
      %p485 = scmp.ne.s32.totalorder %s476, %s477
      %p486 = scmp.eq.s32.totalorder %s41, 0
      %p487 = por %p485, %p486
      %p488 = scmp.ne.s32.totalorder %s476, %s477
      %p489 = scmp.eq.s32.totalorder %s42, 1
      %p490 = por %p488, %p489
      %p492 = scmp.ne.s32.totalorder %s477, %s491
      %p493 = scmp.eq.s32.totalorder %s42, 0
      %p494 = por %p492, %p493
      %s496 = sadd.s32 %s495, 1
      %p499 = scmp.eq.s32.totalorder %s36, 1
      %p500 = scmp.ne.s32.totalorder %s495, %s497
      %p501 = scmp.eq.s32.totalorder %s36, 0
      %p502 = por %p500, %p501
      %p503 = scmp.ne.s32.totalorder %s495, %s497
      %p504 = scmp.eq.s32.totalorder %s41, 1
      %p505 = por %p503, %p504
      %p506 = scmp.ne.s32.totalorder %s497, %s498
      %p507 = scmp.eq.s32.totalorder %s41, 0
      %p508 = por %p506, %p507
      %p509 = scmp.ne.s32.totalorder %s497, %s498
      %p510 = scmp.eq.s32.totalorder %s42, 1
      %p511 = por %p509, %p510
      %p513 = scmp.ne.s32.totalorder %s498, %s512
      %p514 = scmp.eq.s32.totalorder %s42, 0
      %p515 = por %p513, %p514
      %s516 = ssub.s32 %s36, %s43
      %p517 = scmp.eq.s32.totalorder %s516, 0
      %s519 = sadd.s32 %s518, 1
      %s520 = scalar_select %p517, %s518, %s519
      %p523 = pneg %p517
      %p524 = scmp.eq.s32.totalorder %s36, 1
      %p525 = por %p523, %p524
      %p526 = scmp.ne.s32.totalorder %s518, %s521
      %p527 = scmp.eq.s32.totalorder %s36, 0
      %p528 = por %p526, %p527
      %p529 = scmp.ne.s32.totalorder %s518, %s521
      %p530 = scmp.eq.s32.totalorder %s41, 1
      %p531 = por %p529, %p530
      %p532 = scmp.ne.s32.totalorder %s521, %s522
      %p533 = scmp.eq.s32.totalorder %s41, 0
      %p534 = por %p532, %p533
      %p535 = scmp.ne.s32.totalorder %s521, %s522
      %p536 = scmp.eq.s32.totalorder %s42, 1
      %p537 = por %p535, %p536
      %p539 = scmp.ne.s32.totalorder %s522, %s538
      %p540 = scmp.eq.s32.totalorder %s42, 0
      %p541 = por %p539, %p540
      %p542 = scmp.le.s32.totalorder 1, %s36
      %p543 = scmp.lt.s32.totalorder %s36, 3
      %p544 = pnand %p542, %p543
      %p545 = pneg %p544
      // Predicated region
      $region9: #{tpu_custom_call.1} parent=5 // pred_check
        _
      $region10: #{tpu_custom_call.1} parent=5 // pred_check_branch
        %547 = sbr.rel (%p544) target = $region12
      $region11: #{tpu_custom_call.1} parent=5 // pred_region
        %s548 = ssub.s32 %s36, 1
        // Predicated region
        $region13: #{tpu_custom_call.1} parent=11 // pred_check
          %p549 = pneg %p109
        $region14: #{tpu_custom_call.1} parent=11 // pred_check_branch
          %551 = sbr.rel (%p549) target = $region16
        $region15: #{tpu_custom_call.1} parent=11 // pred_region
          %s553 = ssub.s32 16, 16
          %554 = vsyncadd [#allocation7], %s553
          %s556 = sshll.u32 [#allocation6], 4
          %s557 = int_to_ptr.vmem [resolvable:$true] %s556
          %559 = dma.hbm_to_vmem [thread:$0]  %s2, 16, %s557, [#allocation7]
        $region16: #{tpu_custom_call.1} parent=11 // pred_fallthru
          _
        // Predicated region
        $region17: #{tpu_custom_call.1} parent=11 // pred_check
          %p560 = pneg %p130
        $region18: #{tpu_custom_call.1} parent=11 // pred_check_branch
          %562 = sbr.rel (%p560) target = $region20
        $region19: #{tpu_custom_call.1} parent=11 // pred_region
          %s564 = ssub.s32 16, 16
          %565 = vsyncadd [#allocation7], %s564
          %s567 = sshll.u32 [#allocation8], 4
          %s568 = int_to_ptr.vmem [resolvable:$true] %s567
          %570 = dma.hbm_to_vmem [thread:$0]  %s3, 16, %s568, [#allocation7]
        $region20: #{tpu_custom_call.1} parent=11 // pred_fallthru
          _
        // Predicated region
        $region21: #{tpu_custom_call.1} parent=11 // pred_check
          %p571 = pneg %p151
        $region22: #{tpu_custom_call.1} parent=11 // pred_check_branch
          %573 = sbr.rel (%p571) target = $region24
        $region23: #{tpu_custom_call.1} parent=11 // pred_region
          _
        $region24: #{tpu_custom_call.1} parent=11 // pred_fallthru
          _
        // Predicated region
        $region25: #{tpu_custom_call.1} parent=11 // pred_check
          %p574 = pneg %p172
        $region26: #{tpu_custom_call.1} parent=11 // pred_check_branch
          %576 = sbr.rel (%p574) target = $region28
        $region27: #{tpu_custom_call.1} parent=11 // pred_region
          _
        $region28: #{tpu_custom_call.1} parent=11 // pred_fallthru
          _
        // Predicated region
        $region29: #{tpu_custom_call.1} parent=11 // pred_check
          %p577 = pneg %p193
        $region30: #{tpu_custom_call.1} parent=11 // pred_check_branch
          %579 = sbr.rel (%p577) target = $region32
        $region31: #{tpu_custom_call.1} parent=11 // pred_region
          _
        $region32: #{tpu_custom_call.1} parent=11 // pred_fallthru
          _
        // Predicated region
        $region33: #{tpu_custom_call.1} parent=11 // pred_check
          %p580 = pneg %p214
        $region34: #{tpu_custom_call.1} parent=11 // pred_check_branch
          %582 = sbr.rel (%p580) target = $region36
        $region35: #{tpu_custom_call.1} parent=11 // pred_region
          %s584 = ssub.s32 32, 32
          %585 = vsyncadd [#allocation10], %s584
          %s586 = sshll.u32 [#allocation9], 4
          %s587 = int_to_ptr.vmem [resolvable:$true] %s586
          %592 = dma.hbm_to_vmem [thread:$0]  %s7, 32, %s587, [#allocation10], 16, 16, 1
        $region36: #{tpu_custom_call.1} parent=11 // pred_fallthru
          _
        // Predicated region
        $region37: #{tpu_custom_call.1} parent=11 // pred_check
          %p593 = pneg %p235
        $region38: #{tpu_custom_call.1} parent=11 // pred_check_branch
          %595 = sbr.rel (%p593) target = $region40
        $region39: #{tpu_custom_call.1} parent=11 // pred_region
          _
        $region40: #{tpu_custom_call.1} parent=11 // pred_fallthru
          _
        // Predicated region
        $region41: #{tpu_custom_call.1} parent=11 // pred_check
          %p596 = pneg %p256
        $region42: #{tpu_custom_call.1} parent=11 // pred_check_branch
          %598 = sbr.rel (%p596) target = $region44
        $region43: #{tpu_custom_call.1} parent=11 // pred_region
          %s600 = ssub.s32 32, 32
          %601 = vsyncadd [#allocation10], %s600
          %s602 = sshll.u32 [#allocation11], 4
          %s603 = int_to_ptr.vmem [resolvable:$true] %s602
          %608 = dma.hbm_to_vmem [thread:$0]  %s9, 32, %s603, [#allocation10], 16, 16, 1
        $region44: #{tpu_custom_call.1} parent=11 // pred_fallthru
          _
        // Predicated region
        $region45: #{tpu_custom_call.1} parent=11 // pred_check
          %p609 = pneg %p277
        $region46: #{tpu_custom_call.1} parent=11 // pred_check_branch
          %611 = sbr.rel (%p609) target = $region48
        $region47: #{tpu_custom_call.1} parent=11 // pred_region
          %s613 = ssub.s32 512, 512
          %614 = vsyncadd [#allocation13], %s613
          %s615 = sshll.u32 [#allocation12], 4
          %s616 = int_to_ptr.vmem [resolvable:$true] %s615
          %621 = dma.hbm_to_vmem [thread:$0]  %s10, 512, %s616, [#allocation13], 64, 64, 4
        $region48: #{tpu_custom_call.1} parent=11 // pred_fallthru
          _
        // Predicated region
        $region49: #{tpu_custom_call.1} parent=11 // pred_check
          %p622 = pneg %p298
        $region50: #{tpu_custom_call.1} parent=11 // pred_check_branch
          %624 = sbr.rel (%p622) target = $region52
        $region51: #{tpu_custom_call.1} parent=11 // pred_region
          %s626 = ssub.s32 32, 32
          %627 = vsyncadd [#allocation13], %s626
          %s628 = sshll.u32 [#allocation14], 4
          %s629 = int_to_ptr.vmem [resolvable:$true] %s628
          %634 = dma.hbm_to_vmem [thread:$0]  %s11, 32, %s629, [#allocation13], 16, 16, 1
        $region52: #{tpu_custom_call.1} parent=11 // pred_fallthru
          _
        // Predicated region
        $region53: #{tpu_custom_call.1} parent=11 // pred_check
          %p635 = pneg %p319
        $region54: #{tpu_custom_call.1} parent=11 // pred_check_branch
          %637 = sbr.rel (%p635) target = $region56
        $region55: #{tpu_custom_call.1} parent=11 // pred_region
          _
        $region56: #{tpu_custom_call.1} parent=11 // pred_fallthru
          _
        // Predicated region
        $region57: #{tpu_custom_call.1} parent=11 // pred_check
          %p638 = pneg %p340
        $region58: #{tpu_custom_call.1} parent=11 // pred_check_branch
          %640 = sbr.rel (%p638) target = $region60
        $region59: #{tpu_custom_call.1} parent=11 // pred_region
          _
        $region60: #{tpu_custom_call.1} parent=11 // pred_fallthru
          _
        // Predicated region
        $region61: #{tpu_custom_call.1} parent=11 // pred_check
          %p641 = pneg %p361
        $region62: #{tpu_custom_call.1} parent=11 // pred_check_branch
          %643 = sbr.rel (%p641) target = $region64
        $region63: #{tpu_custom_call.1} parent=11 // pred_region
          _
        $region64: #{tpu_custom_call.1} parent=11 // pred_fallthru
          _
        // Predicated region
        $region65: #{tpu_custom_call.1} parent=11 // pred_check
          %p644 = pneg %p382
        $region66: #{tpu_custom_call.1} parent=11 // pred_check_branch
          %646 = sbr.rel (%p644) target = $region68
        $region67: #{tpu_custom_call.1} parent=11 // pred_region
          _
        $region68: #{tpu_custom_call.1} parent=11 // pred_fallthru
          _
        // Predicated region
        $region69: #{tpu_custom_call.1} parent=11 // pred_check
          %p647 = pneg %p403
        $region70: #{tpu_custom_call.1} parent=11 // pred_check_branch
          %649 = sbr.rel (%p647) target = $region72
        $region71: #{tpu_custom_call.1} parent=11 // pred_region
          _
        $region72: #{tpu_custom_call.1} parent=11 // pred_fallthru
          _
        // Predicated region
        $region73: #{tpu_custom_call.1} parent=11 // pred_check
          %p650 = pneg %p424
        $region74: #{tpu_custom_call.1} parent=11 // pred_check_branch
          %652 = sbr.rel (%p650) target = $region76
        $region75: #{tpu_custom_call.1} parent=11 // pred_region
          _
        $region76: #{tpu_custom_call.1} parent=11 // pred_fallthru
          _
        // Predicated region
        $region77: #{tpu_custom_call.1} parent=11 // pred_check
          %p653 = pneg %p445
        $region78: #{tpu_custom_call.1} parent=11 // pred_check_branch
          %655 = sbr.rel (%p653) target = $region80
        $region79: #{tpu_custom_call.1} parent=11 // pred_region
          _
        $region80: #{tpu_custom_call.1} parent=11 // pred_fallthru
          _
        // Predicated region
        $region81: #{tpu_custom_call.1} parent=11 // pred_check
          %p656 = pneg %p466
        $region82: #{tpu_custom_call.1} parent=11 // pred_check_branch
          %658 = sbr.rel (%p656) target = $region84
        $region83: #{tpu_custom_call.1} parent=11 // pred_region
          _
        $region84: #{tpu_custom_call.1} parent=11 // pred_fallthru
          _
        // Predicated region
        $region85: #{tpu_custom_call.1} parent=11 // pred_check
          %p659 = pneg %p487
        $region86: #{tpu_custom_call.1} parent=11 // pred_check_branch
          %661 = sbr.rel (%p659) target = $region88
        $region87: #{tpu_custom_call.1} parent=11 // pred_region
          _
        $region88: #{tpu_custom_call.1} parent=11 // pred_fallthru
          _
        // Predicated region
        $region89: #{tpu_custom_call.1} parent=11 // pred_check
          %p662 = pneg %p508
        $region90: #{tpu_custom_call.1} parent=11 // pred_check_branch
          %664 = sbr.rel (%p662) target = $region92
        $region91: #{tpu_custom_call.1} parent=11 // pred_region
          _
        $region92: #{tpu_custom_call.1} parent=11 // pred_fallthru
          _
      $region12: #{tpu_custom_call.1} parent=5 // pred_fallthru
        _
      %p665 = scmp.lt.s32.totalorder %s36, 2
      // Predicated region
      $region93: #{tpu_custom_call.1} parent=5 // pred_check
        %p666 = pneg %p665
      $region94: #{tpu_custom_call.1} parent=5 // pred_check_branch
        %668 = sbr.rel (%p666) target = $region96
      $region95: #{tpu_custom_call.1} parent=5 // pred_region
        // Predicated region
        $region97: #{tpu_custom_call.1} parent=95 // pred_check
          %p669 = pneg %p56
        $region98: #{tpu_custom_call.1} parent=95 // pred_check_branch
          %671 = sbr.rel (%p669) target = $region100
        $region99: #{tpu_custom_call.1} parent=95 // pred_region
          %s672 = sand.u32 %s46, 1
          %s673 = scalar_lea.sflag [#allocation5], %s672
          %s674 = sand.u32 %s46, 1
          %s675 = smul.addr %s674, 4
          %s676 = scalar_lea.vmem [#allocation4], %s675
          %s678 = ssub.s32 64, 64
          %679 = vsyncadd %s673, %s678
          %s680 = smul.addr %s36, 64
          %s681 = scalar_lea.hbm %s0, %s680
          %s683 = sshll.u32 %s676, 4
          %s684 = int_to_ptr.vmem [resolvable:$true] %s683
          %686 = dma.hbm_to_vmem [thread:$0]  %s681, 64, %s684, %s673
        $region100: #{tpu_custom_call.1} parent=95 // pred_fallthru
          _
        // Predicated region
        $region101: #{tpu_custom_call.1} parent=95 // pred_check
          %p687 = pneg %p82
        $region102: #{tpu_custom_call.1} parent=95 // pred_check_branch
          %689 = sbr.rel (%p687) target = $region104
        $region103: #{tpu_custom_call.1} parent=95 // pred_region
          %p690 = scmp.lt.s32.totalorder %s36, 1
          %s691 = scalar_select %p690, %s36, 1
          %s692 = scalar_lea.vmem %s1, %s691
        $region104: #{tpu_custom_call.1} parent=95 // pred_fallthru
          _
      $region96: #{tpu_custom_call.1} parent=5 // pred_fallthru
        _
      %p693 = scmp.le.s32.totalorder 1, %s36
      %p694 = scmp.lt.s32.totalorder %s36, 3
      %p695 = pnand %p693, %p694
      %p696 = pneg %p695
      // Predicated region
      $region105: #{tpu_custom_call.1} parent=5 // pred_check
        _
      $region106: #{tpu_custom_call.1} parent=5 // pred_check_branch
        %698 = sbr.rel (%p695) target = $region108
      $region107: #{tpu_custom_call.1} parent=5 // pred_region
        %s699 = ssub.s32 %s36, 1
        %s700 = sand.u32 %s49, 1
        %s701 = scalar_lea.sflag [#allocation5], %s700
        %s702 = sand.u32 %s49, 1
        %s703 = smul.addr %s702, 4
        %s704 = scalar_lea.vmem [#allocation4], %s703
        // Predicated region
        $region109: #{tpu_custom_call.1} parent=107 // pred_check
          %p705 = pneg %p62
        $region110: #{tpu_custom_call.1} parent=107 // pred_check_branch
          %707 = sbr.rel (%p705) target = $region112
        $region111: #{tpu_custom_call.1} parent=107 // pred_region
          %708 = dma.done %s701, 64
        $region112: #{tpu_custom_call.1} parent=107 // pred_fallthru
          _
        // Predicated region
        $region113: #{tpu_custom_call.1} parent=107 // pred_check
          %p709 = pneg %p109
        $region114: #{tpu_custom_call.1} parent=107 // pred_check_branch
          %711 = sbr.rel (%p709) target = $region116
        $region115: #{tpu_custom_call.1} parent=107 // pred_region
          %712 = dma.done [#allocation7], 16
        $region116: #{tpu_custom_call.1} parent=107 // pred_fallthru
          _
        // Predicated region
        $region117: #{tpu_custom_call.1} parent=107 // pred_check
          %p713 = pneg %p130
        $region118: #{tpu_custom_call.1} parent=107 // pred_check_branch
          %715 = sbr.rel (%p713) target = $region120
        $region119: #{tpu_custom_call.1} parent=107 // pred_region
          %716 = dma.done [#allocation7], 16
        $region120: #{tpu_custom_call.1} parent=107 // pred_fallthru
          _
        // Predicated region
        $region121: #{tpu_custom_call.1} parent=107 // pred_check
          %p717 = pneg %p214
        $region122: #{tpu_custom_call.1} parent=107 // pred_check_branch
          %719 = sbr.rel (%p717) target = $region124
        $region123: #{tpu_custom_call.1} parent=107 // pred_region
          %720 = dma.done [#allocation10], 32
        $region124: #{tpu_custom_call.1} parent=107 // pred_fallthru
          _
        // Predicated region
        $region125: #{tpu_custom_call.1} parent=107 // pred_check
          %p721 = pneg %p256
        $region126: #{tpu_custom_call.1} parent=107 // pred_check_branch
          %723 = sbr.rel (%p721) target = $region128
        $region127: #{tpu_custom_call.1} parent=107 // pred_region
          %724 = dma.done [#allocation10], 32
        $region128: #{tpu_custom_call.1} parent=107 // pred_fallthru
          _
        // Predicated region
        $region129: #{tpu_custom_call.1} parent=107 // pred_check
          %p725 = pneg %p277
        $region130: #{tpu_custom_call.1} parent=107 // pred_check_branch
          %727 = sbr.rel (%p725) target = $region132
        $region131: #{tpu_custom_call.1} parent=107 // pred_region
          %728 = dma.done [#allocation13], 512
        $region132: #{tpu_custom_call.1} parent=107 // pred_fallthru
          _
        // Predicated region
        $region133: #{tpu_custom_call.1} parent=107 // pred_check
          %p729 = pneg %p298
        $region134: #{tpu_custom_call.1} parent=107 // pred_check_branch
          %731 = sbr.rel (%p729) target = $region136
        $region135: #{tpu_custom_call.1} parent=107 // pred_region
          %732 = dma.done [#allocation13], 32
        $region136: #{tpu_custom_call.1} parent=107 // pred_fallthru
          _
        %s733 = sand.u32 %s49, 1
        %s734 = scalar_lea.sflag [#allocation5], %s733
        %s735 = sand.u32 %s49, 1
        %s736 = smul.addr %s735, 4
        %s737 = scalar_lea.vmem [#allocation4], %s736
        %p738 = pneg %p62
        %p739 = pneg %p59
        %p740 = scmp.lt.s32.totalorder %s41, 1
        %s741 = scalar_select %p740, %s41, 1
        %s742 = scalar_lea.vmem %s1, %s741
        %p743 = pneg %p88
        %p744 = pneg %p85
        %p745 = pneg %p109
        %p746 = pneg %p106
        %p747 = pneg %p130
        %p748 = pneg %p127
        %p749 = pneg %p151
        %p750 = pneg %p148
        %p751 = pneg %p172
        %p752 = pneg %p169
        %p753 = pneg %p193
        %p754 = pneg %p190
        %p755 = pneg %p214
        %p756 = pneg %p211
        %p757 = pneg %p235
        %p758 = pneg %p232
        %p759 = pneg %p256
        %p760 = pneg %p253
        %p761 = pneg %p277
        %p762 = pneg %p274
        %p763 = pneg %p298
        %p764 = pneg %p295
        %p765 = pneg %p319
        %p766 = pneg %p316
        %p767 = pneg %p340
        %p768 = pneg %p337
        %p769 = pneg %p361
        %p770 = pneg %p358
        %p771 = pneg %p382
        %p772 = pneg %p379
        %p773 = pneg %p403
        %p774 = pneg %p400
        %p775 = pneg %p424
        %p776 = pneg %p421
        %p777 = pneg %p445
        %p778 = pneg %p442
        %p779 = pneg %p466
        %p780 = pneg %p463
        %p781 = pneg %p487
        %p782 = pneg %p484
        %p783 = pneg %p508
        %p784 = pneg %p505
        %p785 = pneg %p534
        %p786 = pneg %p531
        %p787 = scmp.lt.s32.totalorder %s41, 1
        %s788 = scalar_select %p787, %s41, 1
        %s789 = scalar_lea.vmem %s22, %s788
        %p790 = scmp.lt.s32.totalorder %s41, 1
        %s791 = scalar_select %p790, %s41, 1
        %s792 = scalar_lea.vmem %s1, %s791
        %p793 = scmp.lt.s32.totalorder %s41, 1
        %s794 = scalar_select %p793, %s41, 1
        %s795 = scalar_lea.vmem %s22, %s794
        %v797 = vld [vmem:[%s792] sm:$0x1]
        %v798 = vunpack.c.l.bf16 %v797
        %v799 = vld [vmem:[%s704] sm:$0xf]
        %v800 = vunpack.c.l.bf16 %v799
        %v801 = vld [vmem:[#allocation6] sm:$0x1]
        %v802 = vld [vmem:[#allocation8] sm:$0x1]
        %vm803 = vcmask 261120
        %v804 = vsel %vm803, %v800, 0.0
        %805 = vadd.xlane.f32.xlu0 %v804
        %v806 = vpop.xlane.xlu0 %805
        %v807 = vrcp.pop 32.0
        %v808 = vmul.f32 %v806, %v807
        %v809 = vsub.f32 %v800, %v808
        %v810 = vmul.f32 %v809, %v809
        %v811 = vsel %vm803, %v810, 0.0
        %812 = vadd.xlane.f32.xlu0 %v811
        %v813 = vpop.xlane.xlu0 %812
        %v814 = vmul.f32 %v813, %v807
        %v815 = vadd.f32 %v814, 1e-12
        %v816 = vrsqrt.pop %v815
        %v817 = vmul.f32 %v809, %v816
        %v819 = vlaneseq
        %v820 = vshrl.u32 %v819, 7
        %v821 = vsub.s32 0, %v820
        %v822 = vrot.slane %v801, %v821
        %v824 = vmul.f32 %v817, %v822
        %v826 = vlaneseq
        %v827 = vshrl.u32 %v826, 7
        %v828 = vsub.s32 0, %v827
        %v829 = vrot.slane %v802, %v828
        %v831 = vadd.f32 %v824, %v829
        %v832 = vpack.c.bf16 %v831, %v831
        %v833 = vld [vmem:[%s4] sm:$0xf]
        %v834 = vld [vmem:[%s4 + $0x4] sm:$0xf]
        %v835 = vld [vmem:[%s4 + $0x8] sm:$0xf]
        %v836 = vld [vmem:[%s4 + $0xc] sm:$0xf]
        %v837 = vld [vmem:[%s5] sm:$0x1]
        %v839 = vlaneseq
        %v840 = vshrl.u32 %v839, 7
        %v841 = vsub.s32 0, %v840
        %v842 = vrot.slane %v837, %v841
        %v848 = vunpack.c.l.b16 %v833
        %v849 = vunpack.c.l.b16 %v834
        %v850 = vunpack.c.l.b16 %v835
        %v851 = vunpack.c.l.b16 %v836
        %v852 = vpack.c.b16 %v849, %v848
        %v853 = vpack.c.b16 %v851, %v850
        %v857 = vsel %vm803, %v832, 0
        %859 = vmatprep.subr.bf16.mxu0 0
        %860 = vmatpush1.bf16.msra.mxu0 %v852
        %861 = vmatprep.subr.bf16.mxu0 0
        %862 = vmatpush1.bf16.msra.mxu0 %v853
        %863 = vmatprep.subr.bf16.mxu0 0
        %864 = vmatpush1.bf16.msra.mxu0 0
        %865 = vmatprep.subr.bf16.mxu0 0
        %866 = vmatpush1.bf16.msra.mxu0 0
        %867 = vmatprep.subr.bf16.mxu0 0
        %868 = vmatpush1.bf16.msra.mxu0 0
        %869 = vmatprep.subr.bf16.mxu0 0
        %870 = vmatpush1.bf16.msra.mxu0 0
        %871 = vmatprep.subr.bf16.mxu0 0
        %872 = vmatpush1.bf16.msra.mxu0 0
        %873 = vmatprep.subr.bf16.mxu0 0
        %874 = vmatpush1.bf16.msra.mxu0 0
        %875 = vmatprep.subr.bf16.mxu0 0
        %876 = vmatpush1.bf16.msra.mxu0 0
        %877 = vmatprep.subr.bf16.mxu0 0
        %878 = vmatpush1.bf16.msra.mxu0 0
        %879 = vmatprep.subr.bf16.mxu0 0
        %880 = vmatpush1.bf16.msra.mxu0 0
        %881 = vmatprep.subr.bf16.mxu0 0
        %882 = vmatpush1.bf16.msra.mxu0 0
        %883 = vmatprep.subr.bf16.mxu0 0
        %884 = vmatpush1.bf16.msra.mxu0 0
        %885 = vmatprep.subr.bf16.mxu0 0
        %886 = vmatpush1.bf16.msra.mxu0 0
        %887 = vmatprep.subr.bf16.mxu0 0
        %888 = vmatpush1.bf16.msra.mxu0 0
        %889 = vmatprep.subr.bf16.mxu0 0
        %890 = vmatpush1.bf16.msra.mxu0 0
        %891 = vmatprep.mubr.bf16.mxu0 0
        %892 = vmatmul.mubr.bf16.gmra.mrb[0].mxu0 %v857
        %v893 = vpop.f32.mrb[0].mxu0
        %v894 = vadd.f32 %v842, %v893
        %v895 = vpop.f32.mrb[0].mxu0
        %v896 = vpop.f32.mrb[0].mxu0
        %v897 = vpop.f32.mrb[0].mxu0
        %898 = vdwg.mxu0
        %v899 = vld [vmem:[%s6] sm:$0xf]
        %v900 = vld [vmem:[%s6 + $0x4] sm:$0xf]
        %v901 = vld [vmem:[%s6 + $0x8] sm:$0xf]
        %v902 = vld [vmem:[%s6 + $0xc] sm:$0xf]
        %v903 = vld [vmem:[#allocation9] sm:$0x1]
        %v905 = vlaneseq
        %v906 = vshrl.u32 %v905, 7
        %v907 = vsub.s32 0, %v906
        %v908 = vrot.slane %v903, %v907
        %v914 = vunpack.c.l.b16 %v899
        %v915 = vunpack.c.l.b16 %v900
        %v916 = vunpack.c.l.b16 %v901
        %v917 = vunpack.c.l.b16 %v902
        %v918 = vpack.c.b16 %v915, %v914
        %v919 = vpack.c.b16 %v917, %v916
        %922 = vmatprep.subr.bf16.mxu0 0
        %923 = vmatpush1.bf16.msra.mxu0 %v918
        %924 = vmatprep.subr.bf16.mxu0 0
        %925 = vmatpush1.bf16.msra.mxu0 %v919
        %926 = vmatprep.subr.bf16.mxu0 0
        %927 = vmatpush1.bf16.msra.mxu0 0
        %928 = vmatprep.subr.bf16.mxu0 0
        %929 = vmatpush1.bf16.msra.mxu0 0
        %930 = vmatprep.subr.bf16.mxu0 0
        %931 = vmatpush1.bf16.msra.mxu0 0
        %932 = vmatprep.subr.bf16.mxu0 0
        %933 = vmatpush1.bf16.msra.mxu0 0
        %934 = vmatprep.subr.bf16.mxu0 0
        %935 = vmatpush1.bf16.msra.mxu0 0
        %936 = vmatprep.subr.bf16.mxu0 0
        %937 = vmatpush1.bf16.msra.mxu0 0
        %938 = vmatprep.subr.bf16.mxu0 0
        %939 = vmatpush1.bf16.msra.mxu0 0
        %940 = vmatprep.subr.bf16.mxu0 0
        %941 = vmatpush1.bf16.msra.mxu0 0
        %942 = vmatprep.subr.bf16.mxu0 0
        %943 = vmatpush1.bf16.msra.mxu0 0
        %944 = vmatprep.subr.bf16.mxu0 0
        %945 = vmatpush1.bf16.msra.mxu0 0
        %946 = vmatprep.subr.bf16.mxu0 0
        %947 = vmatpush1.bf16.msra.mxu0 0
        %948 = vmatprep.subr.bf16.mxu0 0
        %949 = vmatpush1.bf16.msra.mxu0 0
        %950 = vmatprep.subr.bf16.mxu0 0
        %951 = vmatpush1.bf16.msra.mxu0 0
        %952 = vmatprep.subr.bf16.mxu0 0
        %953 = vmatpush1.bf16.msra.mxu0 0
        %954 = vmatprep.mubr.bf16.mxu0 0
        %955 = vmatmul.mubr.bf16.gmra.mrb[0].mxu0 %v857
        %v956 = vpop.f32.mrb[0].mxu0
        %v957 = vadd.f32 %v908, %v956
        %v958 = vpop.f32.mrb[0].mxu0
        %v959 = vpop.f32.mrb[0].mxu0
        %v960 = vpop.f32.mrb[0].mxu0
        %961 = vdwg.mxu0
        %v962 = vld [vmem:[%s8] sm:$0xf]
        %v963 = vld [vmem:[%s8 + $0x4] sm:$0xf]
        %v964 = vld [vmem:[%s8 + $0x8] sm:$0xf]
        %v965 = vld [vmem:[%s8 + $0xc] sm:$0xf]
        %v966 = vld [vmem:[#allocation11] sm:$0x1]
        %v968 = vlaneseq
        %v969 = vshrl.u32 %v968, 7
        %v970 = vsub.s32 0, %v969
        %v971 = vrot.slane %v966, %v970
        %v977 = vunpack.c.l.b16 %v962
        %v978 = vunpack.c.l.b16 %v963
        %v979 = vunpack.c.l.b16 %v964
        %v980 = vunpack.c.l.b16 %v965
        %v981 = vpack.c.b16 %v978, %v977
        %v982 = vpack.c.b16 %v980, %v979
        %985 = vmatprep.subr.bf16.mxu0 0
        %986 = vmatpush1.bf16.msra.mxu0 %v981
        %987 = vmatprep.subr.bf16.mxu0 0
        %988 = vmatpush1.bf16.msra.mxu0 %v982
        %989 = vmatprep.subr.bf16.mxu0 0
        %990 = vmatpush1.bf16.msra.mxu0 0
        %991 = vmatprep.subr.bf16.mxu0 0
        %992 = vmatpush1.bf16.msra.mxu0 0
        %993 = vmatprep.subr.bf16.mxu0 0
        %994 = vmatpush1.bf16.msra.mxu0 0
        %995 = vmatprep.subr.bf16.mxu0 0
        %996 = vmatpush1.bf16.msra.mxu0 0
        %997 = vmatprep.subr.bf16.mxu0 0
        %998 = vmatpush1.bf16.msra.mxu0 0
        %999 = vmatprep.subr.bf16.mxu0 0
        %1000 = vmatpush1.bf16.msra.mxu0 0
        %1001 = vmatprep.subr.bf16.mxu0 0
        %1002 = vmatpush1.bf16.msra.mxu0 0
        %1003 = vmatprep.subr.bf16.mxu0 0
        %1004 = vmatpush1.bf16.msra.mxu0 0
        %1005 = vmatprep.subr.bf16.mxu0 0
        %1006 = vmatpush1.bf16.msra.mxu0 0
        %1007 = vmatprep.subr.bf16.mxu0 0
        %1008 = vmatpush1.bf16.msra.mxu0 0
        %1009 = vmatprep.subr.bf16.mxu0 0
        %1010 = vmatpush1.bf16.msra.mxu0 0
        %1011 = vmatprep.subr.bf16.mxu0 0
        %1012 = vmatpush1.bf16.msra.mxu0 0
        %1013 = vmatprep.subr.bf16.mxu0 0
        %1014 = vmatpush1.bf16.msra.mxu0 0
        %1015 = vmatprep.subr.bf16.mxu0 0
        %1016 = vmatpush1.bf16.msra.mxu0 0
        %1017 = vmatprep.mubr.bf16.mxu0 0
        %1018 = vmatmul.mubr.bf16.gmra.mrb[0].mxu0 %v857
        %v1019 = vpop.f32.mrb[0].mxu0
        %v1020 = vadd.f32 %v971, %v1019
        %v1021 = vpop.f32.mrb[0].mxu0
        %v1022 = vpop.f32.mrb[0].mxu0
        %v1023 = vpop.f32.mrb[0].mxu0
        %1024 = vdwg.mxu0
        %v1025 = vpack.c.bf16 %v894, %v894
        %v1026 = vpack.c.bf16 %v957, %v957
        %v1027 = vpack.c.bf16 %v1020, %v1020
        %vm1028 = vcmask 64512
        %v1030 = vsel %vm1028, %v1025, 0
        %v1033 = vsel %vm1028, %v1026, 0
        %1035 = vmatprep.subr.bf16.mxu0 0
        %1036 = vmatpush1.bf16.xpose.msra.mxu0 %v1033
        %1037 = vmatprep.subr.bf16.mxu0 0
        %1038 = vmatpush1.bf16.xpose.msra.mxu0 0
        %1039 = vmatprep.subr.bf16.mxu0 0
        %1040 = vmatpush1.bf16.xpose.msra.mxu0 0
        %1041 = vmatprep.subr.bf16.mxu0 0
        %1042 = vmatpush1.bf16.xpose.msra.mxu0 0
        %1043 = vmatprep.subr.bf16.mxu0 0
        %1044 = vmatpush1.bf16.xpose.msra.mxu0 0
        %1045 = vmatprep.subr.bf16.mxu0 0
        %1046 = vmatpush1.bf16.xpose.msra.mxu0 0
        %1047 = vmatprep.subr.bf16.mxu0 0
        %1048 = vmatpush1.bf16.xpose.msra.mxu0 0
        %1049 = vmatprep.subr.bf16.mxu0 0
        %1050 = vmatpush1.bf16.xpose.msra.mxu0 0
        %1051 = vmatprep.subr.bf16.mxu0 0
        %1052 = vmatpush1.bf16.xpose.msra.mxu0 0
        %1053 = vmatprep.subr.bf16.mxu0 0
        %1054 = vmatpush1.bf16.xpose.msra.mxu0 0
        %1055 = vmatprep.subr.bf16.mxu0 0
        %1056 = vmatpush1.bf16.xpose.msra.mxu0 0
        %1057 = vmatprep.subr.bf16.mxu0 0
        %1058 = vmatpush1.bf16.xpose.msra.mxu0 0
        %1059 = vmatprep.subr.bf16.mxu0 0
        %1060 = vmatpush1.bf16.xpose.msra.mxu0 0
        %1061 = vmatprep.subr.bf16.mxu0 0
        %1062 = vmatpush1.bf16.xpose.msra.mxu0 0
        %1063 = vmatprep.subr.bf16.mxu0 0
        %1064 = vmatpush1.bf16.xpose.msra.mxu0 0
        %1065 = vmatprep.subr.bf16.mxu0 0
        %1066 = vmatpush1.bf16.xpose.msra.mxu0 0
        %1067 = vmatprep.mubr.bf16.mxu0 0
        %1068 = vmatmul.mubr.bf16.gmra.mrb[0].mxu0 %v1030
        %v1069 = vpop.f32.mrb[0].mxu0
        %v1070 = vadd.f32 0.0, %v1069
        %v1071 = vpop.f32.mrb[0].mxu0
        %v1072 = vpop.f32.mrb[0].mxu0
        %v1073 = vpop.f32.mrb[0].mxu0
        %1074 = vdwg.mxu0
        %v1075 = vmul.f32 %v1070, 0.35355338
        %v1076 = vlaneseq
        %v1077 = vshrl.u32 %v1076, 7
        %v1078 = vsub.s32 0, %v1077
        %v1079 = vrot.slane %v798, %v1078
        %v1080 = vadd.f32 %v1075, %v1079
        %v1081 = vsel %vm1028, %v1080, -inf
        %1082 = vmax.xlane.f32.xlu0 %v1081
        %v1083 = vpop.xlane.xlu0 %1082
        %v1084 = vsub.f32 %v1080, %v1083
        %v1085 = vmul.f32 %v1084, 1.442695
        %v1086 = vpow.pop %v1085
        %v1087 = vsel %vm1028, %v1086, 0.0
        %1088 = vadd.xlane.f32.xlu0 %v1087
        %v1089 = vpop.xlane.xlu0 %1088
        %v1090 = vpack.c.bf16 %v1086, %v1086
        %v1092 = vsel %vm1028, %v1090, 0
        %vm1094 = vcmask 1043456
        %v1096 = vsel %vm1094, %v1027, 0
        %1098 = vmatprep.subr.bf16.mxu0 0
        %1099 = vmatpush1.bf16.msra.mxu0 %v1096
        %1100 = vmatprep.subr.bf16.mxu0 0
        %1101 = vmatpush1.bf16.msra.mxu0 0
        %1102 = vmatprep.subr.bf16.mxu0 0
        %1103 = vmatpush1.bf16.msra.mxu0 0
        %1104 = vmatprep.subr.bf16.mxu0 0
        %1105 = vmatpush1.bf16.msra.mxu0 0
        %1106 = vmatprep.subr.bf16.mxu0 0
        %1107 = vmatpush1.bf16.msra.mxu0 0
        %1108 = vmatprep.subr.bf16.mxu0 0
        %1109 = vmatpush1.bf16.msra.mxu0 0
        %1110 = vmatprep.subr.bf16.mxu0 0
        %1111 = vmatpush1.bf16.msra.mxu0 0
        %1112 = vmatprep.subr.bf16.mxu0 0
        %1113 = vmatpush1.bf16.msra.mxu0 0
        %1114 = vmatprep.subr.bf16.mxu0 0
        %1115 = vmatpush1.bf16.msra.mxu0 0
        %1116 = vmatprep.subr.bf16.mxu0 0
        %1117 = vmatpush1.bf16.msra.mxu0 0
        %1118 = vmatprep.subr.bf16.mxu0 0
        %1119 = vmatpush1.bf16.msra.mxu0 0
        %1120 = vmatprep.subr.bf16.mxu0 0
        %1121 = vmatpush1.bf16.msra.mxu0 0
        %1122 = vmatprep.subr.bf16.mxu0 0
        %1123 = vmatpush1.bf16.msra.mxu0 0
        %1124 = vmatprep.subr.bf16.mxu0 0
        %1125 = vmatpush1.bf16.msra.mxu0 0
        %1126 = vmatprep.subr.bf16.mxu0 0
        %1127 = vmatpush1.bf16.msra.mxu0 0
        %1128 = vmatprep.subr.bf16.mxu0 0
        %1129 = vmatpush1.bf16.msra.mxu0 0
        %1130 = vmatprep.mubr.bf16.mxu0 0
        %1131 = vmatmul.mubr.bf16.gmra.mrb[0].mxu0 %v1092
        %v1132 = vpop.f32.mrb[0].mxu0
        %v1133 = vadd.f32 0.0, %v1132
        %v1134 = vpop.f32.mrb[0].mxu0
        %v1135 = vpop.f32.mrb[0].mxu0
        %v1136 = vpop.f32.mrb[0].mxu0
        %1137 = vdwg.mxu0
        %v1138 = vrcp.pop %v1089
        %v1139 = vmul.f32 %v1133, %v1138
        %v1140 = vpack.c.bf16 %v1139, %v1139
        %vm1141 = vcmask 60416
        %1142 = vst.msk [vmem:[#allocation2] sm:$0xf] %vm1141, %v1140
        %1144 = vrot.lane.b32.xlu0 %v1025, 120
        %v1145 = vpop.permute.xlu0 %1144
        %1147 = vrot.lane.b32.xlu0 %v1026, 120
        %v1148 = vpop.permute.xlu0 %1147
        %v1150 = vsel %vm1028, %v1145, 0
        %v1153 = vsel %vm1028, %v1148, 0
        %1155 = vmatprep.subr.bf16.mxu0 0
        %1156 = vmatpush1.bf16.xpose.msra.mxu0 %v1153
        %1157 = vmatprep.subr.bf16.mxu0 0
        %1158 = vmatpush1.bf16.xpose.msra.mxu0 0
        %1159 = vmatprep.subr.bf16.mxu0 0
        %1160 = vmatpush1.bf16.xpose.msra.mxu0 0
        %1161 = vmatprep.subr.bf16.mxu0 0
        %1162 = vmatpush1.bf16.xpose.msra.mxu0 0
        %1163 = vmatprep.subr.bf16.mxu0 0
        %1164 = vmatpush1.bf16.xpose.msra.mxu0 0
        %1165 = vmatprep.subr.bf16.mxu0 0
        %1166 = vmatpush1.bf16.xpose.msra.mxu0 0
        %1167 = vmatprep.subr.bf16.mxu0 0
        %1168 = vmatpush1.bf16.xpose.msra.mxu0 0
        %1169 = vmatprep.subr.bf16.mxu0 0
        %1170 = vmatpush1.bf16.xpose.msra.mxu0 0
        %1171 = vmatprep.subr.bf16.mxu0 0
        %1172 = vmatpush1.bf16.xpose.msra.mxu0 0
        %1173 = vmatprep.subr.bf16.mxu0 0
        %1174 = vmatpush1.bf16.xpose.msra.mxu0 0
        %1175 = vmatprep.subr.bf16.mxu0 0
        %1176 = vmatpush1.bf16.xpose.msra.mxu0 0
        %1177 = vmatprep.subr.bf16.mxu0 0
        %1178 = vmatpush1.bf16.xpose.msra.mxu0 0
        %1179 = vmatprep.subr.bf16.mxu0 0
        %1180 = vmatpush1.bf16.xpose.msra.mxu0 0
        %1181 = vmatprep.subr.bf16.mxu0 0
        %1182 = vmatpush1.bf16.xpose.msra.mxu0 0
        %1183 = vmatprep.subr.bf16.mxu0 0
        %1184 = vmatpush1.bf16.xpose.msra.mxu0 0
        %1185 = vmatprep.subr.bf16.mxu0 0
        %1186 = vmatpush1.bf16.xpose.msra.mxu0 0
        %1187 = vmatprep.mubr.bf16.mxu0 0
        %1188 = vmatmul.mubr.bf16.gmra.mrb[0].mxu0 %v1150
        %v1189 = vpop.f32.mrb[0].mxu0
        %v1190 = vadd.f32 0.0, %v1189
        %v1191 = vpop.f32.mrb[0].mxu0
        %v1192 = vpop.f32.mrb[0].mxu0
        %v1193 = vpop.f32.mrb[0].mxu0
        %1194 = vdwg.mxu0
        %v1195 = vmul.f32 %v1190, 0.35355338
        %v1196 = vadd.f32 %v1195, %v1079
        %v1197 = vsel %vm1028, %v1196, -inf
        %1198 = vmax.xlane.f32.xlu0 %v1197
        %v1199 = vpop.xlane.xlu0 %1198
        %v1200 = vsub.f32 %v1196, %v1199
        %v1201 = vmul.f32 %v1200, 1.442695
        %v1202 = vpow.pop %v1201
        %v1203 = vsel %vm1028, %v1202, 0.0
        %1204 = vadd.xlane.f32.xlu0 %v1203
        %v1205 = vpop.xlane.xlu0 %1204
        %v1206 = vpack.c.bf16 %v1202, %v1202
        %1208 = vrot.lane.b32.xlu0 %v1027, 120
        %v1209 = vpop.permute.xlu0 %1208
        %v1211 = vsel %vm1028, %v1206, 0
        %v1214 = vsel %vm1094, %v1209, 0
        %1216 = vmatprep.subr.bf16.mxu0 0
        %1217 = vmatpush1.bf16.msra.mxu0 %v1214
        %1218 = vmatprep.subr.bf16.mxu0 0
        %1219 = vmatpush1.bf16.msra.mxu0 0
        %1220 = vmatprep.subr.bf16.mxu0 0
        %1221 = vmatpush1.bf16.msra.mxu0 0
        %1222 = vmatprep.subr.bf16.mxu0 0
        %1223 = vmatpush1.bf16.msra.mxu0 0
        %1224 = vmatprep.subr.bf16.mxu0 0
        %1225 = vmatpush1.bf16.msra.mxu0 0
        %1226 = vmatprep.subr.bf16.mxu0 0
        %1227 = vmatpush1.bf16.msra.mxu0 0
        %1228 = vmatprep.subr.bf16.mxu0 0
        %1229 = vmatpush1.bf16.msra.mxu0 0
        %1230 = vmatprep.subr.bf16.mxu0 0
        %1231 = vmatpush1.bf16.msra.mxu0 0
        %1232 = vmatprep.subr.bf16.mxu0 0
        %1233 = vmatpush1.bf16.msra.mxu0 0
        %1234 = vmatprep.subr.bf16.mxu0 0
        %1235 = vmatpush1.bf16.msra.mxu0 0
        %1236 = vmatprep.subr.bf16.mxu0 0
        %1237 = vmatpush1.bf16.msra.mxu0 0
        %1238 = vmatprep.subr.bf16.mxu0 0
        %1239 = vmatpush1.bf16.msra.mxu0 0
        %1240 = vmatprep.subr.bf16.mxu0 0
        %1241 = vmatpush1.bf16.msra.mxu0 0
        %1242 = vmatprep.subr.bf16.mxu0 0
        %1243 = vmatpush1.bf16.msra.mxu0 0
        %1244 = vmatprep.subr.bf16.mxu0 0
        %1245 = vmatpush1.bf16.msra.mxu0 0
        %1246 = vmatprep.subr.bf16.mxu0 0
        %1247 = vmatpush1.bf16.msra.mxu0 0
        %1248 = vmatprep.mubr.bf16.mxu0 0
        %1249 = vmatmul.mubr.bf16.gmra.mrb[0].mxu0 %v1211
        %v1250 = vpop.f32.mrb[0].mxu0
        %v1251 = vadd.f32 0.0, %v1250
        %v1252 = vpop.f32.mrb[0].mxu0
        %v1253 = vpop.f32.mrb[0].mxu0
        %v1254 = vpop.f32.mrb[0].mxu0
        %1255 = vdwg.mxu0
        %v1256 = vrcp.pop %v1205
        %v1257 = vmul.f32 %v1251, %v1256
        %v1258 = vpack.c.bf16 %v1257, %v1257
        %v1260 = vunpack.c.l.b16 %v1258
        %v1261 = vpack.c.b16 %v1260, %v1260
        %1262 = vrot.lane.b32.xlu0 %v1261, 8
        %v1263 = vpop.permute.xlu0 %1262
        %vm1265 = vcmask 126016
        %1266 = vst.msk [vmem:[#allocation2] sm:$0xf] %vm1265, %v1263
        %1267 = vrot.lane.b32.xlu0 %v1025, 112
        %v1268 = vpop.permute.xlu0 %1267
        %1269 = vrot.lane.b32.xlu0 %v1026, 112
        %v1270 = vpop.permute.xlu0 %1269
        %v1272 = vsel %vm1028, %v1268, 0
        %v1275 = vsel %vm1028, %v1270, 0
        %1277 = vmatprep.subr.bf16.mxu0 0
        %1278 = vmatpush1.bf16.xpose.msra.mxu0 %v1275
        %1279 = vmatprep.subr.bf16.mxu0 0
        %1280 = vmatpush1.bf16.xpose.msra.mxu0 0
        %1281 = vmatprep.subr.bf16.mxu0 0
        %1282 = vmatpush1.bf16.xpose.msra.mxu0 0
        %1283 = vmatprep.subr.bf16.mxu0 0
        %1284 = vmatpush1.bf16.xpose.msra.mxu0 0
        %1285 = vmatprep.subr.bf16.mxu0 0
        %1286 = vmatpush1.bf16.xpose.msra.mxu0 0
        %1287 = vmatprep.subr.bf16.mxu0 0
        %1288 = vmatpush1.bf16.xpose.msra.mxu0 0
        %1289 = vmatprep.subr.bf16.mxu0 0
        %1290 = vmatpush1.bf16.xpose.msra.mxu0 0
        %1291 = vmatprep.subr.bf16.mxu0 0
        %1292 = vmatpush1.bf16.xpose.msra.mxu0 0
        %1293 = vmatprep.subr.bf16.mxu0 0
        %1294 = vmatpush1.bf16.xpose.msra.mxu0 0
        %1295 = vmatprep.subr.bf16.mxu0 0
        %1296 = vmatpush1.bf16.xpose.msra.mxu0 0
        %1297 = vmatprep.subr.bf16.mxu0 0
        %1298 = vmatpush1.bf16.xpose.msra.mxu0 0
        %1299 = vmatprep.subr.bf16.mxu0 0
        %1300 = vmatpush1.bf16.xpose.msra.mxu0 0
        %1301 = vmatprep.subr.bf16.mxu0 0
        %1302 = vmatpush1.bf16.xpose.msra.mxu0 0
        %1303 = vmatprep.subr.bf16.mxu0 0
        %1304 = vmatpush1.bf16.xpose.msra.mxu0 0
        %1305 = vmatprep.subr.bf16.mxu0 0
        %1306 = vmatpush1.bf16.xpose.msra.mxu0 0
        %1307 = vmatprep.subr.bf16.mxu0 0
        %1308 = vmatpush1.bf16.xpose.msra.mxu0 0
        %1309 = vmatprep.mubr.bf16.mxu0 0
        %1310 = vmatmul.mubr.bf16.gmra.mrb[0].mxu0 %v1272
        %v1311 = vpop.f32.mrb[0].mxu0
        %v1312 = vadd.f32 0.0, %v1311
        %v1313 = vpop.f32.mrb[0].mxu0
        %v1314 = vpop.f32.mrb[0].mxu0
        %v1315 = vpop.f32.mrb[0].mxu0
        %1316 = vdwg.mxu0
        %v1317 = vmul.f32 %v1312, 0.35355338
        %v1318 = vadd.f32 %v1317, %v1079
        %v1319 = vsel %vm1028, %v1318, -inf
        %1320 = vmax.xlane.f32.xlu0 %v1319
        %v1321 = vpop.xlane.xlu0 %1320
        %v1322 = vsub.f32 %v1318, %v1321
        %v1323 = vmul.f32 %v1322, 1.442695
        %v1324 = vpow.pop %v1323
        %v1325 = vsel %vm1028, %v1324, 0.0
        %1326 = vadd.xlane.f32.xlu0 %v1325
        %v1327 = vpop.xlane.xlu0 %1326
        %v1328 = vpack.c.bf16 %v1324, %v1324
        %1329 = vrot.lane.b32.xlu0 %v1027, 112
        %v1330 = vpop.permute.xlu0 %1329
        %v1332 = vsel %vm1028, %v1328, 0
        %v1335 = vsel %vm1094, %v1330, 0
        %1337 = vmatprep.subr.bf16.mxu0 0
        %1338 = vmatpush1.bf16.msra.mxu0 %v1335
        %1339 = vmatprep.subr.bf16.mxu0 0
        %1340 = vmatpush1.bf16.msra.mxu0 0
        %1341 = vmatprep.subr.bf16.mxu0 0
        %1342 = vmatpush1.bf16.msra.mxu0 0
        %1343 = vmatprep.subr.bf16.mxu0 0
        %1344 = vmatpush1.bf16.msra.mxu0 0
        %1345 = vmatprep.subr.bf16.mxu0 0
        %1346 = vmatpush1.bf16.msra.mxu0 0
        %1347 = vmatprep.subr.bf16.mxu0 0
        %1348 = vmatpush1.bf16.msra.mxu0 0
        %1349 = vmatprep.subr.bf16.mxu0 0
        %1350 = vmatpush1.bf16.msra.mxu0 0
        %1351 = vmatprep.subr.bf16.mxu0 0
        %1352 = vmatpush1.bf16.msra.mxu0 0
        %1353 = vmatprep.subr.bf16.mxu0 0
        %1354 = vmatpush1.bf16.msra.mxu0 0
        %1355 = vmatprep.subr.bf16.mxu0 0
        %1356 = vmatpush1.bf16.msra.mxu0 0
        %1357 = vmatprep.subr.bf16.mxu0 0
        %1358 = vmatpush1.bf16.msra.mxu0 0
        %1359 = vmatprep.subr.bf16.mxu0 0
        %1360 = vmatpush1.bf16.msra.mxu0 0
        %1361 = vmatprep.subr.bf16.mxu0 0
        %1362 = vmatpush1.bf16.msra.mxu0 0
        %1363 = vmatprep.subr.bf16.mxu0 0
        %1364 = vmatpush1.bf16.msra.mxu0 0
        %1365 = vmatprep.subr.bf16.mxu0 0
        %1366 = vmatpush1.bf16.msra.mxu0 0
        %1367 = vmatprep.subr.bf16.mxu0 0
        %1368 = vmatpush1.bf16.msra.mxu0 0
        %1369 = vmatprep.mubr.bf16.mxu0 0
        %1370 = vmatmul.mubr.bf16.gmra.mrb[0].mxu0 %v1332
        %v1371 = vpop.f32.mrb[0].mxu0
        %v1372 = vadd.f32 0.0, %v1371
        %v1373 = vpop.f32.mrb[0].mxu0
        %v1374 = vpop.f32.mrb[0].mxu0
        %v1375 = vpop.f32.mrb[0].mxu0
        %1376 = vdwg.mxu0
        %v1377 = vrcp.pop %v1327
        %v1378 = vmul.f32 %v1372, %v1377
        %v1379 = vpack.c.bf16 %v1378, %v1378
        %v1381 = vunpack.c.l.b16 %v1379
        %v1382 = vpack.c.b16 %v1381, %v1381
        %1383 = vrot.lane.b32.xlu0 %v1382, 16
        %v1384 = vpop.permute.xlu0 %1383
        %vm1386 = vcmask 191616
        %1387 = vst.msk [vmem:[#allocation2] sm:$0xf] %vm1386, %v1384
        %1388 = vrot.lane.b32.xlu0 %v1025, 104
        %v1389 = vpop.permute.xlu0 %1388
        %1390 = vrot.lane.b32.xlu0 %v1026, 104
        %v1391 = vpop.permute.xlu0 %1390
        %v1393 = vsel %vm1028, %v1389, 0
        %v1396 = vsel %vm1028, %v1391, 0
        %1398 = vmatprep.subr.bf16.mxu0 0
        %1399 = vmatpush1.bf16.xpose.msra.mxu0 %v1396
        %1400 = vmatprep.subr.bf16.mxu0 0
        %1401 = vmatpush1.bf16.xpose.msra.mxu0 0
        %1402 = vmatprep.subr.bf16.mxu0 0
        %1403 = vmatpush1.bf16.xpose.msra.mxu0 0
        %1404 = vmatprep.subr.bf16.mxu0 0
        %1405 = vmatpush1.bf16.xpose.msra.mxu0 0
        %1406 = vmatprep.subr.bf16.mxu0 0
        %1407 = vmatpush1.bf16.xpose.msra.mxu0 0
        %1408 = vmatprep.subr.bf16.mxu0 0
        %1409 = vmatpush1.bf16.xpose.msra.mxu0 0
        %1410 = vmatprep.subr.bf16.mxu0 0
        %1411 = vmatpush1.bf16.xpose.msra.mxu0 0
        %1412 = vmatprep.subr.bf16.mxu0 0
        %1413 = vmatpush1.bf16.xpose.msra.mxu0 0
        %1414 = vmatprep.subr.bf16.mxu0 0
        %1415 = vmatpush1.bf16.xpose.msra.mxu0 0
        %1416 = vmatprep.subr.bf16.mxu0 0
        %1417 = vmatpush1.bf16.xpose.msra.mxu0 0
        %1418 = vmatprep.subr.bf16.mxu0 0
        %1419 = vmatpush1.bf16.xpose.msra.mxu0 0
        %1420 = vmatprep.subr.bf16.mxu0 0
        %1421 = vmatpush1.bf16.xpose.msra.mxu0 0
        %1422 = vmatprep.subr.bf16.mxu0 0
        %1423 = vmatpush1.bf16.xpose.msra.mxu0 0
        %1424 = vmatprep.subr.bf16.mxu0 0
        %1425 = vmatpush1.bf16.xpose.msra.mxu0 0
        %1426 = vmatprep.subr.bf16.mxu0 0
        %1427 = vmatpush1.bf16.xpose.msra.mxu0 0
        %1428 = vmatprep.subr.bf16.mxu0 0
        %1429 = vmatpush1.bf16.xpose.msra.mxu0 0
        %1430 = vmatprep.mubr.bf16.mxu0 0
        %1431 = vmatmul.mubr.bf16.gmra.mrb[0].mxu0 %v1393
        %v1432 = vpop.f32.mrb[0].mxu0
        %v1433 = vadd.f32 0.0, %v1432
        %v1434 = vpop.f32.mrb[0].mxu0
        %v1435 = vpop.f32.mrb[0].mxu0
        %v1436 = vpop.f32.mrb[0].mxu0
        %1437 = vdwg.mxu0
        %v1438 = vmul.f32 %v1433, 0.35355338
        %v1439 = vadd.f32 %v1438, %v1079
        %v1440 = vsel %vm1028, %v1439, -inf
        %1441 = vmax.xlane.f32.xlu0 %v1440
        %v1442 = vpop.xlane.xlu0 %1441
        %v1443 = vsub.f32 %v1439, %v1442
        %v1444 = vmul.f32 %v1443, 1.442695
        %v1445 = vpow.pop %v1444
        %v1446 = vsel %vm1028, %v1445, 0.0
        %1447 = vadd.xlane.f32.xlu0 %v1446
        %v1448 = vpop.xlane.xlu0 %1447
        %v1449 = vpack.c.bf16 %v1445, %v1445
        %1450 = vrot.lane.b32.xlu0 %v1027, 104
        %v1451 = vpop.permute.xlu0 %1450
        %v1453 = vsel %vm1028, %v1449, 0
        %v1456 = vsel %vm1094, %v1451, 0
        %1458 = vmatprep.subr.bf16.mxu0 0
        %1459 = vmatpush1.bf16.msra.mxu0 %v1456
        %1460 = vmatprep.subr.bf16.mxu0 0
        %1461 = vmatpush1.bf16.msra.mxu0 0
        %1462 = vmatprep.subr.bf16.mxu0 0
        %1463 = vmatpush1.bf16.msra.mxu0 0
        %1464 = vmatprep.subr.bf16.mxu0 0
        %1465 = vmatpush1.bf16.msra.mxu0 0
        %1466 = vmatprep.subr.bf16.mxu0 0
        %1467 = vmatpush1.bf16.msra.mxu0 0
        %1468 = vmatprep.subr.bf16.mxu0 0
        %1469 = vmatpush1.bf16.msra.mxu0 0
        %1470 = vmatprep.subr.bf16.mxu0 0
        %1471 = vmatpush1.bf16.msra.mxu0 0
        %1472 = vmatprep.subr.bf16.mxu0 0
        %1473 = vmatpush1.bf16.msra.mxu0 0
        %1474 = vmatprep.subr.bf16.mxu0 0
        %1475 = vmatpush1.bf16.msra.mxu0 0
        %1476 = vmatprep.subr.bf16.mxu0 0
        %1477 = vmatpush1.bf16.msra.mxu0 0
        %1478 = vmatprep.subr.bf16.mxu0 0
        %1479 = vmatpush1.bf16.msra.mxu0 0
        %1480 = vmatprep.subr.bf16.mxu0 0
        %1481 = vmatpush1.bf16.msra.mxu0 0
        %1482 = vmatprep.subr.bf16.mxu0 0
        %1483 = vmatpush1.bf16.msra.mxu0 0
        %1484 = vmatprep.subr.bf16.mxu0 0
        %1485 = vmatpush1.bf16.msra.mxu0 0
        %1486 = vmatprep.subr.bf16.mxu0 0
        %1487 = vmatpush1.bf16.msra.mxu0 0
        %1488 = vmatprep.subr.bf16.mxu0 0
        %1489 = vmatpush1.bf16.msra.mxu0 0
        %1490 = vmatprep.mubr.bf16.mxu0 0
        %1491 = vmatmul.mubr.bf16.gmra.mrb[0].mxu0 %v1453
        %v1492 = vpop.f32.mrb[0].mxu0
        %v1493 = vadd.f32 0.0, %v1492
        %v1494 = vpop.f32.mrb[0].mxu0
        %v1495 = vpop.f32.mrb[0].mxu0
        %v1496 = vpop.f32.mrb[0].mxu0
        %1497 = vdwg.mxu0
        %v1498 = vrcp.pop %v1448
        %v1499 = vmul.f32 %v1493, %v1498
        %v1500 = vpack.c.bf16 %v1499, %v1499
        %v1502 = vunpack.c.l.b16 %v1500
        %v1503 = vpack.c.b16 %v1502, %v1502
        %1504 = vrot.lane.b32.xlu0 %v1503, 24
        %v1505 = vpop.permute.xlu0 %1504
        %vm1507 = vcmask 257216
        %1508 = vst.msk [vmem:[#allocation2] sm:$0xf] %vm1507, %v1505
        %v1509 = vld [vmem:[#allocation2] sm:$0xf]
        %v1510 = vld [vmem:[#allocation12] sm:$0xf]
        %v1511 = vld [vmem:[#allocation12 + $0x4] sm:$0xf]
        %v1512 = vld [vmem:[#allocation12 + $0x8] sm:$0xf]
        %v1513 = vld [vmem:[#allocation12 + $0xc] sm:$0xf]
        %v1514 = vld [vmem:[#allocation14] sm:$0x1]
        %v1516 = vlaneseq
        %v1517 = vshrl.u32 %v1516, 7
        %v1518 = vsub.s32 0, %v1517
        %v1519 = vrot.slane %v1514, %v1518
        %v1525 = vunpack.c.l.b16 %v1510
        %v1526 = vunpack.c.l.b16 %v1511
        %v1527 = vunpack.c.l.b16 %v1512
        %v1528 = vunpack.c.l.b16 %v1513
        %v1529 = vpack.c.b16 %v1526, %v1525
        %v1530 = vpack.c.b16 %v1528, %v1527
        %v1534 = vsel %vm803, %v1509, 0
        %1536 = vmatprep.subr.bf16.mxu0 0
        %1537 = vmatpush1.bf16.msra.mxu0 %v1529
        %1538 = vmatprep.subr.bf16.mxu0 0
        %1539 = vmatpush1.bf16.msra.mxu0 %v1530
        %1540 = vmatprep.subr.bf16.mxu0 0
        %1541 = vmatpush1.bf16.msra.mxu0 0
        %1542 = vmatprep.subr.bf16.mxu0 0
        %1543 = vmatpush1.bf16.msra.mxu0 0
        %1544 = vmatprep.subr.bf16.mxu0 0
        %1545 = vmatpush1.bf16.msra.mxu0 0
        %1546 = vmatprep.subr.bf16.mxu0 0
        %1547 = vmatpush1.bf16.msra.mxu0 0
        %1548 = vmatprep.subr.bf16.mxu0 0
        %1549 = vmatpush1.bf16.msra.mxu0 0
        %1550 = vmatprep.subr.bf16.mxu0 0
        %1551 = vmatpush1.bf16.msra.mxu0 0
        %1552 = vmatprep.subr.bf16.mxu0 0
        %1553 = vmatpush1.bf16.msra.mxu0 0
        %1554 = vmatprep.subr.bf16.mxu0 0
        %1555 = vmatpush1.bf16.msra.mxu0 0
        %1556 = vmatprep.subr.bf16.mxu0 0
        %1557 = vmatpush1.bf16.msra.mxu0 0
        %1558 = vmatprep.subr.bf16.mxu0 0
        %1559 = vmatpush1.bf16.msra.mxu0 0
        %1560 = vmatprep.subr.bf16.mxu0 0
        %1561 = vmatpush1.bf16.msra.mxu0 0
        %1562 = vmatprep.subr.bf16.mxu0 0
        %1563 = vmatpush1.bf16.msra.mxu0 0
        %1564 = vmatprep.subr.bf16.mxu0 0
        %1565 = vmatpush1.bf16.msra.mxu0 0
        %1566 = vmatprep.subr.bf16.mxu0 0
        %1567 = vmatpush1.bf16.msra.mxu0 0
        %1568 = vmatprep.mubr.bf16.mxu0 0
        %1569 = vmatmul.mubr.bf16.gmra.mrb[0].mxu0 %v1534
        %v1570 = vpop.f32.mrb[0].mxu0
        %v1571 = vadd.f32 %v1519, %v1570
        %v1572 = vpop.f32.mrb[0].mxu0
        %v1573 = vpop.f32.mrb[0].mxu0
        %v1574 = vpop.f32.mrb[0].mxu0
        %1575 = vdwg.mxu0
        %v1576 = vadd.f32 %v831, %v1571
        %v1577 = vld [vmem:[%s12] sm:$0x1]
        %v1578 = vld [vmem:[%s13] sm:$0x1]
        %v1579 = vsel %vm803, %v1576, 0.0
        %1580 = vadd.xlane.f32.xlu0 %v1579
        %v1581 = vpop.xlane.xlu0 %1580
        %v1582 = vmul.f32 %v1581, %v807
        %v1583 = vsub.f32 %v1576, %v1582
        %v1584 = vmul.f32 %v1583, %v1583
        %v1585 = vsel %vm803, %v1584, 0.0
        %1586 = vadd.xlane.f32.xlu0 %v1585
        %v1587 = vpop.xlane.xlu0 %1586
        %v1588 = vmul.f32 %v1587, %v807
        %v1589 = vadd.f32 %v1588, 1e-12
        %v1590 = vrsqrt.pop %v1589
        %v1591 = vmul.f32 %v1583, %v1590
        %v1593 = vlaneseq
        %v1594 = vshrl.u32 %v1593, 7
        %v1595 = vsub.s32 0, %v1594
        %v1596 = vrot.slane %v1577, %v1595
        %v1598 = vmul.f32 %v1591, %v1596
        %v1600 = vlaneseq
        %v1601 = vshrl.u32 %v1600, 7
        %v1602 = vsub.s32 0, %v1601
        %v1603 = vrot.slane %v1578, %v1602
        %v1605 = vadd.f32 %v1598, %v1603
        %v1606 = vpack.c.bf16 %v1605, %v1605
        %v1607 = vld [vmem:[%s14] sm:$0xf]
        %v1608 = vld [vmem:[%s14 + $0x4] sm:$0xf]
        %v1609 = vld [vmem:[%s14 + $0x8] sm:$0xf]
        %v1610 = vld [vmem:[%s14 + $0xc] sm:$0xf]
        %v1611 = vld [vmem:[%s15] sm:$0x1]
        %v1613 = vlaneseq
        %v1614 = vshrl.u32 %v1613, 7
        %v1615 = vsub.s32 0, %v1614
        %v1616 = vrot.slane %v1611, %v1615
        %v1622 = vunpack.c.l.b16 %v1607
        %v1623 = vunpack.c.l.b16 %v1608
        %v1624 = vunpack.c.l.b16 %v1609
        %v1625 = vunpack.c.l.b16 %v1610
        %v1626 = vpack.c.b16 %v1623, %v1622
        %v1627 = vpack.c.b16 %v1625, %v1624
        %v1631 = vsel %vm803, %v1606, 0
        %1633 = vmatprep.subr.bf16.mxu0 0
        %1634 = vmatpush1.bf16.msra.mxu0 %v1626
        %1635 = vmatprep.subr.bf16.mxu0 0
        %1636 = vmatpush1.bf16.msra.mxu0 %v1627
        %1637 = vmatprep.subr.bf16.mxu0 0
        %1638 = vmatpush1.bf16.msra.mxu0 0
        %1639 = vmatprep.subr.bf16.mxu0 0
        %1640 = vmatpush1.bf16.msra.mxu0 0
        %1641 = vmatprep.subr.bf16.mxu0 0
        %1642 = vmatpush1.bf16.msra.mxu0 0
        %1643 = vmatprep.subr.bf16.mxu0 0
        %1644 = vmatpush1.bf16.msra.mxu0 0
        %1645 = vmatprep.subr.bf16.mxu0 0
        %1646 = vmatpush1.bf16.msra.mxu0 0
        %1647 = vmatprep.subr.bf16.mxu0 0
        %1648 = vmatpush1.bf16.msra.mxu0 0
        %1649 = vmatprep.subr.bf16.mxu0 0
        %1650 = vmatpush1.bf16.msra.mxu0 0
        %1651 = vmatprep.subr.bf16.mxu0 0
        %1652 = vmatpush1.bf16.msra.mxu0 0
        %1653 = vmatprep.subr.bf16.mxu0 0
        %1654 = vmatpush1.bf16.msra.mxu0 0
        %1655 = vmatprep.subr.bf16.mxu0 0
        %1656 = vmatpush1.bf16.msra.mxu0 0
        %1657 = vmatprep.subr.bf16.mxu0 0
        %1658 = vmatpush1.bf16.msra.mxu0 0
        %1659 = vmatprep.subr.bf16.mxu0 0
        %1660 = vmatpush1.bf16.msra.mxu0 0
        %1661 = vmatprep.subr.bf16.mxu0 0
        %1662 = vmatpush1.bf16.msra.mxu0 0
        %1663 = vmatprep.subr.bf16.mxu0 0
        %1664 = vmatpush1.bf16.msra.mxu0 0
        %1665 = vmatprep.mubr.bf16.mxu0 0
        %1666 = vmatmul.mubr.bf16.gmra.mrb[0].mxu0 %v1631
        %v1667 = vpop.f32.mrb[0].mxu0
        %v1668 = vadd.f32 %v1616, %v1667
        %v1669 = vpop.f32.mrb[0].mxu0
        %v1670 = vpop.f32.mrb[0].mxu0
        %v1671 = vpop.f32.mrb[0].mxu0
        %1672 = vdwg.mxu0
        %v1673 = vmul.f32 %v1668, %v1668
        %v1674 = vmul.f32 %v1668, %v1673
        %v1675 = vmul.f32 %v1674, 0.044715
        %v1676 = vadd.f32 %v1668, %v1675
        %v1677 = vmul.f32 %v1676, 0.7978846
        %v1678 = vtanh.pop %v1677
        %v1679 = vadd.f32 %v1678, 1.0
        %v1680 = vmul.f32 %v1679, 0.5
        %v1681 = vmul.f32 %v1668, %v1680
        %v1682 = vpack.c.bf16 %v1681, %v1681
        %v1683 = vld [vmem:[%s16] sm:$0xf]
        %v1684 = vld [vmem:[%s16 + $0x4] sm:$0xf]
        %v1685 = vld [vmem:[%s16 + $0x8] sm:$0xf]
        %v1686 = vld [vmem:[%s16 + $0xc] sm:$0xf]
        %v1687 = vld [vmem:[%s16 + $0x10] sm:$0xf]
        %v1688 = vld [vmem:[%s16 + $0x14] sm:$0xf]
        %v1689 = vld [vmem:[%s16 + $0x18] sm:$0xf]
        %v1690 = vld [vmem:[%s16 + $0x1c] sm:$0xf]
        %v1691 = vld [vmem:[%s17] sm:$0x1]
        %v1693 = vlaneseq
        %v1694 = vshrl.u32 %v1693, 7
        %v1695 = vsub.s32 0, %v1694
        %v1696 = vrot.slane %v1691, %v1695
        %v1706 = vunpack.c.l.b16 %v1683
        %v1707 = vunpack.c.l.b16 %v1684
        %v1708 = vunpack.c.l.b16 %v1685
        %v1709 = vunpack.c.l.b16 %v1686
        %v1710 = vunpack.c.l.b16 %v1687
        %v1711 = vunpack.c.l.b16 %v1688
        %v1712 = vunpack.c.l.b16 %v1689
        %v1713 = vunpack.c.l.b16 %v1690
        %v1714 = vpack.c.b16 %v1707, %v1706
        %v1715 = vpack.c.b16 %v1709, %v1708
        %v1716 = vpack.c.b16 %v1711, %v1710
        %v1717 = vpack.c.b16 %v1713, %v1712
        %vm1722 = vcmask 523264
        %v1724 = vsel %vm1722, %v1682, 0
        %1726 = vmatprep.subr.bf16.mxu0 0
        %1727 = vmatpush1.bf16.msra.mxu0 %v1714
        %1728 = vmatprep.subr.bf16.mxu0 0
        %1729 = vmatpush1.bf16.msra.mxu0 %v1715
        %1730 = vmatprep.subr.bf16.mxu0 0
        %1731 = vmatpush1.bf16.msra.mxu0 %v1716
        %1732 = vmatprep.subr.bf16.mxu0 0
        %1733 = vmatpush1.bf16.msra.mxu0 %v1717
        %1734 = vmatprep.subr.bf16.mxu0 0
        %1735 = vmatpush1.bf16.msra.mxu0 0
        %1736 = vmatprep.subr.bf16.mxu0 0
        %1737 = vmatpush1.bf16.msra.mxu0 0
        %1738 = vmatprep.subr.bf16.mxu0 0
        %1739 = vmatpush1.bf16.msra.mxu0 0
        %1740 = vmatprep.subr.bf16.mxu0 0
        %1741 = vmatpush1.bf16.msra.mxu0 0
        %1742 = vmatprep.subr.bf16.mxu0 0
        %1743 = vmatpush1.bf16.msra.mxu0 0
        %1744 = vmatprep.subr.bf16.mxu0 0
        %1745 = vmatpush1.bf16.msra.mxu0 0
        %1746 = vmatprep.subr.bf16.mxu0 0
        %1747 = vmatpush1.bf16.msra.mxu0 0
        %1748 = vmatprep.subr.bf16.mxu0 0
        %1749 = vmatpush1.bf16.msra.mxu0 0
        %1750 = vmatprep.subr.bf16.mxu0 0
        %1751 = vmatpush1.bf16.msra.mxu0 0
        %1752 = vmatprep.subr.bf16.mxu0 0
        %1753 = vmatpush1.bf16.msra.mxu0 0
        %1754 = vmatprep.subr.bf16.mxu0 0
        %1755 = vmatpush1.bf16.msra.mxu0 0
        %1756 = vmatprep.subr.bf16.mxu0 0
        %1757 = vmatpush1.bf16.msra.mxu0 0
        %1758 = vmatprep.mubr.bf16.mxu0 0
        %1759 = vmatmul.mubr.bf16.gmra.mrb[0].mxu0 %v1724
        %v1760 = vpop.f32.mrb[0].mxu0
        %v1761 = vadd.f32 %v1696, %v1760
        %v1762 = vpop.f32.mrb[0].mxu0
        %v1763 = vpop.f32.mrb[0].mxu0
        %v1764 = vpop.f32.mrb[0].mxu0
        %1765 = vdwg.mxu0
        %v1766 = vadd.f32 %v1605, %v1761
        %v1767 = vld [vmem:[%s18] sm:$0x1]
        %v1768 = vld [vmem:[%s19] sm:$0x1]
        %v1769 = vsel %vm803, %v1766, 0.0
        %1770 = vadd.xlane.f32.xlu0 %v1769
        %v1771 = vpop.xlane.xlu0 %1770
        %v1772 = vmul.f32 %v1771, %v807
        %v1773 = vsub.f32 %v1766, %v1772
        %v1774 = vmul.f32 %v1773, %v1773
        %v1775 = vsel %vm803, %v1774, 0.0
        %1776 = vadd.xlane.f32.xlu0 %v1775
        %v1777 = vpop.xlane.xlu0 %1776
        %v1778 = vmul.f32 %v1777, %v807
        %v1779 = vadd.f32 %v1778, 1e-12
        %v1780 = vrsqrt.pop %v1779
        %v1781 = vmul.f32 %v1773, %v1780
        %v1783 = vlaneseq
        %v1784 = vshrl.u32 %v1783, 7
        %v1785 = vsub.s32 0, %v1784
        %v1786 = vrot.slane %v1767, %v1785
        %v1788 = vmul.f32 %v1781, %v1786
        %v1790 = vlaneseq
        %v1791 = vshrl.u32 %v1790, 7
        %v1792 = vsub.s32 0, %v1791
        %v1793 = vrot.slane %v1768, %v1792
        %v1795 = vadd.f32 %v1788, %v1793
        %v1796 = vpack.c.bf16 %v1795, %v1795
        %s1797 = scalar_lea.vmem %s4, 16
        %v1798 = vld [vmem:[%s1797] sm:$0xf]
        %v1799 = vld [vmem:[%s1797 + $0x4] sm:$0xf]
        %v1800 = vld [vmem:[%s1797 + $0x8] sm:$0xf]
        %v1801 = vld [vmem:[%s1797 + $0xc] sm:$0xf]
        %s1802 = scalar_lea.vmem %s5, 1
        %v1803 = vld [vmem:[%s1802] sm:$0x1]
        %v1805 = vlaneseq
        %v1806 = vshrl.u32 %v1805, 7
        %v1807 = vsub.s32 0, %v1806
        %v1808 = vrot.slane %v1803, %v1807
        %v1814 = vunpack.c.l.b16 %v1798
        %v1815 = vunpack.c.l.b16 %v1799
        %v1816 = vunpack.c.l.b16 %v1800
        %v1817 = vunpack.c.l.b16 %v1801
        %v1818 = vpack.c.b16 %v1815, %v1814
        %v1819 = vpack.c.b16 %v1817, %v1816
        %v1823 = vsel %vm803, %v1796, 0
        %1825 = vmatprep.subr.bf16.mxu0 0
        %1826 = vmatpush1.bf16.msra.mxu0 %v1818
        %1827 = vmatprep.subr.bf16.mxu0 0
        %1828 = vmatpush1.bf16.msra.mxu0 %v1819
        %1829 = vmatprep.subr.bf16.mxu0 0
        %1830 = vmatpush1.bf16.msra.mxu0 0
        %1831 = vmatprep.subr.bf16.mxu0 0
        %1832 = vmatpush1.bf16.msra.mxu0 0
        %1833 = vmatprep.subr.bf16.mxu0 0
        %1834 = vmatpush1.bf16.msra.mxu0 0
        %1835 = vmatprep.subr.bf16.mxu0 0
        %1836 = vmatpush1.bf16.msra.mxu0 0
        %1837 = vmatprep.subr.bf16.mxu0 0
        %1838 = vmatpush1.bf16.msra.mxu0 0
        %1839 = vmatprep.subr.bf16.mxu0 0
        %1840 = vmatpush1.bf16.msra.mxu0 0
        %1841 = vmatprep.subr.bf16.mxu0 0
        %1842 = vmatpush1.bf16.msra.mxu0 0
        %1843 = vmatprep.subr.bf16.mxu0 0
        %1844 = vmatpush1.bf16.msra.mxu0 0
        %1845 = vmatprep.subr.bf16.mxu0 0
        %1846 = vmatpush1.bf16.msra.mxu0 0
        %1847 = vmatprep.subr.bf16.mxu0 0
        %1848 = vmatpush1.bf16.msra.mxu0 0
        %1849 = vmatprep.subr.bf16.mxu0 0
        %1850 = vmatpush1.bf16.msra.mxu0 0
        %1851 = vmatprep.subr.bf16.mxu0 0
        %1852 = vmatpush1.bf16.msra.mxu0 0
        %1853 = vmatprep.subr.bf16.mxu0 0
        %1854 = vmatpush1.bf16.msra.mxu0 0
        %1855 = vmatprep.subr.bf16.mxu0 0
        %1856 = vmatpush1.bf16.msra.mxu0 0
        %1857 = vmatprep.mubr.bf16.mxu0 0
        %1858 = vmatmul.mubr.bf16.gmra.mrb[0].mxu0 %v1823
        %v1859 = vpop.f32.mrb[0].mxu0
        %v1860 = vadd.f32 %v1808, %v1859
        %v1861 = vpop.f32.mrb[0].mxu0
        %v1862 = vpop.f32.mrb[0].mxu0
        %v1863 = vpop.f32.mrb[0].mxu0
        %1864 = vdwg.mxu0
        %s1865 = scalar_lea.vmem %s6, 16
        %v1866 = vld [vmem:[%s1865] sm:$0xf]
        %v1867 = vld [vmem:[%s1865 + $0x4] sm:$0xf]
        %v1868 = vld [vmem:[%s1865 + $0x8] sm:$0xf]
        %v1869 = vld [vmem:[%s1865 + $0xc] sm:$0xf]
        %s1870 = scalar_lea.vmem [#allocation9], 1
        %v1871 = vld [vmem:[%s1870] sm:$0x1]
        %v1873 = vlaneseq
        %v1874 = vshrl.u32 %v1873, 7
        %v1875 = vsub.s32 0, %v1874
        %v1876 = vrot.slane %v1871, %v1875
        %v1882 = vunpack.c.l.b16 %v1866
        %v1883 = vunpack.c.l.b16 %v1867
        %v1884 = vunpack.c.l.b16 %v1868
        %v1885 = vunpack.c.l.b16 %v1869
        %v1886 = vpack.c.b16 %v1883, %v1882
        %v1887 = vpack.c.b16 %v1885, %v1884
        %1890 = vmatprep.subr.bf16.mxu0 0
        %1891 = vmatpush1.bf16.msra.mxu0 %v1886
        %1892 = vmatprep.subr.bf16.mxu0 0
        %1893 = vmatpush1.bf16.msra.mxu0 %v1887
        %1894 = vmatprep.subr.bf16.mxu0 0
        %1895 = vmatpush1.bf16.msra.mxu0 0
        %1896 = vmatprep.subr.bf16.mxu0 0
        %1897 = vmatpush1.bf16.msra.mxu0 0
        %1898 = vmatprep.subr.bf16.mxu0 0
        %1899 = vmatpush1.bf16.msra.mxu0 0
        %1900 = vmatprep.subr.bf16.mxu0 0
        %1901 = vmatpush1.bf16.msra.mxu0 0
        %1902 = vmatprep.subr.bf16.mxu0 0
        %1903 = vmatpush1.bf16.msra.mxu0 0
        %1904 = vmatprep.subr.bf16.mxu0 0
        %1905 = vmatpush1.bf16.msra.mxu0 0
        %1906 = vmatprep.subr.bf16.mxu0 0
        %1907 = vmatpush1.bf16.msra.mxu0 0
        %1908 = vmatprep.subr.bf16.mxu0 0
        %1909 = vmatpush1.bf16.msra.mxu0 0
        %1910 = vmatprep.subr.bf16.mxu0 0
        %1911 = vmatpush1.bf16.msra.mxu0 0
        %1912 = vmatprep.subr.bf16.mxu0 0
        %1913 = vmatpush1.bf16.msra.mxu0 0
        %1914 = vmatprep.subr.bf16.mxu0 0
        %1915 = vmatpush1.bf16.msra.mxu0 0
        %1916 = vmatprep.subr.bf16.mxu0 0
        %1917 = vmatpush1.bf16.msra.mxu0 0
        %1918 = vmatprep.subr.bf16.mxu0 0
        %1919 = vmatpush1.bf16.msra.mxu0 0
        %1920 = vmatprep.subr.bf16.mxu0 0
        %1921 = vmatpush1.bf16.msra.mxu0 0
        %1922 = vmatprep.mubr.bf16.mxu0 0
        %1923 = vmatmul.mubr.bf16.gmra.mrb[0].mxu0 %v1823
        %v1924 = vpop.f32.mrb[0].mxu0
        %v1925 = vadd.f32 %v1876, %v1924
        %v1926 = vpop.f32.mrb[0].mxu0
        %v1927 = vpop.f32.mrb[0].mxu0
        %v1928 = vpop.f32.mrb[0].mxu0
        %1929 = vdwg.mxu0
        %s1930 = scalar_lea.vmem %s8, 16
        %v1931 = vld [vmem:[%s1930] sm:$0xf]
        %v1932 = vld [vmem:[%s1930 + $0x4] sm:$0xf]
        %v1933 = vld [vmem:[%s1930 + $0x8] sm:$0xf]
        %v1934 = vld [vmem:[%s1930 + $0xc] sm:$0xf]
        %s1935 = scalar_lea.vmem [#allocation11], 1
        %v1936 = vld [vmem:[%s1935] sm:$0x1]
        %v1938 = vlaneseq
        %v1939 = vshrl.u32 %v1938, 7
        %v1940 = vsub.s32 0, %v1939
        %v1941 = vrot.slane %v1936, %v1940
        %v1947 = vunpack.c.l.b16 %v1931
        %v1948 = vunpack.c.l.b16 %v1932
        %v1949 = vunpack.c.l.b16 %v1933
        %v1950 = vunpack.c.l.b16 %v1934
        %v1951 = vpack.c.b16 %v1948, %v1947
        %v1952 = vpack.c.b16 %v1950, %v1949
        %1955 = vmatprep.subr.bf16.mxu0 0
        %1956 = vmatpush1.bf16.msra.mxu0 %v1951
        %1957 = vmatprep.subr.bf16.mxu0 0
        %1958 = vmatpush1.bf16.msra.mxu0 %v1952
        %1959 = vmatprep.subr.bf16.mxu0 0
        %1960 = vmatpush1.bf16.msra.mxu0 0
        %1961 = vmatprep.subr.bf16.mxu0 0
        %1962 = vmatpush1.bf16.msra.mxu0 0
        %1963 = vmatprep.subr.bf16.mxu0 0
        %1964 = vmatpush1.bf16.msra.mxu0 0
        %1965 = vmatprep.subr.bf16.mxu0 0
        %1966 = vmatpush1.bf16.msra.mxu0 0
        %1967 = vmatprep.subr.bf16.mxu0 0
        %1968 = vmatpush1.bf16.msra.mxu0 0
        %1969 = vmatprep.subr.bf16.mxu0 0
        %1970 = vmatpush1.bf16.msra.mxu0 0
        %1971 = vmatprep.subr.bf16.mxu0 0
        %1972 = vmatpush1.bf16.msra.mxu0 0
        %1973 = vmatprep.subr.bf16.mxu0 0
        %1974 = vmatpush1.bf16.msra.mxu0 0
        %1975 = vmatprep.subr.bf16.mxu0 0
        %1976 = vmatpush1.bf16.msra.mxu0 0
        %1977 = vmatprep.subr.bf16.mxu0 0
        %1978 = vmatpush1.bf16.msra.mxu0 0
        %1979 = vmatprep.subr.bf16.mxu0 0
        %1980 = vmatpush1.bf16.msra.mxu0 0
        %1981 = vmatprep.subr.bf16.mxu0 0
        %1982 = vmatpush1.bf16.msra.mxu0 0
        %1983 = vmatprep.subr.bf16.mxu0 0
        %1984 = vmatpush1.bf16.msra.mxu0 0
        %1985 = vmatprep.subr.bf16.mxu0 0
        %1986 = vmatpush1.bf16.msra.mxu0 0
        %1987 = vmatprep.mubr.bf16.mxu0 0
        %1988 = vmatmul.mubr.bf16.gmra.mrb[0].mxu0 %v1823
        %v1989 = vpop.f32.mrb[0].mxu0
        %v1990 = vadd.f32 %v1941, %v1989
        %v1991 = vpop.f32.mrb[0].mxu0
        %v1992 = vpop.f32.mrb[0].mxu0
        %v1993 = vpop.f32.mrb[0].mxu0
        %1994 = vdwg.mxu0
        %v1995 = vpack.c.bf16 %v1860, %v1860
        %v1996 = vpack.c.bf16 %v1925, %v1925
        %v1997 = vpack.c.bf16 %v1990, %v1990
        %v1999 = vsel %vm1028, %v1995, 0
        %v2002 = vsel %vm1028, %v1996, 0
        %2004 = vmatprep.subr.bf16.mxu0 0
        %2005 = vmatpush1.bf16.xpose.msra.mxu0 %v2002
        %2006 = vmatprep.subr.bf16.mxu0 0
        %2007 = vmatpush1.bf16.xpose.msra.mxu0 0
        %2008 = vmatprep.subr.bf16.mxu0 0
        %2009 = vmatpush1.bf16.xpose.msra.mxu0 0
        %2010 = vmatprep.subr.bf16.mxu0 0
        %2011 = vmatpush1.bf16.xpose.msra.mxu0 0
        %2012 = vmatprep.subr.bf16.mxu0 0
        %2013 = vmatpush1.bf16.xpose.msra.mxu0 0
        %2014 = vmatprep.subr.bf16.mxu0 0
        %2015 = vmatpush1.bf16.xpose.msra.mxu0 0
        %2016 = vmatprep.subr.bf16.mxu0 0
        %2017 = vmatpush1.bf16.xpose.msra.mxu0 0
        %2018 = vmatprep.subr.bf16.mxu0 0
        %2019 = vmatpush1.bf16.xpose.msra.mxu0 0
        %2020 = vmatprep.subr.bf16.mxu0 0
        %2021 = vmatpush1.bf16.xpose.msra.mxu0 0
        %2022 = vmatprep.subr.bf16.mxu0 0
        %2023 = vmatpush1.bf16.xpose.msra.mxu0 0
        %2024 = vmatprep.subr.bf16.mxu0 0
        %2025 = vmatpush1.bf16.xpose.msra.mxu0 0
        %2026 = vmatprep.subr.bf16.mxu0 0
        %2027 = vmatpush1.bf16.xpose.msra.mxu0 0
        %2028 = vmatprep.subr.bf16.mxu0 0
        %2029 = vmatpush1.bf16.xpose.msra.mxu0 0
        %2030 = vmatprep.subr.bf16.mxu0 0
        %2031 = vmatpush1.bf16.xpose.msra.mxu0 0
        %2032 = vmatprep.subr.bf16.mxu0 0
        %2033 = vmatpush1.bf16.xpose.msra.mxu0 0
        %2034 = vmatprep.subr.bf16.mxu0 0
        %2035 = vmatpush1.bf16.xpose.msra.mxu0 0
        %2036 = vmatprep.mubr.bf16.mxu0 0
        %2037 = vmatmul.mubr.bf16.gmra.mrb[0].mxu0 %v1999
        %v2038 = vpop.f32.mrb[0].mxu0
        %v2039 = vadd.f32 0.0, %v2038
        %v2040 = vpop.f32.mrb[0].mxu0
        %v2041 = vpop.f32.mrb[0].mxu0
        %v2042 = vpop.f32.mrb[0].mxu0
        %2043 = vdwg.mxu0
        %v2044 = vmul.f32 %v2039, 0.35355338
        %v2045 = vadd.f32 %v2044, %v1079
        %v2046 = vsel %vm1028, %v2045, -inf
        %2047 = vmax.xlane.f32.xlu0 %v2046
        %v2048 = vpop.xlane.xlu0 %2047
        %v2049 = vsub.f32 %v2045, %v2048
        %v2050 = vmul.f32 %v2049, 1.442695
        %v2051 = vpow.pop %v2050
        %v2052 = vsel %vm1028, %v2051, 0.0
        %2053 = vadd.xlane.f32.xlu0 %v2052
        %v2054 = vpop.xlane.xlu0 %2053
        %v2055 = vpack.c.bf16 %v2051, %v2051
        %v2057 = vsel %vm1028, %v2055, 0
        %v2060 = vsel %vm1094, %v1997, 0
        %2062 = vmatprep.subr.bf16.mxu0 0
        %2063 = vmatpush1.bf16.msra.mxu0 %v2060
        %2064 = vmatprep.subr.bf16.mxu0 0
        %2065 = vmatpush1.bf16.msra.mxu0 0
        %2066 = vmatprep.subr.bf16.mxu0 0
        %2067 = vmatpush1.bf16.msra.mxu0 0
        %2068 = vmatprep.subr.bf16.mxu0 0
        %2069 = vmatpush1.bf16.msra.mxu0 0
        %2070 = vmatprep.subr.bf16.mxu0 0
        %2071 = vmatpush1.bf16.msra.mxu0 0
        %2072 = vmatprep.subr.bf16.mxu0 0
        %2073 = vmatpush1.bf16.msra.mxu0 0
        %2074 = vmatprep.subr.bf16.mxu0 0
        %2075 = vmatpush1.bf16.msra.mxu0 0
        %2076 = vmatprep.subr.bf16.mxu0 0
        %2077 = vmatpush1.bf16.msra.mxu0 0
        %2078 = vmatprep.subr.bf16.mxu0 0
        %2079 = vmatpush1.bf16.msra.mxu0 0
        %2080 = vmatprep.subr.bf16.mxu0 0
        %2081 = vmatpush1.bf16.msra.mxu0 0
        %2082 = vmatprep.subr.bf16.mxu0 0
        %2083 = vmatpush1.bf16.msra.mxu0 0
        %2084 = vmatprep.subr.bf16.mxu0 0
        %2085 = vmatpush1.bf16.msra.mxu0 0
        %2086 = vmatprep.subr.bf16.mxu0 0
        %2087 = vmatpush1.bf16.msra.mxu0 0
        %2088 = vmatprep.subr.bf16.mxu0 0
        %2089 = vmatpush1.bf16.msra.mxu0 0
        %2090 = vmatprep.subr.bf16.mxu0 0
        %2091 = vmatpush1.bf16.msra.mxu0 0
        %2092 = vmatprep.subr.bf16.mxu0 0
        %2093 = vmatpush1.bf16.msra.mxu0 0
        %2094 = vmatprep.mubr.bf16.mxu0 0
        %2095 = vmatmul.mubr.bf16.gmra.mrb[0].mxu0 %v2057
        %v2096 = vpop.f32.mrb[0].mxu0
        %v2097 = vadd.f32 0.0, %v2096
        %v2098 = vpop.f32.mrb[0].mxu0
        %v2099 = vpop.f32.mrb[0].mxu0
        %v2100 = vpop.f32.mrb[0].mxu0
        %2101 = vdwg.mxu0
        %v2102 = vrcp.pop %v2054
        %v2103 = vmul.f32 %v2097, %v2102
        %v2104 = vpack.c.bf16 %v2103, %v2103
        %2105 = vst.msk [vmem:[#allocation2] sm:$0xf] %vm1141, %v2104
        %2107 = vrot.lane.b32.xlu0 %v1995, 120
        %v2108 = vpop.permute.xlu0 %2107
        %2110 = vrot.lane.b32.xlu0 %v1996, 120
        %v2111 = vpop.permute.xlu0 %2110
        %v2113 = vsel %vm1028, %v2108, 0
        %v2116 = vsel %vm1028, %v2111, 0
        %2118 = vmatprep.subr.bf16.mxu0 0
        %2119 = vmatpush1.bf16.xpose.msra.mxu0 %v2116
        %2120 = vmatprep.subr.bf16.mxu0 0
        %2121 = vmatpush1.bf16.xpose.msra.mxu0 0
        %2122 = vmatprep.subr.bf16.mxu0 0
        %2123 = vmatpush1.bf16.xpose.msra.mxu0 0
        %2124 = vmatprep.subr.bf16.mxu0 0
        %2125 = vmatpush1.bf16.xpose.msra.mxu0 0
        %2126 = vmatprep.subr.bf16.mxu0 0
        %2127 = vmatpush1.bf16.xpose.msra.mxu0 0
        %2128 = vmatprep.subr.bf16.mxu0 0
        %2129 = vmatpush1.bf16.xpose.msra.mxu0 0
        %2130 = vmatprep.subr.bf16.mxu0 0
        %2131 = vmatpush1.bf16.xpose.msra.mxu0 0
        %2132 = vmatprep.subr.bf16.mxu0 0
        %2133 = vmatpush1.bf16.xpose.msra.mxu0 0
        %2134 = vmatprep.subr.bf16.mxu0 0
        %2135 = vmatpush1.bf16.xpose.msra.mxu0 0
        %2136 = vmatprep.subr.bf16.mxu0 0
        %2137 = vmatpush1.bf16.xpose.msra.mxu0 0
        %2138 = vmatprep.subr.bf16.mxu0 0
        %2139 = vmatpush1.bf16.xpose.msra.mxu0 0
        %2140 = vmatprep.subr.bf16.mxu0 0
        %2141 = vmatpush1.bf16.xpose.msra.mxu0 0
        %2142 = vmatprep.subr.bf16.mxu0 0
        %2143 = vmatpush1.bf16.xpose.msra.mxu0 0
        %2144 = vmatprep.subr.bf16.mxu0 0
        %2145 = vmatpush1.bf16.xpose.msra.mxu0 0
        %2146 = vmatprep.subr.bf16.mxu0 0
        %2147 = vmatpush1.bf16.xpose.msra.mxu0 0
        %2148 = vmatprep.subr.bf16.mxu0 0
        %2149 = vmatpush1.bf16.xpose.msra.mxu0 0
        %2150 = vmatprep.mubr.bf16.mxu0 0
        %2151 = vmatmul.mubr.bf16.gmra.mrb[0].mxu0 %v2113
        %v2152 = vpop.f32.mrb[0].mxu0
        %v2153 = vadd.f32 0.0, %v2152
        %v2154 = vpop.f32.mrb[0].mxu0
        %v2155 = vpop.f32.mrb[0].mxu0
        %v2156 = vpop.f32.mrb[0].mxu0
        %2157 = vdwg.mxu0
        %v2158 = vmul.f32 %v2153, 0.35355338
        %v2159 = vadd.f32 %v2158, %v1079
        %v2160 = vsel %vm1028, %v2159, -inf
        %2161 = vmax.xlane.f32.xlu0 %v2160
        %v2162 = vpop.xlane.xlu0 %2161
        %v2163 = vsub.f32 %v2159, %v2162
        %v2164 = vmul.f32 %v2163, 1.442695
        %v2165 = vpow.pop %v2164
        %v2166 = vsel %vm1028, %v2165, 0.0
        %2167 = vadd.xlane.f32.xlu0 %v2166
        %v2168 = vpop.xlane.xlu0 %2167
        %v2169 = vpack.c.bf16 %v2165, %v2165
        %2171 = vrot.lane.b32.xlu0 %v1997, 120
        %v2172 = vpop.permute.xlu0 %2171
        %v2174 = vsel %vm1028, %v2169, 0
        %v2177 = vsel %vm1094, %v2172, 0
        %2179 = vmatprep.subr.bf16.mxu0 0
        %2180 = vmatpush1.bf16.msra.mxu0 %v2177
        %2181 = vmatprep.subr.bf16.mxu0 0
        %2182 = vmatpush1.bf16.msra.mxu0 0
        %2183 = vmatprep.subr.bf16.mxu0 0
        %2184 = vmatpush1.bf16.msra.mxu0 0
        %2185 = vmatprep.subr.bf16.mxu0 0
        %2186 = vmatpush1.bf16.msra.mxu0 0
        %2187 = vmatprep.subr.bf16.mxu0 0
        %2188 = vmatpush1.bf16.msra.mxu0 0
        %2189 = vmatprep.subr.bf16.mxu0 0
        %2190 = vmatpush1.bf16.msra.mxu0 0
        %2191 = vmatprep.subr.bf16.mxu0 0
        %2192 = vmatpush1.bf16.msra.mxu0 0
        %2193 = vmatprep.subr.bf16.mxu0 0
        %2194 = vmatpush1.bf16.msra.mxu0 0
        %2195 = vmatprep.subr.bf16.mxu0 0
        %2196 = vmatpush1.bf16.msra.mxu0 0
        %2197 = vmatprep.subr.bf16.mxu0 0
        %2198 = vmatpush1.bf16.msra.mxu0 0
        %2199 = vmatprep.subr.bf16.mxu0 0
        %2200 = vmatpush1.bf16.msra.mxu0 0
        %2201 = vmatprep.subr.bf16.mxu0 0
        %2202 = vmatpush1.bf16.msra.mxu0 0
        %2203 = vmatprep.subr.bf16.mxu0 0
        %2204 = vmatpush1.bf16.msra.mxu0 0
        %2205 = vmatprep.subr.bf16.mxu0 0
        %2206 = vmatpush1.bf16.msra.mxu0 0
        %2207 = vmatprep.subr.bf16.mxu0 0
        %2208 = vmatpush1.bf16.msra.mxu0 0
        %2209 = vmatprep.subr.bf16.mxu0 0
        %2210 = vmatpush1.bf16.msra.mxu0 0
        %2211 = vmatprep.mubr.bf16.mxu0 0
        %2212 = vmatmul.mubr.bf16.gmra.mrb[0].mxu0 %v2174
        %v2213 = vpop.f32.mrb[0].mxu0
        %v2214 = vadd.f32 0.0, %v2213
        %v2215 = vpop.f32.mrb[0].mxu0
        %v2216 = vpop.f32.mrb[0].mxu0
        %v2217 = vpop.f32.mrb[0].mxu0
        %2218 = vdwg.mxu0
        %v2219 = vrcp.pop %v2168
        %v2220 = vmul.f32 %v2214, %v2219
        %v2221 = vpack.c.bf16 %v2220, %v2220
        %v2223 = vunpack.c.l.b16 %v2221
        %v2224 = vpack.c.b16 %v2223, %v2223
        %2225 = vrot.lane.b32.xlu0 %v2224, 8
        %v2226 = vpop.permute.xlu0 %2225
        %2228 = vst.msk [vmem:[#allocation2] sm:$0xf] %vm1265, %v2226
        %2229 = vrot.lane.b32.xlu0 %v1995, 112
        %v2230 = vpop.permute.xlu0 %2229
        %2231 = vrot.lane.b32.xlu0 %v1996, 112
        %v2232 = vpop.permute.xlu0 %2231
        %v2234 = vsel %vm1028, %v2230, 0
        %v2237 = vsel %vm1028, %v2232, 0
        %2239 = vmatprep.subr.bf16.mxu0 0
        %2240 = vmatpush1.bf16.xpose.msra.mxu0 %v2237
        %2241 = vmatprep.subr.bf16.mxu0 0
        %2242 = vmatpush1.bf16.xpose.msra.mxu0 0
        %2243 = vmatprep.subr.bf16.mxu0 0
        %2244 = vmatpush1.bf16.xpose.msra.mxu0 0
        %2245 = vmatprep.subr.bf16.mxu0 0
        %2246 = vmatpush1.bf16.xpose.msra.mxu0 0
        %2247 = vmatprep.subr.bf16.mxu0 0
        %2248 = vmatpush1.bf16.xpose.msra.mxu0 0
        %2249 = vmatprep.subr.bf16.mxu0 0
        %2250 = vmatpush1.bf16.xpose.msra.mxu0 0
        %2251 = vmatprep.subr.bf16.mxu0 0
        %2252 = vmatpush1.bf16.xpose.msra.mxu0 0
        %2253 = vmatprep.subr.bf16.mxu0 0
        %2254 = vmatpush1.bf16.xpose.msra.mxu0 0
        %2255 = vmatprep.subr.bf16.mxu0 0
        %2256 = vmatpush1.bf16.xpose.msra.mxu0 0
        %2257 = vmatprep.subr.bf16.mxu0 0
        %2258 = vmatpush1.bf16.xpose.msra.mxu0 0
        %2259 = vmatprep.subr.bf16.mxu0 0
        %2260 = vmatpush1.bf16.xpose.msra.mxu0 0
        %2261 = vmatprep.subr.bf16.mxu0 0
        %2262 = vmatpush1.bf16.xpose.msra.mxu0 0
        %2263 = vmatprep.subr.bf16.mxu0 0
        %2264 = vmatpush1.bf16.xpose.msra.mxu0 0
        %2265 = vmatprep.subr.bf16.mxu0 0
        %2266 = vmatpush1.bf16.xpose.msra.mxu0 0
        %2267 = vmatprep.subr.bf16.mxu0 0
        %2268 = vmatpush1.bf16.xpose.msra.mxu0 0
        %2269 = vmatprep.subr.bf16.mxu0 0
        %2270 = vmatpush1.bf16.xpose.msra.mxu0 0
        %2271 = vmatprep.mubr.bf16.mxu0 0
        %2272 = vmatmul.mubr.bf16.gmra.mrb[0].mxu0 %v2234
        %v2273 = vpop.f32.mrb[0].mxu0
        %v2274 = vadd.f32 0.0, %v2273
        %v2275 = vpop.f32.mrb[0].mxu0
        %v2276 = vpop.f32.mrb[0].mxu0
        %v2277 = vpop.f32.mrb[0].mxu0
        %2278 = vdwg.mxu0
        %v2279 = vmul.f32 %v2274, 0.35355338
        %v2280 = vadd.f32 %v2279, %v1079
        %v2281 = vsel %vm1028, %v2280, -inf
        %2282 = vmax.xlane.f32.xlu0 %v2281
        %v2283 = vpop.xlane.xlu0 %2282
        %v2284 = vsub.f32 %v2280, %v2283
        %v2285 = vmul.f32 %v2284, 1.442695
        %v2286 = vpow.pop %v2285
        %v2287 = vsel %vm1028, %v2286, 0.0
        %2288 = vadd.xlane.f32.xlu0 %v2287
        %v2289 = vpop.xlane.xlu0 %2288
        %v2290 = vpack.c.bf16 %v2286, %v2286
        %2291 = vrot.lane.b32.xlu0 %v1997, 112
        %v2292 = vpop.permute.xlu0 %2291
        %v2294 = vsel %vm1028, %v2290, 0
        %v2297 = vsel %vm1094, %v2292, 0
        %2299 = vmatprep.subr.bf16.mxu0 0
        %2300 = vmatpush1.bf16.msra.mxu0 %v2297
        %2301 = vmatprep.subr.bf16.mxu0 0
        %2302 = vmatpush1.bf16.msra.mxu0 0
        %2303 = vmatprep.subr.bf16.mxu0 0
        %2304 = vmatpush1.bf16.msra.mxu0 0
        %2305 = vmatprep.subr.bf16.mxu0 0
        %2306 = vmatpush1.bf16.msra.mxu0 0
        %2307 = vmatprep.subr.bf16.mxu0 0
        %2308 = vmatpush1.bf16.msra.mxu0 0
        %2309 = vmatprep.subr.bf16.mxu0 0
        %2310 = vmatpush1.bf16.msra.mxu0 0
        %2311 = vmatprep.subr.bf16.mxu0 0
        %2312 = vmatpush1.bf16.msra.mxu0 0
        %2313 = vmatprep.subr.bf16.mxu0 0
        %2314 = vmatpush1.bf16.msra.mxu0 0
        %2315 = vmatprep.subr.bf16.mxu0 0
        %2316 = vmatpush1.bf16.msra.mxu0 0
        %2317 = vmatprep.subr.bf16.mxu0 0
        %2318 = vmatpush1.bf16.msra.mxu0 0
        %2319 = vmatprep.subr.bf16.mxu0 0
        %2320 = vmatpush1.bf16.msra.mxu0 0
        %2321 = vmatprep.subr.bf16.mxu0 0
        %2322 = vmatpush1.bf16.msra.mxu0 0
        %2323 = vmatprep.subr.bf16.mxu0 0
        %2324 = vmatpush1.bf16.msra.mxu0 0
        %2325 = vmatprep.subr.bf16.mxu0 0
        %2326 = vmatpush1.bf16.msra.mxu0 0
        %2327 = vmatprep.subr.bf16.mxu0 0
        %2328 = vmatpush1.bf16.msra.mxu0 0
        %2329 = vmatprep.subr.bf16.mxu0 0
        %2330 = vmatpush1.bf16.msra.mxu0 0
        %2331 = vmatprep.mubr.bf16.mxu0 0
        %2332 = vmatmul.mubr.bf16.gmra.mrb[0].mxu0 %v2294
        %v2333 = vpop.f32.mrb[0].mxu0
        %v2334 = vadd.f32 0.0, %v2333
        %v2335 = vpop.f32.mrb[0].mxu0
        %v2336 = vpop.f32.mrb[0].mxu0
        %v2337 = vpop.f32.mrb[0].mxu0
        %2338 = vdwg.mxu0
        %v2339 = vrcp.pop %v2289
        %v2340 = vmul.f32 %v2334, %v2339
        %v2341 = vpack.c.bf16 %v2340, %v2340
        %v2343 = vunpack.c.l.b16 %v2341
        %v2344 = vpack.c.b16 %v2343, %v2343
        %2345 = vrot.lane.b32.xlu0 %v2344, 16
        %v2346 = vpop.permute.xlu0 %2345
        %2348 = vst.msk [vmem:[#allocation2] sm:$0xf] %vm1386, %v2346
        %2349 = vrot.lane.b32.xlu0 %v1995, 104
        %v2350 = vpop.permute.xlu0 %2349
        %2351 = vrot.lane.b32.xlu0 %v1996, 104
        %v2352 = vpop.permute.xlu0 %2351
        %v2354 = vsel %vm1028, %v2350, 0
        %v2357 = vsel %vm1028, %v2352, 0
        %2359 = vmatprep.subr.bf16.mxu0 0
        %2360 = vmatpush1.bf16.xpose.msra.mxu0 %v2357
        %2361 = vmatprep.subr.bf16.mxu0 0
        %2362 = vmatpush1.bf16.xpose.msra.mxu0 0
        %2363 = vmatprep.subr.bf16.mxu0 0
        %2364 = vmatpush1.bf16.xpose.msra.mxu0 0
        %2365 = vmatprep.subr.bf16.mxu0 0
        %2366 = vmatpush1.bf16.xpose.msra.mxu0 0
        %2367 = vmatprep.subr.bf16.mxu0 0
        %2368 = vmatpush1.bf16.xpose.msra.mxu0 0
        %2369 = vmatprep.subr.bf16.mxu0 0
        %2370 = vmatpush1.bf16.xpose.msra.mxu0 0
        %2371 = vmatprep.subr.bf16.mxu0 0
        %2372 = vmatpush1.bf16.xpose.msra.mxu0 0
        %2373 = vmatprep.subr.bf16.mxu0 0
        %2374 = vmatpush1.bf16.xpose.msra.mxu0 0
        %2375 = vmatprep.subr.bf16.mxu0 0
        %2376 = vmatpush1.bf16.xpose.msra.mxu0 0
        %2377 = vmatprep.subr.bf16.mxu0 0
        %2378 = vmatpush1.bf16.xpose.msra.mxu0 0
        %2379 = vmatprep.subr.bf16.mxu0 0
        %2380 = vmatpush1.bf16.xpose.msra.mxu0 0
        %2381 = vmatprep.subr.bf16.mxu0 0
        %2382 = vmatpush1.bf16.xpose.msra.mxu0 0
        %2383 = vmatprep.subr.bf16.mxu0 0
        %2384 = vmatpush1.bf16.xpose.msra.mxu0 0
        %2385 = vmatprep.subr.bf16.mxu0 0
        %2386 = vmatpush1.bf16.xpose.msra.mxu0 0
        %2387 = vmatprep.subr.bf16.mxu0 0
        %2388 = vmatpush1.bf16.xpose.msra.mxu0 0
        %2389 = vmatprep.subr.bf16.mxu0 0
        %2390 = vmatpush1.bf16.xpose.msra.mxu0 0
        %2391 = vmatprep.mubr.bf16.mxu0 0
        %2392 = vmatmul.mubr.bf16.gmra.mrb[0].mxu0 %v2354
        %v2393 = vpop.f32.mrb[0].mxu0
        %v2394 = vadd.f32 0.0, %v2393
        %v2395 = vpop.f32.mrb[0].mxu0
        %v2396 = vpop.f32.mrb[0].mxu0
        %v2397 = vpop.f32.mrb[0].mxu0
        %2398 = vdwg.mxu0
        %v2399 = vmul.f32 %v2394, 0.35355338
        %v2400 = vadd.f32 %v2399, %v1079
        %v2401 = vsel %vm1028, %v2400, -inf
        %2402 = vmax.xlane.f32.xlu0 %v2401
        %v2403 = vpop.xlane.xlu0 %2402
        %v2404 = vsub.f32 %v2400, %v2403
        %v2405 = vmul.f32 %v2404, 1.442695
        %v2406 = vpow.pop %v2405
        %v2407 = vsel %vm1028, %v2406, 0.0
        %2408 = vadd.xlane.f32.xlu0 %v2407
        %v2409 = vpop.xlane.xlu0 %2408
        %v2410 = vpack.c.bf16 %v2406, %v2406
        %2411 = vrot.lane.b32.xlu0 %v1997, 104
        %v2412 = vpop.permute.xlu0 %2411
        %v2414 = vsel %vm1028, %v2410, 0
        %v2417 = vsel %vm1094, %v2412, 0
        %2419 = vmatprep.subr.bf16.mxu0 0
        %2420 = vmatpush1.bf16.msra.mxu0 %v2417
        %2421 = vmatprep.subr.bf16.mxu0 0
        %2422 = vmatpush1.bf16.msra.mxu0 0
        %2423 = vmatprep.subr.bf16.mxu0 0
        %2424 = vmatpush1.bf16.msra.mxu0 0
        %2425 = vmatprep.subr.bf16.mxu0 0
        %2426 = vmatpush1.bf16.msra.mxu0 0
        %2427 = vmatprep.subr.bf16.mxu0 0
        %2428 = vmatpush1.bf16.msra.mxu0 0
        %2429 = vmatprep.subr.bf16.mxu0 0
        %2430 = vmatpush1.bf16.msra.mxu0 0
        %2431 = vmatprep.subr.bf16.mxu0 0
        %2432 = vmatpush1.bf16.msra.mxu0 0
        %2433 = vmatprep.subr.bf16.mxu0 0
        %2434 = vmatpush1.bf16.msra.mxu0 0
        %2435 = vmatprep.subr.bf16.mxu0 0
        %2436 = vmatpush1.bf16.msra.mxu0 0
        %2437 = vmatprep.subr.bf16.mxu0 0
        %2438 = vmatpush1.bf16.msra.mxu0 0
        %2439 = vmatprep.subr.bf16.mxu0 0
        %2440 = vmatpush1.bf16.msra.mxu0 0
        %2441 = vmatprep.subr.bf16.mxu0 0
        %2442 = vmatpush1.bf16.msra.mxu0 0
        %2443 = vmatprep.subr.bf16.mxu0 0
        %2444 = vmatpush1.bf16.msra.mxu0 0
        %2445 = vmatprep.subr.bf16.mxu0 0
        %2446 = vmatpush1.bf16.msra.mxu0 0
        %2447 = vmatprep.subr.bf16.mxu0 0
        %2448 = vmatpush1.bf16.msra.mxu0 0
        %2449 = vmatprep.subr.bf16.mxu0 0
        %2450 = vmatpush1.bf16.msra.mxu0 0
        %2451 = vmatprep.mubr.bf16.mxu0 0
        %2452 = vmatmul.mubr.bf16.gmra.mrb[0].mxu0 %v2414
        %v2453 = vpop.f32.mrb[0].mxu0
        %v2454 = vadd.f32 0.0, %v2453
        %v2455 = vpop.f32.mrb[0].mxu0
        %v2456 = vpop.f32.mrb[0].mxu0
        %v2457 = vpop.f32.mrb[0].mxu0
        %2458 = vdwg.mxu0
        %v2459 = vrcp.pop %v2409
        %v2460 = vmul.f32 %v2454, %v2459
        %v2461 = vpack.c.bf16 %v2460, %v2460
        %v2463 = vunpack.c.l.b16 %v2461
        %v2464 = vpack.c.b16 %v2463, %v2463
        %2465 = vrot.lane.b32.xlu0 %v2464, 24
        %v2466 = vpop.permute.xlu0 %2465
        %2468 = vst.msk [vmem:[#allocation2] sm:$0xf] %vm1507, %v2466
        %v2469 = vld [vmem:[#allocation2] sm:$0xf]
        %s2470 = scalar_lea.vmem [#allocation12], 16
        %v2471 = vld [vmem:[%s2470] sm:$0xf]
        %v2472 = vld [vmem:[%s2470 + $0x4] sm:$0xf]
        %v2473 = vld [vmem:[%s2470 + $0x8] sm:$0xf]
        %v2474 = vld [vmem:[%s2470 + $0xc] sm:$0xf]
        %s2475 = scalar_lea.vmem [#allocation14], 1
        %v2476 = vld [vmem:[%s2475] sm:$0x1]
        %v2478 = vlaneseq
        %v2479 = vshrl.u32 %v2478, 7
        %v2480 = vsub.s32 0, %v2479
        %v2481 = vrot.slane %v2476, %v2480
        %v2487 = vunpack.c.l.b16 %v2471
        %v2488 = vunpack.c.l.b16 %v2472
        %v2489 = vunpack.c.l.b16 %v2473
        %v2490 = vunpack.c.l.b16 %v2474
        %v2491 = vpack.c.b16 %v2488, %v2487
        %v2492 = vpack.c.b16 %v2490, %v2489
        %v2496 = vsel %vm803, %v2469, 0
        %2498 = vmatprep.subr.bf16.mxu0 0
        %2499 = vmatpush1.bf16.msra.mxu0 %v2491
        %2500 = vmatprep.subr.bf16.mxu0 0
        %2501 = vmatpush1.bf16.msra.mxu0 %v2492
        %2502 = vmatprep.subr.bf16.mxu0 0
        %2503 = vmatpush1.bf16.msra.mxu0 0
        %2504 = vmatprep.subr.bf16.mxu0 0
        %2505 = vmatpush1.bf16.msra.mxu0 0
        %2506 = vmatprep.subr.bf16.mxu0 0
        %2507 = vmatpush1.bf16.msra.mxu0 0
        %2508 = vmatprep.subr.bf16.mxu0 0
        %2509 = vmatpush1.bf16.msra.mxu0 0
        %2510 = vmatprep.subr.bf16.mxu0 0
        %2511 = vmatpush1.bf16.msra.mxu0 0
        %2512 = vmatprep.subr.bf16.mxu0 0
        %2513 = vmatpush1.bf16.msra.mxu0 0
        %2514 = vmatprep.subr.bf16.mxu0 0
        %2515 = vmatpush1.bf16.msra.mxu0 0
        %2516 = vmatprep.subr.bf16.mxu0 0
        %2517 = vmatpush1.bf16.msra.mxu0 0
        %2518 = vmatprep.subr.bf16.mxu0 0
        %2519 = vmatpush1.bf16.msra.mxu0 0
        %2520 = vmatprep.subr.bf16.mxu0 0
        %2521 = vmatpush1.bf16.msra.mxu0 0
        %2522 = vmatprep.subr.bf16.mxu0 0
        %2523 = vmatpush1.bf16.msra.mxu0 0
        %2524 = vmatprep.subr.bf16.mxu0 0
        %2525 = vmatpush1.bf16.msra.mxu0 0
        %2526 = vmatprep.subr.bf16.mxu0 0
        %2527 = vmatpush1.bf16.msra.mxu0 0
        %2528 = vmatprep.subr.bf16.mxu0 0
        %2529 = vmatpush1.bf16.msra.mxu0 0
        %2530 = vmatprep.mubr.bf16.mxu0 0
        %2531 = vmatmul.mubr.bf16.gmra.mrb[0].mxu0 %v2496
        %v2532 = vpop.f32.mrb[0].mxu0
        %v2533 = vadd.f32 %v2481, %v2532
        %v2534 = vpop.f32.mrb[0].mxu0
        %v2535 = vpop.f32.mrb[0].mxu0
        %v2536 = vpop.f32.mrb[0].mxu0
        %2537 = vdwg.mxu0
        %v2538 = vadd.f32 %v1795, %v2533
        %s2539 = scalar_lea.vmem %s12, 1
        %v2540 = vld [vmem:[%s2539] sm:$0x1]
        %s2541 = scalar_lea.vmem %s13, 1
        %v2542 = vld [vmem:[%s2541] sm:$0x1]
        %v2543 = vsel %vm803, %v2538, 0.0
        %2544 = vadd.xlane.f32.xlu0 %v2543
        %v2545 = vpop.xlane.xlu0 %2544
        %v2546 = vmul.f32 %v2545, %v807
        %v2547 = vsub.f32 %v2538, %v2546
        %v2548 = vmul.f32 %v2547, %v2547
        %v2549 = vsel %vm803, %v2548, 0.0
        %2550 = vadd.xlane.f32.xlu0 %v2549
        %v2551 = vpop.xlane.xlu0 %2550
        %v2552 = vmul.f32 %v2551, %v807
        %v2553 = vadd.f32 %v2552, 1e-12
        %v2554 = vrsqrt.pop %v2553
        %v2555 = vmul.f32 %v2547, %v2554
        %v2557 = vlaneseq
        %v2558 = vshrl.u32 %v2557, 7
        %v2559 = vsub.s32 0, %v2558
        %v2560 = vrot.slane %v2540, %v2559
        %v2562 = vmul.f32 %v2555, %v2560
        %v2564 = vlaneseq
        %v2565 = vshrl.u32 %v2564, 7
        %v2566 = vsub.s32 0, %v2565
        %v2567 = vrot.slane %v2542, %v2566
        %v2569 = vadd.f32 %v2562, %v2567
        %v2570 = vpack.c.bf16 %v2569, %v2569
        %s2571 = scalar_lea.vmem %s14, 16
        %v2572 = vld [vmem:[%s2571] sm:$0xf]
        %v2573 = vld [vmem:[%s2571 + $0x4] sm:$0xf]
        %v2574 = vld [vmem:[%s2571 + $0x8] sm:$0xf]
        %v2575 = vld [vmem:[%s2571 + $0xc] sm:$0xf]
        %s2576 = scalar_lea.vmem %s15, 1
        %v2577 = vld [vmem:[%s2576] sm:$0x1]
        %v2579 = vlaneseq
        %v2580 = vshrl.u32 %v2579, 7
        %v2581 = vsub.s32 0, %v2580
        %v2582 = vrot.slane %v2577, %v2581
        %v2588 = vunpack.c.l.b16 %v2572
        %v2589 = vunpack.c.l.b16 %v2573
        %v2590 = vunpack.c.l.b16 %v2574
        %v2591 = vunpack.c.l.b16 %v2575
        %v2592 = vpack.c.b16 %v2589, %v2588
        %v2593 = vpack.c.b16 %v2591, %v2590
        %v2597 = vsel %vm803, %v2570, 0
        %2599 = vmatprep.subr.bf16.mxu0 0
        %2600 = vmatpush1.bf16.msra.mxu0 %v2592
        %2601 = vmatprep.subr.bf16.mxu0 0
        %2602 = vmatpush1.bf16.msra.mxu0 %v2593
        %2603 = vmatprep.subr.bf16.mxu0 0
        %2604 = vmatpush1.bf16.msra.mxu0 0
        %2605 = vmatprep.subr.bf16.mxu0 0
        %2606 = vmatpush1.bf16.msra.mxu0 0
        %2607 = vmatprep.subr.bf16.mxu0 0
        %2608 = vmatpush1.bf16.msra.mxu0 0
        %2609 = vmatprep.subr.bf16.mxu0 0
        %2610 = vmatpush1.bf16.msra.mxu0 0
        %2611 = vmatprep.subr.bf16.mxu0 0
        %2612 = vmatpush1.bf16.msra.mxu0 0
        %2613 = vmatprep.subr.bf16.mxu0 0
        %2614 = vmatpush1.bf16.msra.mxu0 0
        %2615 = vmatprep.subr.bf16.mxu0 0
        %2616 = vmatpush1.bf16.msra.mxu0 0
        %2617 = vmatprep.subr.bf16.mxu0 0
        %2618 = vmatpush1.bf16.msra.mxu0 0
        %2619 = vmatprep.subr.bf16.mxu0 0
        %2620 = vmatpush1.bf16.msra.mxu0 0
        %2621 = vmatprep.subr.bf16.mxu0 0
        %2622 = vmatpush1.bf16.msra.mxu0 0
        %2623 = vmatprep.subr.bf16.mxu0 0
        %2624 = vmatpush1.bf16.msra.mxu0 0
        %2625 = vmatprep.subr.bf16.mxu0 0
        %2626 = vmatpush1.bf16.msra.mxu0 0
        %2627 = vmatprep.subr.bf16.mxu0 0
        %2628 = vmatpush1.bf16.msra.mxu0 0
        %2629 = vmatprep.subr.bf16.mxu0 0
        %2630 = vmatpush1.bf16.msra.mxu0 0
        %2631 = vmatprep.mubr.bf16.mxu0 0
        %2632 = vmatmul.mubr.bf16.gmra.mrb[0].mxu0 %v2597
        %v2633 = vpop.f32.mrb[0].mxu0
        %v2634 = vadd.f32 %v2582, %v2633
        %v2635 = vpop.f32.mrb[0].mxu0
        %v2636 = vpop.f32.mrb[0].mxu0
        %v2637 = vpop.f32.mrb[0].mxu0
        %2638 = vdwg.mxu0
        %v2639 = vmul.f32 %v2634, %v2634
        %v2640 = vmul.f32 %v2634, %v2639
        %v2641 = vmul.f32 %v2640, 0.044715
        %v2642 = vadd.f32 %v2634, %v2641
        %v2643 = vmul.f32 %v2642, 0.7978846
        %v2644 = vtanh.pop %v2643
        %v2645 = vadd.f32 %v2644, 1.0
        %v2646 = vmul.f32 %v2645, 0.5
        %v2647 = vmul.f32 %v2634, %v2646
        %v2648 = vpack.c.bf16 %v2647, %v2647
        %s2649 = scalar_lea.vmem %s16, 32
        %v2650 = vld [vmem:[%s2649] sm:$0xf]
        %v2651 = vld [vmem:[%s2649 + $0x4] sm:$0xf]
        %v2652 = vld [vmem:[%s2649 + $0x8] sm:$0xf]
        %v2653 = vld [vmem:[%s2649 + $0xc] sm:$0xf]
        %v2654 = vld [vmem:[%s2649 + $0x10] sm:$0xf]
        %v2655 = vld [vmem:[%s2649 + $0x14] sm:$0xf]
        %v2656 = vld [vmem:[%s2649 + $0x18] sm:$0xf]
        %v2657 = vld [vmem:[%s2649 + $0x1c] sm:$0xf]
        %s2658 = scalar_lea.vmem %s17, 1
        %v2659 = vld [vmem:[%s2658] sm:$0x1]
        %v2661 = vlaneseq
        %v2662 = vshrl.u32 %v2661, 7
        %v2663 = vsub.s32 0, %v2662
        %v2664 = vrot.slane %v2659, %v2663
        %v2674 = vunpack.c.l.b16 %v2650
        %v2675 = vunpack.c.l.b16 %v2651
        %v2676 = vunpack.c.l.b16 %v2652
        %v2677 = vunpack.c.l.b16 %v2653
        %v2678 = vunpack.c.l.b16 %v2654
        %v2679 = vunpack.c.l.b16 %v2655
        %v2680 = vunpack.c.l.b16 %v2656
        %v2681 = vunpack.c.l.b16 %v2657
        %v2682 = vpack.c.b16 %v2675, %v2674
        %v2683 = vpack.c.b16 %v2677, %v2676
        %v2684 = vpack.c.b16 %v2679, %v2678
        %v2685 = vpack.c.b16 %v2681, %v2680
        %v2691 = vsel %vm1722, %v2648, 0
        %2693 = vmatprep.subr.bf16.mxu0 0
        %2694 = vmatpush1.bf16.msra.mxu0 %v2682
        %2695 = vmatprep.subr.bf16.mxu0 0
        %2696 = vmatpush1.bf16.msra.mxu0 %v2683
        %2697 = vmatprep.subr.bf16.mxu0 0
        %2698 = vmatpush1.bf16.msra.mxu0 %v2684
        %2699 = vmatprep.subr.bf16.mxu0 0
        %2700 = vmatpush1.bf16.msra.mxu0 %v2685
        %2701 = vmatprep.subr.bf16.mxu0 0
        %2702 = vmatpush1.bf16.msra.mxu0 0
        %2703 = vmatprep.subr.bf16.mxu0 0
        %2704 = vmatpush1.bf16.msra.mxu0 0
        %2705 = vmatprep.subr.bf16.mxu0 0
        %2706 = vmatpush1.bf16.msra.mxu0 0
        %2707 = vmatprep.subr.bf16.mxu0 0
        %2708 = vmatpush1.bf16.msra.mxu0 0
        %2709 = vmatprep.subr.bf16.mxu0 0
        %2710 = vmatpush1.bf16.msra.mxu0 0
        %2711 = vmatprep.subr.bf16.mxu0 0
        %2712 = vmatpush1.bf16.msra.mxu0 0
        %2713 = vmatprep.subr.bf16.mxu0 0
        %2714 = vmatpush1.bf16.msra.mxu0 0
        %2715 = vmatprep.subr.bf16.mxu0 0
        %2716 = vmatpush1.bf16.msra.mxu0 0
        %2717 = vmatprep.subr.bf16.mxu0 0
        %2718 = vmatpush1.bf16.msra.mxu0 0
        %2719 = vmatprep.subr.bf16.mxu0 0
        %2720 = vmatpush1.bf16.msra.mxu0 0
        %2721 = vmatprep.subr.bf16.mxu0 0
        %2722 = vmatpush1.bf16.msra.mxu0 0
        %2723 = vmatprep.subr.bf16.mxu0 0
        %2724 = vmatpush1.bf16.msra.mxu0 0
        %2725 = vmatprep.mubr.bf16.mxu0 0
        %2726 = vmatmul.mubr.bf16.gmra.mrb[0].mxu0 %v2691
        %v2727 = vpop.f32.mrb[0].mxu0
        %v2728 = vadd.f32 %v2664, %v2727
        %v2729 = vpop.f32.mrb[0].mxu0
        %v2730 = vpop.f32.mrb[0].mxu0
        %v2731 = vpop.f32.mrb[0].mxu0
        %2732 = vdwg.mxu0
        %v2733 = vadd.f32 %v2569, %v2728
        %s2734 = scalar_lea.vmem %s18, 1
        %v2735 = vld [vmem:[%s2734] sm:$0x1]
        %s2736 = scalar_lea.vmem %s19, 1
        %v2737 = vld [vmem:[%s2736] sm:$0x1]
        %v2738 = vsel %vm803, %v2733, 0.0
        %2739 = vadd.xlane.f32.xlu0 %v2738
        %v2740 = vpop.xlane.xlu0 %2739
        %v2741 = vmul.f32 %v2740, %v807
        %v2742 = vsub.f32 %v2733, %v2741
        %v2743 = vmul.f32 %v2742, %v2742
        %v2744 = vsel %vm803, %v2743, 0.0
        %2745 = vadd.xlane.f32.xlu0 %v2744
        %v2746 = vpop.xlane.xlu0 %2745
        %v2747 = vmul.f32 %v2746, %v807
        %v2748 = vadd.f32 %v2747, 1e-12
        %v2749 = vrsqrt.pop %v2748
        %v2750 = vmul.f32 %v2742, %v2749
        %v2752 = vlaneseq
        %v2753 = vshrl.u32 %v2752, 7
        %v2754 = vsub.s32 0, %v2753
        %v2755 = vrot.slane %v2735, %v2754
        %v2757 = vmul.f32 %v2750, %v2755
        %v2759 = vlaneseq
        %v2760 = vshrl.u32 %v2759, 7
        %v2761 = vsub.s32 0, %v2760
        %v2762 = vrot.slane %v2737, %v2761
        %v2764 = vadd.f32 %v2757, %v2762
        %v2765 = vpack.c.bf16 %v2764, %v2764
        %v2766 = vld [vmem:[%s20] sm:$0xf]
        %v2767 = vld [vmem:[%s20 + $0x4] sm:$0xf]
        %v2768 = vld [vmem:[%s20 + $0x8] sm:$0xf]
        %v2769 = vld [vmem:[%s20 + $0xc] sm:$0xf]
        %v2770 = vld [vmem:[#allocation3] sm:$0x1]
        %v2775 = vunpack.c.l.b16 %v2766
        %v2776 = vunpack.c.l.b16 %v2767
        %v2777 = vunpack.c.l.b16 %v2768
        %v2778 = vunpack.c.l.b16 %v2769
        %v2779 = vpack.c.b16 %v2776, %v2775
        %v2780 = vpack.c.b16 %v2778, %v2777
        %v2784 = vsel %vm803, %v2765, 0
        %2786 = vmatprep.subr.bf16.mxu0 0
        %2787 = vmatpush1.bf16.msra.mxu0 %v2779
        %2788 = vmatprep.subr.bf16.mxu0 0
        %2789 = vmatpush1.bf16.msra.mxu0 %v2780
        %2790 = vmatprep.subr.bf16.mxu0 0
        %2791 = vmatpush1.bf16.msra.mxu0 0
        %2792 = vmatprep.subr.bf16.mxu0 0
        %2793 = vmatpush1.bf16.msra.mxu0 0
        %2794 = vmatprep.subr.bf16.mxu0 0
        %2795 = vmatpush1.bf16.msra.mxu0 0
        %2796 = vmatprep.subr.bf16.mxu0 0
        %2797 = vmatpush1.bf16.msra.mxu0 0
        %2798 = vmatprep.subr.bf16.mxu0 0
        %2799 = vmatpush1.bf16.msra.mxu0 0
        %2800 = vmatprep.subr.bf16.mxu0 0
        %2801 = vmatpush1.bf16.msra.mxu0 0
        %2802 = vmatprep.subr.bf16.mxu0 0
        %2803 = vmatpush1.bf16.msra.mxu0 0
        %2804 = vmatprep.subr.bf16.mxu0 0
        %2805 = vmatpush1.bf16.msra.mxu0 0
        %2806 = vmatprep.subr.bf16.mxu0 0
        %2807 = vmatpush1.bf16.msra.mxu0 0
        %2808 = vmatprep.subr.bf16.mxu0 0
        %2809 = vmatpush1.bf16.msra.mxu0 0
        %2810 = vmatprep.subr.bf16.mxu0 0
        %2811 = vmatpush1.bf16.msra.mxu0 0
        %2812 = vmatprep.subr.bf16.mxu0 0
        %2813 = vmatpush1.bf16.msra.mxu0 0
        %2814 = vmatprep.subr.bf16.mxu0 0
        %2815 = vmatpush1.bf16.msra.mxu0 0
        %2816 = vmatprep.subr.bf16.mxu0 0
        %2817 = vmatpush1.bf16.msra.mxu0 0
        %2818 = vmatprep.mubr.bf16.mxu0 0
        %2819 = vmatmul.mubr.bf16.gmra.mrb[0].mxu0 %v2784
        %v2820 = vpop.f32.mrb[0].mxu0
        %v2821 = vadd.f32 %v2770, %v2820
        %v2822 = vpop.f32.mrb[0].mxu0
        %v2823 = vpop.f32.mrb[0].mxu0
        %v2824 = vpop.f32.mrb[0].mxu0
        %2825 = vdwg.mxu0
        %vm2826 = vcmask 0
        %2827 = vst.msk [vmem:[%s795] sm:$0x1] %vm2826, %v2821
        %p2828 = scmp.lt.s32.totalorder %s41, 1
        %s2829 = scalar_select %p2828, %s41, 1
        %s2830 = scalar_lea.vmem %s22, %s2829
        // Predicated region
        $region137: #{tpu_custom_call.1} parent=107 // pred_check
          %p2831 = pneg %p531
        $region138: #{tpu_custom_call.1} parent=107 // pred_check_branch
          %2833 = sbr.rel (%p2831) target = $region140
        $region139: #{tpu_custom_call.1} parent=107 // pred_region
          _
        $region140: #{tpu_custom_call.1} parent=107 // pred_fallthru
          _
      $region108: #{tpu_custom_call.1} parent=5 // pred_fallthru
        _
      %p2834 = scmp.le.s32.totalorder 2, %s36
      // Predicated region
      $region141: #{tpu_custom_call.1} parent=5 // pred_check
        %p2835 = pneg %p2834
      $region142: #{tpu_custom_call.1} parent=5 // pred_check_branch
        %2837 = sbr.rel (%p2835) target = $region144
      $region143: #{tpu_custom_call.1} parent=5 // pred_region
        %s2838 = ssub.s32 %s36, 2
        // Predicated region
        $region145: #{tpu_custom_call.1} parent=143 // pred_check
          %p2839 = pneg %p537
        $region146: #{tpu_custom_call.1} parent=143 // pred_check_branch
          %2841 = sbr.rel (%p2839) target = $region148
        $region147: #{tpu_custom_call.1} parent=143 // pred_region
          %p2842 = scmp.lt.s32.totalorder %s42, 1
          %s2843 = scalar_select %p2842, %s42, 1
          %s2844 = scalar_lea.vmem %s22, %s2843
        $region148: #{tpu_custom_call.1} parent=143 // pred_fallthru
          _
      $region144: #{tpu_custom_call.1} parent=5 // pred_fallthru
        _
    $region6: #{tpu_custom_call.1} parent=1 // loop_footer
      %s40 = sadd.s32 1, %s36
    $region7: #{tpu_custom_call.1} parent=1 // loop_footer_branch
      %35 = sbr.rel target = $region3
    $region8: #{tpu_custom_call.1} parent=1 // loop_exit
      _
    %2845 = vsyncpa [#allocation5], 1
    %s2846 = scalar_lea.sflag [#allocation5], 1
    %2847 = vsyncpa %s2846, 1
    %2848 = vsyncpa [#allocation7], 1
    %2849 = vsyncpa [#allocation10], 1
    %2850 = vsyncpa [#allocation13], 1

// kernel: tpu_custom_call.1
$region0: #{tpu_custom_call.1}
  #allocation0 [shape = 'u32[]', space=smem, size = 0x4, offset = 0x4, fixed_abs, tag = 'smem constant byte address 0x4 - core index']
  #allocation1 [shape = 'u32[144,128]{1,0:T(1,128)}', space=vmem, size = 0x12000, scoped, tag = 'internal scratch']
  #allocation2 [shape = 'bf16[8,32]{1,0:T(8,128)(2,1)}', space=vmem, size = 0x800, scoped, tag = 'scratch operand']
  #allocation3 [shape = 'f32[1,1]{1,0:T(1,128)S(1)}', space=vmem, size = 0x200, scoped, tag = 'scoped memory for tpu_custom_call.1']
  %s0 = inlined_call_operand.hbm [shape: bf16[2,8,32], index: 0, kind: input, shape index: {}]
  %s1 = inlined_call_operand.vmem [shape: bf16[2,1,8], index: 1, kind: input, shape index: {}]
  %s2 = inlined_call_operand.hbm [shape: f32[1,32], index: 2, kind: input, shape index: {}]
  %s3 = inlined_call_operand.hbm [shape: f32[1,32], index: 3, kind: input, shape index: {}]
  %s4 = inlined_call_operand.vmem [shape: bf16[2,32,32], index: 4, kind: input, shape index: {}]
  %s5 = inlined_call_operand.vmem [shape: f32[2,1,32], index: 5, kind: input, shape index: {}]
  %s6 = inlined_call_operand.vmem [shape: bf16[2,32,32], index: 6, kind: input, shape index: {}]
  %s7 = inlined_call_operand.hbm [shape: f32[2,1,32], index: 7, kind: input, shape index: {}]
  %s8 = inlined_call_operand.vmem [shape: bf16[2,32,32], index: 8, kind: input, shape index: {}]
  %s9 = inlined_call_operand.hbm [shape: f32[2,1,32], index: 9, kind: input, shape index: {}]
  %s10 = inlined_call_operand.hbm [shape: bf16[2,32,32], index: 10, kind: input, shape index: {}]
  %s11 = inlined_call_operand.hbm [shape: f32[2,1,32], index: 11, kind: input, shape index: {}]
  %s12 = inlined_call_operand.vmem [shape: f32[2,1,32], index: 12, kind: input, shape index: {}]
  %s13 = inlined_call_operand.vmem [shape: f32[2,1,32], index: 13, kind: input, shape index: {}]
  %s14 = inlined_call_operand.vmem [shape: bf16[2,32,64], index: 14, kind: input, shape index: {}]
  %s15 = inlined_call_operand.vmem [shape: f32[2,1,64], index: 15, kind: input, shape index: {}]
  %s16 = inlined_call_operand.vmem [shape: bf16[2,64,32], index: 16, kind: input, shape index: {}]
  %s17 = inlined_call_operand.vmem [shape: f32[2,1,32], index: 17, kind: input, shape index: {}]
  %s18 = inlined_call_operand.vmem [shape: f32[2,1,32], index: 18, kind: input, shape index: {}]
  %s19 = inlined_call_operand.vmem [shape: f32[2,1,32], index: 19, kind: input, shape index: {}]
  %s20 = inlined_call_operand.vmem [shape: bf16[32,1], index: 20, kind: input, shape index: {}]
  %s21 = inlined_call_operand.<no memory space> [shape: f32[1,1], index: 21, kind: input, shape index: {}]
  %s22 = inlined_call_operand.vmem [shape: f32[2,1,1], index: 22, kind: output, shape index: {}]
  %s23 = sld [smem:[#allocation0]]
  $region149: #{tpu_custom_call.1} parent=0
    _
  %s25 = ssub.s32 1, %s23
  %s26 = scalar_select 0, %s25, %s23
  %v27 = vstv %s21
  %28 = vst [vmem:[#allocation3] sm:$0x1] %v27
  $region1: #{tpu_custom_call.1} parent=0
    #allocation4 [shape = 'u8[4096]{0}', space=vmem, size = 0x1000, scoped, tag = 'input window, operand 0']
    #allocation5 [shape = 's32[2]{0}', space=sflag, size = 0x8, scoped, tag = 'scoped memory for tpu_custom_call.1']
    #allocation6 [shape = 'u8[512]{0}', space=vmem, size = 0x400, scoped, tag = 'input window, operand 2, single buffered']
    #allocation7 [shape = 's32[1]{0}', space=sflag, size = 0x4, scoped, tag = 'scoped memory for tpu_custom_call.1']
    #allocation8 [shape = 'u8[512]{0}', space=vmem, size = 0x400, scoped, tag = 'input window, operand 3, single buffered']
    #allocation9 [shape = 'u8[1024]{0}', space=vmem, size = 0x400, scoped, tag = 'input window, operand 7, single buffered']
    #allocation10 [shape = 's32[1]{0}', space=sflag, size = 0x4, scoped, tag = 'scoped memory for tpu_custom_call.1']
    #allocation11 [shape = 'u8[1024]{0}', space=vmem, size = 0x400, scoped, tag = 'input window, operand 9, single buffered']
    #allocation12 [shape = 'u8[16384]{0}', space=vmem, size = 0x4000, scoped, tag = 'input window, operand 10, single buffered']
    #allocation13 [shape = 's32[1]{0}', space=sflag, size = 0x4, scoped, tag = 'scoped memory for tpu_custom_call.1']
    #allocation14 [shape = 'u8[1024]{0}', space=vmem, size = 0x400, scoped, tag = 'input window, operand 11, single buffered']
    %29 = vsyncpa [#allocation5], 0
    %s30 = scalar_lea.sflag [#allocation5], 1
    %31 = vsyncpa %s30, 0
    %32 = vsyncpa [#allocation7], 0
    %33 = vsyncpa [#allocation10], 0
    %34 = vsyncpa [#allocation13], 0
    loop: start=0, step=1, limit=4
    $region2: #{tpu_custom_call.1} parent=1 // loop_pre_header
      _
    $region3: #{tpu_custom_call.1} parent=1 // loop_header
      %s36 = sphi 0, %s40
      %p37 = scmp.ge.s32.totalorder %s36, 4
      %s46 = sphi 0, %s48
      %s49 = sphi 0, %s46
      %s50 = sphi 0, %s49
      %s66 = sphi 0, %s50
      %s72 = sphi 0, %s74
      %s75 = sphi 0, %s72
      %s76 = sphi 0, %s75
      %s92 = sphi 0, %s76
      %s96 = sphi 0, %s96
      %s98 = sphi 0, %s96
      %s99 = sphi 0, %s98
      %s113 = sphi 0, %s99
      %s117 = sphi 0, %s117
      %s119 = sphi 0, %s117
      %s120 = sphi 0, %s119
      %s134 = sphi 0, %s120
      %s138 = sphi 0, %s138
      %s140 = sphi 0, %s138
      %s141 = sphi 0, %s140
      %s155 = sphi 0, %s141
      %s159 = sphi 0, %s159
      %s161 = sphi 0, %s159
      %s162 = sphi 0, %s161
      %s176 = sphi 0, %s162
      %s180 = sphi 0, %s180
      %s182 = sphi 0, %s180
      %s183 = sphi 0, %s182
      %s197 = sphi 0, %s183
      %s201 = sphi 0, %s201
      %s203 = sphi 0, %s201
      %s204 = sphi 0, %s203
      %s218 = sphi 0, %s204
      %s222 = sphi 0, %s222
      %s224 = sphi 0, %s222
      %s225 = sphi 0, %s224
      %s239 = sphi 0, %s225
      %s243 = sphi 0, %s243
      %s245 = sphi 0, %s243
      %s246 = sphi 0, %s245
      %s260 = sphi 0, %s246
      %s264 = sphi 0, %s264
      %s266 = sphi 0, %s264
      %s267 = sphi 0, %s266
      %s281 = sphi 0, %s267
      %s285 = sphi 0, %s285
      %s287 = sphi 0, %s285
      %s288 = sphi 0, %s287
      %s302 = sphi 0, %s288
      %s306 = sphi 0, %s306
      %s308 = sphi 0, %s306
      %s309 = sphi 0, %s308
      %s323 = sphi 0, %s309
      %s327 = sphi 0, %s327
      %s329 = sphi 0, %s327
      %s330 = sphi 0, %s329
      %s344 = sphi 0, %s330
      %s348 = sphi 0, %s348
      %s350 = sphi 0, %s348
      %s351 = sphi 0, %s350
      %s365 = sphi 0, %s351
      %s369 = sphi 0, %s369
      %s371 = sphi 0, %s369
      %s372 = sphi 0, %s371
      %s386 = sphi 0, %s372
      %s390 = sphi 0, %s390
      %s392 = sphi 0, %s390
      %s393 = sphi 0, %s392
      %s407 = sphi 0, %s393
      %s411 = sphi 0, %s411
      %s413 = sphi 0, %s411
      %s414 = sphi 0, %s413
      %s428 = sphi 0, %s414
      %s432 = sphi 0, %s432
      %s434 = sphi 0, %s432
      %s435 = sphi 0, %s434
      %s449 = sphi 0, %s435
      %s453 = sphi 0, %s453
      %s455 = sphi 0, %s453
      %s456 = sphi 0, %s455
      %s470 = sphi 0, %s456
      %s474 = sphi 0, %s474
      %s476 = sphi 0, %s474
      %s477 = sphi 0, %s476
      %s491 = sphi 0, %s477
      %s495 = sphi 0, %s495
      %s497 = sphi 0, %s495
      %s498 = sphi 0, %s497
      %s512 = sphi 0, %s498
      %s518 = sphi 0, %s520
      %s521 = sphi 0, %s518
      %s522 = sphi 0, %s521
      %s538 = sphi 0, %s522
    $region4: #{tpu_custom_call.1} parent=1 // loop_header_branch
      %39 = sbr.rel (%p37) target = $region8
    $region5: #{tpu_custom_call.1} parent=1 // loop_body
      %s41 = ssub.s32 %s36, 1
      %s42 = ssub.s32 %s36, 2
      %s43 = sadd.s32 %s36, 1
      %s44 = ssub.s32 %s36, %s43
      %p45 = scmp.eq.s32.totalorder %s44, 0
      %s47 = sadd.s32 %s46, 1
      %s48 = scalar_select %p45, %s46, %s47
      %p51 = pneg %p45
      %p52 = scmp.eq.s32.totalorder %s36, 1
      %p53 = por %p51, %p52
      %p54 = scmp.ne.s32.totalorder %s46, %s49
      %p55 = scmp.eq.s32.totalorder %s36, 0
      %p56 = por %p54, %p55
      %p57 = scmp.ne.s32.totalorder %s46, %s49
      %p58 = scmp.eq.s32.totalorder %s41, 1
      %p59 = por %p57, %p58
      %p60 = scmp.ne.s32.totalorder %s49, %s50
      %p61 = scmp.eq.s32.totalorder %s41, 0
      %p62 = por %p60, %p61
      %p63 = scmp.ne.s32.totalorder %s49, %s50
      %p64 = scmp.eq.s32.totalorder %s42, 1
      %p65 = por %p63, %p64
      %p67 = scmp.ne.s32.totalorder %s50, %s66
      %p68 = scmp.eq.s32.totalorder %s42, 0
      %p69 = por %p67, %p68
      %s70 = ssub.s32 %s36, %s43
      %p71 = scmp.eq.s32.totalorder %s70, 0
      %s73 = sadd.s32 %s72, 1
      %s74 = scalar_select %p71, %s72, %s73
      %p77 = pneg %p71
      %p78 = scmp.eq.s32.totalorder %s36, 1
      %p79 = por %p77, %p78
      %p80 = scmp.ne.s32.totalorder %s72, %s75
      %p81 = scmp.eq.s32.totalorder %s36, 0
      %p82 = por %p80, %p81
      %p83 = scmp.ne.s32.totalorder %s72, %s75
      %p84 = scmp.eq.s32.totalorder %s41, 1
      %p85 = por %p83, %p84
      %p86 = scmp.ne.s32.totalorder %s75, %s76
      %p87 = scmp.eq.s32.totalorder %s41, 0
      %p88 = por %p86, %p87
      %p89 = scmp.ne.s32.totalorder %s75, %s76
      %p90 = scmp.eq.s32.totalorder %s42, 1
      %p91 = por %p89, %p90
      %p93 = scmp.ne.s32.totalorder %s76, %s92
      %p94 = scmp.eq.s32.totalorder %s42, 0
      %p95 = por %p93, %p94
      %s97 = sadd.s32 %s96, 1
      %p100 = scmp.eq.s32.totalorder %s36, 1
      %p101 = scmp.ne.s32.totalorder %s96, %s98
      %p102 = scmp.eq.s32.totalorder %s36, 0
      %p103 = por %p101, %p102
      %p104 = scmp.ne.s32.totalorder %s96, %s98
      %p105 = scmp.eq.s32.totalorder %s41, 1
      %p106 = por %p104, %p105
      %p107 = scmp.ne.s32.totalorder %s98, %s99
      %p108 = scmp.eq.s32.totalorder %s41, 0
      %p109 = por %p107, %p108
      %p110 = scmp.ne.s32.totalorder %s98, %s99
      %p111 = scmp.eq.s32.totalorder %s42, 1
      %p112 = por %p110, %p111
      %p114 = scmp.ne.s32.totalorder %s99, %s113
      %p115 = scmp.eq.s32.totalorder %s42, 0
      %p116 = por %p114, %p115
      %s118 = sadd.s32 %s117, 1
      %p121 = scmp.eq.s32.totalorder %s36, 1
      %p122 = scmp.ne.s32.totalorder %s117, %s119
      %p123 = scmp.eq.s32.totalorder %s36, 0
      %p124 = por %p122, %p123
      %p125 = scmp.ne.s32.totalorder %s117, %s119
      %p126 = scmp.eq.s32.totalorder %s41, 1
      %p127 = por %p125, %p126
      %p128 = scmp.ne.s32.totalorder %s119, %s120
      %p129 = scmp.eq.s32.totalorder %s41, 0
      %p130 = por %p128, %p129
      %p131 = scmp.ne.s32.totalorder %s119, %s120
      %p132 = scmp.eq.s32.totalorder %s42, 1
      %p133 = por %p131, %p132
      %p135 = scmp.ne.s32.totalorder %s120, %s134
      %p136 = scmp.eq.s32.totalorder %s42, 0
      %p137 = por %p135, %p136
      %s139 = sadd.s32 %s138, 1
      %p142 = scmp.eq.s32.totalorder %s36, 1
      %p143 = scmp.ne.s32.totalorder %s138, %s140
      %p144 = scmp.eq.s32.totalorder %s36, 0
      %p145 = por %p143, %p144
      %p146 = scmp.ne.s32.totalorder %s138, %s140
      %p147 = scmp.eq.s32.totalorder %s41, 1
      %p148 = por %p146, %p147
      %p149 = scmp.ne.s32.totalorder %s140, %s141
      %p150 = scmp.eq.s32.totalorder %s41, 0
      %p151 = por %p149, %p150
      %p152 = scmp.ne.s32.totalorder %s140, %s141
      %p153 = scmp.eq.s32.totalorder %s42, 1
      %p154 = por %p152, %p153
      %p156 = scmp.ne.s32.totalorder %s141, %s155
      %p157 = scmp.eq.s32.totalorder %s42, 0
      %p158 = por %p156, %p157
      %s160 = sadd.s32 %s159, 1
      %p163 = scmp.eq.s32.totalorder %s36, 1
      %p164 = scmp.ne.s32.totalorder %s159, %s161
      %p165 = scmp.eq.s32.totalorder %s36, 0
      %p166 = por %p164, %p165
      %p167 = scmp.ne.s32.totalorder %s159, %s161
      %p168 = scmp.eq.s32.totalorder %s41, 1
      %p169 = por %p167, %p168
      %p170 = scmp.ne.s32.totalorder %s161, %s162
      %p171 = scmp.eq.s32.totalorder %s41, 0
      %p172 = por %p170, %p171
      %p173 = scmp.ne.s32.totalorder %s161, %s162
      %p174 = scmp.eq.s32.totalorder %s42, 1
      %p175 = por %p173, %p174
      %p177 = scmp.ne.s32.totalorder %s162, %s176
      %p178 = scmp.eq.s32.totalorder %s42, 0
      %p179 = por %p177, %p178
      %s181 = sadd.s32 %s180, 1
      %p184 = scmp.eq.s32.totalorder %s36, 1
      %p185 = scmp.ne.s32.totalorder %s180, %s182
      %p186 = scmp.eq.s32.totalorder %s36, 0
      %p187 = por %p185, %p186
      %p188 = scmp.ne.s32.totalorder %s180, %s182
      %p189 = scmp.eq.s32.totalorder %s41, 1
      %p190 = por %p188, %p189
      %p191 = scmp.ne.s32.totalorder %s182, %s183
      %p192 = scmp.eq.s32.totalorder %s41, 0
      %p193 = por %p191, %p192
      %p194 = scmp.ne.s32.totalorder %s182, %s183
      %p195 = scmp.eq.s32.totalorder %s42, 1
      %p196 = por %p194, %p195
      %p198 = scmp.ne.s32.totalorder %s183, %s197
      %p199 = scmp.eq.s32.totalorder %s42, 0
      %p200 = por %p198, %p199
      %s202 = sadd.s32 %s201, 1
      %p205 = scmp.eq.s32.totalorder %s36, 1
      %p206 = scmp.ne.s32.totalorder %s201, %s203
      %p207 = scmp.eq.s32.totalorder %s36, 0
      %p208 = por %p206, %p207
      %p209 = scmp.ne.s32.totalorder %s201, %s203
      %p210 = scmp.eq.s32.totalorder %s41, 1
      %p211 = por %p209, %p210
      %p212 = scmp.ne.s32.totalorder %s203, %s204
      %p213 = scmp.eq.s32.totalorder %s41, 0
      %p214 = por %p212, %p213
      %p215 = scmp.ne.s32.totalorder %s203, %s204
      %p216 = scmp.eq.s32.totalorder %s42, 1
      %p217 = por %p215, %p216
      %p219 = scmp.ne.s32.totalorder %s204, %s218
      %p220 = scmp.eq.s32.totalorder %s42, 0
      %p221 = por %p219, %p220
      %s223 = sadd.s32 %s222, 1
      %p226 = scmp.eq.s32.totalorder %s36, 1
      %p227 = scmp.ne.s32.totalorder %s222, %s224
      %p228 = scmp.eq.s32.totalorder %s36, 0
      %p229 = por %p227, %p228
      %p230 = scmp.ne.s32.totalorder %s222, %s224
      %p231 = scmp.eq.s32.totalorder %s41, 1
      %p232 = por %p230, %p231
      %p233 = scmp.ne.s32.totalorder %s224, %s225
      %p234 = scmp.eq.s32.totalorder %s41, 0
      %p235 = por %p233, %p234
      %p236 = scmp.ne.s32.totalorder %s224, %s225
      %p237 = scmp.eq.s32.totalorder %s42, 1
      %p238 = por %p236, %p237
      %p240 = scmp.ne.s32.totalorder %s225, %s239
      %p241 = scmp.eq.s32.totalorder %s42, 0
      %p242 = por %p240, %p241
      %s244 = sadd.s32 %s243, 1
      %p247 = scmp.eq.s32.totalorder %s36, 1
      %p248 = scmp.ne.s32.totalorder %s243, %s245
      %p249 = scmp.eq.s32.totalorder %s36, 0
      %p250 = por %p248, %p249
      %p251 = scmp.ne.s32.totalorder %s243, %s245
      %p252 = scmp.eq.s32.totalorder %s41, 1
      %p253 = por %p251, %p252
      %p254 = scmp.ne.s32.totalorder %s245, %s246
      %p255 = scmp.eq.s32.totalorder %s41, 0
      %p256 = por %p254, %p255
      %p257 = scmp.ne.s32.totalorder %s245, %s246
      %p258 = scmp.eq.s32.totalorder %s42, 1
      %p259 = por %p257, %p258
      %p261 = scmp.ne.s32.totalorder %s246, %s260
      %p262 = scmp.eq.s32.totalorder %s42, 0
      %p263 = por %p261, %p262
      %s265 = sadd.s32 %s264, 1
      %p268 = scmp.eq.s32.totalorder %s36, 1
      %p269 = scmp.ne.s32.totalorder %s264, %s266
      %p270 = scmp.eq.s32.totalorder %s36, 0
      %p271 = por %p269, %p270
      %p272 = scmp.ne.s32.totalorder %s264, %s266
      %p273 = scmp.eq.s32.totalorder %s41, 1
      %p274 = por %p272, %p273
      %p275 = scmp.ne.s32.totalorder %s266, %s267
      %p276 = scmp.eq.s32.totalorder %s41, 0
      %p277 = por %p275, %p276
      %p278 = scmp.ne.s32.totalorder %s266, %s267
      %p279 = scmp.eq.s32.totalorder %s42, 1
      %p280 = por %p278, %p279
      %p282 = scmp.ne.s32.totalorder %s267, %s281
      %p283 = scmp.eq.s32.totalorder %s42, 0
      %p284 = por %p282, %p283
      %s286 = sadd.s32 %s285, 1
      %p289 = scmp.eq.s32.totalorder %s36, 1
      %p290 = scmp.ne.s32.totalorder %s285, %s287
      %p291 = scmp.eq.s32.totalorder %s36, 0
      %p292 = por %p290, %p291
      %p293 = scmp.ne.s32.totalorder %s285, %s287
      %p294 = scmp.eq.s32.totalorder %s41, 1
      %p295 = por %p293, %p294
      %p296 = scmp.ne.s32.totalorder %s287, %s288
      %p297 = scmp.eq.s32.totalorder %s41, 0
      %p298 = por %p296, %p297
      %p299 = scmp.ne.s32.totalorder %s287, %s288
      %p300 = scmp.eq.s32.totalorder %s42, 1
      %p301 = por %p299, %p300
      %p303 = scmp.ne.s32.totalorder %s288, %s302
      %p304 = scmp.eq.s32.totalorder %s42, 0
      %p305 = por %p303, %p304
      %s307 = sadd.s32 %s306, 1
      %p310 = scmp.eq.s32.totalorder %s36, 1
      %p311 = scmp.ne.s32.totalorder %s306, %s308
      %p312 = scmp.eq.s32.totalorder %s36, 0
      %p313 = por %p311, %p312
      %p314 = scmp.ne.s32.totalorder %s306, %s308
      %p315 = scmp.eq.s32.totalorder %s41, 1
      %p316 = por %p314, %p315
      %p317 = scmp.ne.s32.totalorder %s308, %s309
      %p318 = scmp.eq.s32.totalorder %s41, 0
      %p319 = por %p317, %p318
      %p320 = scmp.ne.s32.totalorder %s308, %s309
      %p321 = scmp.eq.s32.totalorder %s42, 1
      %p322 = por %p320, %p321
      %p324 = scmp.ne.s32.totalorder %s309, %s323
      %p325 = scmp.eq.s32.totalorder %s42, 0
      %p326 = por %p324, %p325
      %s328 = sadd.s32 %s327, 1
      %p331 = scmp.eq.s32.totalorder %s36, 1
      %p332 = scmp.ne.s32.totalorder %s327, %s329
      %p333 = scmp.eq.s32.totalorder %s36, 0
      %p334 = por %p332, %p333
      %p335 = scmp.ne.s32.totalorder %s327, %s329
      %p336 = scmp.eq.s32.totalorder %s41, 1
      %p337 = por %p335, %p336
      %p338 = scmp.ne.s32.totalorder %s329, %s330
      %p339 = scmp.eq.s32.totalorder %s41, 0
      %p340 = por %p338, %p339
      %p341 = scmp.ne.s32.totalorder %s329, %s330
      %p342 = scmp.eq.s32.totalorder %s42, 1
      %p343 = por %p341, %p342
      %p345 = scmp.ne.s32.totalorder %s330, %s344
      %p346 = scmp.eq.s32.totalorder %s42, 0
      %p347 = por %p345, %p346
      %s349 = sadd.s32 %s348, 1
      %p352 = scmp.eq.s32.totalorder %s36, 1
      %p353 = scmp.ne.s32.totalorder %s348, %s350
      %p354 = scmp.eq.s32.totalorder %s36, 0
      %p355 = por %p353, %p354
      %p356 = scmp.ne.s32.totalorder %s348, %s350
      %p357 = scmp.eq.s32.totalorder %s41, 1
      %p358 = por %p356, %p357
      %p359 = scmp.ne.s32.totalorder %s350, %s351
      %p360 = scmp.eq.s32.totalorder %s41, 0
      %p361 = por %p359, %p360
      %p362 = scmp.ne.s32.totalorder %s350, %s351
      %p363 = scmp.eq.s32.totalorder %s42, 1
      %p364 = por %p362, %p363
      %p366 = scmp.ne.s32.totalorder %s351, %s365
      %p367 = scmp.eq.s32.totalorder %s42, 0
      %p368 = por %p366, %p367
      %s370 = sadd.s32 %s369, 1
      %p373 = scmp.eq.s32.totalorder %s36, 1
      %p374 = scmp.ne.s32.totalorder %s369, %s371
      %p375 = scmp.eq.s32.totalorder %s36, 0
      %p376 = por %p374, %p375
      %p377 = scmp.ne.s32.totalorder %s369, %s371
      %p378 = scmp.eq.s32.totalorder %s41, 1
      %p379 = por %p377, %p378
      %p380 = scmp.ne.s32.totalorder %s371, %s372
      %p381 = scmp.eq.s32.totalorder %s41, 0
      %p382 = por %p380, %p381
      %p383 = scmp.ne.s32.totalorder %s371, %s372
      %p384 = scmp.eq.s32.totalorder %s42, 1
      %p385 = por %p383, %p384
      %p387 = scmp.ne.s32.totalorder %s372, %s386
      %p388 = scmp.eq.s32.totalorder %s42, 0
      %p389 = por %p387, %p388
      %s391 = sadd.s32 %s390, 1
      %p394 = scmp.eq.s32.totalorder %s36, 1
      %p395 = scmp.ne.s32.totalorder %s390, %s392
      %p396 = scmp.eq.s32.totalorder %s36, 0
      %p397 = por %p395, %p396
      %p398 = scmp.ne.s32.totalorder %s390, %s392
      %p399 = scmp.eq.s32.totalorder %s41, 1
      %p400 = por %p398, %p399
      %p401 = scmp.ne.s32.totalorder %s392, %s393
      %p402 = scmp.eq.s32.totalorder %s41, 0
      %p403 = por %p401, %p402
      %p404 = scmp.ne.s32.totalorder %s392, %s393
      %p405 = scmp.eq.s32.totalorder %s42, 1
      %p406 = por %p404, %p405
      %p408 = scmp.ne.s32.totalorder %s393, %s407
      %p409 = scmp.eq.s32.totalorder %s42, 0
      %p410 = por %p408, %p409
      %s412 = sadd.s32 %s411, 1
      %p415 = scmp.eq.s32.totalorder %s36, 1
      %p416 = scmp.ne.s32.totalorder %s411, %s413
      %p417 = scmp.eq.s32.totalorder %s36, 0
      %p418 = por %p416, %p417
      %p419 = scmp.ne.s32.totalorder %s411, %s413
      %p420 = scmp.eq.s32.totalorder %s41, 1
      %p421 = por %p419, %p420
      %p422 = scmp.ne.s32.totalorder %s413, %s414
      %p423 = scmp.eq.s32.totalorder %s41, 0
      %p424 = por %p422, %p423
      %p425 = scmp.ne.s32.totalorder %s413, %s414
      %p426 = scmp.eq.s32.totalorder %s42, 1
      %p427 = por %p425, %p426
      %p429 = scmp.ne.s32.totalorder %s414, %s428
      %p430 = scmp.eq.s32.totalorder %s42, 0
      %p431 = por %p429, %p430
      %s433 = sadd.s32 %s432, 1
      %p436 = scmp.eq.s32.totalorder %s36, 1
      %p437 = scmp.ne.s32.totalorder %s432, %s434
      %p438 = scmp.eq.s32.totalorder %s36, 0
      %p439 = por %p437, %p438
      %p440 = scmp.ne.s32.totalorder %s432, %s434
      %p441 = scmp.eq.s32.totalorder %s41, 1
      %p442 = por %p440, %p441
      %p443 = scmp.ne.s32.totalorder %s434, %s435
      %p444 = scmp.eq.s32.totalorder %s41, 0
      %p445 = por %p443, %p444
      %p446 = scmp.ne.s32.totalorder %s434, %s435
      %p447 = scmp.eq.s32.totalorder %s42, 1
      %p448 = por %p446, %p447
      %p450 = scmp.ne.s32.totalorder %s435, %s449
      %p451 = scmp.eq.s32.totalorder %s42, 0
      %p452 = por %p450, %p451
      %s454 = sadd.s32 %s453, 1
      %p457 = scmp.eq.s32.totalorder %s36, 1
      %p458 = scmp.ne.s32.totalorder %s453, %s455
      %p459 = scmp.eq.s32.totalorder %s36, 0
      %p460 = por %p458, %p459
      %p461 = scmp.ne.s32.totalorder %s453, %s455
      %p462 = scmp.eq.s32.totalorder %s41, 1
      %p463 = por %p461, %p462
      %p464 = scmp.ne.s32.totalorder %s455, %s456
      %p465 = scmp.eq.s32.totalorder %s41, 0
      %p466 = por %p464, %p465
      %p467 = scmp.ne.s32.totalorder %s455, %s456
      %p468 = scmp.eq.s32.totalorder %s42, 1
      %p469 = por %p467, %p468
      %p471 = scmp.ne.s32.totalorder %s456, %s470
      %p472 = scmp.eq.s32.totalorder %s42, 0
      %p473 = por %p471, %p472
      %s475 = sadd.s32 %s474, 1
      %p478 = scmp.eq.s32.totalorder %s36, 1
      %p479 = scmp.ne.s32.totalorder %s474, %s476
      %p480 = scmp.eq.s32.totalorder %s36, 0
      %p481 = por %p479, %p480
      %p482 = scmp.ne.s32.totalorder %s474, %s476
      %p483 = scmp.eq.s32.totalorder %s41, 1
      %p484 = por %p482, %p483
      %p485 = scmp.ne.s32.totalorder %s476, %s477
      %p486 = scmp.eq.s32.totalorder %s41, 0
      %p487 = por %p485, %p486
      %p488 = scmp.ne.s32.totalorder %s476, %s477
      %p489 = scmp.eq.s32.totalorder %s42, 1
      %p490 = por %p488, %p489
      %p492 = scmp.ne.s32.totalorder %s477, %s491
      %p493 = scmp.eq.s32.totalorder %s42, 0
      %p494 = por %p492, %p493
      %s496 = sadd.s32 %s495, 1
      %p499 = scmp.eq.s32.totalorder %s36, 1
      %p500 = scmp.ne.s32.totalorder %s495, %s497
      %p501 = scmp.eq.s32.totalorder %s36, 0
      %p502 = por %p500, %p501
      %p503 = scmp.ne.s32.totalorder %s495, %s497
      %p504 = scmp.eq.s32.totalorder %s41, 1
      %p505 = por %p503, %p504
      %p506 = scmp.ne.s32.totalorder %s497, %s498
      %p507 = scmp.eq.s32.totalorder %s41, 0
      %p508 = por %p506, %p507
      %p509 = scmp.ne.s32.totalorder %s497, %s498
      %p510 = scmp.eq.s32.totalorder %s42, 1
      %p511 = por %p509, %p510
      %p513 = scmp.ne.s32.totalorder %s498, %s512
      %p514 = scmp.eq.s32.totalorder %s42, 0
      %p515 = por %p513, %p514
      %s516 = ssub.s32 %s36, %s43
      %p517 = scmp.eq.s32.totalorder %s516, 0
      %s519 = sadd.s32 %s518, 1
      %s520 = scalar_select %p517, %s518, %s519
      %p523 = pneg %p517
      %p524 = scmp.eq.s32.totalorder %s36, 1
      %p525 = por %p523, %p524
      %p526 = scmp.ne.s32.totalorder %s518, %s521
      %p527 = scmp.eq.s32.totalorder %s36, 0
      %p528 = por %p526, %p527
      %p529 = scmp.ne.s32.totalorder %s518, %s521
      %p530 = scmp.eq.s32.totalorder %s41, 1
      %p531 = por %p529, %p530
      %p532 = scmp.ne.s32.totalorder %s521, %s522
      %p533 = scmp.eq.s32.totalorder %s41, 0
      %p534 = por %p532, %p533
      %p535 = scmp.ne.s32.totalorder %s521, %s522
      %p536 = scmp.eq.s32.totalorder %s42, 1
      %p537 = por %p535, %p536
      %p539 = scmp.ne.s32.totalorder %s522, %s538
      %p540 = scmp.eq.s32.totalorder %s42, 0
      %p541 = por %p539, %p540
      %p542 = scmp.le.s32.totalorder 1, %s36
      %p543 = scmp.lt.s32.totalorder %s36, 3
      %p544 = pnand %p542, %p543
      %p545 = pneg %p544
      // Predicated region
      $region9: #{tpu_custom_call.1} parent=5 // pred_check
        _
      $region10: #{tpu_custom_call.1} parent=5 // pred_check_branch
        %547 = sbr.rel (%p544) target = $region12
      $region11: #{tpu_custom_call.1} parent=5 // pred_region
        %s548 = ssub.s32 %s36, 1
        // Predicated region
        $region13: #{tpu_custom_call.1} parent=11 // pred_check
          %p549 = pneg %p109
        $region14: #{tpu_custom_call.1} parent=11 // pred_check_branch
          %551 = sbr.rel (%p549) target = $region16
        $region15: #{tpu_custom_call.1} parent=11 // pred_region
          %s553 = ssub.s32 16, 16
          %554 = vsyncadd [#allocation7], %s553
          %s556 = sshll.u32 [#allocation6], 4
          %s557 = int_to_ptr.vmem [resolvable:$true] %s556
          %559 = dma.hbm_to_vmem [thread:$0]  %s2, 16, %s557, [#allocation7]
        $region16: #{tpu_custom_call.1} parent=11 // pred_fallthru
          _
        // Predicated region
        $region17: #{tpu_custom_call.1} parent=11 // pred_check
          %p560 = pneg %p130
        $region18: #{tpu_custom_call.1} parent=11 // pred_check_branch
          %562 = sbr.rel (%p560) target = $region20
        $region19: #{tpu_custom_call.1} parent=11 // pred_region
          %s564 = ssub.s32 16, 16
          %565 = vsyncadd [#allocation7], %s564
          %s567 = sshll.u32 [#allocation8], 4
          %s568 = int_to_ptr.vmem [resolvable:$true] %s567
          %570 = dma.hbm_to_vmem [thread:$0]  %s3, 16, %s568, [#allocation7]
        $region20: #{tpu_custom_call.1} parent=11 // pred_fallthru
          _
        // Predicated region
        $region21: #{tpu_custom_call.1} parent=11 // pred_check
          %p571 = pneg %p151
        $region22: #{tpu_custom_call.1} parent=11 // pred_check_branch
          %573 = sbr.rel (%p571) target = $region24
        $region23: #{tpu_custom_call.1} parent=11 // pred_region
          _
        $region24: #{tpu_custom_call.1} parent=11 // pred_fallthru
          _
        // Predicated region
        $region25: #{tpu_custom_call.1} parent=11 // pred_check
          %p574 = pneg %p172
        $region26: #{tpu_custom_call.1} parent=11 // pred_check_branch
          %576 = sbr.rel (%p574) target = $region28
        $region27: #{tpu_custom_call.1} parent=11 // pred_region
          _
        $region28: #{tpu_custom_call.1} parent=11 // pred_fallthru
          _
        // Predicated region
        $region29: #{tpu_custom_call.1} parent=11 // pred_check
          %p577 = pneg %p193
        $region30: #{tpu_custom_call.1} parent=11 // pred_check_branch
          %579 = sbr.rel (%p577) target = $region32
        $region31: #{tpu_custom_call.1} parent=11 // pred_region
          _
        $region32: #{tpu_custom_call.1} parent=11 // pred_fallthru
          _
        // Predicated region
        $region33: #{tpu_custom_call.1} parent=11 // pred_check
          %p580 = pneg %p214
        $region34: #{tpu_custom_call.1} parent=11 // pred_check_branch
          %582 = sbr.rel (%p580) target = $region36
        $region35: #{tpu_custom_call.1} parent=11 // pred_region
          %s584 = ssub.s32 32, 32
          %585 = vsyncadd [#allocation10], %s584
          %s586 = sshll.u32 [#allocation9], 4
          %s587 = int_to_ptr.vmem [resolvable:$true] %s586
          %592 = dma.hbm_to_vmem [thread:$0]  %s7, 32, %s587, [#allocation10], 16, 16, 1
        $region36: #{tpu_custom_call.1} parent=11 // pred_fallthru
          _
        // Predicated region
        $region37: #{tpu_custom_call.1} parent=11 // pred_check
          %p593 = pneg %p235
        $region38: #{tpu_custom_call.1} parent=11 // pred_check_branch
          %595 = sbr.rel (%p593) target = $region40
        $region39: #{tpu_custom_call.1} parent=11 // pred_region
          _
        $region40: #{tpu_custom_call.1} parent=11 // pred_fallthru
          _
        // Predicated region
        $region41: #{tpu_custom_call.1} parent=11 // pred_check
          %p596 = pneg %p256
        $region42: #{tpu_custom_call.1} parent=11 // pred_check_branch
          %598 = sbr.rel (%p596) target = $region44
        $region43: #{tpu_custom_call.1} parent=11 // pred_region
          %s600 = ssub.s32 32, 32
          %601 = vsyncadd [#allocation10], %s600
          %s602 = sshll.u32 [#allocation11], 4
          %s603 = int_to_ptr.vmem [resolvable:$true] %s602
          %608 = dma.hbm_to_vmem [thread:$0]  %s9, 32, %s603, [#allocation10], 16, 16, 1
        $region44: #{tpu_custom_call.1} parent=11 // pred_fallthru
          _
        // Predicated region
        $region45: #{tpu_custom_call.1} parent=11 // pred_check
          %p609 = pneg %p277
        $region46: #{tpu_custom_call.1} parent=11 // pred_check_branch
          %611 = sbr.rel (%p609) target = $region48
        $region47: #{tpu_custom_call.1} parent=11 // pred_region
          %s613 = ssub.s32 512, 512
          %614 = vsyncadd [#allocation13], %s613
          %s615 = sshll.u32 [#allocation12], 4
          %s616 = int_to_ptr.vmem [resolvable:$true] %s615
          %621 = dma.hbm_to_vmem [thread:$0]  %s10, 512, %s616, [#allocation13], 64, 64, 4
        $region48: #{tpu_custom_call.1} parent=11 // pred_fallthru
          _
        // Predicated region
        $region49: #{tpu_custom_call.1} parent=11 // pred_check
          %p622 = pneg %p298
        $region50: #{tpu_custom_call.1} parent=11 // pred_check_branch
          %624 = sbr.rel (%p622) target = $region52
        $region51: #{tpu_custom_call.1} parent=11 // pred_region
          %s626 = ssub.s32 32, 32
          %627 = vsyncadd [#allocation13], %s626
          %s628 = sshll.u32 [#allocation14], 4
          %s629 = int_to_ptr.vmem [resolvable:$true] %s628
          %634 = dma.hbm_to_vmem [thread:$0]  %s11, 32, %s629, [#allocation13], 16, 16, 1
        $region52: #{tpu_custom_call.1} parent=11 // pred_fallthru
          _
        // Predicated region
        $region53: #{tpu_custom_call.1} parent=11 // pred_check
          %p635 = pneg %p319
        $region54: #{tpu_custom_call.1} parent=11 // pred_check_branch
          %637 = sbr.rel (%p635) target = $region56
        $region55: #{tpu_custom_call.1} parent=11 // pred_region
          _
        $region56: #{tpu_custom_call.1} parent=11 // pred_fallthru
          _
        // Predicated region
        $region57: #{tpu_custom_call.1} parent=11 // pred_check
          %p638 = pneg %p340
        $region58: #{tpu_custom_call.1} parent=11 // pred_check_branch
          %640 = sbr.rel (%p638) target = $region60
        $region59: #{tpu_custom_call.1} parent=11 // pred_region
          _
        $region60: #{tpu_custom_call.1} parent=11 // pred_fallthru
          _
        // Predicated region
        $region61: #{tpu_custom_call.1} parent=11 // pred_check
          %p641 = pneg %p361
        $region62: #{tpu_custom_call.1} parent=11 // pred_check_branch
          %643 = sbr.rel (%p641) target = $region64
        $region63: #{tpu_custom_call.1} parent=11 // pred_region
          _
        $region64: #{tpu_custom_call.1} parent=11 // pred_fallthru
          _
        // Predicated region
        $region65: #{tpu_custom_call.1} parent=11 // pred_check
          %p644 = pneg %p382
        $region66: #{tpu_custom_call.1} parent=11 // pred_check_branch
          %646 = sbr.rel (%p644) target = $region68
        $region67: #{tpu_custom_call.1} parent=11 // pred_region
          _
        $region68: #{tpu_custom_call.1} parent=11 // pred_fallthru
          _
        // Predicated region
        $region69: #{tpu_custom_call.1} parent=11 // pred_check
          %p647 = pneg %p403
        $region70: #{tpu_custom_call.1} parent=11 // pred_check_branch
          %649 = sbr.rel (%p647) target = $region72
        $region71: #{tpu_custom_call.1} parent=11 // pred_region
          _
        $region72: #{tpu_custom_call.1} parent=11 // pred_fallthru
          _
        // Predicated region
        $region73: #{tpu_custom_call.1} parent=11 // pred_check
          %p650 = pneg %p424
        $region74: #{tpu_custom_call.1} parent=11 // pred_check_branch
          %652 = sbr.rel (%p650) target = $region76
        $region75: #{tpu_custom_call.1} parent=11 // pred_region
          _
        $region76: #{tpu_custom_call.1} parent=11 // pred_fallthru
          _
        // Predicated region
        $region77: #{tpu_custom_call.1} parent=11 // pred_check
          %p653 = pneg %p445
        $region78: #{tpu_custom_call.1} parent=11 // pred_check_branch
          %655 = sbr.rel (%p653) target = $region80
        $region79: #{tpu_custom_call.1} parent=11 // pred_region
          _
        $region80: #{tpu_custom_call.1} parent=11 // pred_fallthru
          _
        // Predicated region
        $region81: #{tpu_custom_call.1} parent=11 // pred_check
          %p656 = pneg %p466
        $region82: #{tpu_custom_call.1} parent=11 // pred_check_branch
          %658 = sbr.rel (%p656) target = $region84
        $region83: #{tpu_custom_call.1} parent=11 // pred_region
          _
        $region84: #{tpu_custom_call.1} parent=11 // pred_fallthru
          _
        // Predicated region
        $region85: #{tpu_custom_call.1} parent=11 // pred_check
          %p659 = pneg %p487
        $region86: #{tpu_custom_call.1} parent=11 // pred_check_branch
          %661 = sbr.rel (%p659) target = $region88
        $region87: #{tpu_custom_call.1} parent=11 // pred_region
          _
        $region88: #{tpu_custom_call.1} parent=11 // pred_fallthru
          _
        // Predicated region
        $region89: #{tpu_custom_call.1} parent=11 // pred_check
          %p662 = pneg %p508
        $region90: #{tpu_custom_call.1} parent=11 // pred_check_branch
          %664 = sbr.rel (%p662) target = $region92
        $region91: #{tpu_custom_call.1} parent=11 // pred_region
          _
        $region92: #{tpu_custom_call.1} parent=11 // pred_fallthru
          _
      $region12: #{tpu_custom_call.1} parent=5 // pred_fallthru
        _
      %p665 = scmp.lt.s32.totalorder %s36, 2
      // Predicated region
      $region93: #{tpu_custom_call.1} parent=5 // pred_check
        %p666 = pneg %p665
      $region94: #{tpu_custom_call.1} parent=5 // pred_check_branch
        %668 = sbr.rel (%p666) target = $region96
      $region95: #{tpu_custom_call.1} parent=5 // pred_region
        // Predicated region
        $region97: #{tpu_custom_call.1} parent=95 // pred_check
          %p669 = pneg %p56
        $region98: #{tpu_custom_call.1} parent=95 // pred_check_branch
          %671 = sbr.rel (%p669) target = $region100
        $region99: #{tpu_custom_call.1} parent=95 // pred_region
          %s672 = sand.u32 %s46, 1
          %s673 = scalar_lea.sflag [#allocation5], %s672
          %s674 = sand.u32 %s46, 1
          %s675 = smul.addr %s674, 4
          %s676 = scalar_lea.vmem [#allocation4], %s675
          %s678 = ssub.s32 64, 64
          %679 = vsyncadd %s673, %s678
          %s680 = smul.addr %s36, 64
          %s681 = scalar_lea.hbm %s0, %s680
          %s683 = sshll.u32 %s676, 4
          %s684 = int_to_ptr.vmem [resolvable:$true] %s683
          %686 = dma.hbm_to_vmem [thread:$0]  %s681, 64, %s684, %s673
        $region100: #{tpu_custom_call.1} parent=95 // pred_fallthru
          _
        // Predicated region
        $region101: #{tpu_custom_call.1} parent=95 // pred_check
          %p687 = pneg %p82
        $region102: #{tpu_custom_call.1} parent=95 // pred_check_branch
          %689 = sbr.rel (%p687) target = $region104
        $region103: #{tpu_custom_call.1} parent=95 // pred_region
          %p690 = scmp.lt.s32.totalorder %s36, 1
          %s691 = scalar_select %p690, %s36, 1
          %s692 = scalar_lea.vmem %s1, %s691
        $region104: #{tpu_custom_call.1} parent=95 // pred_fallthru
          _
      $region96: #{tpu_custom_call.1} parent=5 // pred_fallthru
        _
      %p693 = scmp.le.s32.totalorder 1, %s36
      %p694 = scmp.lt.s32.totalorder %s36, 3
      %p695 = pnand %p693, %p694
      %p696 = pneg %p695
      // Predicated region
      $region105: #{tpu_custom_call.1} parent=5 // pred_check
        _
      $region106: #{tpu_custom_call.1} parent=5 // pred_check_branch
        %698 = sbr.rel (%p695) target = $region108
      $region107: #{tpu_custom_call.1} parent=5 // pred_region
        %s699 = ssub.s32 %s36, 1
        %s700 = sand.u32 %s49, 1
        %s701 = scalar_lea.sflag [#allocation5], %s700
        %s702 = sand.u32 %s49, 1
        %s703 = smul.addr %s702, 4
        %s704 = scalar_lea.vmem [#allocation4], %s703
        // Predicated region
        $region109: #{tpu_custom_call.1} parent=107 // pred_check
          %p705 = pneg %p62
        $region110: #{tpu_custom_call.1} parent=107 // pred_check_branch
          %707 = sbr.rel (%p705) target = $region112
        $region111: #{tpu_custom_call.1} parent=107 // pred_region
          %708 = dma.done %s701, 64
        $region112: #{tpu_custom_call.1} parent=107 // pred_fallthru
          _
        // Predicated region
        $region113: #{tpu_custom_call.1} parent=107 // pred_check
          %p709 = pneg %p109
        $region114: #{tpu_custom_call.1} parent=107 // pred_check_branch
          %711 = sbr.rel (%p709) target = $region116
        $region115: #{tpu_custom_call.1} parent=107 // pred_region
          %712 = dma.done [#allocation7], 16
        $region116: #{tpu_custom_call.1} parent=107 // pred_fallthru
          _
        // Predicated region
        $region117: #{tpu_custom_call.1} parent=107 // pred_check
          %p713 = pneg %p130
        $region118: #{tpu_custom_call.1} parent=107 // pred_check_branch
          %715 = sbr.rel (%p713) target = $region120
        $region119: #{tpu_custom_call.1} parent=107 // pred_region
          %716 = dma.done [#allocation7], 16
        $region120: #{tpu_custom_call.1} parent=107 // pred_fallthru
          _
        // Predicated region
        $region121: #{tpu_custom_call.1} parent=107 // pred_check
          %p717 = pneg %p214
        $region122: #{tpu_custom_call.1} parent=107 // pred_check_branch
          %719 = sbr.rel (%p717) target = $region124
        $region123: #{tpu_custom_call.1} parent=107 // pred_region
          %720 = dma.done [#allocation10], 32
        $region124: #{tpu_custom_call.1} parent=107 // pred_fallthru
          _
        // Predicated region
        $region125: #{tpu_custom_call.1} parent=107 // pred_check
          %p721 = pneg %p256
        $region126: #{tpu_custom_call.1} parent=107 // pred_check_branch
          %723 = sbr.rel (%p721) target = $region128
        $region127: #{tpu_custom_call.1} parent=107 // pred_region
          %724 = dma.done [#allocation10], 32
        $region128: #{tpu_custom_call.1} parent=107 // pred_fallthru
          _
        // Predicated region
        $region129: #{tpu_custom_call.1} parent=107 // pred_check
          %p725 = pneg %p277
        $region130: #{tpu_custom_call.1} parent=107 // pred_check_branch
          %727 = sbr.rel (%p725) target = $region132
        $region131: #{tpu_custom_call.1} parent=107 // pred_region
          %728 = dma.done [#allocation13], 512
        $region132: #{tpu_custom_call.1} parent=107 // pred_fallthru
          _
        // Predicated region
        $region133: #{tpu_custom_call.1} parent=107 // pred_check
          %p729 = pneg %p298
        $region134: #{tpu_custom_call.1} parent=107 // pred_check_branch
          %731 = sbr.rel (%p729) target = $region136
        $region135: #{tpu_custom_call.1} parent=107 // pred_region
          %732 = dma.done [#allocation13], 32
        $region136: #{tpu_custom_call.1} parent=107 // pred_fallthru
          _
        %s733 = sand.u32 %s49, 1
        %s734 = scalar_lea.sflag [#allocation5], %s733
        %s735 = sand.u32 %s49, 1
        %s736 = smul.addr %s735, 4
        %s737 = scalar_lea.vmem [#allocation4], %s736
        %p738 = pneg %p62
        %p739 = pneg %p59
        %p740 = scmp.lt.s32.totalorder %s41, 1
        %s741 = scalar_select %p740, %s41, 1
        %s742 = scalar_lea.vmem %s1, %s741
        %p743 = pneg %p88
        %p744 = pneg %p85
        %p745 = pneg %p109
        %p746 = pneg %p106
        %p747 = pneg %p130
        %p748 = pneg %p127
        %p749 = pneg %p151
        %p750 = pneg %p148
        %p751 = pneg %p172
        %p752 = pneg %p169
        %p753 = pneg %p193
        %p754 = pneg %p190
        %p755 = pneg %p214
        %p756 = pneg %p211
        %p757 = pneg %p235
        %p758 = pneg %p232
        %p759 = pneg %p256
        %p760 = pneg %p253
        %p761 = pneg %p277
        %p762 = pneg %p274
        %p763 = pneg %p298
        %p764 = pneg %p295
        %p765 = pneg %p319
        %p766 = pneg %p316
        %p767 = pneg %p340
        %p768 = pneg %p337
        %p769 = pneg %p361
        %p770 = pneg %p358
        %p771 = pneg %p382
        %p772 = pneg %p379
        %p773 = pneg %p403
        %p774 = pneg %p400
        %p775 = pneg %p424
        %p776 = pneg %p421
        %p777 = pneg %p445
        %p778 = pneg %p442
        %p779 = pneg %p466
        %p780 = pneg %p463
        %p781 = pneg %p487
        %p782 = pneg %p484
        %p783 = pneg %p508
        %p784 = pneg %p505
        %p785 = pneg %p534
        %p786 = pneg %p531
        %p787 = scmp.lt.s32.totalorder %s41, 1
        %s788 = scalar_select %p787, %s41, 1
        %s789 = scalar_lea.vmem %s22, %s788
        %p790 = scmp.lt.s32.totalorder %s41, 1
        %s791 = scalar_select %p790, %s41, 1
        %s792 = scalar_lea.vmem %s1, %s791
        %p793 = scmp.lt.s32.totalorder %s41, 1
        %s794 = scalar_select %p793, %s41, 1
        %s795 = scalar_lea.vmem %s22, %s794
        %v797 = vld [vmem:[%s792] sm:$0x1]
        %v798 = vunpack.c.l.bf16 %v797
        %v799 = vld [vmem:[%s704] sm:$0xf]
        %v800 = vunpack.c.l.bf16 %v799
        %v801 = vld [vmem:[#allocation6] sm:$0x1]
        %v802 = vld [vmem:[#allocation8] sm:$0x1]
        %vm803 = vcmask 261120
        %v804 = vsel %vm803, %v800, 0.0
        %805 = vadd.xlane.f32.xlu0 %v804
        %v806 = vpop.xlane.xlu0 %805
        %v807 = vrcp.pop 32.0
        %v808 = vmul.f32 %v806, %v807
        %v809 = vsub.f32 %v800, %v808
        %v810 = vmul.f32 %v809, %v809
        %v811 = vsel %vm803, %v810, 0.0
        %812 = vadd.xlane.f32.xlu0 %v811
        %v813 = vpop.xlane.xlu0 %812
        %v814 = vmul.f32 %v813, %v807
        %v815 = vadd.f32 %v814, 1e-12
        %v816 = vrsqrt.pop %v815
        %v817 = vmul.f32 %v809, %v816
        %v819 = vlaneseq
        %v820 = vshrl.u32 %v819, 7
        %v821 = vsub.s32 0, %v820
        %v822 = vrot.slane %v801, %v821
        %v824 = vmul.f32 %v817, %v822
        %v826 = vlaneseq
        %v827 = vshrl.u32 %v826, 7
        %v828 = vsub.s32 0, %v827
        %v829 = vrot.slane %v802, %v828
        %v831 = vadd.f32 %v824, %v829
        %v832 = vpack.c.bf16 %v831, %v831
        %v833 = vld [vmem:[%s4] sm:$0xf]
        %v834 = vld [vmem:[%s4 + $0x4] sm:$0xf]
        %v835 = vld [vmem:[%s4 + $0x8] sm:$0xf]
        %v836 = vld [vmem:[%s4 + $0xc] sm:$0xf]
        %v837 = vld [vmem:[%s5] sm:$0x1]
        %v839 = vlaneseq
        %v840 = vshrl.u32 %v839, 7
        %v841 = vsub.s32 0, %v840
        %v842 = vrot.slane %v837, %v841
        %v848 = vunpack.c.l.b16 %v833
        %v849 = vunpack.c.l.b16 %v834
        %v850 = vunpack.c.l.b16 %v835
        %v851 = vunpack.c.l.b16 %v836
        %v852 = vpack.c.b16 %v849, %v848
        %v853 = vpack.c.b16 %v851, %v850
        %v857 = vsel %vm803, %v832, 0
        %859 = vmatprep.subr.bf16.mxu0 0
        %860 = vmatpush1.bf16.msra.mxu0 %v852
        %861 = vmatprep.subr.bf16.mxu0 0
        %862 = vmatpush1.bf16.msra.mxu0 %v853
        %863 = vmatprep.subr.bf16.mxu0 0
        %864 = vmatpush1.bf16.msra.mxu0 0
        %865 = vmatprep.subr.bf16.mxu0 0
        %866 = vmatpush1.bf16.msra.mxu0 0
        %867 = vmatprep.subr.bf16.mxu0 0
        %868 = vmatpush1.bf16.msra.mxu0 0
        %869 = vmatprep.subr.bf16.mxu0 0
        %870 = vmatpush1.bf16.msra.mxu0 0
        %871 = vmatprep.subr.bf16.mxu0 0
        %872 = vmatpush1.bf16.msra.mxu0 0
        %873 = vmatprep.subr.bf16.mxu0 0
        %874 = vmatpush1.bf16.msra.mxu0 0
        %875 = vmatprep.subr.bf16.mxu0 0
        %876 = vmatpush1.bf16.msra.mxu0 0
        %877 = vmatprep.subr.bf16.mxu0 0
        %878 = vmatpush1.bf16.msra.mxu0 0
        %879 = vmatprep.subr.bf16.mxu0 0
        %880 = vmatpush1.bf16.msra.mxu0 0
        %881 = vmatprep.subr.bf16.mxu0 0
        %882 = vmatpush1.bf16.msra.mxu0 0
        %883 = vmatprep.subr.bf16.mxu0 0
        %884 = vmatpush1.bf16.msra.mxu0 0
        %885 = vmatprep.subr.bf16.mxu0 0
        %886 = vmatpush1.bf16.msra.mxu0 0
        %887 = vmatprep.subr.bf16.mxu0 0
        %888 = vmatpush1.bf16.msra.mxu0 0
        %889 = vmatprep.subr.bf16.mxu0 0
        %890 = vmatpush1.bf16.msra.mxu0 0
        %891 = vmatprep.mubr.bf16.mxu0 0
        %892 = vmatmul.mubr.bf16.gmra.mrb[0].mxu0 %v857
        %v893 = vpop.f32.mrb[0].mxu0
        %v894 = vadd.f32 %v842, %v893
        %v895 = vpop.f32.mrb[0].mxu0
        %v896 = vpop.f32.mrb[0].mxu0
        %v897 = vpop.f32.mrb[0].mxu0
        %898 = vdwg.mxu0
        %v899 = vld [vmem:[%s6] sm:$0xf]
        %v900 = vld [vmem:[%s6 + $0x4] sm:$0xf]
        %v901 = vld [vmem:[%s6 + $0x8] sm:$0xf]
        %v902 = vld [vmem:[%s6 + $0xc] sm:$0xf]
        %v903 = vld [vmem:[#allocation9] sm:$0x1]
        %v905 = vlaneseq
        %v906 = vshrl.u32 %v905, 7
        %v907 = vsub.s32 0, %v906
        %v908 = vrot.slane %v903, %v907
        %v914 = vunpack.c.l.b16 %v899
        %v915 = vunpack.c.l.b16 %v900
        %v916 = vunpack.c.l.b16 %v901
        %v917 = vunpack.c.l.b16 %v902
        %v918 = vpack.c.b16 %v915, %v914
        %v919 = vpack.c.b16 %v917, %v916
        %922 = vmatprep.subr.bf16.mxu0 0
        %923 = vmatpush1.bf16.msra.mxu0 %v918
        %924 = vmatprep.subr.bf16.mxu0 0
        %925 = vmatpush1.bf16.msra.mxu0 %v919
        %926 = vmatprep.subr.bf16.mxu0 0
        %927 = vmatpush1.bf16.msra.mxu0 0
        %928 = vmatprep.subr.bf16.mxu0 0
        %929 = vmatpush1.bf16.msra.mxu0 0
        %930 = vmatprep.subr.bf16.mxu0 0
        %931 = vmatpush1.bf16.msra.mxu0 0
        %932 = vmatprep.subr.bf16.mxu0 0
        %933 = vmatpush1.bf16.msra.mxu0 0
        %934 = vmatprep.subr.bf16.mxu0 0
        %935 = vmatpush1.bf16.msra.mxu0 0
        %936 = vmatprep.subr.bf16.mxu0 0
        %937 = vmatpush1.bf16.msra.mxu0 0
        %938 = vmatprep.subr.bf16.mxu0 0
        %939 = vmatpush1.bf16.msra.mxu0 0
        %940 = vmatprep.subr.bf16.mxu0 0
        %941 = vmatpush1.bf16.msra.mxu0 0
        %942 = vmatprep.subr.bf16.mxu0 0
        %943 = vmatpush1.bf16.msra.mxu0 0
        %944 = vmatprep.subr.bf16.mxu0 0
        %945 = vmatpush1.bf16.msra.mxu0 0
        %946 = vmatprep.subr.bf16.mxu0 0
        %947 = vmatpush1.bf16.msra.mxu0 0
        %948 = vmatprep.subr.bf16.mxu0 0
        %949 = vmatpush1.bf16.msra.mxu0 0
        %950 = vmatprep.subr.bf16.mxu0 0
        %951 = vmatpush1.bf16.msra.mxu0 0
        %952 = vmatprep.subr.bf16.mxu0 0
        %953 = vmatpush1.bf16.msra.mxu0 0
        %954 = vmatprep.mubr.bf16.mxu0 0
        %955 = vmatmul.mubr.bf16.gmra.mrb[0].mxu0 %v857
        %v956 = vpop.f32.mrb[0].mxu0
        %v957 = vadd.f32 %v908, %v956
        %v958 = vpop.f32.mrb[0].mxu0
        %v959 = vpop.f32.mrb[0].mxu0
        %v960 = vpop.f32.mrb[0].mxu0
        %961 = vdwg.mxu0
        %v962 = vld [vmem:[%s8] sm:$0xf]
        %v963 = vld [vmem:[%s8 + $0x4] sm:$0xf]
        %v964 = vld [vmem:[%s8 + $0x8] sm:$0xf]
        %v965 = vld [vmem:[%s8 + $0xc] sm:$0xf]
        %v966 = vld [vmem:[#allocation11] sm:$0x1]
        %v968 = vlaneseq
        %v969 = vshrl.u32 %v968, 7
        %v970 = vsub.s32 0, %v969
        %v971 = vrot.slane %v966, %v970
        %v977 = vunpack.c.l.b16 %v962
        %v978 = vunpack.c.l.b16 %v963
        %v979 = vunpack.c.l.b16 %v964
        %v980 = vunpack.c.l.b16 %v965
        %v981 = vpack.c.b16 %v978, %v977
        %v982 = vpack.c.b16 %v980, %v979
        %985 = vmatprep.subr.bf16.mxu0 0
        %986 = vmatpush1.bf16.msra.mxu0 %v981
        %987 = vmatprep.subr.bf16.mxu0 0
        %988 = vmatpush1.bf16.msra.mxu0 %v982
        %989 = vmatprep.subr.bf16.mxu0 0
        %990 = vmatpush1.bf16.msra.mxu0 0
        %991 = vmatprep.subr.bf16.mxu0 0
        %992 = vmatpush1.bf16.msra.mxu0 0
        %993 = vmatprep.subr.bf16.mxu0 0
        %994 = vmatpush1.bf16.msra.mxu0 0
        %995 = vmatprep.subr.bf16.mxu0 0
        %996 = vmatpush1.bf16.msra.mxu0 0
        %997 = vmatprep.subr.bf16.mxu0 0
        %998 = vmatpush1.bf16.msra.mxu0 0
        %999 = vmatprep.subr.bf16.mxu0 0
        %1000 = vmatpush1.bf16.msra.mxu0 0
        %1001 = vmatprep.subr.bf16.mxu0 0
        %1002 = vmatpush1.bf16.msra.mxu0 0
        %1003 = vmatprep.subr.bf16.mxu0 0
        %1004 = vmatpush1.bf16.msra.mxu0 0
        %1005 = vmatprep.subr.bf16.mxu0 0
        %1006 = vmatpush1.bf16.msra.mxu0 0
        %1007 = vmatprep.subr.bf16.mxu0 0
        %1008 = vmatpush1.bf16.msra.mxu0 0
        %1009 = vmatprep.subr.bf16.mxu0 0
        %1010 = vmatpush1.bf16.msra.mxu0 0
        %1011 = vmatprep.subr.bf16.mxu0 0
        %1012 = vmatpush1.bf16.msra.mxu0 0
        %1013 = vmatprep.subr.bf16.mxu0 0
        %1014 = vmatpush1.bf16.msra.mxu0 0
        %1015 = vmatprep.subr.bf16.mxu0 0
        %1016 = vmatpush1.bf16.msra.mxu0 0
        %1017 = vmatprep.mubr.bf16.mxu0 0
        %1018 = vmatmul.mubr.bf16.gmra.mrb[0].mxu0 %v857
        %v1019 = vpop.f32.mrb[0].mxu0
        %v1020 = vadd.f32 %v971, %v1019
        %v1021 = vpop.f32.mrb[0].mxu0
        %v1022 = vpop.f32.mrb[0].mxu0
        %v1023 = vpop.f32.mrb[0].mxu0
        %1024 = vdwg.mxu0
        %v1025 = vpack.c.bf16 %v894, %v894
        %v1026 = vpack.c.bf16 %v957, %v957
        %v1027 = vpack.c.bf16 %v1020, %v1020
        %vm1028 = vcmask 64512
        %v1030 = vsel %vm1028, %v1025, 0
        %v1033 = vsel %vm1028, %v1026, 0
        %1035 = vmatprep.subr.bf16.mxu0 0
        %1036 = vmatpush1.bf16.xpose.msra.mxu0 %v1033
        %1037 = vmatprep.subr.bf16.mxu0 0
        %1038 = vmatpush1.bf16.xpose.msra.mxu0 0
        %1039 = vmatprep.subr.bf16.mxu0 0
        %1040 = vmatpush1.bf16.xpose.msra.mxu0 0
        %1041 = vmatprep.subr.bf16.mxu0 0
        %1042 = vmatpush1.bf16.xpose.msra.mxu0 0
        %1043 = vmatprep.subr.bf16.mxu0 0
        %1044 = vmatpush1.bf16.xpose.msra.mxu0 0
        %1045 = vmatprep.subr.bf16.mxu0 0
        %1046 = vmatpush1.bf16.xpose.msra.mxu0 0
        %1047 = vmatprep.subr.bf16.mxu0 0
        %1048 = vmatpush1.bf16.xpose.msra.mxu0 0
        %1049 = vmatprep.subr.bf16.mxu0 0
        %1050 = vmatpush1.bf16.xpose.msra.mxu0 0
        %1051 = vmatprep.subr.bf16.mxu0 0
        %1052 = vmatpush1.bf16.xpose.msra.mxu0 0
        %1053 = vmatprep.subr.bf16.mxu0 0
        %1054 = vmatpush1.bf16.xpose.msra.mxu0 0
        %1055 = vmatprep.subr.bf16.mxu0 0
        %1056 = vmatpush1.bf16.xpose.msra.mxu0 0
        %1057 = vmatprep.subr.bf16.mxu0 0
        %1058 = vmatpush1.bf16.xpose.msra.mxu0 0
        %1059 = vmatprep.subr.bf16.mxu0 0
        %1060 = vmatpush1.bf16.xpose.msra.mxu0 0
        %1061 = vmatprep.subr.bf16.mxu0 0
        %1062 = vmatpush1.bf16.xpose.msra.mxu0 0
        %1063 = vmatprep.subr.bf16.mxu0 0
        %1064 = vmatpush1.bf16.xpose.msra.mxu0 0
        %1065 = vmatprep.subr.bf16.mxu0 0
        %1066 = vmatpush1.bf16.xpose.msra.mxu0 0
        %1067 = vmatprep.mubr.bf16.mxu0 0
        %1068 = vmatmul.mubr.bf16.gmra.mrb[0].mxu0 %v1030
        %v1069 = vpop.f32.mrb[0].mxu0
        %v1070 = vadd.f32 0.0, %v1069
        %v1071 = vpop.f32.mrb[0].mxu0
        %v1072 = vpop.f32.mrb[0].mxu0
        %v1073 = vpop.f32.mrb[0].mxu0
        %1074 = vdwg.mxu0
        %v1075 = vmul.f32 %v1070, 0.35355338
        %v1076 = vlaneseq
        %v1077 = vshrl.u32 %v1076, 7
        %v1078 = vsub.s32 0, %v1077
        %v1079 = vrot.slane %v798, %v1078
        %v1080 = vadd.f32 %v1075, %v1079
        %v1081 = vsel %vm1028, %v1080, -inf
        %1082 = vmax.xlane.f32.xlu0 %v1081
        %v1083 = vpop.xlane.xlu0 %1082
        %v1084 = vsub.f32 %v1080, %v1083
        %v1085 = vmul.f32 %v1084, 1.442695
        %v1086 = vpow.pop %v1085
        %v1087 = vsel %vm1028, %v1086, 0.0
        %1088 = vadd.xlane.f32.xlu0 %v1087
        %v1089 = vpop.xlane.xlu0 %1088
        %v1090 = vpack.c.bf16 %v1086, %v1086
        %v1092 = vsel %vm1028, %v1090, 0
        %vm1094 = vcmask 1043456
        %v1096 = vsel %vm1094, %v1027, 0
        %1098 = vmatprep.subr.bf16.mxu0 0
        %1099 = vmatpush1.bf16.msra.mxu0 %v1096
        %1100 = vmatprep.subr.bf16.mxu0 0
        %1101 = vmatpush1.bf16.msra.mxu0 0
        %1102 = vmatprep.subr.bf16.mxu0 0
        %1103 = vmatpush1.bf16.msra.mxu0 0
        %1104 = vmatprep.subr.bf16.mxu0 0
        %1105 = vmatpush1.bf16.msra.mxu0 0
        %1106 = vmatprep.subr.bf16.mxu0 0
        %1107 = vmatpush1.bf16.msra.mxu0 0
        %1108 = vmatprep.subr.bf16.mxu0 0
        %1109 = vmatpush1.bf16.msra.mxu0 0
        %1110 = vmatprep.subr.bf16.mxu0 0
        %1111 = vmatpush1.bf16.msra.mxu0 0
        %1112 = vmatprep.subr.bf16.mxu0 0
        %1113 = vmatpush1.bf16.msra.mxu0 0
        %1114 = vmatprep.subr.bf16.mxu0 0
        %1115 = vmatpush1.bf16.msra.mxu0 0
        %1116 = vmatprep.subr.bf16.mxu0 0
        %1117 = vmatpush1.bf16.msra.mxu0 0
        %1118 = vmatprep.subr.bf16.mxu0 0
        %1119 = vmatpush1.bf16.msra.mxu0 0
        %1120 = vmatprep.subr.bf16.mxu0 0
        %1121 = vmatpush1.bf16.msra.mxu0 0
        %1122 = vmatprep.subr.bf16.mxu0 0
        %1123 = vmatpush1.bf16.msra.mxu0 0
        %1124 = vmatprep.subr.bf16.mxu0 0
        %1125 = vmatpush1.bf16.msra.mxu0 0
        %1126 = vmatprep.subr.bf16.mxu0 0
        %1127 = vmatpush1.bf16.msra.mxu0 0
        %1128 = vmatprep.subr.bf16.mxu0 0
        %1129 = vmatpush1.bf16.msra.mxu0 0
        %1130 = vmatprep.mubr.bf16.mxu0 0
        %1131 = vmatmul.mubr.bf16.gmra.mrb[0].mxu0 %v1092
        %v1132 = vpop.f32.mrb[0].mxu0
        %v1133 = vadd.f32 0.0, %v1132
        %v1134 = vpop.f32.mrb[0].mxu0
        %v1135 = vpop.f32.mrb[0].mxu0
        %v1136 = vpop.f32.mrb[0].mxu0
        %1137 = vdwg.mxu0
        %v1138 = vrcp.pop %v1089
        %v1139 = vmul.f32 %v1133, %v1138
        %v1140 = vpack.c.bf16 %v1139, %v1139
        %vm1141 = vcmask 60416
        %1142 = vst.msk [vmem:[#allocation2] sm:$0xf] %vm1141, %v1140
        %1144 = vrot.lane.b32.xlu0 %v1025, 120
        %v1145 = vpop.permute.xlu0 %1144
        %1147 = vrot.lane.b32.xlu0 %v1026, 120
        %v1148 = vpop.permute.xlu0 %1147
        %v1150 = vsel %vm1028, %v1145, 0
        %v1153 = vsel %vm1028, %v1148, 0
        %1155 = vmatprep.subr.bf16.mxu0 0
        %1156 = vmatpush1.bf16.xpose.msra.mxu0 %v1153
        %1157 = vmatprep.subr.bf16.mxu0 0
        %1158 = vmatpush1.bf16.xpose.msra.mxu0 0
        %1159 = vmatprep.subr.bf16.mxu0 0
        %1160 = vmatpush1.bf16.xpose.msra.mxu0 0
        %1161 = vmatprep.subr.bf16.mxu0 0
        %1162 = vmatpush1.bf16.xpose.msra.mxu0 0
        %1163 = vmatprep.subr.bf16.mxu0 0
        %1164 = vmatpush1.bf16.xpose.msra.mxu0 0
        %1165 = vmatprep.subr.bf16.mxu0 0
        %1166 = vmatpush1.bf16.xpose.msra.mxu0 0
        %1167 = vmatprep.subr.bf16.mxu0 0
        %1168 = vmatpush1.bf16.xpose.msra.mxu0 0
        %1169 = vmatprep.subr.bf16.mxu0 0
        %1170 = vmatpush1.bf16.xpose.msra.mxu0 0
        %1171 = vmatprep.subr.bf16.mxu0 0
        %1172 = vmatpush1.bf16.xpose.msra.mxu0 0
        %1173 = vmatprep.subr.bf16.mxu0 0
        %1174 = vmatpush1.bf16.xpose.msra.mxu0 0
        %1175 = vmatprep.subr.bf16.mxu0 0
        %1176 = vmatpush1.bf16.xpose.msra.mxu0 0
        %1177 = vmatprep.subr.bf16.mxu0 0
        %1178 = vmatpush1.bf16.xpose.msra.mxu0 0
        %1179 = vmatprep.subr.bf16.mxu0 0
        %1180 = vmatpush1.bf16.xpose.msra.mxu0 0
        %1181 = vmatprep.subr.bf16.mxu0 0
        %1182 = vmatpush1.bf16.xpose.msra.mxu0 0
        %1183 = vmatprep.subr.bf16.mxu0 0
        %1184 = vmatpush1.bf16.xpose.msra.mxu0 0
        %1185 = vmatprep.subr.bf16.mxu0 0
        %1186 = vmatpush1.bf16.xpose.msra.mxu0 0
        %1187 = vmatprep.mubr.bf16.mxu0 0
        %1188 = vmatmul.mubr.bf16.gmra.mrb[0].mxu0 %v1150
        %v1189 = vpop.f32.mrb[0].mxu0
        %v1190 = vadd.f32 0.0, %v1189
        %v1191 = vpop.f32.mrb[0].mxu0
        %v1192 = vpop.f32.mrb[0].mxu0
        %v1193 = vpop.f32.mrb[0].mxu0
        %1194 = vdwg.mxu0
        %v1195 = vmul.f32 %v1190, 0.35355338
        %v1196 = vadd.f32 %v1195, %v1079
        %v1197 = vsel %vm1028, %v1196, -inf
        %1198 = vmax.xlane.f32.xlu0 %v1197
        %v1199 = vpop.xlane.xlu0 %1198
        %v1200 = vsub.f32 %v1196, %v1199
        %v1201 = vmul.f32 %v1200, 1.442695
        %v1202 = vpow.pop %v1201
        %v1203 = vsel %vm1028, %v1202, 0.0
        %1204 = vadd.xlane.f32.xlu0 %v1203
        %v1205 = vpop.xlane.xlu0 %1204
        %v1206 = vpack.c.bf16 %v1202, %v1202
        %1208 = vrot.lane.b32.xlu0 %v1027, 120
        %v1209 = vpop.permute.xlu0 %1208
        %v1211 = vsel %vm1028, %v1206, 0
        %v1214 = vsel %vm1094, %v1209, 0
        %1216 = vmatprep.subr.bf16.mxu0 0
        %1217 = vmatpush1.bf16.msra.mxu0 %v1214
        %1218 = vmatprep.subr.bf16.mxu0 0
        %1219 = vmatpush1.bf16.msra.mxu0 0
        %1220 = vmatprep.subr.bf16.mxu0 0
        %1221 = vmatpush1.bf16.msra.mxu0 0
        %1222 = vmatprep.subr.bf16.mxu0 0
        %1223 = vmatpush1.bf16.msra.mxu0 0
        %1224 = vmatprep.subr.bf16.mxu0 0
        %1225 = vmatpush1.bf16.msra.mxu0 0
        %1226 = vmatprep.subr.bf16.mxu0 0
        %1227 = vmatpush1.bf16.msra.mxu0 0
        %1228 = vmatprep.subr.bf16.mxu0 0
        %1229 = vmatpush1.bf16.msra.mxu0 0
        %1230 = vmatprep.subr.bf16.mxu0 0
        %1231 = vmatpush1.bf16.msra.mxu0 0
        %1232 = vmatprep.subr.bf16.mxu0 0
        %1233 = vmatpush1.bf16.msra.mxu0 0
        %1234 = vmatprep.subr.bf16.mxu0 0
        %1235 = vmatpush1.bf16.msra.mxu0 0
        %1236 = vmatprep.subr.bf16.mxu0 0
        %1237 = vmatpush1.bf16.msra.mxu0 0
        %1238 = vmatprep.subr.bf16.mxu0 0
        %1239 = vmatpush1.bf16.msra.mxu0 0
        %1240 = vmatprep.subr.bf16.mxu0 0
        %1241 = vmatpush1.bf16.msra.mxu0 0
        %1242 = vmatprep.subr.bf16.mxu0 0
        %1243 = vmatpush1.bf16.msra.mxu0 0
        %1244 = vmatprep.subr.bf16.mxu0 0
        %1245 = vmatpush1.bf16.msra.mxu0 0
        %1246 = vmatprep.subr.bf16.mxu0 0
        %1247 = vmatpush1.bf16.msra.mxu0 0
        %1248 = vmatprep.mubr.bf16.mxu0 0
        %1249 = vmatmul.mubr.bf16.gmra.mrb[0].mxu0 %v1211
        %v1250 = vpop.f32.mrb[0].mxu0
        %v1251 = vadd.f32 0.0, %v1250
        %v1252 = vpop.f32.mrb[0].mxu0
        %v1253 = vpop.f32.mrb[0].mxu0
        %v1254 = vpop.f32.mrb[0].mxu0
        %1255 = vdwg.mxu0
        %v1256 = vrcp.pop %v1205
        %v1257 = vmul.f32 %v1251, %v1256
        %v1258 = vpack.c.bf16 %v1257, %v1257
        %v1260 = vunpack.c.l.b16 %v1258
        %v1261 = vpack.c.b16 %v1260, %v1260
        %1262 = vrot.lane.b32.xlu0 %v1261, 8
        %v1263 = vpop.permute.xlu0 %1262
        %vm1265 = vcmask 126016
        %1266 = vst.msk [vmem:[#allocation2] sm:$0xf] %vm1265, %v1263
        %1267 = vrot.lane.b32.xlu0 %v1025, 112
        %v1268 = vpop.permute.xlu0 %1267
        %1269 = vrot.lane.b32.xlu0 %v1026, 112
        %v1270 = vpop.permute.xlu0 %1269
        %v1272 = vsel %vm1028, %v1268, 0
        %v1275 = vsel %vm1028, %v1270, 0
        %1277 = vmatprep.subr.bf16.mxu0 0
        %1278 = vmatpush1.bf16.xpose.msra.mxu0 %v1275
        %1279 = vmatprep.subr.bf16.mxu0 0
        %1280 = vmatpush1.bf16.xpose.msra.mxu0 0
        %1281 = vmatprep.subr.bf16.mxu0 0
        %1282 = vmatpush1.bf16.xpose.msra.mxu0 0
        %1283 = vmatprep.subr.bf16.mxu0 0
        %1284 = vmatpush1.bf16.xpose.msra.mxu0 0
        %1285 = vmatprep.subr.bf16.mxu0 0
        %1286 = vmatpush1.bf16.xpose.msra.mxu0 0
        %1287 = vmatprep.subr.bf16.mxu0 0
        %1288 = vmatpush1.bf16.xpose.msra.mxu0 0
        %1289 = vmatprep.subr.bf16.mxu0 0
        %1290 = vmatpush1.bf16.xpose.msra.mxu0 0
        %1291 = vmatprep.subr.bf16.mxu0 0
        %1292 = vmatpush1.bf16.xpose.msra.mxu0 0
        %1293 = vmatprep.subr.bf16.mxu0 0
        %1294 = vmatpush1.bf16.xpose.msra.mxu0 0
        %1295 = vmatprep.subr.bf16.mxu0 0
        %1296 = vmatpush1.bf16.xpose.msra.mxu0 0
        %1297 = vmatprep.subr.bf16.mxu0 0
        %1298 = vmatpush1.bf16.xpose.msra.mxu0 0
        %1299 = vmatprep.subr.bf16.mxu0 0
        %1300 = vmatpush1.bf16.xpose.msra.mxu0 0
        %1301 = vmatprep.subr.bf16.mxu0 0
        %1302 = vmatpush1.bf16.xpose.msra.mxu0 0
        %1303 = vmatprep.subr.bf16.mxu0 0
        %1304 = vmatpush1.bf16.xpose.msra.mxu0 0
        %1305 = vmatprep.subr.bf16.mxu0 0
        %1306 = vmatpush1.bf16.xpose.msra.mxu0 0
        %1307 = vmatprep.subr.bf16.mxu0 0
        %1308 = vmatpush1.bf16.xpose.msra.mxu0 0
        %1309 = vmatprep.mubr.bf16.mxu0 0
        %1310 = vmatmul.mubr.bf16.gmra.mrb[0].mxu0 %v1272
        %v1311 = vpop.f32.mrb[0].mxu0
        %v1312 = vadd.f32 0.0, %v1311
        %v1313 = vpop.f32.mrb[0].mxu0
        %v1314 = vpop.f32.mrb[0].mxu0
        %v1315 = vpop.f32.mrb[0].mxu0
        %1316 = vdwg.mxu0
        %v1317 = vmul.f32 %v1312, 0.35355338
        %v1318 = vadd.f32 %v1317, %v1079
        %v1319 = vsel %vm1028, %v1318, -inf
        %1320 = vmax.xlane.f32.xlu0 %v1319
        %v1321 = vpop.xlane.xlu0 %1320
        %v1322 = vsub.f32 %v1318, %v1321
        %v1323 = vmul.f32 %v1322, 1.442695
        %v1324 = vpow.pop %v1323
        %v1325 = vsel %vm1028, %v1324, 0.0
        %1326 = vadd.xlane.f32.xlu0 %v1325
        %v1327 = vpop.xlane.xlu0 %1326
        %v1328 = vpack.c.bf16 %v1324, %v1324
        %1329 = vrot.lane.b32.xlu0 %v1027, 112
        %v1330 = vpop.permute.xlu0 %1329
        %v1332 = vsel %vm1028, %v1328, 0
        %v1335 = vsel %vm1094, %v1330, 0
        %1337 = vmatprep.subr.bf16.mxu0 0
        %1338 = vmatpush1.bf16.msra.mxu0 %v1335
        %1339 = vmatprep.subr.bf16.mxu0 0
        %1340 = vmatpush1.bf16.msra.mxu0 0
        %1341 = vmatprep.subr.bf16.mxu0 0
        %1342 = vmatpush1.bf16.msra.mxu0 0
        %1343 = vmatprep.subr.bf16.mxu0 0
        %1344 = vmatpush1.bf16.msra.mxu0 0
        %1345 = vmatprep.subr.bf16.mxu0 0
        %1346 = vmatpush1.bf16.msra.mxu0 0
        %1347 = vmatprep.subr.bf16.mxu0 0
        %1348 = vmatpush1.bf16.msra.mxu0 0
        %1349 = vmatprep.subr.bf16.mxu0 0
        %1350 = vmatpush1.bf16.msra.mxu0 0
        %1351 = vmatprep.subr.bf16.mxu0 0
        %1352 = vmatpush1.bf16.msra.mxu0 0
        %1353 = vmatprep.subr.bf16.mxu0 0
        %1354 = vmatpush1.bf16.msra.mxu0 0
        %1355 = vmatprep.subr.bf16.mxu0 0
        %1356 = vmatpush1.bf16.msra.mxu0 0
        %1357 = vmatprep.subr.bf16.mxu0 0
        %1358 = vmatpush1.bf16.msra.mxu0 0
        %1359 = vmatprep.subr.bf16.mxu0 0
        %1360 = vmatpush1.bf16.msra.mxu0 0
        %1361 = vmatprep.subr.bf16.mxu0 0
        %1362 = vmatpush1.bf16.msra.mxu0 0
        %1363 = vmatprep.subr.bf16.mxu0 0
        %1364 = vmatpush1.bf16.msra.mxu0 0
        %1365 = vmatprep.subr.bf16.mxu0 0
        %1366 = vmatpush1.bf16.msra.mxu0 0
        %1367 = vmatprep.subr.bf16.mxu0 0
        %1368 = vmatpush1.bf16.msra.mxu0 0
        %1369 = vmatprep.mubr.bf16.mxu0 0
        %1370 = vmatmul.mubr.bf16.gmra.mrb[0].mxu0 %v1332
        %v1371 = vpop.f32.mrb[0].mxu0
        %v1372 = vadd.f32 0.0, %v1371
        %v1373 = vpop.f32.mrb[0].mxu0
        %v1374 = vpop.f32.mrb[0].mxu0
        %v1375 = vpop.f32.mrb[0].mxu0
        %1376 = vdwg.mxu0
        %v1377 = vrcp.pop %v1327
        %v1378 = vmul.f32 %v1372, %v1377
        %v1379 = vpack.c.bf16 %v1378, %v1378
        %v1381 = vunpack.c.l.b16 %v1379
        %v1382 = vpack.c.b16 %v1381, %v1381
        %1383 = vrot.lane.b32.xlu0 %v1382, 16
        %v1384 = vpop.permute.xlu0 %1383
        %vm1386 = vcmask 191616
        %1387 = vst.msk [vmem:[#allocation2] sm:$0xf] %vm1386, %v1384
        %1388 = vrot.lane.b32.xlu0 %v1025, 104
        %v1389 = vpop.permute.xlu0 %1388
        %1390 = vrot.lane.b32.xlu0 %v1026, 104
        %v1391 = vpop.permute.xlu0 %1390
        %v1393 = vsel %vm1028, %v1389, 0
        %v1396 = vsel %vm1028, %v1391, 0
        %1398 = vmatprep.subr.bf16.mxu0 0
        %1399 = vmatpush1.bf16.xpose.msra.mxu0 %v1396
        %1400 = vmatprep.subr.bf16.mxu0 0
        %1401 = vmatpush1.bf16.xpose.msra.mxu0 0
        %1402 = vmatprep.subr.bf16.mxu0 0
        %1403 = vmatpush1.bf16.xpose.msra.mxu0 0
        %1404 = vmatprep.subr.bf16.mxu0 0
        %1405 = vmatpush1.bf16.xpose.msra.mxu0 0
        %1406 = vmatprep.subr.bf16.mxu0 0
        %1407 = vmatpush1.bf16.xpose.msra.mxu0 0
        %1408 = vmatprep.subr.bf16.mxu0 0
        %1409 = vmatpush1.bf16.xpose.msra.mxu0 0
        %1410 = vmatprep.subr.bf16.mxu0 0
        %1411 = vmatpush1.bf16.xpose.msra.mxu0 0
        %1412 = vmatprep.subr.bf16.mxu0 0
        %1413 = vmatpush1.bf16.xpose.msra.mxu0 0
        %1414 = vmatprep.subr.bf16.mxu0 0
        %1415 = vmatpush1.bf16.xpose.msra.mxu0 0
        %1416 = vmatprep.subr.bf16.mxu0 0
        %1417 = vmatpush1.bf16.xpose.msra.mxu0 0
        %1418 = vmatprep.subr.bf16.mxu0 0
        %1419 = vmatpush1.bf16.xpose.msra.mxu0 0
        %1420 = vmatprep.subr.bf16.mxu0 0
        %1421 = vmatpush1.bf16.xpose.msra.mxu0 0
        %1422 = vmatprep.subr.bf16.mxu0 0
        %1423 = vmatpush1.bf16.xpose.msra.mxu0 0
        %1424 = vmatprep.subr.bf16.mxu0 0
        %1425 = vmatpush1.bf16.xpose.msra.mxu0 0
        %1426 = vmatprep.subr.bf16.mxu0 0
        %1427 = vmatpush1.bf16.xpose.msra.mxu0 0
        %1428 = vmatprep.subr.bf16.mxu0 0
        %1429 = vmatpush1.bf16.xpose.msra.mxu0 0
        %1430 = vmatprep.mubr.bf16.mxu0 0
        %1431 = vmatmul.mubr.bf16.gmra.mrb[0].mxu0 %v1393
        %v1432 = vpop.f32.mrb[0].mxu0
        %v1433 = vadd.f32 0.0, %v1432
        %v1434 = vpop.f32.mrb[0].mxu0
        %v1435 = vpop.f32.mrb[0].mxu0
        %v1436 = vpop.f32.mrb[0].mxu0
        %1437 = vdwg.mxu0
        %v1438 = vmul.f32 %v1433, 0.35355338
        %v1439 = vadd.f32 %v1438, %v1079
        %v1440 = vsel %vm1028, %v1439, -inf
        %1441 = vmax.xlane.f32.xlu0 %v1440
        %v1442 = vpop.xlane.xlu0 %1441
        %v1443 = vsub.f32 %v1439, %v1442
        %v1444 = vmul.f32 %v1443, 1.442695
        %v1445 = vpow.pop %v1444
        %v1446 = vsel %vm1028, %v1445, 0.0
        %1447 = vadd.xlane.f32.xlu0 %v1446
        %v1448 = vpop.xlane.xlu0 %1447
        %v1449 = vpack.c.bf16 %v1445, %v1445
        %1450 = vrot.lane.b32.xlu0 %v1027, 104
        %v1451 = vpop.permute.xlu0 %1450
        %v1453 = vsel %vm1028, %v1449, 0
        %v1456 = vsel %vm1094, %v1451, 0
        %1458 = vmatprep.subr.bf16.mxu0 0
        %1459 = vmatpush1.bf16.msra.mxu0 %v1456
        %1460 = vmatprep.subr.bf16.mxu0 0
        %1461 = vmatpush1.bf16.msra.mxu0 0
        %1462 = vmatprep.subr.bf16.mxu0 0
        %1463 = vmatpush1.bf16.msra.mxu0 0
        %1464 = vmatprep.subr.bf16.mxu0 0
        %1465 = vmatpush1.bf16.msra.mxu0 0
        %1466 = vmatprep.subr.bf16.mxu0 0
        %1467 = vmatpush1.bf16.msra.mxu0 0
        %1468 = vmatprep.subr.bf16.mxu0 0
        %1469 = vmatpush1.bf16.msra.mxu0 0
        %1470 = vmatprep.subr.bf16.mxu0 0
        %1471 = vmatpush1.bf16.msra.mxu0 0
        %1472 = vmatprep.subr.bf16.mxu0 0
        %1473 = vmatpush1.bf16.msra.mxu0 0
        %1474 = vmatprep.subr.bf16.mxu0 0
        %1475 = vmatpush1.bf16.msra.mxu0 0
        %1476 = vmatprep.subr.bf16.mxu0 0
        %1477 = vmatpush1.bf16.msra.mxu0 0
        %1478 = vmatprep.subr.bf16.mxu0 0
        %1479 = vmatpush1.bf16.msra.mxu0 0
        %1480 = vmatprep.subr.bf16.mxu0 0
        %1481 = vmatpush1.bf16.msra.mxu0 0
        %1482 = vmatprep.subr.bf16.mxu0 0
        %1483 = vmatpush1.bf16.msra.mxu0 0
        %1484 = vmatprep.subr.bf16.mxu0 0
        %1485 = vmatpush1.bf16.msra.mxu0 0
        %1486 = vmatprep.subr.bf16.mxu0 0
        %1487 = vmatpush1.bf16.msra.mxu0 0
        %1488 = vmatprep.subr.bf16.mxu0 0
        %1489 = vmatpush1.bf16.msra.mxu0 0
        %1490 = vmatprep.mubr.bf16.mxu0 0
        %1491 = vmatmul.mubr.bf16.gmra.mrb[0].mxu0 %v1453
        %v1492 = vpop.f32.mrb[0].mxu0
        %v1493 = vadd.f32 0.0, %v1492
        %v1494 = vpop.f32.mrb[0].mxu0
        %v1495 = vpop.f32.mrb[0].mxu0
        %v1496 = vpop.f32.mrb[0].mxu0
        %1497 = vdwg.mxu0
        %v1498 = vrcp.pop %v1448
        %v1499 = vmul.f32 %v1493, %v1498
        %v1500 = vpack.c.bf16 %v1499, %v1499
        %v1502 = vunpack.c.l.b16 %v1500
        %v1503 = vpack.c.b16 %v1502, %v1502
        %1504 = vrot.lane.b32.xlu0 %v1503, 24
        %v1505 = vpop.permute.xlu0 %1504
        %vm1507 = vcmask 257216
        %1508 = vst.msk [vmem:[#allocation2] sm:$0xf] %vm1507, %v1505
        %v1509 = vld [vmem:[#allocation2] sm:$0xf]
        %v1510 = vld [vmem:[#allocation12] sm:$0xf]
        %v1511 = vld [vmem:[#allocation12 + $0x4] sm:$0xf]
        %v1512 = vld [vmem:[#allocation12 + $0x8] sm:$0xf]
        %v1513 = vld [vmem:[#allocation12 + $0xc] sm:$0xf]
        %v1514 = vld [vmem:[#allocation14] sm:$0x1]
        %v1516 = vlaneseq
        %v1517 = vshrl.u32 %v1516, 7
        %v1518 = vsub.s32 0, %v1517
        %v1519 = vrot.slane %v1514, %v1518
        %v1525 = vunpack.c.l.b16 %v1510
        %v1526 = vunpack.c.l.b16 %v1511
        %v1527 = vunpack.c.l.b16 %v1512
        %v1528 = vunpack.c.l.b16 %v1513
        %v1529 = vpack.c.b16 %v1526, %v1525
        %v1530 = vpack.c.b16 %v1528, %v1527
        %v1534 = vsel %vm803, %v1509, 0
        %1536 = vmatprep.subr.bf16.mxu0 0
        %1537 = vmatpush1.bf16.msra.mxu0 %v1529
        %1538 = vmatprep.subr.bf16.mxu0 0
        %1539 = vmatpush1.bf16.msra.mxu0 %v1530
        %1540 = vmatprep.subr.bf16.mxu0 0
        %1541 = vmatpush1.bf16.msra.mxu0 0
        %1542 = vmatprep.subr.bf16.mxu0 0
        %1543 = vmatpush1.bf16.msra.mxu0 0
        %1544 = vmatprep.subr.bf16.mxu0 0
        %1545 = vmatpush1.bf16.msra.mxu0 0
        %1546 = vmatprep.subr.bf16.mxu0 0
        %1547 = vmatpush1.bf16.msra.mxu0 0
        %1548 = vmatprep.subr.bf16.mxu0 0
        %1549 = vmatpush1.bf16.msra.mxu0 0
        %1550 = vmatprep.subr.bf16.mxu0 0
        %1551 = vmatpush1.bf16.msra.mxu0 0
        %1552 = vmatprep.subr.bf16.mxu0 0
        %1553 = vmatpush1.bf16.msra.mxu0 0
        %1554 = vmatprep.subr.bf16.mxu0 0
        %1555 = vmatpush1.bf16.msra.mxu0 0
        %1556 = vmatprep.subr.bf16.mxu0 0
        %1557 = vmatpush1.bf16.msra.mxu0 0
        %1558 = vmatprep.subr.bf16.mxu0 0
        %1559 = vmatpush1.bf16.msra.mxu0 0
        %1560 = vmatprep.subr.bf16.mxu0 0
        %1561 = vmatpush1.bf16.msra.mxu0 0
        %1562 = vmatprep.subr.bf16.mxu0 0
        %1563 = vmatpush1.bf16.msra.mxu0 0
        %1564 = vmatprep.subr.bf16.mxu0 0
        %1565 = vmatpush1.bf16.msra.mxu0 0
        %1566 = vmatprep.subr.bf16.mxu0 0
        %1567 = vmatpush1.bf16.msra.mxu0 0
        %1568 = vmatprep.mubr.bf16.mxu0 0
        %1569 = vmatmul.mubr.bf16.gmra.mrb[0].mxu0 %v1534
        %v1570 = vpop.f32.mrb[0].mxu0
        %v1571 = vadd.f32 %v1519, %v1570
        %v1572 = vpop.f32.mrb[0].mxu0
        %v1573 = vpop.f32.mrb[0].mxu0
        %v1574 = vpop.f32.mrb[0].mxu0
        %1575 = vdwg.mxu0
        %v1576 = vadd.f32 %v831, %v1571
        %v1577 = vld [vmem:[%s12] sm:$0x1]
        %v1578 = vld [vmem:[%s13] sm:$0x1]
        %v1579 = vsel %vm803, %v1576, 0.0
        %1580 = vadd.xlane.f32.xlu0 %v1579
        %v1581 = vpop.xlane.xlu0 %1580
        %v1582 = vmul.f32 %v1581, %v807
        %v1583 = vsub.f32 %v1576, %v1582
        %v1584 = vmul.f32 %v1583, %v1583
        %v1585 = vsel %vm803, %v1584, 0.0
        %1586 = vadd.xlane.f32.xlu0 %v1585
        %v1587 = vpop.xlane.xlu0 %1586
        %v1588 = vmul.f32 %v1587, %v807
        %v1589 = vadd.f32 %v1588, 1e-12
        %v1590 = vrsqrt.pop %v1589
        %v1591 = vmul.f32 %v1583, %v1590
        %v1593 = vlaneseq
        %v1594 = vshrl.u32 %v1593, 7
        %v1595 = vsub.s32 0, %v1594
        %v1596 = vrot.slane %v1577, %v1595
        %v1598 = vmul.f32 %v1591, %v1596
        %v1600 = vlaneseq
        %v1601 = vshrl.u32 %v1600, 7
        %v1602 = vsub.s32 0, %v1601
        %v1603 = vrot.slane %v1578, %v1602
        %v1605 = vadd.f32 %v1598, %v1603
        %v1606 = vpack.c.bf16 %v1605, %v1605
        %v1607 = vld [vmem:[%s14] sm:$0xf]
        %v1608 = vld [vmem:[%s14 + $0x4] sm:$0xf]
        %v1609 = vld [vmem:[%s14 + $0x8] sm:$0xf]
        %v1610 = vld [vmem:[%s14 + $0xc] sm:$0xf]
        %v1611 = vld [vmem:[%s15] sm:$0x1]
        %v1613 = vlaneseq
        %v1614 = vshrl.u32 %v1613, 7
        %v1615 = vsub.s32 0, %v1614
        %v1616 = vrot.slane %v1611, %v1615
        %v1622 = vunpack.c.l.b16 %v1607
        %v1623 = vunpack.c.l.b16 %v1608
        %v1624 = vunpack.c.l.b16 %v1609
        %v1625 = vunpack.c.l.b16 %v1610
        %v1626 = vpack.c.b16 %v1623, %v1622
        %v1627 = vpack.c.b16 %v1625, %v1624
        %v1631 = vsel %vm803, %v1606, 0
        %1633 = vmatprep.subr.bf16.mxu0 0
        %1634 = vmatpush1.bf16.msra.mxu0 %v1626
        %1635 = vmatprep.subr.bf16.mxu0 0
        %1636 = vmatpush1.bf16.msra.mxu0 %v1627
        %1637 = vmatprep.subr.bf16.mxu0 0
        %1638 = vmatpush1.bf16.msra.mxu0 0
        %1639 = vmatprep.subr.bf16.mxu0 0
        %1640 = vmatpush1.bf16.msra.mxu0 0
        %1641 = vmatprep.subr.bf16.mxu0 0
        %1642 = vmatpush1.bf16.msra.mxu0 0
        %1643 = vmatprep.subr.bf16.mxu0 0
        %1644 = vmatpush1.bf16.msra.mxu0 0
        %1645 = vmatprep.subr.bf16.mxu0 0
        %1646 = vmatpush1.bf16.msra.mxu0 0
        %1647 = vmatprep.subr.bf16.mxu0 0
        %1648 = vmatpush1.bf16.msra.mxu0 0
        %1649 = vmatprep.subr.bf16.mxu0 0
        %1650 = vmatpush1.bf16.msra.mxu0 0
        %1651 = vmatprep.subr.bf16.mxu0 0
        %1652 = vmatpush1.bf16.msra.mxu0 0
        %1653 = vmatprep.subr.bf16.mxu0 0
        %1654 = vmatpush1.bf16.msra.mxu0 0
        %1655 = vmatprep.subr.bf16.mxu0 0
        %1656 = vmatpush1.bf16.msra.mxu0 0
        %1657 = vmatprep.subr.bf16.mxu0 0
        %1658 = vmatpush1.bf16.msra.mxu0 0
        %1659 = vmatprep.subr.bf16.mxu0 0
        %1660 = vmatpush1.bf16.msra.mxu0 0
        %1661 = vmatprep.subr.bf16.mxu0 0
        %1662 = vmatpush1.bf16.msra.mxu0 0
        %1663 = vmatprep.subr.bf16.mxu0 0
        %1664 = vmatpush1.bf16.msra.mxu0 0
        %1665 = vmatprep.mubr.bf16.mxu0 0
        %1666 = vmatmul.mubr.bf16.gmra.mrb[0].mxu0 %v1631
        %v1667 = vpop.f32.mrb[0].mxu0
        %v1668 = vadd.f32 %v1616, %v1667
        %v1669 = vpop.f32.mrb[0].mxu0
        %v1670 = vpop.f32.mrb[0].mxu0
        %v1671 = vpop.f32.mrb[0].mxu0
        %1672 = vdwg.mxu0
        %v1673 = vmul.f32 %v1668, %v1668
        %v1674 = vmul.f32 %v1668, %v1673
        %v1675 = vmul.f32 %v1674, 0.044715
        %v1676 = vadd.f32 %v1668, %v1675
        %v1677 = vmul.f32 %v1676, 0.7978846
        %v1678 = vtanh.pop %v1677
        %v1679 = vadd.f32 %v1678, 1.0
        %v1680 = vmul.f32 %v1679, 0.5
        %v1681 = vmul.f32 %v1668, %v1680
        %v1682 = vpack.c.bf16 %v1681, %v1681
        %v1683 = vld [vmem:[%s16] sm:$0xf]
        %v1684 = vld [vmem:[%s16 + $0x4] sm:$0xf]
        %v1685 = vld [vmem:[%s16 + $0x8] sm:$0xf]
        %v1686 = vld [vmem:[%s16 + $0xc] sm:$0xf]
        %v1687 = vld [vmem:[%s16 + $0x10] sm:$0xf]
        %v1688 = vld [vmem:[%s16 + $0x14] sm:$0xf]
        %v1689 = vld [vmem:[%s16 + $0x18] sm:$0xf]
        %v1690 = vld [vmem:[%s16 + $0x1c] sm:$0xf]
        %v1691 = vld [vmem:[%s17] sm:$0x1]
        %v1693 = vlaneseq
        %v1694 = vshrl.u32 %v1693, 7
        %v1695 = vsub.s32 0, %v1694
        %v1696 = vrot.slane %v1691, %v1695
        %v1706 = vunpack.c.l.b16 %v1683
        %v1707 = vunpack.c.l.b16 %v1684
        %v1708 = vunpack.c.l.b16 %v1685
        %v1709 = vunpack.c.l.b16 %v1686
        %v1710 = vunpack.c.l.b16 %v1687
        %v1711 = vunpack.c.l.b16 %v1688
        %v1712 = vunpack.c.l.b16 %v1689
        %v1713 = vunpack.c.l.b16 %v1690
        %v1714 = vpack.c.b16 %v1707, %v1706
        %v1715 = vpack.c.b16 %v1709, %v1708
        %v1716 = vpack.c.b16 %v1711, %v1710
        %v1717 = vpack.c.b16 %v1713, %v1712
        %vm1722 = vcmask 523264
        %v1724 = vsel %vm1722, %v1682, 0
        %1726 = vmatprep.subr.bf16.mxu0 0
        %1727 = vmatpush1.bf16.msra.mxu0 %v1714
        %1728 = vmatprep.subr.bf16.mxu0 0
        %1729 = vmatpush1.bf16.msra.mxu0 %v1715
        %1730 = vmatprep.subr.bf16.mxu0 0
        %1731 = vmatpush1.bf16.msra.mxu0 %v1716
        %1732 = vmatprep.subr.bf16.mxu0 0
        %1733 = vmatpush1.bf16.msra.mxu0 %v1717
        %1734 = vmatprep.subr.bf16.mxu0 0
        %1735 = vmatpush1.bf16.msra.mxu0 0
        %1736 = vmatprep.subr.bf16.mxu0 0
        %1737 = vmatpush1.bf16.msra.mxu0 0
        %1738 = vmatprep.subr.bf16.mxu0 0
        %1739 = vmatpush1.bf16.msra.mxu0 0
        %1740 = vmatprep.subr.bf16.mxu0 0
        %1741 = vmatpush1.bf16.msra.mxu0 0
        %1742 = vmatprep.subr.bf16.mxu0 0
        %1743 = vmatpush1.bf16.msra.mxu0 0
        %1744 = vmatprep.subr.bf16.mxu0 0
        %1745 = vmatpush1.bf16.msra.mxu0 0
        %1746 = vmatprep.subr.bf16.mxu0 0
        %1747 = vmatpush1.bf16.msra.mxu0 0
        %1748 = vmatprep.subr.bf16.mxu0 0
        %1749 = vmatpush1.bf16.msra.mxu0 0
        %1750 = vmatprep.subr.bf16.mxu0 0
        %1751 = vmatpush1.bf16.msra.mxu0 0
        %1752 = vmatprep.subr.bf16.mxu0 0
        %1753 = vmatpush1.bf16.msra.mxu0 0
        %1754 = vmatprep.subr.bf16.mxu0 0
        %1755 = vmatpush1.bf16.msra.mxu0 0
        %1756 = vmatprep.subr.bf16.mxu0 0
        %1757 = vmatpush1.bf16.msra.mxu0 0
        %1758 = vmatprep.mubr.bf16.mxu0 0
        %1759 = vmatmul.mubr.bf16.gmra.mrb[0].mxu0 %v1724
        %v1760 = vpop.f32.mrb[0].mxu0
        %v1761 = vadd.f32 %v1696, %v1760
        %v1762 = vpop.f32.mrb[0].mxu0
        %v1763 = vpop.f32.mrb[0].mxu0
        %v1764 = vpop.f32.mrb[0].mxu0
        %1765 = vdwg.mxu0
        %v1766 = vadd.f32 %v1605, %v1761
        %v1767 = vld [vmem:[%s18] sm:$0x1]
        %v1768 = vld [vmem:[%s19] sm:$0x1]
        %v1769 = vsel %vm803, %v1766, 0.0
        %1770 = vadd.xlane.f32.xlu0 %v1769
        %v1771 = vpop.xlane.xlu0 %1770
        %v1772 = vmul.f32 %v1771, %v807
        %v1773 = vsub.f32 %v1766, %v1772
        %v1774 = vmul.f32 %v1773, %v1773
        %v1775 = vsel %vm803, %v1774, 0.0
        %1776 = vadd.xlane.f32.xlu0 %v1775
        %v1777 = vpop.xlane.xlu0 %1776
        %v1778 = vmul.f32 %v1777, %v807
        %v1779 = vadd.f32 %v1778, 1e-12
        %v1780 = vrsqrt.pop %v1779
        %v1781 = vmul.f32 %v1773, %v1780
        %v1783 = vlaneseq
        %v1784 = vshrl.u32 %v1783, 7
        %v1785 = vsub.s32 0, %v1784
        %v1786 = vrot.slane %v1767, %v1785
        %v1788 = vmul.f32 %v1781, %v1786
        %v1790 = vlaneseq
        %v1791 = vshrl.u32 %v1790, 7
        %v1792 = vsub.s32 0, %v1791
        %v1793 = vrot.slane %v1768, %v1792
        %v1795 = vadd.f32 %v1788, %v1793
        %v1796 = vpack.c.bf16 %v1795, %v1795
        %s1797 = scalar_lea.vmem %s4, 16
        %v1798 = vld [vmem:[%s1797] sm:$0xf]
        %v1799 = vld [vmem:[%s1797 + $0x4] sm:$0xf]
        %v1800 = vld [vmem:[%s1797 + $0x8] sm:$0xf]
        %v1801 = vld [vmem:[%s1797 + $0xc] sm:$0xf]
        %s1802 = scalar_lea.vmem %s5, 1
        %v1803 = vld [vmem:[%s1802] sm:$0x1]
        %v1805 = vlaneseq
        %v1806 = vshrl.u32 %v1805, 7
        %v1807 = vsub.s32 0, %v1806
        %v1808 = vrot.slane %v1803, %v1807
        %v1814 = vunpack.c.l.b16 %v1798
        %v1815 = vunpack.c.l.b16 %v1799
        %v1816 = vunpack.c.l.b16 %v1800
        %v1817 = vunpack.c.l.b16 %v1801
        %v1818 = vpack.c.b16 %v1815, %v1814
        %v1819 = vpack.c.b16 %v1817, %v1816
        %v1823 = vsel %vm803, %v1796, 0
        %1825 = vmatprep.subr.bf16.mxu0 0
        %1826 = vmatpush1.bf16.msra.mxu0 %v1818
        %1827 = vmatprep.subr.bf16.mxu0 0
        %1828 = vmatpush1.bf16.msra.mxu0 %v1819
        %1829 = vmatprep.subr.bf16.mxu0 0
        %1830 = vmatpush1.bf16.msra.mxu0 0
        %1831 = vmatprep.subr.bf16.mxu0 0
        %1832 = vmatpush1.bf16.msra.mxu0 0
        %1833 = vmatprep.subr.bf16.mxu0 0
        %1834 = vmatpush1.bf16.msra.mxu0 0
        %1835 = vmatprep.subr.bf16.mxu0 0
        %1836 = vmatpush1.bf16.msra.mxu0 0
        %1837 = vmatprep.subr.bf16.mxu0 0
        %1838 = vmatpush1.bf16.msra.mxu0 0
        %1839 = vmatprep.subr.bf16.mxu0 0
        %1840 = vmatpush1.bf16.msra.mxu0 0
        %1841 = vmatprep.subr.bf16.mxu0 0
        %1842 = vmatpush1.bf16.msra.mxu0 0
        %1843 = vmatprep.subr.bf16.mxu0 0
        %1844 = vmatpush1.bf16.msra.mxu0 0
        %1845 = vmatprep.subr.bf16.mxu0 0
        %1846 = vmatpush1.bf16.msra.mxu0 0
        %1847 = vmatprep.subr.bf16.mxu0 0
        %1848 = vmatpush1.bf16.msra.mxu0 0
        %1849 = vmatprep.subr.bf16.mxu0 0
        %1850 = vmatpush1.bf16.msra.mxu0 0
        %1851 = vmatprep.subr.bf16.mxu0 0
        %1852 = vmatpush1.bf16.msra.mxu0 0
        %1853 = vmatprep.subr.bf16.mxu0 0
        %1854 = vmatpush1.bf16.msra.mxu0 0
        %1855 = vmatprep.subr.bf16.mxu0 0
        %1856 = vmatpush1.bf16.msra.mxu0 0
        %1857 = vmatprep.mubr.bf16.mxu0 0
        %1858 = vmatmul.mubr.bf16.gmra.mrb[0].mxu0 %v1823
        %v1859 = vpop.f32.mrb[0].mxu0
        %v1860 = vadd.f32 %v1808, %v1859
        %v1861 = vpop.f32.mrb[0].mxu0
        %v1862 = vpop.f32.mrb[0].mxu0
        %v1863 = vpop.f32.mrb[0].mxu0
        %1864 = vdwg.mxu0
        %s1865 = scalar_lea.vmem %s6, 16
        %v1866 = vld [vmem:[%s1865] sm:$0xf]
        %v1867 = vld [vmem:[%s1865 + $0x4] sm:$0xf]
        %v1868 = vld [vmem:[%s1865 + $0x8] sm:$0xf]
        %v1869 = vld [vmem:[%s1865 + $0xc] sm:$0xf]
        %s1870 = scalar_lea.vmem [#allocation9], 1
        %v1871 = vld [vmem:[%s1870] sm:$0x1]
        %v1873 = vlaneseq
        %v1874 = vshrl.u32 %v1873, 7
        %v1875 = vsub.s32 0, %v1874
        %v1876 = vrot.slane %v1871, %v1875
        %v1882 = vunpack.c.l.b16 %v1866
        %v1883 = vunpack.c.l.b16 %v1867
        %v1884 = vunpack.c.l.b16 %v1868
        %v1885 = vunpack.c.l.b16 %v1869
        %v1886 = vpack.c.b16 %v1883, %v1882
        %v1887 = vpack.c.b16 %v1885, %v1884
        %1890 = vmatprep.subr.bf16.mxu0 0
        %1891 = vmatpush1.bf16.msra.mxu0 %v1886
        %1892 = vmatprep.subr.bf16.mxu0 0
        %1893 = vmatpush1.bf16.msra.mxu0 %v1887
        %1894 = vmatprep.subr.bf16.mxu0 0
        %1895 = vmatpush1.bf16.msra.mxu0 0
        %1896 = vmatprep.subr.bf16.mxu0 0
        %1897 = vmatpush1.bf16.msra.mxu0 0
        %1898 = vmatprep.subr.bf16.mxu0 0
        %1899 = vmatpush1.bf16.msra.mxu0 0
        %1900 = vmatprep.subr.bf16.mxu0 0
        %1901 = vmatpush1.bf16.msra.mxu0 0
        %1902 = vmatprep.subr.bf16.mxu0 0
        %1903 = vmatpush1.bf16.msra.mxu0 0
        %1904 = vmatprep.subr.bf16.mxu0 0
        %1905 = vmatpush1.bf16.msra.mxu0 0
        %1906 = vmatprep.subr.bf16.mxu0 0
        %1907 = vmatpush1.bf16.msra.mxu0 0
        %1908 = vmatprep.subr.bf16.mxu0 0
        %1909 = vmatpush1.bf16.msra.mxu0 0
        %1910 = vmatprep.subr.bf16.mxu0 0
        %1911 = vmatpush1.bf16.msra.mxu0 0
        %1912 = vmatprep.subr.bf16.mxu0 0
        %1913 = vmatpush1.bf16.msra.mxu0 0
        %1914 = vmatprep.subr.bf16.mxu0 0
        %1915 = vmatpush1.bf16.msra.mxu0 0
        %1916 = vmatprep.subr.bf16.mxu0 0
        %1917 = vmatpush1.bf16.msra.mxu0 0
        %1918 = vmatprep.subr.bf16.mxu0 0
        %1919 = vmatpush1.bf16.msra.mxu0 0
        %1920 = vmatprep.subr.bf16.mxu0 0
        %1921 = vmatpush1.bf16.msra.mxu0 0
        %1922 = vmatprep.mubr.bf16.mxu0 0
        %1923 = vmatmul.mubr.bf16.gmra.mrb[0].mxu0 %v1823
        %v1924 = vpop.f32.mrb[0].mxu0
        %v1925 = vadd.f32 %v1876, %v1924
        %v1926 = vpop.f32.mrb[0].mxu0
        %v1927 = vpop.f32.mrb[0].mxu0
        %v1928 = vpop.f32.mrb[0].mxu0
        %1929 = vdwg.mxu0
        %s1930 = scalar_lea.vmem %s8, 16
        %v1931 = vld [vmem:[%s1930] sm:$0xf]
        %v1932 = vld [vmem:[%s1930 + $0x4] sm:$0xf]
        %v1933 = vld [vmem:[%s1930 + $0x8] sm:$0xf]
        %v1934 = vld [vmem:[%s1930 + $0xc] sm:$0xf]
        %s1935 = scalar_lea.vmem [#allocation11], 1
        %v1936 = vld [vmem:[%s1935] sm:$0x1]
        %v1938 = vlaneseq
        %v1939 = vshrl.u32 %v1938, 7
        %v1940 = vsub.s32 0, %v1939
        %v1941 = vrot.slane %v1936, %v1940
        %v1947 = vunpack.c.l.b16 %v1931
        %v1948 = vunpack.c.l.b16 %v1932
        %v1949 = vunpack.c.l.b16 %v1933
        %v1950 = vunpack.c.l.b16 %v1934
        %v1951 = vpack.c.b16 %v1948, %v1947
        %v1952 = vpack.c.b16 %v1950, %v1949
        %1955 = vmatprep.subr.bf16.mxu0 0
        %1956 = vmatpush1.bf16.msra.mxu0 %v1951
        %1957 = vmatprep.subr.bf16.mxu0 0
        %1958 = vmatpush1.bf16.msra.mxu0 %v1952
        %1959 = vmatprep.subr.bf16.mxu0 0
        %1960 = vmatpush1.bf16.msra.mxu0 0
        %1961 = vmatprep.subr.bf16.mxu0 0
        %1962 = vmatpush1.bf16.msra.mxu0 0
        %1963 = vmatprep.subr.bf16.mxu0 0
        %1964 = vmatpush1.bf16.msra.mxu0 0
        %1965 = vmatprep.subr.bf16.mxu0 0
        %1966 = vmatpush1.bf16.msra.mxu0 0
        %1967 = vmatprep.subr.bf16.mxu0 0
        %1968 = vmatpush1.bf16.msra.mxu0 0
        %1969 = vmatprep.subr.bf16.mxu0 0
        %1970 = vmatpush1.bf16.msra.mxu0 0
        %1971 = vmatprep.subr.bf16.mxu0 0
        %1972 = vmatpush1.bf16.msra.mxu0 0
        %1973 = vmatprep.subr.bf16.mxu0 0
        %1974 = vmatpush1.bf16.msra.mxu0 0
        %1975 = vmatprep.subr.bf16.mxu0 0
        %1976 = vmatpush1.bf16.msra.mxu0 0
        %1977 = vmatprep.subr.bf16.mxu0 0
        %1978 = vmatpush1.bf16.msra.mxu0 0
        %1979 = vmatprep.subr.bf16.mxu0 0
        %1980 = vmatpush1.bf16.msra.mxu0 0
        %1981 = vmatprep.subr.bf16.mxu0 0
        %1982 = vmatpush1.bf16.msra.mxu0 0
        %1983 = vmatprep.subr.bf16.mxu0 0
        %1984 = vmatpush1.bf16.msra.mxu0 0
        %1985 = vmatprep.subr.bf16.mxu0 0
        %1986 = vmatpush1.bf16.msra.mxu0 0
        %1987 = vmatprep.mubr.bf16.mxu0 0
        %1988 = vmatmul.mubr.bf16.gmra.mrb[0].mxu0 %v1823
        %v1989 = vpop.f32.mrb[0].mxu0
        %v1990 = vadd.f32 %v1941, %v1989
        %v1991 = vpop.f32.mrb[0].mxu0
        %v1992 = vpop.f32.mrb[0].mxu0
        %v1993 = vpop.f32.mrb[0].mxu0
        %1994 = vdwg.mxu0
        %v1995 = vpack.c.bf16 %v1860, %v1860
        %v1996 = vpack.c.bf16 %v1925, %v1925
        %v1997 = vpack.c.bf16 %v1990, %v1990
        %v1999 = vsel %vm1028, %v1995, 0
        %v2002 = vsel %vm1028, %v1996, 0
        %2004 = vmatprep.subr.bf16.mxu0 0
        %2005 = vmatpush1.bf16.xpose.msra.mxu0 %v2002
        %2006 = vmatprep.subr.bf16.mxu0 0
        %2007 = vmatpush1.bf16.xpose.msra.mxu0 0
        %2008 = vmatprep.subr.bf16.mxu0 0
        %2009 = vmatpush1.bf16.xpose.msra.mxu0 0
        %2010 = vmatprep.subr.bf16.mxu0 0
        %2011 = vmatpush1.bf16.xpose.msra.mxu0 0
        %2012 = vmatprep.subr.bf16.mxu0 0
        %2013 = vmatpush1.bf16.xpose.msra.mxu0 0
        %2014 = vmatprep.subr.bf16.mxu0 0
        %2015 = vmatpush1.bf16.xpose.msra.mxu0 0
        %2016 = vmatprep.subr.bf16.mxu0 0
        %2017 = vmatpush1.bf16.xpose.msra.mxu0 0
        %2018 = vmatprep.subr.bf16.mxu0 0
        %2019 = vmatpush1.bf16.xpose.msra.mxu0 0
        %2020 = vmatprep.subr.bf16.mxu0 0
        %2021 = vmatpush1.bf16.xpose.msra.mxu0 0
        %2022 = vmatprep.subr.bf16.mxu0 0
        %2023 = vmatpush1.bf16.xpose.msra.mxu0 0
        %2024 = vmatprep.subr.bf16.mxu0 0
        %2025 = vmatpush1.bf16.xpose.msra.mxu0 0
        %2026 = vmatprep.subr.bf16.mxu0 0
        %2027 = vmatpush1.bf16.xpose.msra.mxu0 0
        %2028 = vmatprep.subr.bf16.mxu0 0
        %2029 = vmatpush1.bf16.xpose.msra.mxu0 0
        %2030 = vmatprep.subr.bf16.mxu0 0
        %2031 = vmatpush1.bf16.xpose.msra.mxu0 0
        %2032 = vmatprep.subr.bf16.mxu0 0
        %2033 = vmatpush1.bf16.xpose.msra.mxu0 0
        %2034 = vmatprep.subr.bf16.mxu0 0
        %2035 = vmatpush1.bf16.xpose.msra.mxu0 0
        %2036 = vmatprep.mubr.bf16.mxu0 0
        %2037 = vmatmul.mubr.bf16.gmra.mrb[0].mxu0 %v1999
        %v2038 = vpop.f32.mrb[0].mxu0
        %v2039 = vadd.f32 0.0, %v2038
        %v2040 = vpop.f32.mrb[0].mxu0
        %v2041 = vpop.f32.mrb[0].mxu0
        %v2042 = vpop.f32.mrb[0].mxu0
        %2043 = vdwg.mxu0
        %v2044 = vmul.f32 %v2039, 0.35355338
        %v2045 = vadd.f32 %v2044, %v1079
        %v2046 = vsel %vm1028, %v2045, -inf
        %2047 = vmax.xlane.f32.xlu0 %v2046
        %v2048 = vpop.xlane.xlu0 %2047
        %v2049 = vsub.f32 %v2045, %v2048
        %v2050 = vmul.f32 %v2049, 1.442695
        %v2051 = vpow.pop %v2050
        %v2052 = vsel %vm1028, %v2051, 0.0
        %2053 = vadd.xlane.f32.xlu0 %v2052
        %v2054 = vpop.xlane.xlu0 %2053
        %v2055 = vpack.c.bf16 %v2051, %v2051
        %v2057 = vsel %vm1028, %v2055, 0
        %v2060 = vsel %vm1094, %v1997, 0
        %2062 = vmatprep.subr.bf16.mxu0 0
        %2063 = vmatpush1.bf16.msra.mxu0 %v2060
        %2064 = vmatprep.subr.bf16.mxu0 0
        %2065 = vmatpush1.bf16.msra.mxu0 0
        %2066 = vmatprep.subr.bf16.mxu0 0
        %2067 = vmatpush1.bf16.msra.mxu0 0
        %2068 = vmatprep.subr.bf16.mxu0 0
        %2069 = vmatpush1.bf16.msra.mxu0 0
        %2070 = vmatprep.subr.bf16.mxu0 0
        %2071 = vmatpush1.bf16.msra.mxu0 0
        %2072 = vmatprep.subr.bf16.mxu0 0
        %2073 = vmatpush1.bf16.msra.mxu0 0
        %2074 = vmatprep.subr.bf16.mxu0 0
        %2075 = vmatpush1.bf16.msra.mxu0 0
        %2076 = vmatprep.subr.bf16.mxu0 0
        %2077 = vmatpush1.bf16.msra.mxu0 0
        %2078 = vmatprep.subr.bf16.mxu0 0
        %2079 = vmatpush1.bf16.msra.mxu0 0
        %2080 = vmatprep.subr.bf16.mxu0 0
        %2081 = vmatpush1.bf16.msra.mxu0 0
        %2082 = vmatprep.subr.bf16.mxu0 0
        %2083 = vmatpush1.bf16.msra.mxu0 0
        %2084 = vmatprep.subr.bf16.mxu0 0
        %2085 = vmatpush1.bf16.msra.mxu0 0
        %2086 = vmatprep.subr.bf16.mxu0 0
        %2087 = vmatpush1.bf16.msra.mxu0 0
        %2088 = vmatprep.subr.bf16.mxu0 0
        %2089 = vmatpush1.bf16.msra.mxu0 0
        %2090 = vmatprep.subr.bf16.mxu0 0
        %2091 = vmatpush1.bf16.msra.mxu0 0
        %2092 = vmatprep.subr.bf16.mxu0 0
        %2093 = vmatpush1.bf16.msra.mxu0 0
        %2094 = vmatprep.mubr.bf16.mxu0 0
        %2095 = vmatmul.mubr.bf16.gmra.mrb[0].mxu0 %v2057
        %v2096 = vpop.f32.mrb[0].mxu0
        %v2097 = vadd.f32 0.0, %v2096
        %v2098 = vpop.f32.mrb[0].mxu0
        %v2099 = vpop.f32.mrb[0].mxu0
        %v2100 = vpop.f32.mrb[0].mxu0
        %2101 = vdwg.mxu0
        %v2102 = vrcp.pop %v2054
        %v2103 = vmul.f32 %v2097, %v2102
        %v2104 = vpack.c.bf16 %v2103, %v2103
        %2105 = vst.msk [vmem:[#allocation2] sm:$0xf] %vm1141, %v2104
        %2107 = vrot.lane.b32.xlu0 %v1995, 120
        %v2108 = vpop.permute.xlu0 %2107
        %2110 = vrot.lane.b32.xlu0 %v1996, 120
        %v2111 = vpop.permute.xlu0 %2110
        %v2113 = vsel %vm1028, %v2108, 0
        %v2116 = vsel %vm1028, %v2111, 0
        %2118 = vmatprep.subr.bf16.mxu0 0
        %2119 = vmatpush1.bf16.xpose.msra.mxu0 %v2116
        %2120 = vmatprep.subr.bf16.mxu0 0
        %2121 = vmatpush1.bf16.xpose.msra.mxu0 0
        %2122 = vmatprep.subr.bf16.mxu0 0
        %2123 = vmatpush1.bf16.xpose.msra.mxu0 0
        %2124 = vmatprep.subr.bf16.mxu0 0
        %2125 = vmatpush1.bf16.xpose.msra.mxu0 0
        %2126 = vmatprep.subr.bf16.mxu0 0
        %2127 = vmatpush1.bf16.xpose.msra.mxu0 0
        %2128 = vmatprep.subr.bf16.mxu0 0
        %2129 = vmatpush1.bf16.xpose.msra.mxu0 0
        %2130 = vmatprep.subr.bf16.mxu0 0
        %2131 = vmatpush1.bf16.xpose.msra.mxu0 0
        %2132 = vmatprep.subr.bf16.mxu0 0
        %2133 = vmatpush1.bf16.xpose.msra.mxu0 0
        %2134 = vmatprep.subr.bf16.mxu0 0
        %2135 = vmatpush1.bf16.xpose.msra.mxu0 0
        %2136 = vmatprep.subr.bf16.mxu0 0
        %2137 = vmatpush1.bf16.xpose.msra.mxu0 0
        %2138 = vmatprep.subr.bf16.mxu0 0
        %2139 = vmatpush1.bf16.xpose.msra.mxu0 0
        %2140 = vmatprep.subr.bf16.mxu0 0
        %2141 = vmatpush1.bf16.xpose.msra.mxu0 0
        %2142 = vmatprep.subr.bf16.mxu0 0
        %2143 = vmatpush1.bf16.xpose.msra.mxu0 0
        %2144 = vmatprep.subr.bf16.mxu0 0
        %2145 = vmatpush1.bf16.xpose.msra.mxu0 0
        %2146 = vmatprep.subr.bf16.mxu0 0
        %2147 = vmatpush1.bf16.xpose.msra.mxu0 0
        %2148 = vmatprep.subr.bf16.mxu0 0
        %2149 = vmatpush1.bf16.xpose.msra.mxu0 0
        %2150 = vmatprep.mubr.bf16.mxu0 0
        %2151 = vmatmul.mubr.bf16.gmra.mrb[0].mxu0 %v2113
        %v2152 = vpop.f32.mrb[0].mxu0
        %v2153 = vadd.f32 0.0, %v2152
        %v2154 = vpop.f32.mrb[0].mxu0
        %v2155 = vpop.f32.mrb[0].mxu0
        %v2156 = vpop.f32.mrb[0].mxu0
        %2157 = vdwg.mxu0
        %v2158 = vmul.f32 %v2153, 0.35355338
        %v2159 = vadd.f32 %v2158, %v1079
        %v2160 = vsel %vm1028, %v2159, -inf
        %2161 = vmax.xlane.f32.xlu0 %v2160
        %v2162 = vpop.xlane.xlu0 %2161
        %v2163 = vsub.f32 %v2159, %v2162
        %v2164 = vmul.f32 %v2163, 1.442695
        %v2165 = vpow.pop %v2164
        %v2166 = vsel %vm1028, %v2165, 0.0
        %2167 = vadd.xlane.f32.xlu0 %v2166
        %v2168 = vpop.xlane.xlu0 %2167
        %v2169 = vpack.c.bf16 %v2165, %v2165
        %2171 = vrot.lane.b32.xlu0 %v1997, 120
        %v2172 = vpop.permute.xlu0 %2171
        %v2174 = vsel %vm1028, %v2169, 0
        %v2177 = vsel %vm1094, %v2172, 0
        %2179 = vmatprep.subr.bf16.mxu0 0
        %2180 = vmatpush1.bf16.msra.mxu0 %v2177
        %2181 = vmatprep.subr.bf16.mxu0 0
        %2182 = vmatpush1.bf16.msra.mxu0 0
        %2183 = vmatprep.subr.bf16.mxu0 0
        %2184 = vmatpush1.bf16.msra.mxu0 0
        %2185 = vmatprep.subr.bf16.mxu0 0
        %2186 = vmatpush1.bf16.msra.mxu0 0
        %2187 = vmatprep.subr.bf16.mxu0 0
        %2188 = vmatpush1.bf16.msra.mxu0 0
        %2189 = vmatprep.subr.bf16.mxu0 0
        %2190 = vmatpush1.bf16.msra.mxu0 0
        %2191 = vmatprep.subr.bf16.mxu0 0
        %2192 = vmatpush1.bf16.msra.mxu0 0
        %2193 = vmatprep.subr.bf16.mxu0 0
        %2194 = vmatpush1.bf16.msra.mxu0 0
        %2195 = vmatprep.subr.bf16.mxu0 0
        %2196 = vmatpush1.bf16.msra.mxu0 0
        %2197 = vmatprep.subr.bf16.mxu0 0
        %2198 = vmatpush1.bf16.msra.mxu0 0
        %2199 = vmatprep.subr.bf16.mxu0 0
        %2200 = vmatpush1.bf16.msra.mxu0 0
        %2201 = vmatprep.subr.bf16.mxu0 0
        %2202 = vmatpush1.bf16.msra.mxu0 0
        %2203 = vmatprep.subr.bf16.mxu0 0
        %2204 = vmatpush1.bf16.msra.mxu0 0
        %2205 = vmatprep.subr.bf16.mxu0 0
        %2206 = vmatpush1.bf16.msra.mxu0 0
        %2207 = vmatprep.subr.bf16.mxu0 0
        %2208 = vmatpush1.bf16.msra.mxu0 0
        %2209 = vmatprep.subr.bf16.mxu0 0
        %2210 = vmatpush1.bf16.msra.mxu0 0
        %2211 = vmatprep.mubr.bf16.mxu0 0
        %2212 = vmatmul.mubr.bf16.gmra.mrb[0].mxu0 %v2174
        %v2213 = vpop.f32.mrb[0].mxu0
        %v2214 = vadd.f32 0.0, %v2213
        %v2215 = vpop.f32.mrb[0].mxu0
        %v2216 = vpop.f32.mrb[0].mxu0
        %v2217 = vpop.f32.mrb[0].mxu0
        %2218 = vdwg.mxu0
        %v2219 = vrcp.pop %v2168
        %v2220 = vmul.f32 %v2214, %v2219
        %v2221 = vpack.c.bf16 %v2220, %v2220
        %v2223 = vunpack.c.l.b16 %v2221
        %v2224 = vpack.c.b16 %v2223, %v2223
        %2225 = vrot.lane.b32.xlu0 %v2224, 8
        %v2226 = vpop.permute.xlu0 %2225
        %2228 = vst.msk [vmem:[#allocation2] sm:$0xf] %vm1265, %v2226
        %2229 = vrot.lane.b32.xlu0 %v1995, 112
        %v2230 = vpop.permute.xlu0 %2229
        %2231 = vrot.lane.b32.xlu0 %v1996, 112
        %v2232 = vpop.permute.xlu0 %2231
        %v2234 = vsel %vm1028, %v2230, 0
        %v2237 = vsel %vm1028, %v2232, 0
        %2239 = vmatprep.subr.bf16.mxu0 0
        %2240 = vmatpush1.bf16.xpose.msra.mxu0 %v2237
        %2241 = vmatprep.subr.bf16.mxu0 0
        %2242 = vmatpush1.bf16.xpose.msra.mxu0 0
        %2243 = vmatprep.subr.bf16.mxu0 0
        %2244 = vmatpush1.bf16.xpose.msra.mxu0 0
        %2245 = vmatprep.subr.bf16.mxu0 0
        %2246 = vmatpush1.bf16.xpose.msra.mxu0 0
        %2247 = vmatprep.subr.bf16.mxu0 0
        %2248 = vmatpush1.bf16.xpose.msra.mxu0 0
        %2249 = vmatprep.subr.bf16.mxu0 0
        %2250 = vmatpush1.bf16.xpose.msra.mxu0 0
        %2251 = vmatprep.subr.bf16.mxu0 0
        %2252 = vmatpush1.bf16.xpose.msra.mxu0 0
        %2253 = vmatprep.subr.bf16.mxu0 0
        %2254 = vmatpush1.bf16.xpose.msra.mxu0 0
        %2255 = vmatprep.subr.bf16.mxu0 0
        %2256 = vmatpush1.bf16.xpose.msra.mxu0 0
        %2257 = vmatprep.subr.bf16.mxu0 0
        %2258 = vmatpush1.bf16.xpose.msra.mxu0 0
        %2259 = vmatprep.subr.bf16.mxu0 0
        %2260 = vmatpush1.bf16.xpose.msra.mxu0 0
        %2261 = vmatprep.subr.bf16.mxu0 0
        %2262 = vmatpush1.bf16.xpose.msra.mxu0 0
        %2263 = vmatprep.subr.bf16.mxu0 0
        %2264 = vmatpush1.bf16.xpose.msra.mxu0 0
        %2265 = vmatprep.subr.bf16.mxu0 0
        %2266 = vmatpush1.bf16.xpose.msra.mxu0 0
        %2267 = vmatprep.subr.bf16.mxu0 0
        %2268 = vmatpush1.bf16.xpose.msra.mxu0 0
        %2269 = vmatprep.subr.bf16.mxu0 0
        %2270 = vmatpush1.bf16.xpose.msra.mxu0 0
        %2271 = vmatprep.mubr.bf16.mxu0 0
        %2272 = vmatmul.mubr.bf16.gmra.mrb[0].mxu0 %v2234
        %v2273 = vpop.f32.mrb[0].mxu0
        %v2274 = vadd.f32 0.0, %v2273
        %v2275 = vpop.f32.mrb[0].mxu0
        %v2276 = vpop.f32.mrb[0].mxu0
        %v2277 = vpop.f32.mrb[0].mxu0
        %2278 = vdwg.mxu0
        %v2279 = vmul.f32 %v2274, 0.35355338
        %v2280 = vadd.f32 %v2279, %v1079
        %v2281 = vsel %vm1028, %v2280, -inf
        %2282 = vmax.xlane.f32.xlu0 %v2281
        %v2283 = vpop.xlane.xlu0 %2282
        %v2284 = vsub.f32 %v2280, %v2283
        %v2285 = vmul.f32 %v2284, 1.442695
        %v2286 = vpow.pop %v2285
        %v2287 = vsel %vm1028, %v2286, 0.0
        %2288 = vadd.xlane.f32.xlu0 %v2287
        %v2289 = vpop.xlane.xlu0 %2288
        %v2290 = vpack.c.bf16 %v2286, %v2286
        %2291 = vrot.lane.b32.xlu0 %v1997, 112
        %v2292 = vpop.permute.xlu0 %2291
        %v2294 = vsel %vm1028, %v2290, 0
        %v2297 = vsel %vm1094, %v2292, 0
        %2299 = vmatprep.subr.bf16.mxu0 0
        %2300 = vmatpush1.bf16.msra.mxu0 %v2297
        %2301 = vmatprep.subr.bf16.mxu0 0
        %2302 = vmatpush1.bf16.msra.mxu0 0
        %2303 = vmatprep.subr.bf16.mxu0 0
        %2304 = vmatpush1.bf16.msra.mxu0 0
        %2305 = vmatprep.subr.bf16.mxu0 0
        %2306 = vmatpush1.bf16.msra.mxu0 0
        %2307 = vmatprep.subr.bf16.mxu0 0
        %2308 = vmatpush1.bf16.msra.mxu0 0
        %2309 = vmatprep.subr.bf16.mxu0 0
        %2310 = vmatpush1.bf16.msra.mxu0 0
        %2311 = vmatprep.subr.bf16.mxu0 0
        %2312 = vmatpush1.bf16.msra.mxu0 0
        %2313 = vmatprep.subr.bf16.mxu0 0
        %2314 = vmatpush1.bf16.msra.mxu0 0
        %2315 = vmatprep.subr.bf16.mxu0 0
        %2316 = vmatpush1.bf16.msra.mxu0 0
        %2317 = vmatprep.subr.bf16.mxu0 0
        %2318 = vmatpush1.bf16.msra.mxu0 0
        %2319 = vmatprep.subr.bf16.mxu0 0
        %2320 = vmatpush1.bf16.msra.mxu0 0
        %2321 = vmatprep.subr.bf16.mxu0 0
        %2322 = vmatpush1.bf16.msra.mxu0 0
        %2323 = vmatprep.subr.bf16.mxu0 0
        %2324 = vmatpush1.bf16.msra.mxu0 0
        %2325 = vmatprep.subr.bf16.mxu0 0
        %2326 = vmatpush1.bf16.msra.mxu0 0
        %2327 = vmatprep.subr.bf16.mxu0 0
        %2328 = vmatpush1.bf16.msra.mxu0 0
        %2329 = vmatprep.subr.bf16.mxu0 0
        %2330 = vmatpush1.bf16.msra.mxu0 0
        %2331 = vmatprep.mubr.bf16.mxu0 0
        %2332 = vmatmul.mubr.bf16.gmra.mrb[0].mxu0 %v2294
        %v2333 = vpop.f32.mrb[0].mxu0
        %v2334 = vadd.f32 0.0, %v2333
        %v2335 = vpop.f32.mrb[0].mxu0
        %v2336 = vpop.f32.mrb[0].mxu0
        %v2337 = vpop.f32.mrb[0].mxu0
        %2338 = vdwg.mxu0
        %v2339 = vrcp.pop %v2289
        %v2340 = vmul.f32 %v2334, %v2339
        %v2341 = vpack.c.bf16 %v2340, %v2340
        %v2343 = vunpack.c.l.b16 %v2341
        %v2344 = vpack.c.b16 %v2343, %v2343
        %2345 = vrot.lane.b32.xlu0 %v2344, 16
        %v2346 = vpop.permute.xlu0 %2345
        %2348 = vst.msk [vmem:[#allocation2] sm:$0xf] %vm1386, %v2346
        %2349 = vrot.lane.b32.xlu0 %v1995, 104
        %v2350 = vpop.permute.xlu0 %2349
        %2351 = vrot.lane.b32.xlu0 %v1996, 104
        %v2352 = vpop.permute.xlu0 %2351
        %v2354 = vsel %vm1028, %v2350, 0
        %v2357 = vsel %vm1028, %v2352, 0
        %2359 = vmatprep.subr.bf16.mxu0 0
        %2360 = vmatpush1.bf16.xpose.msra.mxu0 %v2357
        %2361 = vmatprep.subr.bf16.mxu0 0
        %2362 = vmatpush1.bf16.xpose.msra.mxu0 0
        %2363 = vmatprep.subr.bf16.mxu0 0
        %2364 = vmatpush1.bf16.xpose.msra.mxu0 0
        %2365 = vmatprep.subr.bf16.mxu0 0
        %2366 = vmatpush1.bf16.xpose.msra.mxu0 0
        %2367 = vmatprep.subr.bf16.mxu0 0
        %2368 = vmatpush1.bf16.xpose.msra.mxu0 0
        %2369 = vmatprep.subr.bf16.mxu0 0
        %2370 = vmatpush1.bf16.xpose.msra.mxu0 0
        %2371 = vmatprep.subr.bf16.mxu0 0
        %2372 = vmatpush1.bf16.xpose.msra.mxu0 0
        %2373 = vmatprep.subr.bf16.mxu0 0
        %2374 = vmatpush1.bf16.xpose.msra.mxu0 0
        %2375 = vmatprep.subr.bf16.mxu0 0
        %2376 = vmatpush1.bf16.xpose.msra.mxu0 0
        %2377 = vmatprep.subr.bf16.mxu0 0
        %2378 = vmatpush1.bf16.xpose.msra.mxu0 0
        %2379 = vmatprep.subr.bf16.mxu0 0
        %2380 = vmatpush1.bf16.xpose.msra.mxu0 0
        %2381 = vmatprep.subr.bf16.mxu0 0
        %2382 = vmatpush1.bf16.xpose.msra.mxu0 0
        %2383 = vmatprep.subr.bf16.mxu0 0
        %2384 = vmatpush1.bf16.xpose.msra.mxu0 0
        %2385 = vmatprep.subr.bf16.mxu0 0
        %2386 = vmatpush1.bf16.xpose.msra.mxu0 0
        %2387 = vmatprep.subr.bf16.mxu0 0
        %2388 = vmatpush1.bf16.xpose.msra.mxu0 0
        %2389 = vmatprep.subr.bf16.mxu0 0
        %2390 = vmatpush1.bf16.xpose.msra.mxu0 0
        %2391 = vmatprep.mubr.bf16.mxu0 0
        %2392 = vmatmul.mubr.bf16.gmra.mrb[0].mxu0 %v2354
        %v2393 = vpop.f32.mrb[0].mxu0
        %v2394 = vadd.f32 0.0, %v2393
        %v2395 = vpop.f32.mrb[0].mxu0
        %v2396 = vpop.f32.mrb[0].mxu0
        %v2397 = vpop.f32.mrb[0].mxu0
        %2398 = vdwg.mxu0
        %v2399 = vmul.f32 %v2394, 0.35355338
        %v2400 = vadd.f32 %v2399, %v1079
        %v2401 = vsel %vm1028, %v2400, -inf
        %2402 = vmax.xlane.f32.xlu0 %v2401
        %v2403 = vpop.xlane.xlu0 %2402
        %v2404 = vsub.f32 %v2400, %v2403
        %v2405 = vmul.f32 %v2404, 1.442695
        %v2406 = vpow.pop %v2405
        %v2407 = vsel %vm1028, %v2406, 0.0
        %2408 = vadd.xlane.f32.xlu0 %v2407
        %v2409 = vpop.xlane.xlu0 %2408
        %v2410 = vpack.c.bf16 %v2406, %v2406
        %2411 = vrot.lane.b32.xlu0 %v1997, 104
        %v2412 = vpop.permute.xlu0 %2411
        %v2414 = vsel %vm1028, %v2410, 0
        %v2417 = vsel %vm1094, %v2412, 0
        %2419 = vmatprep.subr.bf16.mxu0 0
        %2420 = vmatpush1.bf16.msra.mxu0 %v2417
        %2421 = vmatprep.subr.bf16.mxu0 0
        %2422 = vmatpush1.bf16.msra.mxu0 0
        %2423 = vmatprep.subr.bf16.mxu0 0
        %2424 = vmatpush1.bf16.msra.mxu0 0
        %2425 = vmatprep.subr.bf16.mxu0 0
        %2426 = vmatpush1.bf16.msra.mxu0 0
        %2427 = vmatprep.subr.bf16.mxu0 0
        %2428 = vmatpush1.bf16.msra.mxu0 0
        %2429 = vmatprep.subr.bf16.mxu0 0
        %2430 = vmatpush1.bf16.msra.mxu0 0
        %2431 = vmatprep.subr.bf16.mxu0 0
        %2432 = vmatpush1.bf16.msra.mxu0 0
        %2433 = vmatprep.subr.bf16.mxu0 0
        %2434 = vmatpush1.bf16.msra.mxu0 0
        %2435 = vmatprep.subr.bf16.mxu0 0
        %2436 = vmatpush1.bf16.msra.mxu0 0
        %2437 = vmatprep.subr.bf16.mxu0 0
        %2438 = vmatpush1.bf16.msra.mxu0 0
        %2439 = vmatprep.subr.bf16.mxu0 0
        %2440 = vmatpush1.bf16.msra.mxu0 0
        %2441 = vmatprep.subr.bf16.mxu0 0
        %2442 = vmatpush1.bf16.msra.mxu0 0
        %2443 = vmatprep.subr.bf16.mxu0 0
        %2444 = vmatpush1.bf16.msra.mxu0 0
        %2445 = vmatprep.subr.bf16.mxu0 0
        %2446 = vmatpush1.bf16.msra.mxu0 0
        %2447 = vmatprep.subr.bf16.mxu0 0
        %2448 = vmatpush1.bf16.msra.mxu0 0
        %2449 = vmatprep.subr.bf16.mxu0 0
        %2450 = vmatpush1.bf16.msra.mxu0 0
        %2451 = vmatprep.mubr.bf16.mxu0 0
        %2452 = vmatmul.mubr.bf16.gmra.mrb[0].mxu0 %v2414
        %v2453 = vpop.f32.mrb[0].mxu0
        %v2454 = vadd.f32 0.0, %v2453
        %v2455 = vpop.f32.mrb[0].mxu0
        %v2456 = vpop.f32.mrb[0].mxu0
        %v2457 = vpop.f32.mrb[0].mxu0
        %2458 = vdwg.mxu0
        %v2459 = vrcp.pop %v2409
        %v2460 = vmul.f32 %v2454, %v2459
        %v2461 = vpack.c.bf16 %v2460, %v2460
        %v2463 = vunpack.c.l.b16 %v2461
        %v2464 = vpack.c.b16 %v2463, %v2463
        %2465 = vrot.lane.b32.xlu0 %v2464, 24
        %v2466 = vpop.permute.xlu0 %2465
        %2468 = vst.msk [vmem:[#allocation2] sm:$0xf] %vm1507, %v2466
        %v2469 = vld [vmem:[#allocation2] sm:$0xf]
        %s2470 = scalar_lea.vmem [#allocation12], 16
        %v2471 = vld [vmem:[%s2470] sm:$0xf]
        %v2472 = vld [vmem:[%s2470 + $0x4] sm:$0xf]
        %v2473 = vld [vmem:[%s2470 + $0x8] sm:$0xf]
        %v2474 = vld [vmem:[%s2470 + $0xc] sm:$0xf]
        %s2475 = scalar_lea.vmem [#allocation14], 1
        %v2476 = vld [vmem:[%s2475] sm:$0x1]
        %v2478 = vlaneseq
        %v2479 = vshrl.u32 %v2478, 7
        %v2480 = vsub.s32 0, %v2479
        %v2481 = vrot.slane %v2476, %v2480
        %v2487 = vunpack.c.l.b16 %v2471
        %v2488 = vunpack.c.l.b16 %v2472
        %v2489 = vunpack.c.l.b16 %v2473
        %v2490 = vunpack.c.l.b16 %v2474
        %v2491 = vpack.c.b16 %v2488, %v2487
        %v2492 = vpack.c.b16 %v2490, %v2489
        %v2496 = vsel %vm803, %v2469, 0
        %2498 = vmatprep.subr.bf16.mxu0 0
        %2499 = vmatpush1.bf16.msra.mxu0 %v2491
        %2500 = vmatprep.subr.bf16.mxu0 0
        %2501 = vmatpush1.bf16.msra.mxu0 %v2492
        %2502 = vmatprep.subr.bf16.mxu0 0
        %2503 = vmatpush1.bf16.msra.mxu0 0
        %2504 = vmatprep.subr.bf16.mxu0 0
        %2505 = vmatpush1.bf16.msra.mxu0 0
        %2506 = vmatprep.subr.bf16.mxu0 0
        %2507 = vmatpush1.bf16.msra.mxu0 0
        %2508 = vmatprep.subr.bf16.mxu0 0
        %2509 = vmatpush1.bf16.msra.mxu0 0
        %2510 = vmatprep.subr.bf16.mxu0 0
        %2511 = vmatpush1.bf16.msra.mxu0 0
        %2512 = vmatprep.subr.bf16.mxu0 0
        %2513 = vmatpush1.bf16.msra.mxu0 0
        %2514 = vmatprep.subr.bf16.mxu0 0
        %2515 = vmatpush1.bf16.msra.mxu0 0
        %2516 = vmatprep.subr.bf16.mxu0 0
        %2517 = vmatpush1.bf16.msra.mxu0 0
        %2518 = vmatprep.subr.bf16.mxu0 0
        %2519 = vmatpush1.bf16.msra.mxu0 0
        %2520 = vmatprep.subr.bf16.mxu0 0
        %2521 = vmatpush1.bf16.msra.mxu0 0
        %2522 = vmatprep.subr.bf16.mxu0 0
        %2523 = vmatpush1.bf16.msra.mxu0 0
        %2524 = vmatprep.subr.bf16.mxu0 0
        %2525 = vmatpush1.bf16.msra.mxu0 0
        %2526 = vmatprep.subr.bf16.mxu0 0
        %2527 = vmatpush1.bf16.msra.mxu0 0
        %2528 = vmatprep.subr.bf16.mxu0 0
        %2529 = vmatpush1.bf16.msra.mxu0 0
        %2530 = vmatprep.mubr.bf16.mxu0 0
        %2531 = vmatmul.mubr.bf16.gmra.mrb[0].mxu0 %v2496
        %v2532 = vpop.f32.mrb[0].mxu0
        %v2533 = vadd.f32 %v2481, %v2532
        %v2534 = vpop.f32.mrb[0].mxu0
        %v2535 = vpop.f32.mrb[0].mxu0
        %v2536 = vpop.f32.mrb[0].mxu0
        %2537 = vdwg.mxu0
        %v2538 = vadd.f32 %v1795, %v2533
        %s2539 = scalar_lea.vmem %s12, 1
        %v2540 = vld [vmem:[%s2539] sm:$0x1]
        %s2541 = scalar_lea.vmem %s13, 1
        %v2542 = vld [vmem:[%s2541] sm:$0x1]
        %v2543 = vsel %vm803, %v2538, 0.0
        %2544 = vadd.xlane.f32.xlu0 %v2543
        %v2545 = vpop.xlane.xlu0 %2544
        %v2546 = vmul.f32 %v2545, %v807
        %v2547 = vsub.f32 %v2538, %v2546
        %v2548 = vmul.f32 %v2547, %v2547
        %v2549 = vsel %vm803, %v2548, 0.0
        %2550 = vadd.xlane.f32.xlu0 %v2549
        %v2551 = vpop.xlane.xlu0 %2550
        %v2552 = vmul.f32 %v2551, %v807
        %v2553 = vadd.f32 %v2552, 1e-12
        %v2554 = vrsqrt.pop %v2553
        %v2555 = vmul.f32 %v2547, %v2554
        %v2557 = vlaneseq
        %v2558 = vshrl.u32 %v2557, 7
        %v2559 = vsub.s32 0, %v2558
        %v2560 = vrot.slane %v2540, %v2559
        %v2562 = vmul.f32 %v2555, %v2560
        %v2564 = vlaneseq
        %v2565 = vshrl.u32 %v2564, 7
        %v2566 = vsub.s32 0, %v2565
        %v2567 = vrot.slane %v2542, %v2566
        %v2569 = vadd.f32 %v2562, %v2567
        %v2570 = vpack.c.bf16 %v2569, %v2569
        %s2571 = scalar_lea.vmem %s14, 16
        %v2572 = vld [vmem:[%s2571] sm:$0xf]
        %v2573 = vld [vmem:[%s2571 + $0x4] sm:$0xf]
        %v2574 = vld [vmem:[%s2571 + $0x8] sm:$0xf]
        %v2575 = vld [vmem:[%s2571 + $0xc] sm:$0xf]
        %s2576 = scalar_lea.vmem %s15, 1
        %v2577 = vld [vmem:[%s2576] sm:$0x1]
        %v2579 = vlaneseq
        %v2580 = vshrl.u32 %v2579, 7
        %v2581 = vsub.s32 0, %v2580
        %v2582 = vrot.slane %v2577, %v2581
        %v2588 = vunpack.c.l.b16 %v2572
        %v2589 = vunpack.c.l.b16 %v2573
        %v2590 = vunpack.c.l.b16 %v2574
        %v2591 = vunpack.c.l.b16 %v2575
        %v2592 = vpack.c.b16 %v2589, %v2588
        %v2593 = vpack.c.b16 %v2591, %v2590
        %v2597 = vsel %vm803, %v2570, 0
        %2599 = vmatprep.subr.bf16.mxu0 0
        %2600 = vmatpush1.bf16.msra.mxu0 %v2592
        %2601 = vmatprep.subr.bf16.mxu0 0
        %2602 = vmatpush1.bf16.msra.mxu0 %v2593
        %2603 = vmatprep.subr.bf16.mxu0 0
        %2604 = vmatpush1.bf16.msra.mxu0 0
        %2605 = vmatprep.subr.bf16.mxu0 0
        %2606 = vmatpush1.bf16.msra.mxu0 0
        %2607 = vmatprep.subr.bf16.mxu0 0
        %2608 = vmatpush1.bf16.msra.mxu0 0
        %2609 = vmatprep.subr.bf16.mxu0 0
        %2610 = vmatpush1.bf16.msra.mxu0 0
        %2611 = vmatprep.subr.bf16.mxu0 0
        %2612 = vmatpush1.bf16.msra.mxu0 0
        %2613 = vmatprep.subr.bf16.mxu0 0
        %2614 = vmatpush1.bf16.msra.mxu0 0
        %2615 = vmatprep.subr.bf16.mxu0 0
        %2616 = vmatpush1.bf16.msra.mxu0 0
        %2617 = vmatprep.subr.bf16.mxu0 0
        %2618 = vmatpush1.bf16.msra.mxu0 0
        %2619 = vmatprep.subr.bf16.mxu0 0
        %2620 = vmatpush1.bf16.msra.mxu0 0
        %2621 = vmatprep.subr.bf16.mxu0 0
        %2622 = vmatpush1.bf16.msra.mxu0 0
        %2623 = vmatprep.subr.bf16.mxu0 0
        %2624 = vmatpush1.bf16.msra.mxu0 0
        %2625 = vmatprep.subr.bf16.mxu0 0
        %2626 = vmatpush1.bf16.msra.mxu0 0
        %2627 = vmatprep.subr.bf16.mxu0 0
        %2628 = vmatpush1.bf16.msra.mxu0 0
        %2629 = vmatprep.subr.bf16.mxu0 0
        %2630 = vmatpush1.bf16.msra.mxu0 0
        %2631 = vmatprep.mubr.bf16.mxu0 0
        %2632 = vmatmul.mubr.bf16.gmra.mrb[0].mxu0 %v2597
        %v2633 = vpop.f32.mrb[0].mxu0
        %v2634 = vadd.f32 %v2582, %v2633
        %v2635 = vpop.f32.mrb[0].mxu0
        %v2636 = vpop.f32.mrb[0].mxu0
        %v2637 = vpop.f32.mrb[0].mxu0
        %2638 = vdwg.mxu0
        %v2639 = vmul.f32 %v2634, %v2634
        %v2640 = vmul.f32 %v2634, %v2639
        %v2641 = vmul.f32 %v2640, 0.044715
        %v2642 = vadd.f32 %v2634, %v2641
        %v2643 = vmul.f32 %v2642, 0.7978846
        %v2644 = vtanh.pop %v2643
        %v2645 = vadd.f32 %v2644, 1.0
        %v2646 = vmul.f32 %v2645, 0.5
        %v2647 = vmul.f32 %v2634, %v2646
        %v2648 = vpack.c.bf16 %v2647, %v2647
        %s2649 = scalar_lea.vmem %s16, 32
        %v2650 = vld [vmem:[%s2649] sm:$0xf]
        %v2651 = vld [vmem:[%s2649 + $0x4] sm:$0xf]
        %v2652 = vld [vmem:[%s2649 + $0x8] sm:$0xf]
        %v2653 = vld [vmem:[%s2649 + $0xc] sm:$0xf]
        %v2654 = vld [vmem:[%s2649 + $0x10] sm:$0xf]
        %v2655 = vld [vmem:[%s2649 + $0x14] sm:$0xf]
        %v2656 = vld [vmem:[%s2649 + $0x18] sm:$0xf]
        %v2657 = vld [vmem:[%s2649 + $0x1c] sm:$0xf]
        %s2658 = scalar_lea.vmem %s17, 1
        %v2659 = vld [vmem:[%s2658] sm:$0x1]
        %v2661 = vlaneseq
        %v2662 = vshrl.u32 %v2661, 7
        %v2663 = vsub.s32 0, %v2662
        %v2664 = vrot.slane %v2659, %v2663
        %v2674 = vunpack.c.l.b16 %v2650
        %v2675 = vunpack.c.l.b16 %v2651
        %v2676 = vunpack.c.l.b16 %v2652
        %v2677 = vunpack.c.l.b16 %v2653
        %v2678 = vunpack.c.l.b16 %v2654
        %v2679 = vunpack.c.l.b16 %v2655
        %v2680 = vunpack.c.l.b16 %v2656
        %v2681 = vunpack.c.l.b16 %v2657
        %v2682 = vpack.c.b16 %v2675, %v2674
        %v2683 = vpack.c.b16 %v2677, %v2676
        %v2684 = vpack.c.b16 %v2679, %v2678
        %v2685 = vpack.c.b16 %v2681, %v2680
        %v2691 = vsel %vm1722, %v2648, 0
        %2693 = vmatprep.subr.bf16.mxu0 0
        %2694 = vmatpush1.bf16.msra.mxu0 %v2682
        %2695 = vmatprep.subr.bf16.mxu0 0
        %2696 = vmatpush1.bf16.msra.mxu0 %v2683
        %2697 = vmatprep.subr.bf16.mxu0 0
        %2698 = vmatpush1.bf16.msra.mxu0 %v2684
        %2699 = vmatprep.subr.bf16.mxu0 0
        %2700 = vmatpush1.bf16.msra.mxu0 %v2685
        %2701 = vmatprep.subr.bf16.mxu0 0
        %2702 = vmatpush1.bf16.msra.mxu0 0
        %2703 = vmatprep.subr.bf16.mxu0 0
        %2704 = vmatpush1.bf16.msra.mxu0 0
        %2705 = vmatprep.subr.bf16.mxu0 0
        %2706 = vmatpush1.bf16.msra.mxu0 0
        %2707 = vmatprep.subr.bf16.mxu0 0
        %2708 = vmatpush1.bf16.msra.mxu0 0
        %2709 = vmatprep.subr.bf16.mxu0 0
        %2710 = vmatpush1.bf16.msra.mxu0 0
        %2711 = vmatprep.subr.bf16.mxu0 0
        %2712 = vmatpush1.bf16.msra.mxu0 0
        %2713 = vmatprep.subr.bf16.mxu0 0
        %2714 = vmatpush1.bf16.msra.mxu0 0
        %2715 = vmatprep.subr.bf16.mxu0 0
        %2716 = vmatpush1.bf16.msra.mxu0 0
        %2717 = vmatprep.subr.bf16.mxu0 0
        %2718 = vmatpush1.bf16.msra.mxu0 0
        %2719 = vmatprep.subr.bf16.mxu0 0
        %2720 = vmatpush1.bf16.msra.mxu0 0
        %2721 = vmatprep.subr.bf16.mxu0 0
        %2722 = vmatpush1.bf16.msra.mxu0 0
        %2723 = vmatprep.subr.bf16.mxu0 0
        %2724 = vmatpush1.bf16.msra.mxu0 0
        %2725 = vmatprep.mubr.bf16.mxu0 0
        %2726 = vmatmul.mubr.bf16.gmra.mrb[0].mxu0 %v2691
        %v2727 = vpop.f32.mrb[0].mxu0
        %v2728 = vadd.f32 %v2664, %v2727
        %v2729 = vpop.f32.mrb[0].mxu0
        %v2730 = vpop.f32.mrb[0].mxu0
        %v2731 = vpop.f32.mrb[0].mxu0
        %2732 = vdwg.mxu0
        %v2733 = vadd.f32 %v2569, %v2728
        %s2734 = scalar_lea.vmem %s18, 1
        %v2735 = vld [vmem:[%s2734] sm:$0x1]
        %s2736 = scalar_lea.vmem %s19, 1
        %v2737 = vld [vmem:[%s2736] sm:$0x1]
        %v2738 = vsel %vm803, %v2733, 0.0
        %2739 = vadd.xlane.f32.xlu0 %v2738
        %v2740 = vpop.xlane.xlu0 %2739
        %v2741 = vmul.f32 %v2740, %v807
        %v2742 = vsub.f32 %v2733, %v2741
        %v2743 = vmul.f32 %v2742, %v2742
        %v2744 = vsel %vm803, %v2743, 0.0
        %2745 = vadd.xlane.f32.xlu0 %v2744
        %v2746 = vpop.xlane.xlu0 %2745
        %v2747 = vmul.f32 %v2746, %v807
        %v2748 = vadd.f32 %v2747, 1e-12
        %v2749 = vrsqrt.pop %v2748
        %v2750 = vmul.f32 %v2742, %v2749
        %v2752 = vlaneseq
        %v2753 = vshrl.u32 %v2752, 7
        %v2754 = vsub.s32 0, %v2753
        %v2755 = vrot.slane %v2735, %v2754
        %v2757 = vmul.f32 %v2750, %v2755
        %v2759 = vlaneseq
        %v2760 = vshrl.u32 %v2759, 7
        %v2761 = vsub.s32 0, %v2760
        %v2762 = vrot.slane %v2737, %v2761
        %v2764 = vadd.f32 %v2757, %v2762
        %v2765 = vpack.c.bf16 %v2764, %v2764
        %v2766 = vld [vmem:[%s20] sm:$0xf]
        %v2767 = vld [vmem:[%s20 + $0x4] sm:$0xf]
        %v2768 = vld [vmem:[%s20 + $0x8] sm:$0xf]
        %v2769 = vld [vmem:[%s20 + $0xc] sm:$0xf]
        %v2770 = vld [vmem:[#allocation3] sm:$0x1]
        %v2775 = vunpack.c.l.b16 %v2766
        %v2776 = vunpack.c.l.b16 %v2767
        %v2777 = vunpack.c.l.b16 %v2768
        %v2778 = vunpack.c.l.b16 %v2769
        %v2779 = vpack.c.b16 %v2776, %v2775
        %v2780 = vpack.c.b16 %v2778, %v2777
        %v2784 = vsel %vm803, %v2765, 0
        %2786 = vmatprep.subr.bf16.mxu0 0
        %2787 = vmatpush1.bf16.msra.mxu0 %v2779
        %2788 = vmatprep.subr.bf16.mxu0 0
        %2789 = vmatpush1.bf16.msra.mxu0 %v2780
        %2790 = vmatprep.subr.bf16.mxu0 0
        %2791 = vmatpush1.bf16.msra.mxu0 0
        %2792 = vmatprep.subr.bf16.mxu0 0
        %2793 = vmatpush1.bf16.msra.mxu0 0
        %2794 = vmatprep.subr.bf16.mxu0 0
        %2795 = vmatpush1.bf16.msra.mxu0 0
        %2796 = vmatprep.subr.bf16.mxu0 0
        %2797 = vmatpush1.bf16.msra.mxu0 0
        %2798 = vmatprep.subr.bf16.mxu0 0
        %2799 = vmatpush1.bf16.msra.mxu0 0
        %2800 = vmatprep.subr.bf16.mxu0 0
        %2801 = vmatpush1.bf16.msra.mxu0 0
        %2802 = vmatprep.subr.bf16.mxu0 0
        %2803 = vmatpush1.bf16.msra.mxu0 0
        %2804 = vmatprep.subr.bf16.mxu0 0
        %2805 = vmatpush1.bf16.msra.mxu0 0
        %2806 = vmatprep.subr.bf16.mxu0 0
        %2807 = vmatpush1.bf16.msra.mxu0 0
        %2808 = vmatprep.subr.bf16.mxu0 0
        %2809 = vmatpush1.bf16.msra.mxu0 0
        %2810 = vmatprep.subr.bf16.mxu0 0
        %2811 = vmatpush1.bf16.msra.mxu0 0
        %2812 = vmatprep.subr.bf16.mxu0 0
        %2813 = vmatpush1.bf16.msra.mxu0 0
        %2814 = vmatprep.subr.bf16.mxu0 0
        %2815 = vmatpush1.bf16.msra.mxu0 0
        %2816 = vmatprep.subr.bf16.mxu0 0
        %2817 = vmatpush1.bf16.msra.mxu0 0
        %2818 = vmatprep.mubr.bf16.mxu0 0
        %2819 = vmatmul.mubr.bf16.gmra.mrb[0].mxu0 %v2784
        %v2820 = vpop.f32.mrb[0].mxu0
        %v2821 = vadd.f32 %v2770, %v2820
        %v2822 = vpop.f32.mrb[0].mxu0
        %v2823 = vpop.f32.mrb[0].mxu0
        %v2824 = vpop.f32.mrb[0].mxu0
        %2825 = vdwg.mxu0
        %vm2826 = vcmask 0
        %2827 = vst.msk [vmem:[%s795] sm:$0x1] %vm2826, %v2821
        %p2828 = scmp.lt.s32.totalorder %s41, 1
        %s2829 = scalar_select %p2828, %s41, 1
        %s2830 = scalar_lea.vmem %s22, %s2829
        // Predicated region
        $region137: #{tpu_custom_call.1} parent=107 // pred_check
          %p2831 = pneg %p531
        $region138: #{tpu_custom_call.1} parent=107 // pred_check_branch
          %2833 = sbr.rel (%p2831) target = $region140
        $region139: #{tpu_custom_call.1} parent=107 // pred_region
          _
        $region140: #{tpu_custom_call.1} parent=107 // pred_fallthru
          _
      $region108: #{tpu_custom_call.1} parent=5 // pred_fallthru
        _
      %p2834 = scmp.le.s32.totalorder 2, %s36
      // Predicated region
      $region141: #{tpu_custom_call.1} parent=5 // pred_check
        %p2835 = pneg %p2834
      $region142: #{tpu_custom_call.1} parent=5 // pred_check_branch
        %2837 = sbr.rel (%p2835) target = $region144
      $region143: #{tpu_custom_call.1} parent=5 // pred_region
        %s2838 = ssub.s32 %s36, 2
        // Predicated region
        $region145: #{tpu_custom_call.1} parent=143 // pred_check
          %p2839 = pneg %p537
        $region146: #{tpu_custom_call.1} parent=143 // pred_check_branch
          %2841 = sbr.rel (%p2839) target = $region148
        $region147: #{tpu_custom_call.1} parent=143 // pred_region
          %p2842 = scmp.lt.s32.totalorder %s42, 1
          %s2843 = scalar_select %p2842, %s42, 1
          %s2844 = scalar_lea.vmem %s22, %s2843
        $region148: #{tpu_custom_call.1} parent=143 // pred_fallthru
          _
      $region144: #{tpu_custom_call.1} parent=5 // pred_fallthru
        _
    $region6: #{tpu_custom_call.1} parent=1 // loop_footer
      %s40 = sadd.s32 1, %s36
    $region7: #{tpu_custom_call.1} parent=1 // loop_footer_branch
      %35 = sbr.rel target = $region3
    $region8: #{tpu_custom_call.1} parent=1 // loop_exit
      _
    %2845 = vsyncpa [#allocation5], 1
    %s2846 = scalar_lea.sflag [#allocation5], 1
    %2847 = vsyncpa %s2846, 1
    %2848 = vsyncpa [#allocation7], 1
    %2849 = vsyncpa [#allocation10], 1
    %2850 = vsyncpa [#allocation13], 1

</llo_original>
